<compile_context>
chip_gen: v5e
topology: v5e:2x2
jax: 0.10.0
libtpu: 0.0.40
codegen_flags: <defaults>
</compile_context>

<pallas_src>
import functools

import numpy as np
import jax
import jax.numpy as jnp
from jax.experimental import pallas as pl
from jax.experimental.pallas import tpu as pltpu


# --------------------------------------------------------------------------- helpers

def _round_up(x, m):
    return ((x + m - 1) // m) * m


_VMEM_CAP = None


def _vmem_capacity():
    """Physical VMEM bytes per core (fallback: 64 MiB — the v7x / safe assumption)."""
    global _VMEM_CAP
    if _VMEM_CAP is None:
        cap = 64 * 1024 * 1024
        try:
            info = pltpu.get_tpu_info()
            for name in ("vmem_capacity_bytes", "vmem_bytes", "vmem_size_bytes"):
                v = getattr(info, name, None)
                if v:
                    cap = int(v)
                    break
        except Exception:
            pass
        _VMEM_CAP = cap
    return _VMEM_CAP


def _erf(x):
    # Abramowitz & Stegun 7.1.26 (|err| < 1.5e-7).  approx reciprocal goes to the EUP;
    # its ~1e-3 relative error is far below the bf16 activation noise floor.
    a1, a2, a3, a4, a5 = 0.254829592, -0.284496736, 1.421413741, -1.453152027, 1.061405429
    p = 0.3275911
    s = jnp.where(x >= 0.0, 1.0, -1.0)
    ax = jnp.abs(x)
    t = pl.reciprocal(1.0 + p * ax, approx=True)
    poly = ((((a5 * t + a4) * t + a3) * t + a2) * t + a1) * t
    return s * (1.0 - poly * jnp.exp(-ax * ax))


def _gelu_exact(x):
    # nn.GELU() default (approximate='none'): 0.5 * x * (1 + erf(x / sqrt(2)))
    return 0.5 * x * (1.0 + _erf(x * 0.7071067811865476))


# --------------------------------------------------------------------------- fused matmul kernel
# y = [LN_in](x) @ W + b  -> [GELU] -> [+ residual] -> [LN_out]

def _fused_matmul_kernel(x_ref, w_ref, b_ref, *rest,
                         has_ln_in, has_res, has_ln_out, activation, eps):
    if has_ln_in:
        xb_ref = rest[-1]            # (tm, K) bf16 scratch (normalized + cast LHS)
        rest = rest[:-1]
    o_ref = rest[-1]
    extras = rest[:-1]
    idx = 0
    if has_ln_in:
        g_in_ref, b_in_ref = extras[idx], extras[idx + 1]
        idx += 2
    if has_res:
        res_ref = extras[idx]
        idx += 1
    if has_ln_out:
        g_out_ref, b_out_ref = extras[idx], extras[idx + 1]
        idx += 2

    if has_ln_in:
        # LN prologue + bf16 cast computed ONCE per M-tile (j == 0) and reused for all
        # N-tiles; the j axis is "arbitrary" so the scratch carries across it.
        @pl.when(pl.program_id(1) == 0)
        def _():
            xf = x_ref[...].astype(jnp.float32)
            mu = jnp.mean(xf, axis=-1, keepdims=True)
            var = jnp.mean((xf - mu) * (xf - mu), axis=-1, keepdims=True)
            xn = (xf - mu) * jax.lax.rsqrt(var + eps)
            xn = xn * g_in_ref[...] + b_in_ref[...]
            xb_ref[...] = xn.astype(jnp.bfloat16)
        lhs = xb_ref[...]
    else:
        lhs = x_ref[...].astype(jnp.bfloat16)

    # bf16 operands feed the MXU at full rate (v6e/v7x); accumulate in f32.
    acc = jnp.dot(lhs, w_ref[...].astype(jnp.bfloat16),
                  preferred_element_type=jnp.float32)
    acc = acc + b_ref[...].astype(jnp.float32)
    if activation == "gelu":
        acc = _gelu_exact(acc)
    if has_res:
        acc = acc + res_ref[...].astype(jnp.float32)
    if has_ln_out:
        mu = jnp.mean(acc, axis=-1, keepdims=True)
        var = jnp.mean((acc - mu) * (acc - mu), axis=-1, keepdims=True)
        acc = (acc - mu) * jax.lax.rsqrt(var + eps)
        acc = acc * g_out_ref[...].astype(jnp.float32) + b_out_ref[...].astype(jnp.float32)
    o_ref[...] = acc.astype(o_ref.dtype)


def fused_linear(x, w, b, *, ln_in=None, residual=None, ln_out=None,
                 activation="none", eps=1e-5, out_dtype=jnp.bfloat16):
    M, K = x.shape
    Kw, N = w.shape
    assert K == Kw

    # N tiling (the LN epilogue needs the whole output row per block).
    if ln_out is not None or (N % 128 != 0):
        tn = N
    elif N % 256 == 0:
        tn = 256
    else:
        tn = 128
    nj = N // tn

    # M tiling: the largest tile that fits the generation's VMEM budget.
    cap = _vmem_capacity()
    budget = int(min(cap // 2, 100 * 1024 * 1024))

    def _est(tm_):
        by = 2 * tm_ * K * x.dtype.itemsize                    # LHS (double-buffered)
        by += 2 * K * tn * 2                                    # weights (bf16)
        by += 2 * tm_ * tn * jnp.dtype(out_dtype).itemsize      # output
        if residual is not None:
            by += 2 * tm_ * tn * residual.dtype.itemsize
        if ln_in is not None:
            by += tm_ * K * 2                                   # hoisted-LHS scratch
        by += 4 * tm_ * K + 4 * tm_ * tn                        # f32 working set
        return by

    tm = 128
    for cand in (512, 256, 128):
        if _est(cand) <= int(0.6 * budget):
            tm = cand
            break
    tm = min(tm, _round_up(M, 8))
    ni = pl.cdiv(M, tm)   # ragged last tile: garbage rows stay row-contained, writes masked
    # TODO(synk): pl.Buffered(1) on the weight spec when nj == 1 would save one weight
    # buffer on v7x; omitted to keep maximum runtime compatibility.

    inputs = [x, w, b.reshape(1, N)]
    in_specs = [
        pl.BlockSpec((tm, K), lambda i, j: (i, 0)),
        pl.BlockSpec((K, tn), lambda i, j: (0, j)),
        pl.BlockSpec((1, tn), lambda i, j: (0, j)),
    ]
    if ln_in is not None:
        g, bb = ln_in
        inputs += [g.reshape(1, K), bb.reshape(1, K)]
        in_specs += [pl.BlockSpec((1, K), lambda i, j: (0, 0))] * 2
    if residual is not None:
        inputs.append(residual)
        in_specs.append(pl.BlockSpec((tm, tn), lambda i, j: (i, j)))
    if ln_out is not None:
        g, bb = ln_out
        inputs += [g.reshape(1, N), bb.reshape(1, N)]
        in_specs += [pl.BlockSpec((1, tn), lambda i, j: (0, j))] * 2

    if ln_in is not None:
        dims = ("parallel", "arbitrary")        # scratch must carry across j
        scratch = [pltpu.VMEM((tm, K), jnp.bfloat16)]
    else:
        dims = ("parallel", "parallel")
        scratch = []

    return pl.pallas_call(
        functools.partial(_fused_matmul_kernel,
                          has_ln_in=ln_in is not None,
                          has_res=residual is not None,
                          has_ln_out=ln_out is not None,
                          activation=activation, eps=eps),
        out_shape=jax.ShapeDtypeStruct((M, N), out_dtype),
        grid=(ni, nj),
        in_specs=in_specs,
        out_specs=pl.BlockSpec((tm, tn), lambda i, j: (i, j)),
        scratch_shapes=scratch,
        compiler_params=pltpu.CompilerParams(
            dimension_semantics=dims,
            vmem_limit_bytes=budget),
    )(*inputs)


# --------------------------------------------------------------------------- fused NAT attention
# One grid step = one batch image.  The kernel reads the (H, W, 3C) bf16 qkv plane,
# builds the k*k clamped-window shifted K/V views at FULL channel width in VMEM
# (lane dense), reduces scores per head and broadcasts the softmax weights back to
# channels on the MXU via block-diagonal selectors, and writes the (H, W, C) output
# once (lane-dense, unmasked store).

def _nat_attn_kernel(qkv_ref, bias_ref, o_ref, *, num_heads, head_dim, ksize, scale):
    _, H, W, _ = qkv_ref.shape
    k = ksize
    nh = (k - 1) // 2
    C = num_heads * head_dim
    S = H * W

    # Block-diagonal 0/1 selectors: (C, heads) for the per-head channel reduction and
    # (heads, C) for the head->channel broadcast.  MXU is otherwise idle here.
    cidx = jax.lax.broadcasted_iota(jnp.int32, (C, num_heads), 0)
    hidx = jax.lax.broadcasted_iota(jnp.int32, (C, num_heads), 1)
    sel_cn = ((cidx >= hidx * head_dim) & (cidx < (hidx + 1) * head_dim)).astype(jnp.float32)
    cidx2 = jax.lax.broadcasted_iota(jnp.int32, (num_heads, C), 1)
    hidx2 = jax.lax.broadcasted_iota(jnp.int32, (num_heads, C), 0)
    sel_nc = ((cidx2 >= hidx2 * head_dim) & (cidx2 < (hidx2 + 1) * head_dim)).astype(jnp.float32)

    qkv = qkv_ref[0]                                         # (H, W, 3C) bf16
    q = qkv[:, :, :C].astype(jnp.float32) * scale            # full-C planes (f32: v5e-safe)
    kp = qkv[:, :, C:2 * C].astype(jnp.float32)
    vp = qkv[:, :, 2 * C:].astype(jnp.float32)

    # NAT clamped-window shifts: rows map to clip(arange(H) - nh, 0, H - k) + d.
    def shift_rows(x, d):
        if nh == 0:
            return x
        top = jnp.broadcast_to(x[d:d + 1], (nh, W, C))
        mid = x[d:H - k + d + 1]
        bot = jnp.broadcast_to(x[H - k + d:H - k + d + 1], (nh, W, C))
        return jnp.concatenate([top, mid, bot], axis=0)

    def shift_cols(x, d):
        if nh == 0:
            return x
        left = jnp.broadcast_to(x[:, d:d + 1], (H, nh, C))
        mid = x[:, d:W - k + d + 1]
        right = jnp.broadcast_to(x[:, W - k + d:W - k + d + 1], (H, nh, C))
        return jnp.concatenate([left, mid, right], axis=1)

    q2 = q.reshape(S, C)

    # ---- pass 1: per-offset scores for ALL heads at once -----------------------
    ps = []
    for di in range(k):
        k_row = shift_rows(kp, di)                  # one row-shift per di (hoisted)
        for dj in range(k):
            k_sh = shift_cols(k_row, dj).reshape(S, C)
            s = jnp.dot(q2 * k_sh, sel_cn,          # (S, heads): reduce on MXU
                        preferred_element_type=jnp.float32)
            ps.append(s + bias_ref[di * k + dj])

    m = ps[0]
    for s in ps[1:]:
        m = jnp.maximum(m, s)
    l = jnp.zeros_like(m)
    for o in range(k * k):
        p = jnp.exp(ps[o] - m)
        ps[o] = p
        l = l + p
    inv_l = 1.0 / l            # exact reciprocal: it scales the output directly

    # ---- pass 2: weighted sum of shifted V planes, full-C accumulator -----------
    acc = jnp.zeros((S, C), jnp.float32)
    for di in range(k):
        v_row = shift_rows(vp, di)
        for dj in range(k):
            w_full = jnp.dot(ps[di * k + dj] * inv_l, sel_nc,   # (S, C) broadcast on MXU
                             preferred_element_type=jnp.float32)
            acc = acc + w_full * shift_cols(v_row, dj).reshape(S, C)

    o_ref[0] = acc.reshape(H, W, C).astype(o_ref.dtype)


def nat_attention(qkv_bhwc, bias, num_heads, head_dim, kernel_size):
    B, H, W, threeC = qkv_bhwc.shape
    C = num_heads * head_dim
    assert threeC == 3 * C
    assert H >= kernel_size and W >= kernel_size
    kk = kernel_size * kernel_size
    S = H * W
    scale = head_dim ** -0.5
    budget = int(min(_vmem_capacity() // 2, 100 * 1024 * 1024))
    # TODO(synk): when B == 1 on v7x (2 TensorCores) add an H-strip "parallel" grid axis
    # so both cores are busy; with B >= 2 the batch axis already provides parallel steps.
    return pl.pallas_call(
        functools.partial(_nat_attn_kernel, num_heads=num_heads, head_dim=head_dim,
                          ksize=kernel_size, scale=scale),
        out_shape=jax.ShapeDtypeStruct((B, H, W, C), qkv_bhwc.dtype),
        grid=(B,),
        in_specs=[
            pl.BlockSpec((1, H, W, threeC), lambda b: (b, 0, 0, 0)),
            pl.BlockSpec((kk, S, num_heads), lambda b: (0, 0, 0)),   # resident; no B bcast
        ],
        out_specs=pl.BlockSpec((1, H, W, C), lambda b: (b, 0, 0, 0)),
        compiler_params=pltpu.CompilerParams(
            dimension_semantics=("parallel",),
            vmem_limit_bytes=budget),
    )(qkv_bhwc, bias)


def _build_attn_bias(rpb, H, W, ksize):
    # Precomputed ONCE at parameter-init time (fully static given H, W) in the exact
    # layout the attention kernel consumes: (kk, H*W, heads).
    k = ksize
    nh = (k - 1) // 2
    heads = rpb.shape[0]
    idx_h = np.clip(np.arange(H) - nh, 0, H - k)[:, None] + np.arange(k)   # (H, k)
    idx_w = np.clip(np.arange(W) - nh, 0, W - k)[:, None] + np.arange(k)   # (W, k)
    bi = idx_h - np.arange(H)[:, None] + (k - 1)                           # (H, k)
    bj = idx_w - np.arange(W)[:, None] + (k - 1)                           # (W, k)
    t = rpb[:, bi, :]                      # (heads, H, k, 2k-1)
    t = t[:, :, :, bj]                     # (heads, H, k_di, W, k_dj)
    bias = jnp.transpose(t, (2, 4, 1, 3, 0))     # (k_di, k_dj, H, W, heads)
    return bias.reshape(k * k, H * W, heads).astype(jnp.float32)


# --------------------------------------------------------------------------- NAT forward

def nat_layer_forward(x, p, num_heads, kernel_size):
    B, H, W, C = x.shape
    hd = C // num_heads
    N = B * H * W
    xf = x.reshape(N, C)

    # norm1 fused into the qkv projection; bf16 activation slab out.
    qkv = fused_linear(xf, p["qkv_w"], p["qkv_b"],
                       ln_in=(p["norm1_g"], p["norm1_b"]))           # (N, 3C) bf16
    qkv = qkv.reshape(B, H, W, 3 * C)                                # free reshape

    attn = nat_attention(qkv, p["attn_bias"], num_heads, hd, kernel_size)   # (B,H,W,C) bf16

    # proj with fused residual (drop_path = identity at inference)
    x1 = fused_linear(attn.reshape(N, C), p["proj_w"], p["proj_b"], residual=xf)

    # MLP: norm2 fused into fc1 (+GELU); residual fused into fc2
    h2 = fused_linear(x1, p["fc1_w"], p["fc1_b"],
                      ln_in=(p["norm2_g"], p["norm2_b"]), activation="gelu")
    x2 = fused_linear(h2, p["fc2_w"], p["fc2_b"], residual=x1)
    return x2.reshape(B, H, W, C)


def conv_downsampler_forward(x, p):
    # Conv2d(dim, 2*dim, k=3, s=2, p=1, bias=False) + LayerNorm(2*dim), channels-last.
    # TODO(synk): fold the 3x3 stride-2 window into the contraction with manual DMA —
    # the strided halo window is not expressible with BlockSpec alone; im2col stays as
    # XLA glue but now in bf16 (half the HBM traffic of the previous f32 patches).
    B, H, W, C = x.shape
    Ho, Wo = (H + 1) // 2, (W + 1) // 2
    xp = jnp.pad(x, ((0, 0), (1, 1), (1, 1), (0, 0)))
    cols = [xp[:, kh:kh + 2 * Ho - 1:2, kw:kw + 2 * Wo - 1:2, :]
            for kh in range(3) for kw in range(3)]
    patches = jnp.stack(cols, axis=3).reshape(B * Ho * Wo, 9 * C)
    y = fused_linear(patches, p["conv_wm"], jnp.zeros((2 * C,), jnp.float32),
                     ln_out=(p["norm_g"], p["norm_b"]), out_dtype=jnp.float32)
    return y.reshape(B, Ho, Wo, 2 * C)


def nat_block_forward(x, params, num_heads, kernel_size):
    for lp in params["layers"]:
        x = nat_layer_forward(x, lp, num_heads, kernel_size)
    if "downsample" in params:
        x = conv_downsampler_forward(x, params["downsample"])
    return x


# --------------------------------------------------------------------------- parameter init

def init_nat_block_params(key, dim, depth, num_heads, kernel_size, H, W,
                          mlp_ratio=4.0, downsample=True):
    hidden = int(dim * mlp_ratio)
    wdt = jnp.bfloat16    # MXU operand dtype; accumulation stays f32 in-kernel
    params = {"layers": []}
    for i in range(depth):
        ks = jax.random.split(jax.random.fold_in(key, i), 6)
        rpb = 0.02 * jax.random.normal(
            ks[2], (num_heads, 2 * kernel_size - 1, 2 * kernel_size - 1), jnp.float32)
        params["layers"].append({
            "norm1_g": jnp.ones((dim,), jnp.float32),
            "norm1_b": jnp.zeros((dim,), jnp.float32),
            "qkv_w": (0.02 * jax.random.normal(ks[0], (dim, 3 * dim), jnp.float32)).astype(wdt),
            "qkv_b": 0.02 * jax.random.normal(ks[1], (3 * dim,), jnp.float32),
            "attn_bias": _build_attn_bias(rpb, H, W, kernel_size),   # (kk, H*W, heads)
            "proj_w": (0.02 * jax.random.normal(ks[3], (dim, dim), jnp.float32)).astype(wdt),
            "proj_b": jnp.zeros((dim,), jnp.float32),
            "norm2_g": jnp.ones((dim,), jnp.float32),
            "norm2_b": jnp.zeros((dim,), jnp.float32),
            "fc1_w": (0.02 * jax.random.normal(ks[4], (dim, hidden), jnp.float32)).astype(wdt),
            "fc1_b": jnp.zeros((hidden,), jnp.float32),
            "fc2_w": (0.02 * jax.random.normal(ks[5], (hidden, dim), jnp.float32)).astype(wdt),
            "fc2_b": jnp.zeros((dim,), jnp.float32),
        })
    if downsample:
        kd = jax.random.fold_in(key, 10_000)
        conv_w = 0.05 * jax.random.normal(kd, (2 * dim, dim, 3, 3), jnp.float32)
        conv_wm = jnp.transpose(conv_w, (2, 3, 1, 0)).reshape(9 * dim, 2 * dim).astype(wdt)
        params["downsample"] = {
            "conv_wm": conv_wm,
            "norm_g": jnp.ones((2 * dim,), jnp.float32),
            "norm_b": jnp.zeros((2 * dim,), jnp.float32),
        }
    return params


# --------------------------------------------------------------------------- main

if __name__ == "__main__":
    key = jax.random.PRNGKey(0)
    B, H, W, dim = 2, 8, 8, 32
    depth, num_heads, kernel_size = 2, 2, 3

    pkey, xkey = jax.random.split(key)
    params = init_nat_block_params(pkey, dim, depth, num_heads, kernel_size, H, W)
    x = jax.random.normal(xkey, (B, H, W, dim), jnp.float32)   # channels-last input

    fwd = jax.jit(lambda xx: nat_block_forward(xx, params, num_heads, kernel_size))
    y = fwd(x)
    jax.block_until_ready(y)

    assert y.shape == (B, (H + 1) // 2, (W + 1) // 2, 2 * dim), y.shape
    assert bool(jnp.all(jnp.isfinite(y.astype(jnp.float32))))
    print("KERNEL_OK")
</pallas_src>

<mosaic_0001>
module attributes {stable_mosaic.version = 11 : i64} {
  func.func @_fused_matmul_kernel(%arg0: i32, %arg1: i32, %arg2: memref<128x32xbf16, #tpu.memory_space<vmem>>, %arg3: memref<32x32xbf16, #tpu.memory_space<vmem>>, %arg4: memref<1x32xf32, #tpu.memory_space<vmem>>, %arg5: memref<128x32xf32, #tpu.memory_space<vmem>>, %arg6: memref<128x32xbf16, #tpu.memory_space<vmem>>) attributes {dimension_semantics = [#tpu.dimension_semantics<parallel>, #tpu.dimension_semantics<parallel>], iteration_bounds = array<i64: 1, 1>, scalar_prefetch = 0 : i64, scratch_operands = 0 : i64, tpu.core_type = #tpu.core_type<tc>, window_params = [{transform_indices = @transform_0, window_bounds = array<i64: 128, 32>}, {transform_indices = @transform_1, window_bounds = array<i64: 32, 32>}, {transform_indices = @transform_2, window_bounds = array<i64: 1, 32>}, {transform_indices = @transform_3, window_bounds = array<i64: 128, 32>}, {transform_indices = @transform_4, window_bounds = array<i64: 128, 32>}]} {
    %c0 = arith.constant 0 : index
    %c0_0 = arith.constant 0 : index
    %0 = vector.load %arg2[%c0, %c0_0] : memref<128x32xbf16, #tpu.memory_space<vmem>>, vector<128x32xbf16>
    %c0_1 = arith.constant 0 : index
    %c0_2 = arith.constant 0 : index
    %1 = vector.load %arg3[%c0_1, %c0_2] : memref<32x32xbf16, #tpu.memory_space<vmem>>, vector<32x32xbf16>
    %cst = arith.constant dense<0.000000e+00> : vector<128x32xf32>
    %2 = tpu.matmul %0, %1, %cst {dimension_numbers = #tpu.dot_dimension_numbers<[1], [0], [0], [1], [0, 0, 1, 1], [], []>} : vector<128x32xbf16>, vector<32x32xbf16>, vector<128x32xf32> -> vector<128x32xf32>
    %c0_3 = arith.constant 0 : index
    %c0_4 = arith.constant 0 : index
    %3 = vector.load %arg4[%c0_3, %c0_4] : memref<1x32xf32, #tpu.memory_space<vmem>>, vector<1x32xf32>
    %4 = vector.broadcast %3 : vector<1x32xf32> to vector<128x32xf32>
    %5 = arith.addf %2, %4 : vector<128x32xf32>
    %c0_5 = arith.constant 0 : index
    %c0_6 = arith.constant 0 : index
    %6 = vector.load %arg5[%c0_5, %c0_6] : memref<128x32xf32, #tpu.memory_space<vmem>>, vector<128x32xf32>
    %7 = arith.addf %5, %6 : vector<128x32xf32>
    %8 = arith.truncf %7 : vector<128x32xf32> to vector<128x32xbf16>
    %c0_7 = arith.constant 0 : index
    %c0_8 = arith.constant 0 : index
    %9 = vector.load %arg6[%c0_7, %c0_8] : memref<128x32xbf16, #tpu.memory_space<vmem>>, vector<128x32xbf16>
    tpu.vector_store %arg6[%c0_7, %c0_8], %8 {strides = array<i32>} : memref<128x32xbf16, #tpu.memory_space<vmem>>, vector<128x32xbf16>,
    return
  }
  func.func @transform_0(%arg0: i32, %arg1: i32) -> (i32, i32) {
    %c0_i32 = arith.constant 0 : i32
    %c0_i32_0 = arith.constant 0 : i32
    return %arg0, %c0_i32 : i32, i32
  }
  func.func @transform_1(%arg0: i32, %arg1: i32) -> (i32, i32) {
    %c0_i32 = arith.constant 0 : i32
    %c0_i32_0 = arith.constant 0 : i32
    return %c0_i32, %arg1 : i32, i32
  }
  func.func @transform_2(%arg0: i32, %arg1: i32) -> (i32, i32) {
    %c0_i32 = arith.constant 0 : i32
    %c0_i32_0 = arith.constant 0 : i32
    return %c0_i32, %arg1 : i32, i32
  }
  func.func @transform_3(%arg0: i32, %arg1: i32) -> (i32, i32) {
    %c0_i32 = arith.constant 0 : i32
    return %arg0, %arg1 : i32, i32
  }
  func.func @transform_4(%arg0: i32, %arg1: i32) -> (i32, i32) {
    %c0_i32 = arith.constant 0 : i32
    return %arg0, %arg1 : i32, i32
  }
}

module attributes {stable_mosaic.version = 11 : i64} {
  func.func @_fused_matmul_kernel(%arg0: i32, %arg1: i32, %arg2: memref<128x32xf32, #tpu.memory_space<vmem>>, %arg3: memref<32x96xbf16, #tpu.memory_space<vmem>>, %arg4: memref<1x96xf32, #tpu.memory_space<vmem>>, %arg5: memref<1x32xf32, #tpu.memory_space<vmem>>, %arg6: memref<1x32xf32, #tpu.memory_space<vmem>>, %arg7: memref<128x96xbf16, #tpu.memory_space<vmem>>, %arg8: memref<128x32xbf16, #tpu.memory_space<vmem>>) attributes {dimension_semantics = [#tpu.dimension_semantics<parallel>, #tpu.dimension_semantics<arbitrary>], iteration_bounds = array<i64: 1, 1>, scalar_prefetch = 0 : i64, scratch_operands = 1 : i64, tpu.core_type = #tpu.core_type<tc>, window_params = [{transform_indices = @transform_0, window_bounds = array<i64: 128, 32>}, {transform_indices = @transform_1, window_bounds = array<i64: 32, 96>}, {transform_indices = @transform_2, window_bounds = array<i64: 1, 96>}, {pipeline_mode = #tpu.pipeline_mode<synchronous>, transform_indices = @transform_3, window_bounds = array<i64: 1, 32>}, {pipeline_mode = #tpu.pipeline_mode<synchronous>, transform_indices = @transform_4, window_bounds = array<i64: 1, 32>}, {transform_indices = @transform_5, window_bounds = array<i64: 128, 96>}]} {
    %c0_i32 = arith.constant 0 : i32
    %0 = arith.cmpi eq, %arg1, %c0_i32 : i32
    %1 = arith.extui %0 : i1 to i32
    %c0_i32_0 = arith.constant 0 : i32
    %2 = arith.cmpi ne, %1, %c0_i32_0 : i32
    scf.if %2 {
      %c0_8 = arith.constant 0 : index
      %c0_9 = arith.constant 0 : index
      %11 = vector.load %arg2[%c0_8, %c0_9] : memref<128x32xf32, #tpu.memory_space<vmem>>, vector<128x32xf32>
      %cst_10 = arith.constant dense<0.000000e+00> : vector<128xf32>
      %12 = vector.multi_reduction <add>, %11, %cst_10 [1] : vector<128x32xf32> to vector<128xf32>
      %13 = vector.shape_cast %12 : vector<128xf32> to vector<128x1xf32>
      %cst_11 = arith.constant 3.200000e+01 : f32
      %14 = vector.broadcast %cst_11 : f32 to vector<128x1xf32>
      %15 = arith.divf %13, %14 : vector<128x1xf32>
      %16 = vector.broadcast %15 : vector<128x1xf32> to vector<128x32xf32>
      %17 = arith.subf %11, %16 : vector<128x32xf32>
      %18 = vector.broadcast %15 : vector<128x1xf32> to vector<128x32xf32>
      %19 = arith.subf %11, %18 : vector<128x32xf32>
      %20 = arith.mulf %17, %19 : vector<128x32xf32>
      %cst_12 = arith.constant dense<0.000000e+00> : vector<128xf32>
      %21 = vector.multi_reduction <add>, %20, %cst_12 [1] : vector<128x32xf32> to vector<128xf32>
      %22 = vector.shape_cast %21 : vector<128xf32> to vector<128x1xf32>
      %cst_13 = arith.constant 3.200000e+01 : f32
      %23 = vector.broadcast %cst_13 : f32 to vector<128x1xf32>
      %24 = arith.divf %22, %23 : vector<128x1xf32>
      %25 = vector.broadcast %15 : vector<128x1xf32> to vector<128x32xf32>
      %26 = arith.subf %11, %25 : vector<128x32xf32>
      %cst_14 = arith.constant 9.99999974E-6 : f32
      %27 = vector.broadcast %cst_14 : f32 to vector<128x1xf32>
      %28 = arith.addf %24, %27 : vector<128x1xf32>
      %29 = math.rsqrt %28 : vector<128x1xf32>
      %30 = vector.broadcast %29 : vector<128x1xf32> to vector<128x32xf32>
      %31 = arith.mulf %26, %30 : vector<128x32xf32>
      %c0_15 = arith.constant 0 : index
      %c0_16 = arith.constant 0 : index
      %32 = vector.load %arg5[%c0_15, %c0_16] : memref<1x32xf32, #tpu.memory_space<vmem>>, vector<1x32xf32>
      %33 = vector.broadcast %32 : vector<1x32xf32> to vector<128x32xf32>
      %34 = arith.mulf %31, %33 : vector<128x32xf32>
      %c0_17 = arith.constant 0 : index
      %c0_18 = arith.constant 0 : index
      %35 = vector.load %arg6[%c0_17, %c0_18] : memref<1x32xf32, #tpu.memory_space<vmem>>, vector<1x32xf32>
      %36 = vector.broadcast %35 : vector<1x32xf32> to vector<128x32xf32>
      %37 = arith.addf %34, %36 : vector<128x32xf32>
      %38 = arith.truncf %37 : vector<128x32xf32> to vector<128x32xbf16>
      %c0_19 = arith.constant 0 : index
      %c0_20 = arith.constant 0 : index
      %39 = vector.load %arg8[%c0_19, %c0_20] : memref<128x32xbf16, #tpu.memory_space<vmem>>, vector<128x32xbf16>
      tpu.vector_store %arg8[%c0_19, %c0_20], %38 {strides = array<i32>} : memref<128x32xbf16, #tpu.memory_space<vmem>>, vector<128x32xbf16>,
    } else {
    }
    %c0 = arith.constant 0 : index
    %c0_1 = arith.constant 0 : index
    %3 = vector.load %arg8[%c0, %c0_1] : memref<128x32xbf16, #tpu.memory_space<vmem>>, vector<128x32xbf16>
    %c0_2 = arith.constant 0 : index
    %c0_3 = arith.constant 0 : index
    %4 = vector.load %arg3[%c0_2, %c0_3] : memref<32x96xbf16, #tpu.memory_space<vmem>>, vector<32x96xbf16>
    %cst = arith.constant dense<0.000000e+00> : vector<128x96xf32>
    %5 = tpu.matmul %3, %4, %cst {dimension_numbers = #tpu.dot_dimension_numbers<[1], [0], [0], [1], [0, 0, 1, 1], [], []>} : vector<128x32xbf16>, vector<32x96xbf16>, vector<128x96xf32> -> vector<128x96xf32>
    %c0_4 = arith.constant 0 : index
    %c0_5 = arith.constant 0 : index
    %6 = vector.load %arg4[%c0_4, %c0_5] : memref<1x96xf32, #tpu.memory_space<vmem>>, vector<1x96xf32>
    %7 = vector.broadcast %6 : vector<1x96xf32> to vector<128x96xf32>
    %8 = arith.addf %5, %7 : vector<128x96xf32>
    %9 = arith.truncf %8 : vector<128x96xf32> to vector<128x96xbf16>
    %c0_6 = arith.constant 0 : index
    %c0_7 = arith.constant 0 : index
    %10 = vector.load %arg7[%c0_6, %c0_7] : memref<128x96xbf16, #tpu.memory_space<vmem>>, vector<128x96xbf16>
    tpu.vector_store %arg7[%c0_6, %c0_7], %9 {strides = array<i32>} : memref<128x96xbf16, #tpu.memory_space<vmem>>, vector<128x96xbf16>,
    return
  }
  func.func @transform_0(%arg0: i32, %arg1: i32) -> (i32, i32) {
    %c0_i32 = arith.constant 0 : i32
    %c0_i32_0 = arith.constant 0 : i32
    return %arg0, %c0_i32 : i32, i32
  }
  func.func @transform_1(%arg0: i32, %arg1: i32) -> (i32, i32) {
    %c0_i32 = arith.constant 0 : i32
    %c0_i32_0 = arith.constant 0 : i32
    return %c0_i32, %arg1 : i32, i32
  }
  func.func @transform_2(%arg0: i32, %arg1: i32) -> (i32, i32) {
    %c0_i32 = arith.constant 0 : i32
    %c0_i32_0 = arith.constant 0 : i32
    return %c0_i32, %arg1 : i32, i32
  }
  func.func @transform_3(%arg0: i32, %arg1: i32) -> (i32, i32) {
    %c0_i32 = arith.constant 0 : i32
    %c0_i32_0 = arith.constant 0 : i32
    %c0_i32_1 = arith.constant 0 : i32
    return %c0_i32, %c0_i32_0 : i32, i32
  }
  func.func @transform_4(%arg0: i32, %arg1: i32) -> (i32, i32) {
    %c0_i32 = arith.constant 0 : i32
    %c0_i32_0 = arith.constant 0 : i32
    %c0_i32_1 = arith.constant 0 : i32
    return %c0_i32, %c0_i32_0 : i32, i32
  }
  func.func @transform_5(%arg0: i32, %arg1: i32) -> (i32, i32) {
    %c0_i32 = arith.constant 0 : i32
    return %arg0, %arg1 : i32, i32
  }
}

module attributes {stable_mosaic.version = 11 : i64} {
  func.func @_nat_attn_kernel(%arg0: i32, %arg1: memref<1x8x8x96xbf16, #tpu.memory_space<vmem>>, %arg2: memref<9x64x2xf32, #tpu.memory_space<vmem>>, %arg3: memref<1x8x8x32xbf16, #tpu.memory_space<vmem>>) attributes {dimension_semantics = [#tpu.dimension_semantics<parallel>], iteration_bounds = array<i64: 2>, scalar_prefetch = 0 : i64, scratch_operands = 0 : i64, tpu.core_type = #tpu.core_type<tc>, window_params = [{transform_indices = @transform_0, window_bounds = array<i64: 1, 8, 8, 96>}, {pipeline_mode = #tpu.pipeline_mode<synchronous>, transform_indices = @transform_1, window_bounds = array<i64: 9, 64, 2>}, {transform_indices = @transform_2, window_bounds = array<i64: 1, 8, 8, 32>}]} {
    %0 = tpu.iota {dimensions = array<i32: 0>} : vector<32x2xi32>
    %1 = tpu.iota {dimensions = array<i32: 1>} : vector<32x2xi32>
    %c16_i32 = arith.constant 16 : i32
    %2 = vector.broadcast %c16_i32 : i32 to vector<32x2xi32>
    %3 = arith.muli %1, %2 : vector<32x2xi32>
    %4 = arith.cmpi sge, %0, %3 : vector<32x2xi32>
    %c1_i32 = arith.constant 1 : i32
    %5 = vector.broadcast %c1_i32 : i32 to vector<32x2xi32>
    %6 = arith.addi %1, %5 : vector<32x2xi32>
    %c16_i32_0 = arith.constant 16 : i32
    %7 = vector.broadcast %c16_i32_0 : i32 to vector<32x2xi32>
    %8 = arith.muli %6, %7 : vector<32x2xi32>
    %9 = arith.cmpi slt, %0, %8 : vector<32x2xi32>
    %10 = arith.andi %4, %9 : vector<32x2xi1>
    %11 = arith.extui %10 : vector<32x2xi1> to vector<32x2xi32>
    %12 = arith.sitofp %11 : vector<32x2xi32> to vector<32x2xf32>
    %13 = tpu.iota {dimensions = array<i32: 1>} : vector<2x32xi32>
    %14 = tpu.iota {dimensions = array<i32: 0>} : vector<2x32xi32>
    %c16_i32_1 = arith.constant 16 : i32
    %15 = vector.broadcast %c16_i32_1 : i32 to vector<2x32xi32>
    %16 = arith.muli %14, %15 : vector<2x32xi32>
    %17 = arith.cmpi sge, %13, %16 : vector<2x32xi32>
    %c1_i32_2 = arith.constant 1 : i32
    %18 = vector.broadcast %c1_i32_2 : i32 to vector<2x32xi32>
    %19 = arith.addi %14, %18 : vector<2x32xi32>
    %c16_i32_3 = arith.constant 16 : i32
    %20 = vector.broadcast %c16_i32_3 : i32 to vector<2x32xi32>
    %21 = arith.muli %19, %20 : vector<2x32xi32>
    %22 = arith.cmpi slt, %13, %21 : vector<2x32xi32>
    %23 = arith.andi %17, %22 : vector<2x32xi1>
    %24 = arith.extui %23 : vector<2x32xi1> to vector<2x32xi32>
    %25 = arith.sitofp %24 : vector<2x32xi32> to vector<2x32xf32>
    %c0 = arith.constant 0 : index
    %c0_4 = arith.constant 0 : index
    %c0_5 = arith.constant 0 : index
    %c0_6 = arith.constant 0 : index
    %26 = vector.load %arg1[%c0, %c0_4, %c0_5, %c0_6] : memref<1x8x8x96xbf16, #tpu.memory_space<vmem>>, vector<1x8x8x96xbf16>
    %27 = vector.shape_cast %26 : vector<1x8x8x96xbf16> to vector<8x8x96xbf16>
    %28 = vector.extract_strided_slice %27 {offsets = [0, 0, 0], sizes = [8, 8, 32], strides = [1, 1, 1]} : vector<8x8x96xbf16> to vector<8x8x32xbf16>
    %29 = arith.extf %28 : vector<8x8x32xbf16> to vector<8x8x32xf32>
    %cst = arith.constant 2.500000e-01 : f32
    %30 = vector.broadcast %cst : f32 to vector<8x8x32xf32>
    %31 = arith.mulf %29, %30 : vector<8x8x32xf32>
    %32 = vector.extract_strided_slice %27 {offsets = [0, 0, 32], sizes = [8, 8, 32], strides = [1, 1, 1]} : vector<8x8x96xbf16> to vector<8x8x32xbf16>
    %33 = arith.extf %32 : vector<8x8x32xbf16> to vector<8x8x32xf32>
    %34 = vector.extract_strided_slice %27 {offsets = [0, 0, 64], sizes = [8, 8, 32], strides = [1, 1, 1]} : vector<8x8x96xbf16> to vector<8x8x32xbf16>
    %35 = arith.extf %34 : vector<8x8x32xbf16> to vector<8x8x32xf32>
    %36 = vector.shape_cast %31 : vector<8x8x32xf32> to vector<64x32xf32>
    %37 = vector.extract_strided_slice %33 {offsets = [0, 0, 0], sizes = [1, 8, 32], strides = [1, 1, 1]} : vector<8x8x32xf32> to vector<1x8x32xf32>
    %38 = vector.extract_strided_slice %33 {offsets = [0, 0, 0], sizes = [6, 8, 32], strides = [1, 1, 1]} : vector<8x8x32xf32> to vector<6x8x32xf32>
    %39 = vector.extract_strided_slice %33 {offsets = [5, 0, 0], sizes = [1, 8, 32], strides = [1, 1, 1]} : vector<8x8x32xf32> to vector<1x8x32xf32>
    %40 = tpu.concatenate %37, %38, %39 in 0 : vector<1x8x32xf32>, vector<6x8x32xf32>, vector<1x8x32xf32> -> vector<8x8x32xf32>
    %41 = vector.extract_strided_slice %40 {offsets = [0, 0, 0], sizes = [8, 1, 32], strides = [1, 1, 1]} : vector<8x8x32xf32> to vector<8x1x32xf32>
    %42 = vector.extract_strided_slice %40 {offsets = [0, 0, 0], sizes = [8, 6, 32], strides = [1, 1, 1]} : vector<8x8x32xf32> to vector<8x6x32xf32>
    %43 = vector.extract_strided_slice %40 {offsets = [0, 5, 0], sizes = [8, 1, 32], strides = [1, 1, 1]} : vector<8x8x32xf32> to vector<8x1x32xf32>
    %44 = tpu.concatenate %41, %42, %43 in 1 : vector<8x1x32xf32>, vector<8x6x32xf32>, vector<8x1x32xf32> -> vector<8x8x32xf32>
    %45 = vector.shape_cast %44 : vector<8x8x32xf32> to vector<64x32xf32>
    %46 = arith.mulf %36, %45 : vector<64x32xf32>
    %cst_7 = arith.constant dense<0.000000e+00> : vector<64x2xf32>
    %47 = tpu.matmul %46, %12, %cst_7 {dimension_numbers = #tpu.dot_dimension_numbers<[1], [0], [0], [1], [0, 0, 1, 1], [], []>} : vector<64x32xf32>, vector<32x2xf32>, vector<64x2xf32> -> vector<64x2xf32>
    %c0_8 = arith.constant 0 : index
    %c0_9 = arith.constant 0 : index
    %c0_10 = arith.constant 0 : index
    %48 = vector.load %arg2[%c0_8, %c0_9, %c0_10] : memref<9x64x2xf32, #tpu.memory_space<vmem>>, vector<1x64x2xf32>
    %49 = vector.shape_cast %48 : vector<1x64x2xf32> to vector<64x2xf32>
    %50 = arith.addf %47, %49 : vector<64x2xf32>
    %51 = vector.extract_strided_slice %40 {offsets = [0, 1, 0], sizes = [8, 1, 32], strides = [1, 1, 1]} : vector<8x8x32xf32> to vector<8x1x32xf32>
    %52 = vector.extract_strided_slice %40 {offsets = [0, 1, 0], sizes = [8, 6, 32], strides = [1, 1, 1]} : vector<8x8x32xf32> to vector<8x6x32xf32>
    %53 = vector.extract_strided_slice %40 {offsets = [0, 6, 0], sizes = [8, 1, 32], strides = [1, 1, 1]} : vector<8x8x32xf32> to vector<8x1x32xf32>
    %54 = tpu.concatenate %51, %52, %53 in 1 : vector<8x1x32xf32>, vector<8x6x32xf32>, vector<8x1x32xf32> -> vector<8x8x32xf32>
    %55 = vector.shape_cast %54 : vector<8x8x32xf32> to vector<64x32xf32>
    %56 = arith.mulf %36, %55 : vector<64x32xf32>
    %cst_11 = arith.constant dense<0.000000e+00> : vector<64x2xf32>
    %57 = tpu.matmul %56, %12, %cst_11 {dimension_numbers = #tpu.dot_dimension_numbers<[1], [0], [0], [1], [0, 0, 1, 1], [], []>} : vector<64x32xf32>, vector<32x2xf32>, vector<64x2xf32> -> vector<64x2xf32>
    %c1 = arith.constant 1 : index
    %c0_12 = arith.constant 0 : index
    %c0_13 = arith.constant 0 : index
    %58 = vector.load %arg2[%c1, %c0_12, %c0_13] : memref<9x64x2xf32, #tpu.memory_space<vmem>>, vector<1x64x2xf32>
    %59 = vector.shape_cast %58 : vector<1x64x2xf32> to vector<64x2xf32>
    %60 = arith.addf %57, %59 : vector<64x2xf32>
    %61 = vector.extract_strided_slice %40 {offsets = [0, 2, 0], sizes = [8, 1, 32], strides = [1, 1, 1]} : vector<8x8x32xf32> to vector<8x1x32xf32>
    %62 = vector.extract_strided_slice %40 {offsets = [0, 2, 0], sizes = [8, 6, 32], strides = [1, 1, 1]} : vector<8x8x32xf32> to vector<8x6x32xf32>
    %63 = vector.extract_strided_slice %40 {offsets = [0, 7, 0], sizes = [8, 1, 32], strides = [1, 1, 1]} : vector<8x8x32xf32> to vector<8x1x32xf32>
    %64 = tpu.concatenate %61, %62, %63 in 1 : vector<8x1x32xf32>, vector<8x6x32xf32>, vector<8x1x32xf32> -> vector<8x8x32xf32>
    %65 = vector.shape_cast %64 : vector<8x8x32xf32> to vector<64x32xf32>
    %66 = arith.mulf %36, %65 : vector<64x32xf32>
    %cst_14 = arith.constant dense<0.000000e+00> : vector<64x2xf32>
    %67 = tpu.matmul %66, %12, %cst_14 {dimension_numbers = #tpu.dot_dimension_numbers<[1], [0], [0], [1], [0, 0, 1, 1], [], []>} : vector<64x32xf32>, vector<32x2xf32>, vector<64x2xf32> -> vector<64x2xf32>
    %c2 = arith.constant 2 : index
    %c0_15 = arith.constant 0 : index
    %c0_16 = arith.constant 0 : index
    %68 = vector.load %arg2[%c2, %c0_15, %c0_16] : memref<9x64x2xf32, #tpu.memory_space<vmem>>, vector<1x64x2xf32>
    %69 = vector.shape_cast %68 : vector<1x64x2xf32> to vector<64x2xf32>
    %70 = arith.addf %67, %69 : vector<64x2xf32>
    %71 = vector.extract_strided_slice %33 {offsets = [1, 0, 0], sizes = [1, 8, 32], strides = [1, 1, 1]} : vector<8x8x32xf32> to vector<1x8x32xf32>
    %72 = vector.extract_strided_slice %33 {offsets = [1, 0, 0], sizes = [6, 8, 32], strides = [1, 1, 1]} : vector<8x8x32xf32> to vector<6x8x32xf32>
    %73 = vector.extract_strided_slice %33 {offsets = [6, 0, 0], sizes = [1, 8, 32], strides = [1, 1, 1]} : vector<8x8x32xf32> to vector<1x8x32xf32>
    %74 = tpu.concatenate %71, %72, %73 in 0 : vector<1x8x32xf32>, vector<6x8x32xf32>, vector<1x8x32xf32> -> vector<8x8x32xf32>
    %75 = vector.extract_strided_slice %74 {offsets = [0, 0, 0], sizes = [8, 1, 32], strides = [1, 1, 1]} : vector<8x8x32xf32> to vector<8x1x32xf32>
    %76 = vector.extract_strided_slice %74 {offsets = [0, 0, 0], sizes = [8, 6, 32], strides = [1, 1, 1]} : vector<8x8x32xf32> to vector<8x6x32xf32>
    %77 = vector.extract_strided_slice %74 {offsets = [0, 5, 0], sizes = [8, 1, 32], strides = [1, 1, 1]} : vector<8x8x32xf32> to vector<8x1x32xf32>
    %78 = tpu.concatenate %75, %76, %77 in 1 : vector<8x1x32xf32>, vector<8x6x32xf32>, vector<8x1x32xf32> -> vector<8x8x32xf32>
    %79 = vector.shape_cast %78 : vector<8x8x32xf32> to vector<64x32xf32>
    %80 = arith.mulf %36, %79 : vector<64x32xf32>
    %cst_17 = arith.constant dense<0.000000e+00> : vector<64x2xf32>
    %81 = tpu.matmul %80, %12, %cst_17 {dimension_numbers = #tpu.dot_dimension_numbers<[1], [0], [0], [1], [0, 0, 1, 1], [], []>} : vector<64x32xf32>, vector<32x2xf32>, vector<64x2xf32> -> vector<64x2xf32>
    %c3 = arith.constant 3 : index
    %c0_18 = arith.constant 0 : index
    %c0_19 = arith.constant 0 : index
    %82 = vector.load %arg2[%c3, %c0_18, %c0_19] : memref<9x64x2xf32, #tpu.memory_space<vmem>>, vector<1x64x2xf32>
    %83 = vector.shape_cast %82 : vector<1x64x2xf32> to vector<64x2xf32>
    %84 = arith.addf %81, %83 : vector<64x2xf32>
    %85 = vector.extract_strided_slice %74 {offsets = [0, 1, 0], sizes = [8, 1, 32], strides = [1, 1, 1]} : vector<8x8x32xf32> to vector<8x1x32xf32>
    %86 = vector.extract_strided_slice %74 {offsets = [0, 1, 0], sizes = [8, 6, 32], strides = [1, 1, 1]} : vector<8x8x32xf32> to vector<8x6x32xf32>
    %87 = vector.extract_strided_slice %74 {offsets = [0, 6, 0], sizes = [8, 1, 32], strides = [1, 1, 1]} : vector<8x8x32xf32> to vector<8x1x32xf32>
    %88 = tpu.concatenate %85, %86, %87 in 1 : vector<8x1x32xf32>, vector<8x6x32xf32>, vector<8x1x32xf32> -> vector<8x8x32xf32>
    %89 = vector.shape_cast %88 : vector<8x8x32xf32> to vector<64x32xf32>
    %90 = arith.mulf %36, %89 : vector<64x32xf32>
    %cst_20 = arith.constant dense<0.000000e+00> : vector<64x2xf32>
    %91 = tpu.matmul %90, %12, %cst_20 {dimension_numbers = #tpu.dot_dimension_numbers<[1], [0], [0], [1], [0, 0, 1, 1], [], []>} : vector<64x32xf32>, vector<32x2xf32>, vector<64x2xf32> -> vector<64x2xf32>
    %c4 = arith.constant 4 : index
    %c0_21 = arith.constant 0 : index
    %c0_22 = arith.constant 0 : index
    %92 = vector.load %arg2[%c4, %c0_21, %c0_22] : memref<9x64x2xf32, #tpu.memory_space<vmem>>, vector<1x64x2xf32>
    %93 = vector.shape_cast %92 : vector<1x64x2xf32> to vector<64x2xf32>
    %94 = arith.addf %91, %93 : vector<64x2xf32>
    %95 = vector.extract_strided_slice %74 {offsets = [0, 2, 0], sizes = [8, 1, 32], strides = [1, 1, 1]} : vector<8x8x32xf32> to vector<8x1x32xf32>
    %96 = vector.extract_strided_slice %74 {offsets = [0, 2, 0], sizes = [8, 6, 32], strides = [1, 1, 1]} : vector<8x8x32xf32> to vector<8x6x32xf32>
    %97 = vector.extract_strided_slice %74 {offsets = [0, 7, 0], sizes = [8, 1, 32], strides = [1, 1, 1]} : vector<8x8x32xf32> to vector<8x1x32xf32>
    %98 = tpu.concatenate %95, %96, %97 in 1 : vector<8x1x32xf32>, vector<8x6x32xf32>, vector<8x1x32xf32> -> vector<8x8x32xf32>
    %99 = vector.shape_cast %98 : vector<8x8x32xf32> to vector<64x32xf32>
    %100 = arith.mulf %36, %99 : vector<64x32xf32>
    %cst_23 = arith.constant dense<0.000000e+00> : vector<64x2xf32>
    %101 = tpu.matmul %100, %12, %cst_23 {dimension_numbers = #tpu.dot_dimension_numbers<[1], [0], [0], [1], [0, 0, 1, 1], [], []>} : vector<64x32xf32>, vector<32x2xf32>, vector<64x2xf32> -> vector<64x2xf32>
    %c5 = arith.constant 5 : index
    %c0_24 = arith.constant 0 : index
    %c0_25 = arith.constant 0 : index
    %102 = vector.load %arg2[%c5, %c0_24, %c0_25] : memref<9x64x2xf32, #tpu.memory_space<vmem>>, vector<1x64x2xf32>
    %103 = vector.shape_cast %102 : vector<1x64x2xf32> to vector<64x2xf32>
    %104 = arith.addf %101, %103 : vector<64x2xf32>
    %105 = vector.extract_strided_slice %33 {offsets = [2, 0, 0], sizes = [1, 8, 32], strides = [1, 1, 1]} : vector<8x8x32xf32> to vector<1x8x32xf32>
    %106 = vector.extract_strided_slice %33 {offsets = [2, 0, 0], sizes = [6, 8, 32], strides = [1, 1, 1]} : vector<8x8x32xf32> to vector<6x8x32xf32>
    %107 = vector.extract_strided_slice %33 {offsets = [7, 0, 0], sizes = [1, 8, 32], strides = [1, 1, 1]} : vector<8x8x32xf32> to vector<1x8x32xf32>
    %108 = tpu.concatenate %105, %106, %107 in 0 : vector<1x8x32xf32>, vector<6x8x32xf32>, vector<1x8x32xf32> -> vector<8x8x32xf32>
    %109 = vector.extract_strided_slice %108 {offsets = [0, 0, 0], sizes = [8, 1, 32], strides = [1, 1, 1]} : vector<8x8x32xf32> to vector<8x1x32xf32>
    %110 = vector.extract_strided_slice %108 {offsets = [0, 0, 0], sizes = [8, 6, 32], strides = [1, 1, 1]} : vector<8x8x32xf32> to vector<8x6x32xf32>
    %111 = vector.extract_strided_slice %108 {offsets = [0, 5, 0], sizes = [8, 1, 32], strides = [1, 1, 1]} : vector<8x8x32xf32> to vector<8x1x32xf32>
    %112 = tpu.concatenate %109, %110, %111 in 1 : vector<8x1x32xf32>, vector<8x6x32xf32>, vector<8x1x32xf32> -> vector<8x8x32xf32>
    %113 = vector.shape_cast %112 : vector<8x8x32xf32> to vector<64x32xf32>
    %114 = arith.mulf %36, %113 : vector<64x32xf32>
    %cst_26 = arith.constant dense<0.000000e+00> : vector<64x2xf32>
    %115 = tpu.matmul %114, %12, %cst_26 {dimension_numbers = #tpu.dot_dimension_numbers<[1], [0], [0], [1], [0, 0, 1, 1], [], []>} : vector<64x32xf32>, vector<32x2xf32>, vector<64x2xf32> -> vector<64x2xf32>
    %c6 = arith.constant 6 : index
    %c0_27 = arith.constant 0 : index
    %c0_28 = arith.constant 0 : index
    %116 = vector.load %arg2[%c6, %c0_27, %c0_28] : memref<9x64x2xf32, #tpu.memory_space<vmem>>, vector<1x64x2xf32>
    %117 = vector.shape_cast %116 : vector<1x64x2xf32> to vector<64x2xf32>
    %118 = arith.addf %115, %117 : vector<64x2xf32>
    %119 = vector.extract_strided_slice %108 {offsets = [0, 1, 0], sizes = [8, 1, 32], strides = [1, 1, 1]} : vector<8x8x32xf32> to vector<8x1x32xf32>
    %120 = vector.extract_strided_slice %108 {offsets = [0, 1, 0], sizes = [8, 6, 32], strides = [1, 1, 1]} : vector<8x8x32xf32> to vector<8x6x32xf32>
    %121 = vector.extract_strided_slice %108 {offsets = [0, 6, 0], sizes = [8, 1, 32], strides = [1, 1, 1]} : vector<8x8x32xf32> to vector<8x1x32xf32>
    %122 = tpu.concatenate %119, %120, %121 in 1 : vector<8x1x32xf32>, vector<8x6x32xf32>, vector<8x1x32xf32> -> vector<8x8x32xf32>
    %123 = vector.shape_cast %122 : vector<8x8x32xf32> to vector<64x32xf32>
    %124 = arith.mulf %36, %123 : vector<64x32xf32>
    %cst_29 = arith.constant dense<0.000000e+00> : vector<64x2xf32>
    %125 = tpu.matmul %124, %12, %cst_29 {dimension_numbers = #tpu.dot_dimension_numbers<[1], [0], [0], [1], [0, 0, 1, 1], [], []>} : vector<64x32xf32>, vector<32x2xf32>, vector<64x2xf32> -> vector<64x2xf32>
    %c7 = arith.constant 7 : index
    %c0_30 = arith.constant 0 : index
    %c0_31 = arith.constant 0 : index
    %126 = vector.load %arg2[%c7, %c0_30, %c0_31] : memref<9x64x2xf32, #tpu.memory_space<vmem>>, vector<1x64x2xf32>
    %127 = vector.shape_cast %126 : vector<1x64x2xf32> to vector<64x2xf32>
    %128 = arith.addf %125, %127 : vector<64x2xf32>
    %129 = vector.extract_strided_slice %108 {offsets = [0, 2, 0], sizes = [8, 1, 32], strides = [1, 1, 1]} : vector<8x8x32xf32> to vector<8x1x32xf32>
    %130 = vector.extract_strided_slice %108 {offsets = [0, 2, 0], sizes = [8, 6, 32], strides = [1, 1, 1]} : vector<8x8x32xf32> to vector<8x6x32xf32>
    %131 = vector.extract_strided_slice %108 {offsets = [0, 7, 0], sizes = [8, 1, 32], strides = [1, 1, 1]} : vector<8x8x32xf32> to vector<8x1x32xf32>
    %132 = tpu.concatenate %129, %130, %131 in 1 : vector<8x1x32xf32>, vector<8x6x32xf32>, vector<8x1x32xf32> -> vector<8x8x32xf32>
    %133 = vector.shape_cast %132 : vector<8x8x32xf32> to vector<64x32xf32>
    %134 = arith.mulf %36, %133 : vector<64x32xf32>
    %cst_32 = arith.constant dense<0.000000e+00> : vector<64x2xf32>
    %135 = tpu.matmul %134, %12, %cst_32 {dimension_numbers = #tpu.dot_dimension_numbers<[1], [0], [0], [1], [0, 0, 1, 1], [], []>} : vector<64x32xf32>, vector<32x2xf32>, vector<64x2xf32> -> vector<64x2xf32>
    %c8 = arith.constant 8 : index
    %c0_33 = arith.constant 0 : index
    %c0_34 = arith.constant 0 : index
    %136 = vector.load %arg2[%c8, %c0_33, %c0_34] : memref<9x64x2xf32, #tpu.memory_space<vmem>>, vector<1x64x2xf32>
    %137 = vector.shape_cast %136 : vector<1x64x2xf32> to vector<64x2xf32>
    %138 = arith.addf %135, %137 : vector<64x2xf32>
    %139 = arith.maximumf %50, %60 : vector<64x2xf32>
    %140 = arith.maximumf %139, %70 : vector<64x2xf32>
    %141 = arith.maximumf %140, %84 : vector<64x2xf32>
    %142 = arith.maximumf %141, %94 : vector<64x2xf32>
    %143 = arith.maximumf %142, %104 : vector<64x2xf32>
    %144 = arith.maximumf %143, %118 : vector<64x2xf32>
    %145 = arith.maximumf %144, %128 : vector<64x2xf32>
    %146 = arith.maximumf %145, %138 : vector<64x2xf32>
    %cst_35 = arith.constant 0.000000e+00 : f32
    %147 = vector.broadcast %cst_35 : f32 to vector<64x2xf32>
    %148 = arith.subf %50, %146 : vector<64x2xf32>
    %149 = math.exp %148 : vector<64x2xf32>
    %150 = arith.addf %147, %149 : vector<64x2xf32>
    %151 = arith.subf %60, %146 : vector<64x2xf32>
    %152 = math.exp %151 : vector<64x2xf32>
    %153 = arith.addf %150, %152 : vector<64x2xf32>
    %154 = arith.subf %70, %146 : vector<64x2xf32>
    %155 = math.exp %154 : vector<64x2xf32>
    %156 = arith.addf %153, %155 : vector<64x2xf32>
    %157 = arith.subf %84, %146 : vector<64x2xf32>
    %158 = math.exp %157 : vector<64x2xf32>
    %159 = arith.addf %156, %158 : vector<64x2xf32>
    %160 = arith.subf %94, %146 : vector<64x2xf32>
    %161 = math.exp %160 : vector<64x2xf32>
    %162 = arith.addf %159, %161 : vector<64x2xf32>
    %163 = arith.subf %104, %146 : vector<64x2xf32>
    %164 = math.exp %163 : vector<64x2xf32>
    %165 = arith.addf %162, %164 : vector<64x2xf32>
    %166 = arith.subf %118, %146 : vector<64x2xf32>
    %167 = math.exp %166 : vector<64x2xf32>
    %168 = arith.addf %165, %167 : vector<64x2xf32>
    %169 = arith.subf %128, %146 : vector<64x2xf32>
    %170 = math.exp %169 : vector<64x2xf32>
    %171 = arith.addf %168, %170 : vector<64x2xf32>
    %172 = arith.subf %138, %146 : vector<64x2xf32>
    %173 = math.exp %172 : vector<64x2xf32>
    %174 = arith.addf %171, %173 : vector<64x2xf32>
    %cst_36 = arith.constant 1.000000e+00 : f32
    %175 = vector.broadcast %cst_36 : f32 to vector<64x2xf32>
    %176 = arith.divf %175, %174 : vector<64x2xf32>
    %cst_37 = arith.constant 0.000000e+00 : f32
    %177 = vector.broadcast %cst_37 : f32 to vector<64x32xf32>
    %178 = vector.extract_strided_slice %35 {offsets = [0, 0, 0], sizes = [1, 8, 32], strides = [1, 1, 1]} : vector<8x8x32xf32> to vector<1x8x32xf32>
    %179 = vector.extract_strided_slice %35 {offsets = [0, 0, 0], sizes = [6, 8, 32], strides = [1, 1, 1]} : vector<8x8x32xf32> to vector<6x8x32xf32>
    %180 = vector.extract_strided_slice %35 {offsets = [5, 0, 0], sizes = [1, 8, 32], strides = [1, 1, 1]} : vector<8x8x32xf32> to vector<1x8x32xf32>
    %181 = tpu.concatenate %178, %179, %180 in 0 : vector<1x8x32xf32>, vector<6x8x32xf32>, vector<1x8x32xf32> -> vector<8x8x32xf32>
    %182 = arith.mulf %149, %176 : vector<64x2xf32>
    %cst_38 = arith.constant dense<0.000000e+00> : vector<64x32xf32>
    %183 = tpu.matmul %182, %25, %cst_38 {dimension_numbers = #tpu.dot_dimension_numbers<[1], [0], [0], [1], [0, 0, 1, 1], [], []>} : vector<64x2xf32>, vector<2x32xf32>, vector<64x32xf32> -> vector<64x32xf32>
    %184 = vector.extract_strided_slice %181 {offsets = [0, 0, 0], sizes = [8, 1, 32], strides = [1, 1, 1]} : vector<8x8x32xf32> to vector<8x1x32xf32>
    %185 = vector.extract_strided_slice %181 {offsets = [0, 0, 0], sizes = [8, 6, 32], strides = [1, 1, 1]} : vector<8x8x32xf32> to vector<8x6x32xf32>
    %186 = vector.extract_strided_slice %181 {offsets = [0, 5, 0], sizes = [8, 1, 32], strides = [1, 1, 1]} : vector<8x8x32xf32> to vector<8x1x32xf32>
    %187 = tpu.concatenate %184, %185, %186 in 1 : vector<8x1x32xf32>, vector<8x6x32xf32>, vector<8x1x32xf32> -> vector<8x8x32xf32>
    %188 = vector.shape_cast %187 : vector<8x8x32xf32> to vector<64x32xf32>
    %189 = arith.mulf %183, %188 : vector<64x32xf32>
    %190 = arith.addf %177, %189 : vector<64x32xf32>
    %191 = arith.mulf %152, %176 : vector<64x2xf32>
    %cst_39 = arith.constant dense<0.000000e+00> : vector<64x32xf32>
    %192 = tpu.matmul %191, %25, %cst_39 {dimension_numbers = #tpu.dot_dimension_numbers<[1], [0], [0], [1], [0, 0, 1, 1], [], []>} : vector<64x2xf32>, vector<2x32xf32>, vector<64x32xf32> -> vector<64x32xf32>
    %193 = vector.extract_strided_slice %181 {offsets = [0, 1, 0], sizes = [8, 1, 32], strides = [1, 1, 1]} : vector<8x8x32xf32> to vector<8x1x32xf32>
    %194 = vector.extract_strided_slice %181 {offsets = [0, 1, 0], sizes = [8, 6, 32], strides = [1, 1, 1]} : vector<8x8x32xf32> to vector<8x6x32xf32>
    %195 = vector.extract_strided_slice %181 {offsets = [0, 6, 0], sizes = [8, 1, 32], strides = [1, 1, 1]} : vector<8x8x32xf32> to vector<8x1x32xf32>
    %196 = tpu.concatenate %193, %194, %195 in 1 : vector<8x1x32xf32>, vector<8x6x32xf32>, vector<8x1x32xf32> -> vector<8x8x32xf32>
    %197 = vector.shape_cast %196 : vector<8x8x32xf32> to vector<64x32xf32>
    %198 = arith.mulf %192, %197 : vector<64x32xf32>
    %199 = arith.addf %190, %198 : vector<64x32xf32>
    %200 = arith.mulf %155, %176 : vector<64x2xf32>
    %cst_40 = arith.constant dense<0.000000e+00> : vector<64x32xf32>
    %201 = tpu.matmul %200, %25, %cst_40 {dimension_numbers = #tpu.dot_dimension_numbers<[1], [0], [0], [1], [0, 0, 1, 1], [], []>} : vector<64x2xf32>, vector<2x32xf32>, vector<64x32xf32> -> vector<64x32xf32>
    %202 = vector.extract_strided_slice %181 {offsets = [0, 2, 0], sizes = [8, 1, 32], strides = [1, 1, 1]} : vector<8x8x32xf32> to vector<8x1x32xf32>
    %203 = vector.extract_strided_slice %181 {offsets = [0, 2, 0], sizes = [8, 6, 32], strides = [1, 1, 1]} : vector<8x8x32xf32> to vector<8x6x32xf32>
    %204 = vector.extract_strided_slice %181 {offsets = [0, 7, 0], sizes = [8, 1, 32], strides = [1, 1, 1]} : vector<8x8x32xf32> to vector<8x1x32xf32>
    %205 = tpu.concatenate %202, %203, %204 in 1 : vector<8x1x32xf32>, vector<8x6x32xf32>, vector<8x1x32xf32> -> vector<8x8x32xf32>
    %206 = vector.shape_cast %205 : vector<8x8x32xf32> to vector<64x32xf32>
    %207 = arith.mulf %201, %206 : vector<64x32xf32>
    %208 = arith.addf %199, %207 : vector<64x32xf32>
    %209 = vector.extract_strided_slice %35 {offsets = [1, 0, 0], sizes = [1, 8, 32], strides = [1, 1, 1]} : vector<8x8x32xf32> to vector<1x8x32xf32>
    %210 = vector.extract_strided_slice %35 {offsets = [1, 0, 0], sizes = [6, 8, 32], strides = [1, 1, 1]} : vector<8x8x32xf32> to vector<6x8x32xf32>
    %211 = vector.extract_strided_slice %35 {offsets = [6, 0, 0], sizes = [1, 8, 32], strides = [1, 1, 1]} : vector<8x8x32xf32> to vector<1x8x32xf32>
    %212 = tpu.concatenate %209, %210, %211 in 0 : vector<1x8x32xf32>, vector<6x8x32xf32>, vector<1x8x32xf32> -> vector<8x8x32xf32>
    %213 = arith.mulf %158, %176 : vector<64x2xf32>
    %cst_41 = arith.constant dense<0.000000e+00> : vector<64x32xf32>
    %214 = tpu.matmul %213, %25, %cst_41 {dimension_numbers = #tpu.dot_dimension_numbers<[1], [0], [0], [1], [0, 0, 1, 1], [], []>} : vector<64x2xf32>, vector<2x32xf32>, vector<64x32xf32> -> vector<64x32xf32>
    %215 = vector.extract_strided_slice %212 {offsets = [0, 0, 0], sizes = [8, 1, 32], strides = [1, 1, 1]} : vector<8x8x32xf32> to vector<8x1x32xf32>
    %216 = vector.extract_strided_slice %212 {offsets = [0, 0, 0], sizes = [8, 6, 32], strides = [1, 1, 1]} : vector<8x8x32xf32> to vector<8x6x32xf32>
    %217 = vector.extract_strided_slice %212 {offsets = [0, 5, 0], sizes = [8, 1, 32], strides = [1, 1, 1]} : vector<8x8x32xf32> to vector<8x1x32xf32>
    %218 = tpu.concatenate %215, %216, %217 in 1 : vector<8x1x32xf32>, vector<8x6x32xf32>, vector<8x1x32xf32> -> vector<8x8x32xf32>
    %219 = vector.shape_cast %218 : vector<8x8x32xf32> to vector<64x32xf32>
    %220 = arith.mulf %214, %219 : vector<64x32xf32>
    %221 = arith.addf %208, %220 : vector<64x32xf32>
    %222 = arith.mulf %161, %176 : vector<64x2xf32>
    %cst_42 = arith.constant dense<0.000000e+00> : vector<64x32xf32>
    %223 = tpu.matmul %222, %25, %cst_42 {dimension_numbers = #tpu.dot_dimension_numbers<[1], [0], [0], [1], [0, 0, 1, 1], [], []>} : vector<64x2xf32>, vector<2x32xf32>, vector<64x32xf32> -> vector<64x32xf32>
    %224 = vector.extract_strided_slice %212 {offsets = [0, 1, 0], sizes = [8, 1, 32], strides = [1, 1, 1]} : vector<8x8x32xf32> to vector<8x1x32xf32>
    %225 = vector.extract_strided_slice %212 {offsets = [0, 1, 0], sizes = [8, 6, 32], strides = [1, 1, 1]} : vector<8x8x32xf32> to vector<8x6x32xf32>
    %226 = vector.extract_strided_slice %212 {offsets = [0, 6, 0], sizes = [8, 1, 32], strides = [1, 1, 1]} : vector<8x8x32xf32> to vector<8x1x32xf32>
    %227 = tpu.concatenate %224, %225, %226 in 1 : vector<8x1x32xf32>, vector<8x6x32xf32>, vector<8x1x32xf32> -> vector<8x8x32xf32>
    %228 = vector.shape_cast %227 : vector<8x8x32xf32> to vector<64x32xf32>
    %229 = arith.mulf %223, %228 : vector<64x32xf32>
    %230 = arith.addf %221, %229 : vector<64x32xf32>
    %231 = arith.mulf %164, %176 : vector<64x2xf32>
    %cst_43 = arith.constant dense<0.000000e+00> : vector<64x32xf32>
    %232 = tpu.matmul %231, %25, %cst_43 {dimension_numbers = #tpu.dot_dimension_numbers<[1], [0], [0], [1], [0, 0, 1, 1], [], []>} : vector<64x2xf32>, vector<2x32xf32>, vector<64x32xf32> -> vector<64x32xf32>
    %233 = vector.extract_strided_slice %212 {offsets = [0, 2, 0], sizes = [8, 1, 32], strides = [1, 1, 1]} : vector<8x8x32xf32> to vector<8x1x32xf32>
    %234 = vector.extract_strided_slice %212 {offsets = [0, 2, 0], sizes = [8, 6, 32], strides = [1, 1, 1]} : vector<8x8x32xf32> to vector<8x6x32xf32>
    %235 = vector.extract_strided_slice %212 {offsets = [0, 7, 0], sizes = [8, 1, 32], strides = [1, 1, 1]} : vector<8x8x32xf32> to vector<8x1x32xf32>
    %236 = tpu.concatenate %233, %234, %235 in 1 : vector<8x1x32xf32>, vector<8x6x32xf32>, vector<8x1x32xf32> -> vector<8x8x32xf32>
    %237 = vector.shape_cast %236 : vector<8x8x32xf32> to vector<64x32xf32>
    %238 = arith.mulf %232, %237 : vector<64x32xf32>
    %239 = arith.addf %230, %238 : vector<64x32xf32>
    %240 = vector.extract_strided_slice %35 {offsets = [2, 0, 0], sizes = [1, 8, 32], strides = [1, 1, 1]} : vector<8x8x32xf32> to vector<1x8x32xf32>
    %241 = vector.extract_strided_slice %35 {offsets = [2, 0, 0], sizes = [6, 8, 32], strides = [1, 1, 1]} : vector<8x8x32xf32> to vector<6x8x32xf32>
    %242 = vector.extract_strided_slice %35 {offsets = [7, 0, 0], sizes = [1, 8, 32], strides = [1, 1, 1]} : vector<8x8x32xf32> to vector<1x8x32xf32>
    %243 = tpu.concatenate %240, %241, %242 in 0 : vector<1x8x32xf32>, vector<6x8x32xf32>, vector<1x8x32xf32> -> vector<8x8x32xf32>
    %244 = arith.mulf %167, %176 : vector<64x2xf32>
    %cst_44 = arith.constant dense<0.000000e+00> : vector<64x32xf32>
    %245 = tpu.matmul %244, %25, %cst_44 {dimension_numbers = #tpu.dot_dimension_numbers<[1], [0], [0], [1], [0, 0, 1, 1], [], []>} : vector<64x2xf32>, vector<2x32xf32>, vector<64x32xf32> -> vector<64x32xf32>
    %246 = vector.extract_strided_slice %243 {offsets = [0, 0, 0], sizes = [8, 1, 32], strides = [1, 1, 1]} : vector<8x8x32xf32> to vector<8x1x32xf32>
    %247 = vector.extract_strided_slice %243 {offsets = [0, 0, 0], sizes = [8, 6, 32], strides = [1, 1, 1]} : vector<8x8x32xf32> to vector<8x6x32xf32>
    %248 = vector.extract_strided_slice %243 {offsets = [0, 5, 0], sizes = [8, 1, 32], strides = [1, 1, 1]} : vector<8x8x32xf32> to vector<8x1x32xf32>
    %249 = tpu.concatenate %246, %247, %248 in 1 : vector<8x1x32xf32>, vector<8x6x32xf32>, vector<8x1x32xf32> -> vector<8x8x32xf32>
    %250 = vector.shape_cast %249 : vector<8x8x32xf32> to vector<64x32xf32>
    %251 = arith.mulf %245, %250 : vector<64x32xf32>
    %252 = arith.addf %239, %251 : vector<64x32xf32>
    %253 = arith.mulf %170, %176 : vector<64x2xf32>
    %cst_45 = arith.constant dense<0.000000e+00> : vector<64x32xf32>
    %254 = tpu.matmul %253, %25, %cst_45 {dimension_numbers = #tpu.dot_dimension_numbers<[1], [0], [0], [1], [0, 0, 1, 1], [], []>} : vector<64x2xf32>, vector<2x32xf32>, vector<64x32xf32> -> vector<64x32xf32>
    %255 = vector.extract_strided_slice %243 {offsets = [0, 1, 0], sizes = [8, 1, 32], strides = [1, 1, 1]} : vector<8x8x32xf32> to vector<8x1x32xf32>
    %256 = vector.extract_strided_slice %243 {offsets = [0, 1, 0], sizes = [8, 6, 32], strides = [1, 1, 1]} : vector<8x8x32xf32> to vector<8x6x32xf32>
    %257 = vector.extract_strided_slice %243 {offsets = [0, 6, 0], sizes = [8, 1, 32], strides = [1, 1, 1]} : vector<8x8x32xf32> to vector<8x1x32xf32>
    %258 = tpu.concatenate %255, %256, %257 in 1 : vector<8x1x32xf32>, vector<8x6x32xf32>, vector<8x1x32xf32> -> vector<8x8x32xf32>
    %259 = vector.shape_cast %258 : vector<8x8x32xf32> to vector<64x32xf32>
    %260 = arith.mulf %254, %259 : vector<64x32xf32>
    %261 = arith.addf %252, %260 : vector<64x32xf32>
    %262 = arith.mulf %173, %176 : vector<64x2xf32>
    %cst_46 = arith.constant dense<0.000000e+00> : vector<64x32xf32>
    %263 = tpu.matmul %262, %25, %cst_46 {dimension_numbers = #tpu.dot_dimension_numbers<[1], [0], [0], [1], [0, 0, 1, 1], [], []>} : vector<64x2xf32>, vector<2x32xf32>, vector<64x32xf32> -> vector<64x32xf32>
    %264 = vector.extract_strided_slice %243 {offsets = [0, 2, 0], sizes = [8, 1, 32], strides = [1, 1, 1]} : vector<8x8x32xf32> to vector<8x1x32xf32>
    %265 = vector.extract_strided_slice %243 {offsets = [0, 2, 0], sizes = [8, 6, 32], strides = [1, 1, 1]} : vector<8x8x32xf32> to vector<8x6x32xf32>
    %266 = vector.extract_strided_slice %243 {offsets = [0, 7, 0], sizes = [8, 1, 32], strides = [1, 1, 1]} : vector<8x8x32xf32> to vector<8x1x32xf32>
    %267 = tpu.concatenate %264, %265, %266 in 1 : vector<8x1x32xf32>, vector<8x6x32xf32>, vector<8x1x32xf32> -> vector<8x8x32xf32>
    %268 = vector.shape_cast %267 : vector<8x8x32xf32> to vector<64x32xf32>
    %269 = arith.mulf %263, %268 : vector<64x32xf32>
    %270 = arith.addf %261, %269 : vector<64x32xf32>
    %271 = vector.shape_cast %270 : vector<64x32xf32> to vector<8x8x32xf32>
    %272 = arith.truncf %271 : vector<8x8x32xf32> to vector<8x8x32xbf16>
    %c0_47 = arith.constant 0 : index
    %c0_48 = arith.constant 0 : index
    %c0_49 = arith.constant 0 : index
    %c0_50 = arith.constant 0 : index
    %273 = vector.load %arg3[%c0_47, %c0_48, %c0_49, %c0_50] : memref<1x8x8x32xbf16, #tpu.memory_space<vmem>>, vector<1x8x8x32xbf16>
    %274 = vector.shape_cast %273 : vector<1x8x8x32xbf16> to vector<8x8x32xbf16>
    %275 = vector.shape_cast %272 : vector<8x8x32xbf16> to vector<1x8x8x32xbf16>
    tpu.vector_store %arg3[%c0_47, %c0_48, %c0_49, %c0_50], %275 {strides = array<i32>} : memref<1x8x8x32xbf16, #tpu.memory_space<vmem>>, vector<1x8x8x32xbf16>,
    return
  }
  func.func @transform_0(%arg0: i32) -> (i32, i32, i32, i32) {
    %c0_i32 = arith.constant 0 : i32
    %c0_i32_0 = arith.constant 0 : i32
    %c0_i32_1 = arith.constant 0 : i32
    %c0_i32_2 = arith.constant 0 : i32
    return %arg0, %c0_i32, %c0_i32_0, %c0_i32_1 : i32, i32, i32, i32
  }
  func.func @transform_1(%arg0: i32) -> (i32, i32, i32) {
    %c0_i32 = arith.constant 0 : i32
    %c0_i32_0 = arith.constant 0 : i32
    %c0_i32_1 = arith.constant 0 : i32
    %c0_i32_2 = arith.constant 0 : i32
    return %c0_i32, %c0_i32_0, %c0_i32_1 : i32, i32, i32
  }
  func.func @transform_2(%arg0: i32) -> (i32, i32, i32, i32) {
    %c0_i32 = arith.constant 0 : i32
    %c0_i32_0 = arith.constant 0 : i32
    %c0_i32_1 = arith.constant 0 : i32
    %c0_i32_2 = arith.constant 0 : i32
    return %arg0, %c0_i32, %c0_i32_0, %c0_i32_1 : i32, i32, i32, i32
  }
}

module attributes {stable_mosaic.version = 11 : i64} {
  func.func @_fused_matmul_kernel(%arg0: i32, %arg1: i32, %arg2: memref<128x128xbf16, #tpu.memory_space<vmem>>, %arg3: memref<128x32xbf16, #tpu.memory_space<vmem>>, %arg4: memref<1x32xf32, #tpu.memory_space<vmem>>, %arg5: memref<128x32xbf16, #tpu.memory_space<vmem>>, %arg6: memref<128x32xbf16, #tpu.memory_space<vmem>>) attributes {dimension_semantics = [#tpu.dimension_semantics<parallel>, #tpu.dimension_semantics<parallel>], iteration_bounds = array<i64: 1, 1>, scalar_prefetch = 0 : i64, scratch_operands = 0 : i64, tpu.core_type = #tpu.core_type<tc>, window_params = [{transform_indices = @transform_0, window_bounds = array<i64: 128, 128>}, {transform_indices = @transform_1, window_bounds = array<i64: 128, 32>}, {transform_indices = @transform_2, window_bounds = array<i64: 1, 32>}, {transform_indices = @transform_3, window_bounds = array<i64: 128, 32>}, {transform_indices = @transform_4, window_bounds = array<i64: 128, 32>}]} {
    %c0 = arith.constant 0 : index
    %c0_0 = arith.constant 0 : index
    %0 = vector.load %arg2[%c0, %c0_0] : memref<128x128xbf16, #tpu.memory_space<vmem>>, vector<128x128xbf16>
    %c0_1 = arith.constant 0 : index
    %c0_2 = arith.constant 0 : index
    %1 = vector.load %arg3[%c0_1, %c0_2] : memref<128x32xbf16, #tpu.memory_space<vmem>>, vector<128x32xbf16>
    %cst = arith.constant dense<0.000000e+00> : vector<128x32xf32>
    %2 = tpu.matmul %0, %1, %cst {dimension_numbers = #tpu.dot_dimension_numbers<[1], [0], [0], [1], [0, 0, 1, 1], [], []>} : vector<128x128xbf16>, vector<128x32xbf16>, vector<128x32xf32> -> vector<128x32xf32>
    %c0_3 = arith.constant 0 : index
    %c0_4 = arith.constant 0 : index
    %3 = vector.load %arg4[%c0_3, %c0_4] : memref<1x32xf32, #tpu.memory_space<vmem>>, vector<1x32xf32>
    %4 = vector.broadcast %3 : vector<1x32xf32> to vector<128x32xf32>
    %5 = arith.addf %2, %4 : vector<128x32xf32>
    %c0_5 = arith.constant 0 : index
    %c0_6 = arith.constant 0 : index
    %6 = vector.load %arg5[%c0_5, %c0_6] : memref<128x32xbf16, #tpu.memory_space<vmem>>, vector<128x32xbf16>
    %7 = arith.extf %6 : vector<128x32xbf16> to vector<128x32xf32>
    %8 = arith.addf %5, %7 : vector<128x32xf32>
    %9 = arith.truncf %8 : vector<128x32xf32> to vector<128x32xbf16>
    %c0_7 = arith.constant 0 : index
    %c0_8 = arith.constant 0 : index
    %10 = vector.load %arg6[%c0_7, %c0_8] : memref<128x32xbf16, #tpu.memory_space<vmem>>, vector<128x32xbf16>
    tpu.vector_store %arg6[%c0_7, %c0_8], %9 {strides = array<i32>} : memref<128x32xbf16, #tpu.memory_space<vmem>>, vector<128x32xbf16>,
    return
  }
  func.func @transform_0(%arg0: i32, %arg1: i32) -> (i32, i32) {
    %c0_i32 = arith.constant 0 : i32
    %c0_i32_0 = arith.constant 0 : i32
    return %arg0, %c0_i32 : i32, i32
  }
  func.func @transform_1(%arg0: i32, %arg1: i32) -> (i32, i32) {
    %c0_i32 = arith.constant 0 : i32
    %c0_i32_0 = arith.constant 0 : i32
    return %c0_i32, %arg1 : i32, i32
  }
  func.func @transform_2(%arg0: i32, %arg1: i32) -> (i32, i32) {
    %c0_i32 = arith.constant 0 : i32
    %c0_i32_0 = arith.constant 0 : i32
    return %c0_i32, %arg1 : i32, i32
  }
  func.func @transform_3(%arg0: i32, %arg1: i32) -> (i32, i32) {
    %c0_i32 = arith.constant 0 : i32
    return %arg0, %arg1 : i32, i32
  }
  func.func @transform_4(%arg0: i32, %arg1: i32) -> (i32, i32) {
    %c0_i32 = arith.constant 0 : i32
    return %arg0, %arg1 : i32, i32
  }
}

module attributes {stable_mosaic.version = 11 : i64} {
  func.func @_fused_matmul_kernel(%arg0: i32, %arg1: i32, %arg2: memref<128x32xbf16, #tpu.memory_space<vmem>>, %arg3: memref<32x128xbf16, #tpu.memory_space<vmem>>, %arg4: memref<1x128xf32, #tpu.memory_space<vmem>>, %arg5: memref<1x32xf32, #tpu.memory_space<vmem>>, %arg6: memref<1x32xf32, #tpu.memory_space<vmem>>, %arg7: memref<128x128xbf16, #tpu.memory_space<vmem>>, %arg8: memref<128x32xbf16, #tpu.memory_space<vmem>>) attributes {dimension_semantics = [#tpu.dimension_semantics<parallel>, #tpu.dimension_semantics<arbitrary>], iteration_bounds = array<i64: 1, 1>, scalar_prefetch = 0 : i64, scratch_operands = 1 : i64, tpu.core_type = #tpu.core_type<tc>, window_params = [{transform_indices = @transform_0, window_bounds = array<i64: 128, 32>}, {transform_indices = @transform_1, window_bounds = array<i64: 32, 128>}, {transform_indices = @transform_2, window_bounds = array<i64: 1, 128>}, {pipeline_mode = #tpu.pipeline_mode<synchronous>, transform_indices = @transform_3, window_bounds = array<i64: 1, 32>}, {pipeline_mode = #tpu.pipeline_mode<synchronous>, transform_indices = @transform_4, window_bounds = array<i64: 1, 32>}, {transform_indices = @transform_5, window_bounds = array<i64: 128, 128>}]} {
    %c0_i32 = arith.constant 0 : i32
    %0 = arith.cmpi eq, %arg1, %c0_i32 : i32
    %1 = arith.extui %0 : i1 to i32
    %c0_i32_0 = arith.constant 0 : i32
    %2 = arith.cmpi ne, %1, %c0_i32_0 : i32
    scf.if %2 {
      %c0_23 = arith.constant 0 : index
      %c0_24 = arith.constant 0 : index
      %51 = vector.load %arg2[%c0_23, %c0_24] : memref<128x32xbf16, #tpu.memory_space<vmem>>, vector<128x32xbf16>
      %52 = arith.extf %51 : vector<128x32xbf16> to vector<128x32xf32>
      %cst_25 = arith.constant dense<0.000000e+00> : vector<128xf32>
      %53 = vector.multi_reduction <add>, %52, %cst_25 [1] : vector<128x32xf32> to vector<128xf32>
      %54 = vector.shape_cast %53 : vector<128xf32> to vector<128x1xf32>
      %cst_26 = arith.constant 3.200000e+01 : f32
      %55 = vector.broadcast %cst_26 : f32 to vector<128x1xf32>
      %56 = arith.divf %54, %55 : vector<128x1xf32>
      %57 = vector.broadcast %56 : vector<128x1xf32> to vector<128x32xf32>
      %58 = arith.subf %52, %57 : vector<128x32xf32>
      %59 = vector.broadcast %56 : vector<128x1xf32> to vector<128x32xf32>
      %60 = arith.subf %52, %59 : vector<128x32xf32>
      %61 = arith.mulf %58, %60 : vector<128x32xf32>
      %cst_27 = arith.constant dense<0.000000e+00> : vector<128xf32>
      %62 = vector.multi_reduction <add>, %61, %cst_27 [1] : vector<128x32xf32> to vector<128xf32>
      %63 = vector.shape_cast %62 : vector<128xf32> to vector<128x1xf32>
      %cst_28 = arith.constant 3.200000e+01 : f32
      %64 = vector.broadcast %cst_28 : f32 to vector<128x1xf32>
      %65 = arith.divf %63, %64 : vector<128x1xf32>
      %66 = vector.broadcast %56 : vector<128x1xf32> to vector<128x32xf32>
      %67 = arith.subf %52, %66 : vector<128x32xf32>
      %cst_29 = arith.constant 9.99999974E-6 : f32
      %68 = vector.broadcast %cst_29 : f32 to vector<128x1xf32>
      %69 = arith.addf %65, %68 : vector<128x1xf32>
      %70 = math.rsqrt %69 : vector<128x1xf32>
      %71 = vector.broadcast %70 : vector<128x1xf32> to vector<128x32xf32>
      %72 = arith.mulf %67, %71 : vector<128x32xf32>
      %c0_30 = arith.constant 0 : index
      %c0_31 = arith.constant 0 : index
      %73 = vector.load %arg5[%c0_30, %c0_31] : memref<1x32xf32, #tpu.memory_space<vmem>>, vector<1x32xf32>
      %74 = vector.broadcast %73 : vector<1x32xf32> to vector<128x32xf32>
      %75 = arith.mulf %72, %74 : vector<128x32xf32>
      %c0_32 = arith.constant 0 : index
      %c0_33 = arith.constant 0 : index
      %76 = vector.load %arg6[%c0_32, %c0_33] : memref<1x32xf32, #tpu.memory_space<vmem>>, vector<1x32xf32>
      %77 = vector.broadcast %76 : vector<1x32xf32> to vector<128x32xf32>
      %78 = arith.addf %75, %77 : vector<128x32xf32>
      %79 = arith.truncf %78 : vector<128x32xf32> to vector<128x32xbf16>
      %c0_34 = arith.constant 0 : index
      %c0_35 = arith.constant 0 : index
      %80 = vector.load %arg8[%c0_34, %c0_35] : memref<128x32xbf16, #tpu.memory_space<vmem>>, vector<128x32xbf16>
      tpu.vector_store %arg8[%c0_34, %c0_35], %79 {strides = array<i32>} : memref<128x32xbf16, #tpu.memory_space<vmem>>, vector<128x32xbf16>,
    } else {
    }
    %c0 = arith.constant 0 : index
    %c0_1 = arith.constant 0 : index
    %3 = vector.load %arg8[%c0, %c0_1] : memref<128x32xbf16, #tpu.memory_space<vmem>>, vector<128x32xbf16>
    %c0_2 = arith.constant 0 : index
    %c0_3 = arith.constant 0 : index
    %4 = vector.load %arg3[%c0_2, %c0_3] : memref<32x128xbf16, #tpu.memory_space<vmem>>, vector<32x128xbf16>
    %cst = arith.constant dense<0.000000e+00> : vector<128x128xf32>
    %5 = tpu.matmul %3, %4, %cst {dimension_numbers = #tpu.dot_dimension_numbers<[1], [0], [0], [1], [0, 0, 1, 1], [], []>} : vector<128x32xbf16>, vector<32x128xbf16>, vector<128x128xf32> -> vector<128x128xf32>
    %c0_4 = arith.constant 0 : index
    %c0_5 = arith.constant 0 : index
    %6 = vector.load %arg4[%c0_4, %c0_5] : memref<1x128xf32, #tpu.memory_space<vmem>>, vector<1x128xf32>
    %7 = vector.broadcast %6 : vector<1x128xf32> to vector<128x128xf32>
    %8 = arith.addf %5, %7 : vector<128x128xf32>
    %cst_6 = arith.constant 5.000000e-01 : f32
    %9 = vector.broadcast %cst_6 : f32 to vector<128x128xf32>
    %10 = arith.mulf %9, %8 : vector<128x128xf32>
    %cst_7 = arith.constant 0.707106769 : f32
    %11 = vector.broadcast %cst_7 : f32 to vector<128x128xf32>
    %12 = arith.mulf %8, %11 : vector<128x128xf32>
    %cst_8 = arith.constant 0.000000e+00 : f32
    %13 = vector.broadcast %cst_8 : f32 to vector<128x128xf32>
    %14 = arith.cmpf oge, %12, %13 : vector<128x128xf32>
    %cst_9 = arith.constant 1.000000e+00 : f32
    %cst_10 = arith.constant -1.000000e+00 : f32
    %15 = vector.broadcast %cst_9 : f32 to vector<128x128xf32>
    %16 = vector.broadcast %cst_10 : f32 to vector<128x128xf32>
    %17 = arith.select %14, %15, %16 : vector<128x128xi1>, vector<128x128xf32>
    %18 = math.absf %12 : vector<128x128xf32>
    %cst_11 = arith.constant 0.327591091 : f32
    %19 = vector.broadcast %cst_11 : f32 to vector<128x128xf32>
    %20 = arith.mulf %19, %18 : vector<128x128xf32>
    %cst_12 = arith.constant 1.000000e+00 : f32
    %21 = vector.broadcast %cst_12 : f32 to vector<128x128xf32>
    %22 = arith.addf %21, %20 : vector<128x128xf32>
    %23 = tpu.reciprocal %22 {approx = true} : vector<128x128xf32> -> vector<128x128xf32>
    %cst_13 = arith.constant 1.06140542 : f32
    %24 = vector.broadcast %cst_13 : f32 to vector<128x128xf32>
    %25 = arith.mulf %24, %23 : vector<128x128xf32>
    %cst_14 = arith.constant -1.45315206 : f32
    %26 = vector.broadcast %cst_14 : f32 to vector<128x128xf32>
    %27 = arith.addf %25, %26 : vector<128x128xf32>
    %28 = arith.mulf %27, %23 : vector<128x128xf32>
    %cst_15 = arith.constant 1.42141378 : f32
    %29 = vector.broadcast %cst_15 : f32 to vector<128x128xf32>
    %30 = arith.addf %28, %29 : vector<128x128xf32>
    %31 = arith.mulf %30, %23 : vector<128x128xf32>
    %cst_16 = arith.constant -0.284496725 : f32
    %32 = vector.broadcast %cst_16 : f32 to vector<128x128xf32>
    %33 = arith.addf %31, %32 : vector<128x128xf32>
    %34 = arith.mulf %33, %23 : vector<128x128xf32>
    %cst_17 = arith.constant 0.254829586 : f32
    %35 = vector.broadcast %cst_17 : f32 to vector<128x128xf32>
    %36 = arith.addf %34, %35 : vector<128x128xf32>
    %37 = arith.mulf %36, %23 : vector<128x128xf32>
    %cst_18 = arith.constant 0.000000e+00 : f32
    %38 = vector.broadcast %cst_18 : f32 to vector<128x128xf32>
    %39 = arith.subf %38, %18 : vector<128x128xf32>
    %40 = arith.mulf %39, %18 : vector<128x128xf32>
    %41 = math.exp %40 : vector<128x128xf32>
    %42 = arith.mulf %37, %41 : vector<128x128xf32>
    %cst_19 = arith.constant 1.000000e+00 : f32
    %43 = vector.broadcast %cst_19 : f32 to vector<128x128xf32>
    %44 = arith.subf %43, %42 : vector<128x128xf32>
    %45 = arith.mulf %17, %44 : vector<128x128xf32>
    %cst_20 = arith.constant 1.000000e+00 : f32
    %46 = vector.broadcast %cst_20 : f32 to vector<128x128xf32>
    %47 = arith.addf %46, %45 : vector<128x128xf32>
    %48 = arith.mulf %10, %47 : vector<128x128xf32>
    %49 = arith.truncf %48 : vector<128x128xf32> to vector<128x128xbf16>
    %c0_21 = arith.constant 0 : index
    %c0_22 = arith.constant 0 : index
    %50 = vector.load %arg7[%c0_21, %c0_22] : memref<128x128xbf16, #tpu.memory_space<vmem>>, vector<128x128xbf16>
    tpu.vector_store %arg7[%c0_21, %c0_22], %49 {strides = array<i32>} : memref<128x128xbf16, #tpu.memory_space<vmem>>, vector<128x128xbf16>,
    return
  }
  func.func @transform_0(%arg0: i32, %arg1: i32) -> (i32, i32) {
    %c0_i32 = arith.constant 0 : i32
    %c0_i32_0 = arith.constant 0 : i32
    return %arg0, %c0_i32 : i32, i32
  }
  func.func @transform_1(%arg0: i32, %arg1: i32) -> (i32, i32) {
    %c0_i32 = arith.constant 0 : i32
    %c0_i32_0 = arith.constant 0 : i32
    return %c0_i32, %arg1 : i32, i32
  }
  func.func @transform_2(%arg0: i32, %arg1: i32) -> (i32, i32) {
    %c0_i32 = arith.constant 0 : i32
    %c0_i32_0 = arith.constant 0 : i32
    return %c0_i32, %arg1 : i32, i32
  }
  func.func @transform_3(%arg0: i32, %arg1: i32) -> (i32, i32) {
    %c0_i32 = arith.constant 0 : i32
    %c0_i32_0 = arith.constant 0 : i32
    %c0_i32_1 = arith.constant 0 : i32
    return %c0_i32, %c0_i32_0 : i32, i32
  }
  func.func @transform_4(%arg0: i32, %arg1: i32) -> (i32, i32) {
    %c0_i32 = arith.constant 0 : i32
    %c0_i32_0 = arith.constant 0 : i32
    %c0_i32_1 = arith.constant 0 : i32
    return %c0_i32, %c0_i32_0 : i32, i32
  }
  func.func @transform_5(%arg0: i32, %arg1: i32) -> (i32, i32) {
    %c0_i32 = arith.constant 0 : i32
    return %arg0, %arg1 : i32, i32
  }
}

module attributes {stable_mosaic.version = 11 : i64} {
  func.func @_fused_matmul_kernel(%arg0: i32, %arg1: i32, %arg2: memref<128x32xbf16, #tpu.memory_space<vmem>>, %arg3: memref<32x96xbf16, #tpu.memory_space<vmem>>, %arg4: memref<1x96xf32, #tpu.memory_space<vmem>>, %arg5: memref<1x32xf32, #tpu.memory_space<vmem>>, %arg6: memref<1x32xf32, #tpu.memory_space<vmem>>, %arg7: memref<128x96xbf16, #tpu.memory_space<vmem>>, %arg8: memref<128x32xbf16, #tpu.memory_space<vmem>>) attributes {dimension_semantics = [#tpu.dimension_semantics<parallel>, #tpu.dimension_semantics<arbitrary>], iteration_bounds = array<i64: 1, 1>, scalar_prefetch = 0 : i64, scratch_operands = 1 : i64, tpu.core_type = #tpu.core_type<tc>, window_params = [{transform_indices = @transform_0, window_bounds = array<i64: 128, 32>}, {transform_indices = @transform_1, window_bounds = array<i64: 32, 96>}, {transform_indices = @transform_2, window_bounds = array<i64: 1, 96>}, {pipeline_mode = #tpu.pipeline_mode<synchronous>, transform_indices = @transform_3, window_bounds = array<i64: 1, 32>}, {pipeline_mode = #tpu.pipeline_mode<synchronous>, transform_indices = @transform_4, window_bounds = array<i64: 1, 32>}, {transform_indices = @transform_5, window_bounds = array<i64: 128, 96>}]} {
    %c0_i32 = arith.constant 0 : i32
    %0 = arith.cmpi eq, %arg1, %c0_i32 : i32
    %1 = arith.extui %0 : i1 to i32
    %c0_i32_0 = arith.constant 0 : i32
    %2 = arith.cmpi ne, %1, %c0_i32_0 : i32
    scf.if %2 {
      %c0_8 = arith.constant 0 : index
      %c0_9 = arith.constant 0 : index
      %11 = vector.load %arg2[%c0_8, %c0_9] : memref<128x32xbf16, #tpu.memory_space<vmem>>, vector<128x32xbf16>
      %12 = arith.extf %11 : vector<128x32xbf16> to vector<128x32xf32>
      %cst_10 = arith.constant dense<0.000000e+00> : vector<128xf32>
      %13 = vector.multi_reduction <add>, %12, %cst_10 [1] : vector<128x32xf32> to vector<128xf32>
      %14 = vector.shape_cast %13 : vector<128xf32> to vector<128x1xf32>
      %cst_11 = arith.constant 3.200000e+01 : f32
      %15 = vector.broadcast %cst_11 : f32 to vector<128x1xf32>
      %16 = arith.divf %14, %15 : vector<128x1xf32>
      %17 = vector.broadcast %16 : vector<128x1xf32> to vector<128x32xf32>
      %18 = arith.subf %12, %17 : vector<128x32xf32>
      %19 = vector.broadcast %16 : vector<128x1xf32> to vector<128x32xf32>
      %20 = arith.subf %12, %19 : vector<128x32xf32>
      %21 = arith.mulf %18, %20 : vector<128x32xf32>
      %cst_12 = arith.constant dense<0.000000e+00> : vector<128xf32>
      %22 = vector.multi_reduction <add>, %21, %cst_12 [1] : vector<128x32xf32> to vector<128xf32>
      %23 = vector.shape_cast %22 : vector<128xf32> to vector<128x1xf32>
      %cst_13 = arith.constant 3.200000e+01 : f32
      %24 = vector.broadcast %cst_13 : f32 to vector<128x1xf32>
      %25 = arith.divf %23, %24 : vector<128x1xf32>
      %26 = vector.broadcast %16 : vector<128x1xf32> to vector<128x32xf32>
      %27 = arith.subf %12, %26 : vector<128x32xf32>
      %cst_14 = arith.constant 9.99999974E-6 : f32
      %28 = vector.broadcast %cst_14 : f32 to vector<128x1xf32>
      %29 = arith.addf %25, %28 : vector<128x1xf32>
      %30 = math.rsqrt %29 : vector<128x1xf32>
      %31 = vector.broadcast %30 : vector<128x1xf32> to vector<128x32xf32>
      %32 = arith.mulf %27, %31 : vector<128x32xf32>
      %c0_15 = arith.constant 0 : index
      %c0_16 = arith.constant 0 : index
      %33 = vector.load %arg5[%c0_15, %c0_16] : memref<1x32xf32, #tpu.memory_space<vmem>>, vector<1x32xf32>
      %34 = vector.broadcast %33 : vector<1x32xf32> to vector<128x32xf32>
      %35 = arith.mulf %32, %34 : vector<128x32xf32>
      %c0_17 = arith.constant 0 : index
      %c0_18 = arith.constant 0 : index
      %36 = vector.load %arg6[%c0_17, %c0_18] : memref<1x32xf32, #tpu.memory_space<vmem>>, vector<1x32xf32>
      %37 = vector.broadcast %36 : vector<1x32xf32> to vector<128x32xf32>
      %38 = arith.addf %35, %37 : vector<128x32xf32>
      %39 = arith.truncf %38 : vector<128x32xf32> to vector<128x32xbf16>
      %c0_19 = arith.constant 0 : index
      %c0_20 = arith.constant 0 : index
      %40 = vector.load %arg8[%c0_19, %c0_20] : memref<128x32xbf16, #tpu.memory_space<vmem>>, vector<128x32xbf16>
      tpu.vector_store %arg8[%c0_19, %c0_20], %39 {strides = array<i32>} : memref<128x32xbf16, #tpu.memory_space<vmem>>, vector<128x32xbf16>,
    } else {
    }
    %c0 = arith.constant 0 : index
    %c0_1 = arith.constant 0 : index
    %3 = vector.load %arg8[%c0, %c0_1] : memref<128x32xbf16, #tpu.memory_space<vmem>>, vector<128x32xbf16>
    %c0_2 = arith.constant 0 : index
    %c0_3 = arith.constant 0 : index
    %4 = vector.load %arg3[%c0_2, %c0_3] : memref<32x96xbf16, #tpu.memory_space<vmem>>, vector<32x96xbf16>
    %cst = arith.constant dense<0.000000e+00> : vector<128x96xf32>
    %5 = tpu.matmul %3, %4, %cst {dimension_numbers = #tpu.dot_dimension_numbers<[1], [0], [0], [1], [0, 0, 1, 1], [], []>} : vector<128x32xbf16>, vector<32x96xbf16>, vector<128x96xf32> -> vector<128x96xf32>
    %c0_4 = arith.constant 0 : index
    %c0_5 = arith.constant 0 : index
    %6 = vector.load %arg4[%c0_4, %c0_5] : memref<1x96xf32, #tpu.memory_space<vmem>>, vector<1x96xf32>
    %7 = vector.broadcast %6 : vector<1x96xf32> to vector<128x96xf32>
    %8 = arith.addf %5, %7 : vector<128x96xf32>
    %9 = arith.truncf %8 : vector<128x96xf32> to vector<128x96xbf16>
    %c0_6 = arith.constant 0 : index
    %c0_7 = arith.constant 0 : index
    %10 = vector.load %arg7[%c0_6, %c0_7] : memref<128x96xbf16, #tpu.memory_space<vmem>>, vector<128x96xbf16>
    tpu.vector_store %arg7[%c0_6, %c0_7], %9 {strides = array<i32>} : memref<128x96xbf16, #tpu.memory_space<vmem>>, vector<128x96xbf16>,
    return
  }
  func.func @transform_0(%arg0: i32, %arg1: i32) -> (i32, i32) {
    %c0_i32 = arith.constant 0 : i32
    %c0_i32_0 = arith.constant 0 : i32
    return %arg0, %c0_i32 : i32, i32
  }
  func.func @transform_1(%arg0: i32, %arg1: i32) -> (i32, i32) {
    %c0_i32 = arith.constant 0 : i32
    %c0_i32_0 = arith.constant 0 : i32
    return %c0_i32, %arg1 : i32, i32
  }
  func.func @transform_2(%arg0: i32, %arg1: i32) -> (i32, i32) {
    %c0_i32 = arith.constant 0 : i32
    %c0_i32_0 = arith.constant 0 : i32
    return %c0_i32, %arg1 : i32, i32
  }
  func.func @transform_3(%arg0: i32, %arg1: i32) -> (i32, i32) {
    %c0_i32 = arith.constant 0 : i32
    %c0_i32_0 = arith.constant 0 : i32
    %c0_i32_1 = arith.constant 0 : i32
    return %c0_i32, %c0_i32_0 : i32, i32
  }
  func.func @transform_4(%arg0: i32, %arg1: i32) -> (i32, i32) {
    %c0_i32 = arith.constant 0 : i32
    %c0_i32_0 = arith.constant 0 : i32
    %c0_i32_1 = arith.constant 0 : i32
    return %c0_i32, %c0_i32_0 : i32, i32
  }
  func.func @transform_5(%arg0: i32, %arg1: i32) -> (i32, i32) {
    %c0_i32 = arith.constant 0 : i32
    return %arg0, %arg1 : i32, i32
  }
}

module attributes {stable_mosaic.version = 11 : i64} {
  func.func @_fused_matmul_kernel(%arg0: i32, %arg1: i32, %arg2: memref<128x32xbf16, #tpu.memory_space<vmem>>, %arg3: memref<32x32xbf16, #tpu.memory_space<vmem>>, %arg4: memref<1x32xf32, #tpu.memory_space<vmem>>, %arg5: memref<128x32xbf16, #tpu.memory_space<vmem>>, %arg6: memref<128x32xbf16, #tpu.memory_space<vmem>>) attributes {dimension_semantics = [#tpu.dimension_semantics<parallel>, #tpu.dimension_semantics<parallel>], iteration_bounds = array<i64: 1, 1>, scalar_prefetch = 0 : i64, scratch_operands = 0 : i64, tpu.core_type = #tpu.core_type<tc>, window_params = [{transform_indices = @transform_0, window_bounds = array<i64: 128, 32>}, {transform_indices = @transform_1, window_bounds = array<i64: 32, 32>}, {transform_indices = @transform_2, window_bounds = array<i64: 1, 32>}, {transform_indices = @transform_3, window_bounds = array<i64: 128, 32>}, {transform_indices = @transform_4, window_bounds = array<i64: 128, 32>}]} {
    %c0 = arith.constant 0 : index
    %c0_0 = arith.constant 0 : index
    %0 = vector.load %arg2[%c0, %c0_0] : memref<128x32xbf16, #tpu.memory_space<vmem>>, vector<128x32xbf16>
    %c0_1 = arith.constant 0 : index
    %c0_2 = arith.constant 0 : index
    %1 = vector.load %arg3[%c0_1, %c0_2] : memref<32x32xbf16, #tpu.memory_space<vmem>>, vector<32x32xbf16>
    %cst = arith.constant dense<0.000000e+00> : vector<128x32xf32>
    %2 = tpu.matmul %0, %1, %cst {dimension_numbers = #tpu.dot_dimension_numbers<[1], [0], [0], [1], [0, 0, 1, 1], [], []>} : vector<128x32xbf16>, vector<32x32xbf16>, vector<128x32xf32> -> vector<128x32xf32>
    %c0_3 = arith.constant 0 : index
    %c0_4 = arith.constant 0 : index
    %3 = vector.load %arg4[%c0_3, %c0_4] : memref<1x32xf32, #tpu.memory_space<vmem>>, vector<1x32xf32>
    %4 = vector.broadcast %3 : vector<1x32xf32> to vector<128x32xf32>
    %5 = arith.addf %2, %4 : vector<128x32xf32>
    %c0_5 = arith.constant 0 : index
    %c0_6 = arith.constant 0 : index
    %6 = vector.load %arg5[%c0_5, %c0_6] : memref<128x32xbf16, #tpu.memory_space<vmem>>, vector<128x32xbf16>
    %7 = arith.extf %6 : vector<128x32xbf16> to vector<128x32xf32>
    %8 = arith.addf %5, %7 : vector<128x32xf32>
    %9 = arith.truncf %8 : vector<128x32xf32> to vector<128x32xbf16>
    %c0_7 = arith.constant 0 : index
    %c0_8 = arith.constant 0 : index
    %10 = vector.load %arg6[%c0_7, %c0_8] : memref<128x32xbf16, #tpu.memory_space<vmem>>, vector<128x32xbf16>
    tpu.vector_store %arg6[%c0_7, %c0_8], %9 {strides = array<i32>} : memref<128x32xbf16, #tpu.memory_space<vmem>>, vector<128x32xbf16>,
    return
  }
  func.func @transform_0(%arg0: i32, %arg1: i32) -> (i32, i32) {
    %c0_i32 = arith.constant 0 : i32
    %c0_i32_0 = arith.constant 0 : i32
    return %arg0, %c0_i32 : i32, i32
  }
  func.func @transform_1(%arg0: i32, %arg1: i32) -> (i32, i32) {
    %c0_i32 = arith.constant 0 : i32
    %c0_i32_0 = arith.constant 0 : i32
    return %c0_i32, %arg1 : i32, i32
  }
  func.func @transform_2(%arg0: i32, %arg1: i32) -> (i32, i32) {
    %c0_i32 = arith.constant 0 : i32
    %c0_i32_0 = arith.constant 0 : i32
    return %c0_i32, %arg1 : i32, i32
  }
  func.func @transform_3(%arg0: i32, %arg1: i32) -> (i32, i32) {
    %c0_i32 = arith.constant 0 : i32
    return %arg0, %arg1 : i32, i32
  }
  func.func @transform_4(%arg0: i32, %arg1: i32) -> (i32, i32) {
    %c0_i32 = arith.constant 0 : i32
    return %arg0, %arg1 : i32, i32
  }
}

module attributes {stable_mosaic.version = 11 : i64} {
  func.func @_fused_matmul_kernel(%arg0: i32, %arg1: i32, %arg2: memref<128x32xbf16, #tpu.memory_space<vmem>>, %arg3: memref<32x128xbf16, #tpu.memory_space<vmem>>, %arg4: memref<1x128xf32, #tpu.memory_space<vmem>>, %arg5: memref<1x32xf32, #tpu.memory_space<vmem>>, %arg6: memref<1x32xf32, #tpu.memory_space<vmem>>, %arg7: memref<128x128xbf16, #tpu.memory_space<vmem>>, %arg8: memref<128x32xbf16, #tpu.memory_space<vmem>>) attributes {dimension_semantics = [#tpu.dimension_semantics<parallel>, #tpu.dimension_semantics<arbitrary>], iteration_bounds = array<i64: 1, 1>, scalar_prefetch = 0 : i64, scratch_operands = 1 : i64, tpu.core_type = #tpu.core_type<tc>, window_params = [{transform_indices = @transform_0, window_bounds = array<i64: 128, 32>}, {transform_indices = @transform_1, window_bounds = array<i64: 32, 128>}, {transform_indices = @transform_2, window_bounds = array<i64: 1, 128>}, {pipeline_mode = #tpu.pipeline_mode<synchronous>, transform_indices = @transform_3, window_bounds = array<i64: 1, 32>}, {pipeline_mode = #tpu.pipeline_mode<synchronous>, transform_indices = @transform_4, window_bounds = array<i64: 1, 32>}, {transform_indices = @transform_5, window_bounds = array<i64: 128, 128>}]} {
    %c0_i32 = arith.constant 0 : i32
    %0 = arith.cmpi eq, %arg1, %c0_i32 : i32
    %1 = arith.extui %0 : i1 to i32
    %c0_i32_0 = arith.constant 0 : i32
    %2 = arith.cmpi ne, %1, %c0_i32_0 : i32
    scf.if %2 {
      %c0_23 = arith.constant 0 : index
      %c0_24 = arith.constant 0 : index
      %51 = vector.load %arg2[%c0_23, %c0_24] : memref<128x32xbf16, #tpu.memory_space<vmem>>, vector<128x32xbf16>
      %52 = arith.extf %51 : vector<128x32xbf16> to vector<128x32xf32>
      %cst_25 = arith.constant dense<0.000000e+00> : vector<128xf32>
      %53 = vector.multi_reduction <add>, %52, %cst_25 [1] : vector<128x32xf32> to vector<128xf32>
      %54 = vector.shape_cast %53 : vector<128xf32> to vector<128x1xf32>
      %cst_26 = arith.constant 3.200000e+01 : f32
      %55 = vector.broadcast %cst_26 : f32 to vector<128x1xf32>
      %56 = arith.divf %54, %55 : vector<128x1xf32>
      %57 = vector.broadcast %56 : vector<128x1xf32> to vector<128x32xf32>
      %58 = arith.subf %52, %57 : vector<128x32xf32>
      %59 = vector.broadcast %56 : vector<128x1xf32> to vector<128x32xf32>
      %60 = arith.subf %52, %59 : vector<128x32xf32>
      %61 = arith.mulf %58, %60 : vector<128x32xf32>
      %cst_27 = arith.constant dense<0.000000e+00> : vector<128xf32>
      %62 = vector.multi_reduction <add>, %61, %cst_27 [1] : vector<128x32xf32> to vector<128xf32>
      %63 = vector.shape_cast %62 : vector<128xf32> to vector<128x1xf32>
      %cst_28 = arith.constant 3.200000e+01 : f32
      %64 = vector.broadcast %cst_28 : f32 to vector<128x1xf32>
      %65 = arith.divf %63, %64 : vector<128x1xf32>
      %66 = vector.broadcast %56 : vector<128x1xf32> to vector<128x32xf32>
      %67 = arith.subf %52, %66 : vector<128x32xf32>
      %cst_29 = arith.constant 9.99999974E-6 : f32
      %68 = vector.broadcast %cst_29 : f32 to vector<128x1xf32>
      %69 = arith.addf %65, %68 : vector<128x1xf32>
      %70 = math.rsqrt %69 : vector<128x1xf32>
      %71 = vector.broadcast %70 : vector<128x1xf32> to vector<128x32xf32>
      %72 = arith.mulf %67, %71 : vector<128x32xf32>
      %c0_30 = arith.constant 0 : index
      %c0_31 = arith.constant 0 : index
      %73 = vector.load %arg5[%c0_30, %c0_31] : memref<1x32xf32, #tpu.memory_space<vmem>>, vector<1x32xf32>
      %74 = vector.broadcast %73 : vector<1x32xf32> to vector<128x32xf32>
      %75 = arith.mulf %72, %74 : vector<128x32xf32>
      %c0_32 = arith.constant 0 : index
      %c0_33 = arith.constant 0 : index
      %76 = vector.load %arg6[%c0_32, %c0_33] : memref<1x32xf32, #tpu.memory_space<vmem>>, vector<1x32xf32>
      %77 = vector.broadcast %76 : vector<1x32xf32> to vector<128x32xf32>
      %78 = arith.addf %75, %77 : vector<128x32xf32>
      %79 = arith.truncf %78 : vector<128x32xf32> to vector<128x32xbf16>
      %c0_34 = arith.constant 0 : index
      %c0_35 = arith.constant 0 : index
      %80 = vector.load %arg8[%c0_34, %c0_35] : memref<128x32xbf16, #tpu.memory_space<vmem>>, vector<128x32xbf16>
      tpu.vector_store %arg8[%c0_34, %c0_35], %79 {strides = array<i32>} : memref<128x32xbf16, #tpu.memory_space<vmem>>, vector<128x32xbf16>,
    } else {
    }
    %c0 = arith.constant 0 : index
    %c0_1 = arith.constant 0 : index
    %3 = vector.load %arg8[%c0, %c0_1] : memref<128x32xbf16, #tpu.memory_space<vmem>>, vector<128x32xbf16>
    %c0_2 = arith.constant 0 : index
    %c0_3 = arith.constant 0 : index
    %4 = vector.load %arg3[%c0_2, %c0_3] : memref<32x128xbf16, #tpu.memory_space<vmem>>, vector<32x128xbf16>
    %cst = arith.constant dense<0.000000e+00> : vector<128x128xf32>
    %5 = tpu.matmul %3, %4, %cst {dimension_numbers = #tpu.dot_dimension_numbers<[1], [0], [0], [1], [0, 0, 1, 1], [], []>} : vector<128x32xbf16>, vector<32x128xbf16>, vector<128x128xf32> -> vector<128x128xf32>
    %c0_4 = arith.constant 0 : index
    %c0_5 = arith.constant 0 : index
    %6 = vector.load %arg4[%c0_4, %c0_5] : memref<1x128xf32, #tpu.memory_space<vmem>>, vector<1x128xf32>
    %7 = vector.broadcast %6 : vector<1x128xf32> to vector<128x128xf32>
    %8 = arith.addf %5, %7 : vector<128x128xf32>
    %cst_6 = arith.constant 5.000000e-01 : f32
    %9 = vector.broadcast %cst_6 : f32 to vector<128x128xf32>
    %10 = arith.mulf %9, %8 : vector<128x128xf32>
    %cst_7 = arith.constant 0.707106769 : f32
    %11 = vector.broadcast %cst_7 : f32 to vector<128x128xf32>
    %12 = arith.mulf %8, %11 : vector<128x128xf32>
    %cst_8 = arith.constant 0.000000e+00 : f32
    %13 = vector.broadcast %cst_8 : f32 to vector<128x128xf32>
    %14 = arith.cmpf oge, %12, %13 : vector<128x128xf32>
    %cst_9 = arith.constant 1.000000e+00 : f32
    %cst_10 = arith.constant -1.000000e+00 : f32
    %15 = vector.broadcast %cst_9 : f32 to vector<128x128xf32>
    %16 = vector.broadcast %cst_10 : f32 to vector<128x128xf32>
    %17 = arith.select %14, %15, %16 : vector<128x128xi1>, vector<128x128xf32>
    %18 = math.absf %12 : vector<128x128xf32>
    %cst_11 = arith.constant 0.327591091 : f32
    %19 = vector.broadcast %cst_11 : f32 to vector<128x128xf32>
    %20 = arith.mulf %19, %18 : vector<128x128xf32>
    %cst_12 = arith.constant 1.000000e+00 : f32
    %21 = vector.broadcast %cst_12 : f32 to vector<128x128xf32>
    %22 = arith.addf %21, %20 : vector<128x128xf32>
    %23 = tpu.reciprocal %22 {approx = true} : vector<128x128xf32> -> vector<128x128xf32>
    %cst_13 = arith.constant 1.06140542 : f32
    %24 = vector.broadcast %cst_13 : f32 to vector<128x128xf32>
    %25 = arith.mulf %24, %23 : vector<128x128xf32>
    %cst_14 = arith.constant -1.45315206 : f32
    %26 = vector.broadcast %cst_14 : f32 to vector<128x128xf32>
    %27 = arith.addf %25, %26 : vector<128x128xf32>
    %28 = arith.mulf %27, %23 : vector<128x128xf32>
    %cst_15 = arith.constant 1.42141378 : f32
    %29 = vector.broadcast %cst_15 : f32 to vector<128x128xf32>
    %30 = arith.addf %28, %29 : vector<128x128xf32>
    %31 = arith.mulf %30, %23 : vector<128x128xf32>
    %cst_16 = arith.constant -0.284496725 : f32
    %32 = vector.broadcast %cst_16 : f32 to vector<128x128xf32>
    %33 = arith.addf %31, %32 : vector<128x128xf32>
    %34 = arith.mulf %33, %23 : vector<128x128xf32>
    %cst_17 = arith.constant 0.254829586 : f32
    %35 = vector.broadcast %cst_17 : f32 to vector<128x128xf32>
    %36 = arith.addf %34, %35 : vector<128x128xf32>
    %37 = arith.mulf %36, %23 : vector<128x128xf32>
    %cst_18 = arith.constant 0.000000e+00 : f32
    %38 = vector.broadcast %cst_18 : f32 to vector<128x128xf32>
    %39 = arith.subf %38, %18 : vector<128x128xf32>
    %40 = arith.mulf %39, %18 : vector<128x128xf32>
    %41 = math.exp %40 : vector<128x128xf32>
    %42 = arith.mulf %37, %41 : vector<128x128xf32>
    %cst_19 = arith.constant 1.000000e+00 : f32
    %43 = vector.broadcast %cst_19 : f32 to vector<128x128xf32>
    %44 = arith.subf %43, %42 : vector<128x128xf32>
    %45 = arith.mulf %17, %44 : vector<128x128xf32>
    %cst_20 = arith.constant 1.000000e+00 : f32
    %46 = vector.broadcast %cst_20 : f32 to vector<128x128xf32>
    %47 = arith.addf %46, %45 : vector<128x128xf32>
    %48 = arith.mulf %10, %47 : vector<128x128xf32>
    %49 = arith.truncf %48 : vector<128x128xf32> to vector<128x128xbf16>
    %c0_21 = arith.constant 0 : index
    %c0_22 = arith.constant 0 : index
    %50 = vector.load %arg7[%c0_21, %c0_22] : memref<128x128xbf16, #tpu.memory_space<vmem>>, vector<128x128xbf16>
    tpu.vector_store %arg7[%c0_21, %c0_22], %49 {strides = array<i32>} : memref<128x128xbf16, #tpu.memory_space<vmem>>, vector<128x128xbf16>,
    return
  }
  func.func @transform_0(%arg0: i32, %arg1: i32) -> (i32, i32) {
    %c0_i32 = arith.constant 0 : i32
    %c0_i32_0 = arith.constant 0 : i32
    return %arg0, %c0_i32 : i32, i32
  }
  func.func @transform_1(%arg0: i32, %arg1: i32) -> (i32, i32) {
    %c0_i32 = arith.constant 0 : i32
    %c0_i32_0 = arith.constant 0 : i32
    return %c0_i32, %arg1 : i32, i32
  }
  func.func @transform_2(%arg0: i32, %arg1: i32) -> (i32, i32) {
    %c0_i32 = arith.constant 0 : i32
    %c0_i32_0 = arith.constant 0 : i32
    return %c0_i32, %arg1 : i32, i32
  }
  func.func @transform_3(%arg0: i32, %arg1: i32) -> (i32, i32) {
    %c0_i32 = arith.constant 0 : i32
    %c0_i32_0 = arith.constant 0 : i32
    %c0_i32_1 = arith.constant 0 : i32
    return %c0_i32, %c0_i32_0 : i32, i32
  }
  func.func @transform_4(%arg0: i32, %arg1: i32) -> (i32, i32) {
    %c0_i32 = arith.constant 0 : i32
    %c0_i32_0 = arith.constant 0 : i32
    %c0_i32_1 = arith.constant 0 : i32
    return %c0_i32, %c0_i32_0 : i32, i32
  }
  func.func @transform_5(%arg0: i32, %arg1: i32) -> (i32, i32) {
    %c0_i32 = arith.constant 0 : i32
    return %arg0, %arg1 : i32, i32
  }
}

module attributes {stable_mosaic.version = 11 : i64} {
  func.func @_fused_matmul_kernel(%arg0: i32, %arg1: i32, %arg2: memref<32x288xbf16, #tpu.memory_space<vmem>>, %arg3: memref<288x64xbf16, #tpu.memory_space<vmem>>, %arg4: memref<1x64xf32, #tpu.memory_space<vmem>>, %arg5: memref<1x64xf32, #tpu.memory_space<vmem>>, %arg6: memref<1x64xf32, #tpu.memory_space<vmem>>, %arg7: memref<32x64xf32, #tpu.memory_space<vmem>>) attributes {dimension_semantics = [#tpu.dimension_semantics<parallel>, #tpu.dimension_semantics<parallel>], iteration_bounds = array<i64: 1, 1>, scalar_prefetch = 0 : i64, scratch_operands = 0 : i64, tpu.core_type = #tpu.core_type<tc>, window_params = [{transform_indices = @transform_0, window_bounds = array<i64: 32, 288>}, {transform_indices = @transform_1, window_bounds = array<i64: 288, 64>}, {transform_indices = @transform_2, window_bounds = array<i64: 1, 64>}, {transform_indices = @transform_3, window_bounds = array<i64: 1, 64>}, {transform_indices = @transform_4, window_bounds = array<i64: 1, 64>}, {transform_indices = @transform_5, window_bounds = array<i64: 32, 64>}]} {
    %c0 = arith.constant 0 : index
    %c0_0 = arith.constant 0 : index
    %0 = vector.load %arg2[%c0, %c0_0] : memref<32x288xbf16, #tpu.memory_space<vmem>>, vector<32x288xbf16>
    %c0_1 = arith.constant 0 : index
    %c0_2 = arith.constant 0 : index
    %1 = vector.load %arg3[%c0_1, %c0_2] : memref<288x64xbf16, #tpu.memory_space<vmem>>, vector<288x64xbf16>
    %cst = arith.constant dense<0.000000e+00> : vector<32x64xf32>
    %2 = tpu.matmul %0, %1, %cst {dimension_numbers = #tpu.dot_dimension_numbers<[1], [0], [0], [1], [0, 0, 1, 1], [], []>} : vector<32x288xbf16>, vector<288x64xbf16>, vector<32x64xf32> -> vector<32x64xf32>
    %c0_3 = arith.constant 0 : index
    %c0_4 = arith.constant 0 : index
    %3 = vector.load %arg4[%c0_3, %c0_4] : memref<1x64xf32, #tpu.memory_space<vmem>>, vector<1x64xf32>
    %4 = vector.broadcast %3 : vector<1x64xf32> to vector<32x64xf32>
    %5 = arith.addf %2, %4 : vector<32x64xf32>
    %cst_5 = arith.constant dense<0.000000e+00> : vector<32xf32>
    %6 = vector.multi_reduction <add>, %5, %cst_5 [1] : vector<32x64xf32> to vector<32xf32>
    %7 = vector.shape_cast %6 : vector<32xf32> to vector<32x1xf32>
    %cst_6 = arith.constant 6.400000e+01 : f32
    %8 = vector.broadcast %cst_6 : f32 to vector<32x1xf32>
    %9 = arith.divf %7, %8 : vector<32x1xf32>
    %10 = vector.broadcast %9 : vector<32x1xf32> to vector<32x64xf32>
    %11 = arith.subf %5, %10 : vector<32x64xf32>
    %12 = vector.broadcast %9 : vector<32x1xf32> to vector<32x64xf32>
    %13 = arith.subf %5, %12 : vector<32x64xf32>
    %14 = arith.mulf %11, %13 : vector<32x64xf32>
    %cst_7 = arith.constant dense<0.000000e+00> : vector<32xf32>
    %15 = vector.multi_reduction <add>, %14, %cst_7 [1] : vector<32x64xf32> to vector<32xf32>
    %16 = vector.shape_cast %15 : vector<32xf32> to vector<32x1xf32>
    %cst_8 = arith.constant 6.400000e+01 : f32
    %17 = vector.broadcast %cst_8 : f32 to vector<32x1xf32>
    %18 = arith.divf %16, %17 : vector<32x1xf32>
    %19 = vector.broadcast %9 : vector<32x1xf32> to vector<32x64xf32>
    %20 = arith.subf %5, %19 : vector<32x64xf32>
    %cst_9 = arith.constant 9.99999974E-6 : f32
    %21 = vector.broadcast %cst_9 : f32 to vector<32x1xf32>
    %22 = arith.addf %18, %21 : vector<32x1xf32>
    %23 = math.rsqrt %22 : vector<32x1xf32>
    %24 = vector.broadcast %23 : vector<32x1xf32> to vector<32x64xf32>
    %25 = arith.mulf %20, %24 : vector<32x64xf32>
    %c0_10 = arith.constant 0 : index
    %c0_11 = arith.constant 0 : index
    %26 = vector.load %arg5[%c0_10, %c0_11] : memref<1x64xf32, #tpu.memory_space<vmem>>, vector<1x64xf32>
    %27 = vector.broadcast %26 : vector<1x64xf32> to vector<32x64xf32>
    %28 = arith.mulf %25, %27 : vector<32x64xf32>
    %c0_12 = arith.constant 0 : index
    %c0_13 = arith.constant 0 : index
    %29 = vector.load %arg6[%c0_12, %c0_13] : memref<1x64xf32, #tpu.memory_space<vmem>>, vector<1x64xf32>
    %30 = vector.broadcast %29 : vector<1x64xf32> to vector<32x64xf32>
    %31 = arith.addf %28, %30 : vector<32x64xf32>
    %c0_14 = arith.constant 0 : index
    %c0_15 = arith.constant 0 : index
    %32 = vector.load %arg7[%c0_14, %c0_15] : memref<32x64xf32, #tpu.memory_space<vmem>>, vector<32x64xf32>
    tpu.vector_store %arg7[%c0_14, %c0_15], %31 {strides = array<i32>} : memref<32x64xf32, #tpu.memory_space<vmem>>, vector<32x64xf32>,
    return
  }
  func.func @transform_0(%arg0: i32, %arg1: i32) -> (i32, i32) {
    %c0_i32 = arith.constant 0 : i32
    %c0_i32_0 = arith.constant 0 : i32
    return %arg0, %c0_i32 : i32, i32
  }
  func.func @transform_1(%arg0: i32, %arg1: i32) -> (i32, i32) {
    %c0_i32 = arith.constant 0 : i32
    %c0_i32_0 = arith.constant 0 : i32
    return %c0_i32, %arg1 : i32, i32
  }
  func.func @transform_2(%arg0: i32, %arg1: i32) -> (i32, i32) {
    %c0_i32 = arith.constant 0 : i32
    %c0_i32_0 = arith.constant 0 : i32
    return %c0_i32, %arg1 : i32, i32
  }
  func.func @transform_3(%arg0: i32, %arg1: i32) -> (i32, i32) {
    %c0_i32 = arith.constant 0 : i32
    %c0_i32_0 = arith.constant 0 : i32
    return %c0_i32, %arg1 : i32, i32
  }
  func.func @transform_4(%arg0: i32, %arg1: i32) -> (i32, i32) {
    %c0_i32 = arith.constant 0 : i32
    %c0_i32_0 = arith.constant 0 : i32
    return %c0_i32, %arg1 : i32, i32
  }
  func.func @transform_5(%arg0: i32, %arg1: i32) -> (i32, i32) {
    %c0_i32 = arith.constant 0 : i32
    return %arg0, %arg1 : i32, i32
  }
}

</mosaic_0001>

<llo_original>
// kernel: _lambda_.13
$region0: #{_lambda_.13}
  #allocation0 [shape = 'u32[]', space=smem, size = 0x4, offset = 0x4, fixed_abs, tag = 'smem constant byte address 0x4 - core index']
  #allocation1 [shape = 'u32[72,128]{1,0:T(1,128)}', space=vmem, size = 0x9000, scoped, tag = 'internal scratch']
  %s0 = inlined_call_operand.vmem [shape: bf16[128,32], index: 0, kind: input, shape index: {}]
  %s1 = inlined_call_operand.hbm [shape: bf16[32,32], index: 1, kind: input, shape index: {}]
  %s2 = inlined_call_operand.vmem [shape: f32[1,32], index: 2, kind: input, shape index: {}]
  %s3 = inlined_call_operand.hbm [shape: f32[128,32], index: 3, kind: input, shape index: {}]
  %s4 = inlined_call_operand.vmem [shape: bf16[128,32], index: 4, kind: output, shape index: {}]
  %s5 = sld [smem:[#allocation0]]
  $region34: #{_lambda_.13} parent=0
    _
  %s7 = ssub.s32 1, %s5
  %s8 = scalar_select 0, %s7, %s5
  $region1: #{_lambda_.13} parent=0
    #allocation2 [shape = 'u8[8192]{0}', space=vmem, size = 0x2000, scoped, tag = 'input window, operand 1, single buffered']
    #allocation3 [shape = 's32[1]{0}', space=sflag, size = 0x4, scoped, tag = 'scoped memory for _lambda_.13']
    #allocation4 [shape = 'u8[65536]{0}', space=vmem, size = 0x10000, scoped, tag = 'input window, operand 3, single buffered']
    #allocation5 [shape = 's32[1]{0}', space=sflag, size = 0x4, scoped, tag = 'scoped memory for _lambda_.13']
    %9 = vsyncpa [#allocation3], 0
    %10 = vsyncpa [#allocation5], 0
    // Predicated region
    $region2: #{_lambda_.13} parent=1 // pred_check
      _
    $region3: #{_lambda_.13} parent=1 // pred_check_branch
      %12 = sbr.rel (0) target = $region5
    $region4: #{_lambda_.13} parent=1 // pred_region
      _
    $region5: #{_lambda_.13} parent=1 // pred_fallthru
      _
    // Predicated region
    $region6: #{_lambda_.13} parent=1 // pred_check
      _
    $region7: #{_lambda_.13} parent=1 // pred_check_branch
      %14 = sbr.rel (0) target = $region9
    $region8: #{_lambda_.13} parent=1 // pred_region
      %16 = vsyncadd [#allocation3], 0
      %s17 = sshll.u32 %s1, 4
      %s18 = int_to_ptr.hbm [resolvable:$true] %s17
      %s19 = sshll.u32 [#allocation2], 4
      %s20 = int_to_ptr.vmem [resolvable:$true] %s19
      %25 = dma.hbm_to_vmem [thread:$0]  %s18, 256, %s20, [#allocation3], 64, 64, 4
    $region9: #{_lambda_.13} parent=1 // pred_fallthru
      _
    // Predicated region
    $region10: #{_lambda_.13} parent=1 // pred_check
      _
    $region11: #{_lambda_.13} parent=1 // pred_check_branch
      %27 = sbr.rel (0) target = $region13
    $region12: #{_lambda_.13} parent=1 // pred_region
      _
    $region13: #{_lambda_.13} parent=1 // pred_fallthru
      _
    // Predicated region
    $region14: #{_lambda_.13} parent=1 // pred_check
      _
    $region15: #{_lambda_.13} parent=1 // pred_check_branch
      %29 = sbr.rel (0) target = $region17
    $region16: #{_lambda_.13} parent=1 // pred_region
      %31 = vsyncadd [#allocation5], 0
      %s32 = sshll.u32 %s3, 4
      %s33 = int_to_ptr.hbm [resolvable:$true] %s32
      %s34 = sshll.u32 [#allocation4], 4
      %s35 = int_to_ptr.vmem [resolvable:$true] %s34
      %40 = dma.hbm_to_vmem [thread:$0]  %s33, 2048, %s35, [#allocation5], 128, 128, 8
    $region17: #{_lambda_.13} parent=1 // pred_fallthru
      _
    // Predicated region
    $region18: #{_lambda_.13} parent=1 // pred_check
      _
    $region19: #{_lambda_.13} parent=1 // pred_check_branch
      %42 = sbr.rel (0) target = $region21
    $region20: #{_lambda_.13} parent=1 // pred_region
      %44 = dma.done [#allocation3], 256
    $region21: #{_lambda_.13} parent=1 // pred_fallthru
      _
    // Predicated region
    $region22: #{_lambda_.13} parent=1 // pred_check
      _
    $region23: #{_lambda_.13} parent=1 // pred_check_branch
      %46 = sbr.rel (0) target = $region25
    $region24: #{_lambda_.13} parent=1 // pred_region
      %48 = dma.done [#allocation5], 2048
    $region25: #{_lambda_.13} parent=1 // pred_fallthru
      _
    %v50 = vld [vmem:[%s0] sm:$0xf]
    %v51 = vld [vmem:[%s0 + $0x4] sm:$0xf]
    %v52 = vld [vmem:[%s0 + $0x8] sm:$0xf]
    %v53 = vld [vmem:[%s0 + $0xc] sm:$0xf]
    %v54 = vld [vmem:[%s0 + $0x10] sm:$0xf]
    %v55 = vld [vmem:[%s0 + $0x14] sm:$0xf]
    %v56 = vld [vmem:[%s0 + $0x18] sm:$0xf]
    %v57 = vld [vmem:[%s0 + $0x1c] sm:$0xf]
    %v58 = vld [vmem:[%s0 + $0x20] sm:$0xf]
    %v59 = vld [vmem:[%s0 + $0x24] sm:$0xf]
    %v60 = vld [vmem:[%s0 + $0x28] sm:$0xf]
    %v61 = vld [vmem:[%s0 + $0x2c] sm:$0xf]
    %v62 = vld [vmem:[%s0 + $0x30] sm:$0xf]
    %v63 = vld [vmem:[%s0 + $0x34] sm:$0xf]
    %v64 = vld [vmem:[%s0 + $0x38] sm:$0xf]
    %v65 = vld [vmem:[%s0 + $0x3c] sm:$0xf]
    %v66 = vld [vmem:[#allocation2] sm:$0xf]
    %v67 = vld [vmem:[#allocation2 + $0x4] sm:$0xf]
    %v68 = vld [vmem:[#allocation2 + $0x8] sm:$0xf]
    %v69 = vld [vmem:[#allocation2 + $0xc] sm:$0xf]
    %v70 = vld [vmem:[%s2] sm:$0x1]
    %v72 = vperm.slane %v70, 0
    %v90 = vunpack.c.l.b16 %v50
    %v91 = vunpack.c.l.b16 %v51
    %v92 = vunpack.c.l.b16 %v52
    %v93 = vunpack.c.l.b16 %v53
    %v94 = vunpack.c.l.b16 %v54
    %v95 = vunpack.c.l.b16 %v55
    %v96 = vunpack.c.l.b16 %v56
    %v97 = vunpack.c.l.b16 %v57
    %v98 = vunpack.c.l.b16 %v58
    %v99 = vunpack.c.l.b16 %v59
    %v100 = vunpack.c.l.b16 %v60
    %v101 = vunpack.c.l.b16 %v61
    %v102 = vunpack.c.l.b16 %v62
    %v103 = vunpack.c.l.b16 %v63
    %v104 = vunpack.c.l.b16 %v64
    %v105 = vunpack.c.l.b16 %v65
    %v106 = vpack.c.b16 %v91, %v90
    %v107 = vpack.c.b16 %v93, %v92
    %v108 = vpack.c.b16 %v95, %v94
    %v109 = vpack.c.b16 %v97, %v96
    %v110 = vpack.c.b16 %v99, %v98
    %v111 = vpack.c.b16 %v101, %v100
    %v112 = vpack.c.b16 %v103, %v102
    %v113 = vpack.c.b16 %v105, %v104
    %v118 = vunpack.c.l.b16 %v66
    %v119 = vunpack.c.l.b16 %v67
    %v120 = vunpack.c.l.b16 %v68
    %v121 = vunpack.c.l.b16 %v69
    %v122 = vpack.c.b16 %v119, %v118
    %v123 = vpack.c.b16 %v121, %v120
    %vm126 = vcmask 261120
    %v128 = vsel %vm126, %v106, 0
    %v131 = vsel %vm126, %v107, 0
    %v134 = vsel %vm126, %v108, 0
    %v137 = vsel %vm126, %v109, 0
    %v140 = vsel %vm126, %v110, 0
    %v143 = vsel %vm126, %v111, 0
    %v146 = vsel %vm126, %v112, 0
    %v149 = vsel %vm126, %v113, 0
    %151 = vmatpush.bf16.msra.mxu0 0
    %152 = vmatpush.bf16.msra.mxu0 0
    %153 = vmatpush.bf16.msra.mxu0 0
    %154 = vmatpush.bf16.msra.mxu0 0
    %155 = vmatpush.bf16.msra.mxu0 0
    %156 = vmatpush.bf16.msra.mxu0 0
    %157 = vmatpush.bf16.msra.mxu0 %v123
    %158 = vmatpush.bf16.msra.mxu0 %v122
    %159 = vmatmul.bf16.gmra.mxu0 %v128
    %v160 = vpop.f32.mrf.mxu0
    %v161 = vadd.f32 %v72, %v160
    %v162 = vpop.f32.mrf.mxu0
    %v163 = vadd.f32 %v72, %v162
    %164 = vmatmul.bf16.gmra.mxu0 %v131
    %v165 = vpop.f32.mrf.mxu0
    %v166 = vadd.f32 %v72, %v165
    %v167 = vpop.f32.mrf.mxu0
    %v168 = vadd.f32 %v72, %v167
    %169 = vmatmul.bf16.gmra.mxu0 %v134
    %v170 = vpop.f32.mrf.mxu0
    %v171 = vadd.f32 %v72, %v170
    %v172 = vpop.f32.mrf.mxu0
    %v173 = vadd.f32 %v72, %v172
    %174 = vmatmul.bf16.gmra.mxu0 %v137
    %v175 = vpop.f32.mrf.mxu0
    %v176 = vadd.f32 %v72, %v175
    %v177 = vpop.f32.mrf.mxu0
    %v178 = vadd.f32 %v72, %v177
    %179 = vmatmul.bf16.gmra.mxu0 %v140
    %v180 = vpop.f32.mrf.mxu0
    %v181 = vadd.f32 %v72, %v180
    %v182 = vpop.f32.mrf.mxu0
    %v183 = vadd.f32 %v72, %v182
    %184 = vmatmul.bf16.gmra.mxu0 %v143
    %v185 = vpop.f32.mrf.mxu0
    %v186 = vadd.f32 %v72, %v185
    %v187 = vpop.f32.mrf.mxu0
    %v188 = vadd.f32 %v72, %v187
    %189 = vmatmul.bf16.gmra.mxu0 %v146
    %v190 = vpop.f32.mrf.mxu0
    %v191 = vadd.f32 %v72, %v190
    %v192 = vpop.f32.mrf.mxu0
    %v193 = vadd.f32 %v72, %v192
    %194 = vmatmul.bf16.gmra.mxu0 %v149
    %v195 = vpop.f32.mrf.mxu0
    %v196 = vadd.f32 %v72, %v195
    %v197 = vpop.f32.mrf.mxu0
    %v198 = vadd.f32 %v72, %v197
    %199 = vdwg.mxu0
    %v200 = vld [vmem:[#allocation4] sm:$0xff]
    %v201 = vld [vmem:[#allocation4 + $0x8] sm:$0xff]
    %v202 = vld [vmem:[#allocation4 + $0x10] sm:$0xff]
    %v203 = vld [vmem:[#allocation4 + $0x18] sm:$0xff]
    %v204 = vld [vmem:[#allocation4 + $0x20] sm:$0xff]
    %v205 = vld [vmem:[#allocation4 + $0x28] sm:$0xff]
    %v206 = vld [vmem:[#allocation4 + $0x30] sm:$0xff]
    %v207 = vld [vmem:[#allocation4 + $0x38] sm:$0xff]
    %v208 = vld [vmem:[#allocation4 + $0x40] sm:$0xff]
    %v209 = vld [vmem:[#allocation4 + $0x48] sm:$0xff]
    %v210 = vld [vmem:[#allocation4 + $0x50] sm:$0xff]
    %v211 = vld [vmem:[#allocation4 + $0x58] sm:$0xff]
    %v212 = vld [vmem:[#allocation4 + $0x60] sm:$0xff]
    %v213 = vld [vmem:[#allocation4 + $0x68] sm:$0xff]
    %v214 = vld [vmem:[#allocation4 + $0x70] sm:$0xff]
    %v215 = vld [vmem:[#allocation4 + $0x78] sm:$0xff]
    %v216 = vadd.f32 %v161, %v200
    %v217 = vadd.f32 %v163, %v201
    %v218 = vadd.f32 %v166, %v202
    %v219 = vadd.f32 %v168, %v203
    %v220 = vadd.f32 %v171, %v204
    %v221 = vadd.f32 %v173, %v205
    %v222 = vadd.f32 %v176, %v206
    %v223 = vadd.f32 %v178, %v207
    %v224 = vadd.f32 %v181, %v208
    %v225 = vadd.f32 %v183, %v209
    %v226 = vadd.f32 %v186, %v210
    %v227 = vadd.f32 %v188, %v211
    %v228 = vadd.f32 %v191, %v212
    %v229 = vadd.f32 %v193, %v213
    %v230 = vadd.f32 %v196, %v214
    %v231 = vadd.f32 %v198, %v215
    %v232 = vpack.c.bf16 %v216, %v216
    %v233 = vpack.c.bf16 %v217, %v217
    %v234 = vpack.c.bf16 %v218, %v218
    %v235 = vpack.c.bf16 %v219, %v219
    %v236 = vpack.c.bf16 %v220, %v220
    %v237 = vpack.c.bf16 %v221, %v221
    %v238 = vpack.c.bf16 %v222, %v222
    %v239 = vpack.c.bf16 %v223, %v223
    %v240 = vpack.c.bf16 %v224, %v224
    %v241 = vpack.c.bf16 %v225, %v225
    %v242 = vpack.c.bf16 %v226, %v226
    %v243 = vpack.c.bf16 %v227, %v227
    %v244 = vpack.c.bf16 %v228, %v228
    %v245 = vpack.c.bf16 %v229, %v229
    %v246 = vpack.c.bf16 %v230, %v230
    %v247 = vpack.c.bf16 %v231, %v231
    %vm248 = vcmask 257024
    %249 = vst.msk [vmem:[%s4] sm:$0xf] %vm248, %v232
    %250 = vst.msk [vmem:[%s4 + $0x4] sm:$0xf] %vm248, %v233
    %251 = vst.msk [vmem:[%s4 + $0x8] sm:$0xf] %vm248, %v234
    %252 = vst.msk [vmem:[%s4 + $0xc] sm:$0xf] %vm248, %v235
    %253 = vst.msk [vmem:[%s4 + $0x10] sm:$0xf] %vm248, %v236
    %254 = vst.msk [vmem:[%s4 + $0x14] sm:$0xf] %vm248, %v237
    %255 = vst.msk [vmem:[%s4 + $0x18] sm:$0xf] %vm248, %v238
    %256 = vst.msk [vmem:[%s4 + $0x1c] sm:$0xf] %vm248, %v239
    %257 = vst.msk [vmem:[%s4 + $0x20] sm:$0xf] %vm248, %v240
    %258 = vst.msk [vmem:[%s4 + $0x24] sm:$0xf] %vm248, %v241
    %259 = vst.msk [vmem:[%s4 + $0x28] sm:$0xf] %vm248, %v242
    %260 = vst.msk [vmem:[%s4 + $0x2c] sm:$0xf] %vm248, %v243
    %261 = vst.msk [vmem:[%s4 + $0x30] sm:$0xf] %vm248, %v244
    %262 = vst.msk [vmem:[%s4 + $0x34] sm:$0xf] %vm248, %v245
    %263 = vst.msk [vmem:[%s4 + $0x38] sm:$0xf] %vm248, %v246
    %264 = vst.msk [vmem:[%s4 + $0x3c] sm:$0xf] %vm248, %v247
    // Predicated region
    $region26: #{_lambda_.13} parent=1 // pred_check
      _
    $region27: #{_lambda_.13} parent=1 // pred_check_branch
      %266 = sbr.rel (0) target = $region29
    $region28: #{_lambda_.13} parent=1 // pred_region
      _
    $region29: #{_lambda_.13} parent=1 // pred_fallthru
      _
    // Predicated region
    $region30: #{_lambda_.13} parent=1 // pred_check
      _
    $region31: #{_lambda_.13} parent=1 // pred_check_branch
      %268 = sbr.rel (0) target = $region33
    $region32: #{_lambda_.13} parent=1 // pred_region
      _
    $region33: #{_lambda_.13} parent=1 // pred_fallthru
      _
    %269 = vsyncpa [#allocation3], 1
    %270 = vsyncpa [#allocation5], 1

// kernel: _lambda_.11
$region0: #{_lambda_.11}
  #allocation0 [shape = 'u32[]', space=smem, size = 0x4, offset = 0x4, fixed_abs, tag = 'smem constant byte address 0x4 - core index']
  #allocation1 [shape = 'u32[72,128]{1,0:T(1,128)}', space=vmem, size = 0x9000, scoped, tag = 'internal scratch']
  #allocation2 [shape = 'bf16[128,32]{1,0:T(8,128)(2,1)}', space=vmem, size = 0x8000, scoped, tag = 'scratch operand']
  %s0 = inlined_call_operand.hbm [shape: f32[128,32], index: 0, kind: input, shape index: {}]
  %s1 = inlined_call_operand.vmem [shape: bf16[32,96], index: 1, kind: input, shape index: {}]
  %s2 = inlined_call_operand.hbm [shape: f32[1,96], index: 2, kind: input, shape index: {}]
  %s3 = inlined_call_operand.vmem [shape: f32[1,32], index: 3, kind: input, shape index: {}]
  %s4 = inlined_call_operand.vmem [shape: f32[1,32], index: 4, kind: input, shape index: {}]
  %s5 = inlined_call_operand.vmem [shape: bf16[128,96], index: 5, kind: output, shape index: {}]
  %s6 = sld [smem:[#allocation0]]
  $region42: #{_lambda_.11} parent=0
    _
  %s8 = ssub.s32 1, %s6
  %s9 = scalar_select 0, %s8, %s6
  $region1: #{_lambda_.11} parent=0
    #allocation3 [shape = 'u8[65536]{0}', space=vmem, size = 0x10000, scoped, tag = 'input window, operand 0, single buffered']
    #allocation4 [shape = 's32[1]{0}', space=sflag, size = 0x4, scoped, tag = 'scoped memory for _lambda_.11']
    #allocation5 [shape = 'u8[512]{0}', space=vmem, size = 0x400, scoped, tag = 'input window, operand 2, single buffered']
    #allocation6 [shape = 's32[1]{0}', space=sflag, size = 0x4, scoped, tag = 'scoped memory for _lambda_.11']
    %10 = vsyncpa [#allocation4], 0
    %11 = vsyncpa [#allocation6], 0
    // Predicated region
    $region2: #{_lambda_.11} parent=1 // pred_check
      _
    $region3: #{_lambda_.11} parent=1 // pred_check_branch
      %13 = sbr.rel (0) target = $region5
    $region4: #{_lambda_.11} parent=1 // pred_region
      %15 = vsyncadd [#allocation4], 0
      %s16 = sshll.u32 %s0, 4
      %s17 = int_to_ptr.hbm [resolvable:$true] %s16
      %s18 = sshll.u32 [#allocation3], 4
      %s19 = int_to_ptr.vmem [resolvable:$true] %s18
      %24 = dma.hbm_to_vmem [thread:$0]  %s17, 2048, %s19, [#allocation4], 128, 128, 8
    $region5: #{_lambda_.11} parent=1 // pred_fallthru
      _
    // Predicated region
    $region6: #{_lambda_.11} parent=1 // pred_check
      _
    $region7: #{_lambda_.11} parent=1 // pred_check_branch
      %26 = sbr.rel (0) target = $region9
    $region8: #{_lambda_.11} parent=1 // pred_region
      _
    $region9: #{_lambda_.11} parent=1 // pred_fallthru
      _
    // Predicated region
    $region10: #{_lambda_.11} parent=1 // pred_check
      _
    $region11: #{_lambda_.11} parent=1 // pred_check_branch
      %28 = sbr.rel (0) target = $region13
    $region12: #{_lambda_.11} parent=1 // pred_region
      %30 = vsyncadd [#allocation6], 0
      %s32 = sshll.u32 %s2, 4
      %s33 = int_to_ptr.hbm [resolvable:$true] %s32
      %s34 = sshll.u32 [#allocation5], 4
      %s35 = int_to_ptr.vmem [resolvable:$true] %s34
      %37 = dma.hbm_to_vmem [thread:$0]  %s33, 16, %s35, [#allocation6]
    $region13: #{_lambda_.11} parent=1 // pred_fallthru
      _
    // Predicated region
    $region14: #{_lambda_.11} parent=1 // pred_check
      _
    $region15: #{_lambda_.11} parent=1 // pred_check_branch
      %39 = sbr.rel (0) target = $region17
    $region16: #{_lambda_.11} parent=1 // pred_region
      _
    $region17: #{_lambda_.11} parent=1 // pred_fallthru
      _
    // Predicated region
    $region18: #{_lambda_.11} parent=1 // pred_check
      _
    $region19: #{_lambda_.11} parent=1 // pred_check_branch
      %41 = sbr.rel (0) target = $region21
    $region20: #{_lambda_.11} parent=1 // pred_region
      _
    $region21: #{_lambda_.11} parent=1 // pred_fallthru
      _
    // Predicated region
    $region22: #{_lambda_.11} parent=1 // pred_check
      _
    $region23: #{_lambda_.11} parent=1 // pred_check_branch
      %43 = sbr.rel (0) target = $region25
    $region24: #{_lambda_.11} parent=1 // pred_region
      %45 = dma.done [#allocation4], 2048
    $region25: #{_lambda_.11} parent=1 // pred_fallthru
      _
    // Predicated region
    $region26: #{_lambda_.11} parent=1 // pred_check
      _
    $region27: #{_lambda_.11} parent=1 // pred_check_branch
      %47 = sbr.rel (0) target = $region29
    $region28: #{_lambda_.11} parent=1 // pred_region
      %49 = dma.done [#allocation6], 16
    $region29: #{_lambda_.11} parent=1 // pred_fallthru
      _
    %p51 = scmp.eq.s32.totalorder 0, 0
    // Predicated region
    $region30: #{_lambda_.11} parent=1 // pred_check
      %p52 = pneg %p51
    $region31: #{_lambda_.11} parent=1 // pred_check_branch
      %54 = sbr.rel (%p52) target = $region33
    $region32: #{_lambda_.11} parent=1 // pred_region
      %v55 = vld [vmem:[#allocation3] sm:$0xff]
      %v56 = vld [vmem:[#allocation3 + $0x8] sm:$0xff]
      %v57 = vld [vmem:[#allocation3 + $0x10] sm:$0xff]
      %v58 = vld [vmem:[#allocation3 + $0x18] sm:$0xff]
      %v59 = vld [vmem:[#allocation3 + $0x20] sm:$0xff]
      %v60 = vld [vmem:[#allocation3 + $0x28] sm:$0xff]
      %v61 = vld [vmem:[#allocation3 + $0x30] sm:$0xff]
      %v62 = vld [vmem:[#allocation3 + $0x38] sm:$0xff]
      %v63 = vld [vmem:[#allocation3 + $0x40] sm:$0xff]
      %v64 = vld [vmem:[#allocation3 + $0x48] sm:$0xff]
      %v65 = vld [vmem:[#allocation3 + $0x50] sm:$0xff]
      %v66 = vld [vmem:[#allocation3 + $0x58] sm:$0xff]
      %v67 = vld [vmem:[#allocation3 + $0x60] sm:$0xff]
      %v68 = vld [vmem:[#allocation3 + $0x68] sm:$0xff]
      %v69 = vld [vmem:[#allocation3 + $0x70] sm:$0xff]
      %v70 = vld [vmem:[#allocation3 + $0x78] sm:$0xff]
      %vm71 = vcmask 261120
      %v72 = vsel %vm71, %v55, 0.0
      %73 = vadd.xlane.f32.xlu0 %v72
      %v74 = vpop.xlane.xlu0 %73
      %v75 = vsel %vm71, %v56, 0.0
      %76 = vadd.xlane.f32.xlu0 %v75
      %v77 = vpop.xlane.xlu0 %76
      %v78 = vsel %vm71, %v57, 0.0
      %79 = vadd.xlane.f32.xlu0 %v78
      %v80 = vpop.xlane.xlu0 %79
      %v81 = vsel %vm71, %v58, 0.0
      %82 = vadd.xlane.f32.xlu0 %v81
      %v83 = vpop.xlane.xlu0 %82
      %v84 = vsel %vm71, %v59, 0.0
      %85 = vadd.xlane.f32.xlu0 %v84
      %v86 = vpop.xlane.xlu0 %85
      %v87 = vsel %vm71, %v60, 0.0
      %88 = vadd.xlane.f32.xlu0 %v87
      %v89 = vpop.xlane.xlu0 %88
      %v90 = vsel %vm71, %v61, 0.0
      %91 = vadd.xlane.f32.xlu0 %v90
      %v92 = vpop.xlane.xlu0 %91
      %v93 = vsel %vm71, %v62, 0.0
      %94 = vadd.xlane.f32.xlu0 %v93
      %v95 = vpop.xlane.xlu0 %94
      %v96 = vsel %vm71, %v63, 0.0
      %97 = vadd.xlane.f32.xlu0 %v96
      %v98 = vpop.xlane.xlu0 %97
      %v99 = vsel %vm71, %v64, 0.0
      %100 = vadd.xlane.f32.xlu0 %v99
      %v101 = vpop.xlane.xlu0 %100
      %v102 = vsel %vm71, %v65, 0.0
      %103 = vadd.xlane.f32.xlu0 %v102
      %v104 = vpop.xlane.xlu0 %103
      %v105 = vsel %vm71, %v66, 0.0
      %106 = vadd.xlane.f32.xlu0 %v105
      %v107 = vpop.xlane.xlu0 %106
      %v108 = vsel %vm71, %v67, 0.0
      %109 = vadd.xlane.f32.xlu0 %v108
      %v110 = vpop.xlane.xlu0 %109
      %v111 = vsel %vm71, %v68, 0.0
      %112 = vadd.xlane.f32.xlu0 %v111
      %v113 = vpop.xlane.xlu0 %112
      %v114 = vsel %vm71, %v69, 0.0
      %115 = vadd.xlane.f32.xlu0 %v114
      %v116 = vpop.xlane.xlu0 %115
      %v117 = vsel %vm71, %v70, 0.0
      %118 = vadd.xlane.f32.xlu0 %v117
      %v119 = vpop.xlane.xlu0 %118
      %v120 = vrcp.pop 32.0
      %v121 = vmul.f32 32.0, %v120
      %v122 = vsub.f32 1.0, %v121
      %v123 = vmul.f32 %v120, %v122
      %v124 = vadd.f32 %v120, %v123
      %vm125 = vweird.f32 %v120
      %v126 = vsel %vm125, %v120, %v124
      %v127 = vmul.f32 %v74, %v126
      %v128 = vmul.f32 %v77, %v126
      %v129 = vmul.f32 %v80, %v126
      %v130 = vmul.f32 %v83, %v126
      %v131 = vmul.f32 %v86, %v126
      %v132 = vmul.f32 %v89, %v126
      %v133 = vmul.f32 %v92, %v126
      %v134 = vmul.f32 %v95, %v126
      %v135 = vmul.f32 %v98, %v126
      %v136 = vmul.f32 %v101, %v126
      %v137 = vmul.f32 %v104, %v126
      %v138 = vmul.f32 %v107, %v126
      %v139 = vmul.f32 %v110, %v126
      %v140 = vmul.f32 %v113, %v126
      %v141 = vmul.f32 %v116, %v126
      %v142 = vmul.f32 %v119, %v126
      %v143 = vsub.f32 %v55, %v127
      %v144 = vsub.f32 %v56, %v128
      %v145 = vsub.f32 %v57, %v129
      %v146 = vsub.f32 %v58, %v130
      %v147 = vsub.f32 %v59, %v131
      %v148 = vsub.f32 %v60, %v132
      %v149 = vsub.f32 %v61, %v133
      %v150 = vsub.f32 %v62, %v134
      %v151 = vsub.f32 %v63, %v135
      %v152 = vsub.f32 %v64, %v136
      %v153 = vsub.f32 %v65, %v137
      %v154 = vsub.f32 %v66, %v138
      %v155 = vsub.f32 %v67, %v139
      %v156 = vsub.f32 %v68, %v140
      %v157 = vsub.f32 %v69, %v141
      %v158 = vsub.f32 %v70, %v142
      %v159 = vmul.f32 %v143, %v143
      %v160 = vmul.f32 %v144, %v144
      %v161 = vmul.f32 %v145, %v145
      %v162 = vmul.f32 %v146, %v146
      %v163 = vmul.f32 %v147, %v147
      %v164 = vmul.f32 %v148, %v148
      %v165 = vmul.f32 %v149, %v149
      %v166 = vmul.f32 %v150, %v150
      %v167 = vmul.f32 %v151, %v151
      %v168 = vmul.f32 %v152, %v152
      %v169 = vmul.f32 %v153, %v153
      %v170 = vmul.f32 %v154, %v154
      %v171 = vmul.f32 %v155, %v155
      %v172 = vmul.f32 %v156, %v156
      %v173 = vmul.f32 %v157, %v157
      %v174 = vmul.f32 %v158, %v158
      %v175 = vsel %vm71, %v159, 0.0
      %176 = vadd.xlane.f32.xlu0 %v175
      %v177 = vpop.xlane.xlu0 %176
      %v178 = vsel %vm71, %v160, 0.0
      %179 = vadd.xlane.f32.xlu0 %v178
      %v180 = vpop.xlane.xlu0 %179
      %v181 = vsel %vm71, %v161, 0.0
      %182 = vadd.xlane.f32.xlu0 %v181
      %v183 = vpop.xlane.xlu0 %182
      %v184 = vsel %vm71, %v162, 0.0
      %185 = vadd.xlane.f32.xlu0 %v184
      %v186 = vpop.xlane.xlu0 %185
      %v187 = vsel %vm71, %v163, 0.0
      %188 = vadd.xlane.f32.xlu0 %v187
      %v189 = vpop.xlane.xlu0 %188
      %v190 = vsel %vm71, %v164, 0.0
      %191 = vadd.xlane.f32.xlu0 %v190
      %v192 = vpop.xlane.xlu0 %191
      %v193 = vsel %vm71, %v165, 0.0
      %194 = vadd.xlane.f32.xlu0 %v193
      %v195 = vpop.xlane.xlu0 %194
      %v196 = vsel %vm71, %v166, 0.0
      %197 = vadd.xlane.f32.xlu0 %v196
      %v198 = vpop.xlane.xlu0 %197
      %v199 = vsel %vm71, %v167, 0.0
      %200 = vadd.xlane.f32.xlu0 %v199
      %v201 = vpop.xlane.xlu0 %200
      %v202 = vsel %vm71, %v168, 0.0
      %203 = vadd.xlane.f32.xlu0 %v202
      %v204 = vpop.xlane.xlu0 %203
      %v205 = vsel %vm71, %v169, 0.0
      %206 = vadd.xlane.f32.xlu0 %v205
      %v207 = vpop.xlane.xlu0 %206
      %v208 = vsel %vm71, %v170, 0.0
      %209 = vadd.xlane.f32.xlu0 %v208
      %v210 = vpop.xlane.xlu0 %209
      %v211 = vsel %vm71, %v171, 0.0
      %212 = vadd.xlane.f32.xlu0 %v211
      %v213 = vpop.xlane.xlu0 %212
      %v214 = vsel %vm71, %v172, 0.0
      %215 = vadd.xlane.f32.xlu0 %v214
      %v216 = vpop.xlane.xlu0 %215
      %v217 = vsel %vm71, %v173, 0.0
      %218 = vadd.xlane.f32.xlu0 %v217
      %v219 = vpop.xlane.xlu0 %218
      %v220 = vsel %vm71, %v174, 0.0
      %221 = vadd.xlane.f32.xlu0 %v220
      %v222 = vpop.xlane.xlu0 %221
      %v223 = vmul.f32 %v177, %v126
      %v224 = vmul.f32 %v180, %v126
      %v225 = vmul.f32 %v183, %v126
      %v226 = vmul.f32 %v186, %v126
      %v227 = vmul.f32 %v189, %v126
      %v228 = vmul.f32 %v192, %v126
      %v229 = vmul.f32 %v195, %v126
      %v230 = vmul.f32 %v198, %v126
      %v231 = vmul.f32 %v201, %v126
      %v232 = vmul.f32 %v204, %v126
      %v233 = vmul.f32 %v207, %v126
      %v234 = vmul.f32 %v210, %v126
      %v235 = vmul.f32 %v213, %v126
      %v236 = vmul.f32 %v216, %v126
      %v237 = vmul.f32 %v219, %v126
      %v238 = vmul.f32 %v222, %v126
      %v239 = vadd.f32 %v223, 1e-05
      %v240 = vadd.f32 %v224, 1e-05
      %v241 = vadd.f32 %v225, 1e-05
      %v242 = vadd.f32 %v226, 1e-05
      %v243 = vadd.f32 %v227, 1e-05
      %v244 = vadd.f32 %v228, 1e-05
      %v245 = vadd.f32 %v229, 1e-05
      %v246 = vadd.f32 %v230, 1e-05
      %v247 = vadd.f32 %v231, 1e-05
      %v248 = vadd.f32 %v232, 1e-05
      %v249 = vadd.f32 %v233, 1e-05
      %v250 = vadd.f32 %v234, 1e-05
      %v251 = vadd.f32 %v235, 1e-05
      %v252 = vadd.f32 %v236, 1e-05
      %v253 = vadd.f32 %v237, 1e-05
      %v254 = vadd.f32 %v238, 1e-05
      %v255 = vrsqrt.pop %v239
      %v256 = vmul.f32 %v255, %v239
      %v257 = vmul.f32 %v256, %v255
      %v258 = vmul.f32 0.5, %v257
      %v259 = vsub.f32 1.5, %v258
      %v260 = vmul.f32 %v255, %v259
      %vm261 = vweird.f32 %v239
      %vm262 = vweird.f32 %v255
      %vm263 = vmor %vm261, %vm262
      %v264 = vsel %vm263, %v255, %v260
      %v265 = vrsqrt.pop %v240
      %v266 = vmul.f32 %v265, %v240
      %v267 = vmul.f32 %v266, %v265
      %v268 = vmul.f32 0.5, %v267
      %v269 = vsub.f32 1.5, %v268
      %v270 = vmul.f32 %v265, %v269
      %vm271 = vweird.f32 %v240
      %vm272 = vweird.f32 %v265
      %vm273 = vmor %vm271, %vm272
      %v274 = vsel %vm273, %v265, %v270
      %v275 = vrsqrt.pop %v241
      %v276 = vmul.f32 %v275, %v241
      %v277 = vmul.f32 %v276, %v275
      %v278 = vmul.f32 0.5, %v277
      %v279 = vsub.f32 1.5, %v278
      %v280 = vmul.f32 %v275, %v279
      %vm281 = vweird.f32 %v241
      %vm282 = vweird.f32 %v275
      %vm283 = vmor %vm281, %vm282
      %v284 = vsel %vm283, %v275, %v280
      %v285 = vrsqrt.pop %v242
      %v286 = vmul.f32 %v285, %v242
      %v287 = vmul.f32 %v286, %v285
      %v288 = vmul.f32 0.5, %v287
      %v289 = vsub.f32 1.5, %v288
      %v290 = vmul.f32 %v285, %v289
      %vm291 = vweird.f32 %v242
      %vm292 = vweird.f32 %v285
      %vm293 = vmor %vm291, %vm292
      %v294 = vsel %vm293, %v285, %v290
      %v295 = vrsqrt.pop %v243
      %v296 = vmul.f32 %v295, %v243
      %v297 = vmul.f32 %v296, %v295
      %v298 = vmul.f32 0.5, %v297
      %v299 = vsub.f32 1.5, %v298
      %v300 = vmul.f32 %v295, %v299
      %vm301 = vweird.f32 %v243
      %vm302 = vweird.f32 %v295
      %vm303 = vmor %vm301, %vm302
      %v304 = vsel %vm303, %v295, %v300
      %v305 = vrsqrt.pop %v244
      %v306 = vmul.f32 %v305, %v244
      %v307 = vmul.f32 %v306, %v305
      %v308 = vmul.f32 0.5, %v307
      %v309 = vsub.f32 1.5, %v308
      %v310 = vmul.f32 %v305, %v309
      %vm311 = vweird.f32 %v244
      %vm312 = vweird.f32 %v305
      %vm313 = vmor %vm311, %vm312
      %v314 = vsel %vm313, %v305, %v310
      %v315 = vrsqrt.pop %v245
      %v316 = vmul.f32 %v315, %v245
      %v317 = vmul.f32 %v316, %v315
      %v318 = vmul.f32 0.5, %v317
      %v319 = vsub.f32 1.5, %v318
      %v320 = vmul.f32 %v315, %v319
      %vm321 = vweird.f32 %v245
      %vm322 = vweird.f32 %v315
      %vm323 = vmor %vm321, %vm322
      %v324 = vsel %vm323, %v315, %v320
      %v325 = vrsqrt.pop %v246
      %v326 = vmul.f32 %v325, %v246
      %v327 = vmul.f32 %v326, %v325
      %v328 = vmul.f32 0.5, %v327
      %v329 = vsub.f32 1.5, %v328
      %v330 = vmul.f32 %v325, %v329
      %vm331 = vweird.f32 %v246
      %vm332 = vweird.f32 %v325
      %vm333 = vmor %vm331, %vm332
      %v334 = vsel %vm333, %v325, %v330
      %v335 = vrsqrt.pop %v247
      %v336 = vmul.f32 %v335, %v247
      %v337 = vmul.f32 %v336, %v335
      %v338 = vmul.f32 0.5, %v337
      %v339 = vsub.f32 1.5, %v338
      %v340 = vmul.f32 %v335, %v339
      %vm341 = vweird.f32 %v247
      %vm342 = vweird.f32 %v335
      %vm343 = vmor %vm341, %vm342
      %v344 = vsel %vm343, %v335, %v340
      %v345 = vrsqrt.pop %v248
      %v346 = vmul.f32 %v345, %v248
      %v347 = vmul.f32 %v346, %v345
      %v348 = vmul.f32 0.5, %v347
      %v349 = vsub.f32 1.5, %v348
      %v350 = vmul.f32 %v345, %v349
      %vm351 = vweird.f32 %v248
      %vm352 = vweird.f32 %v345
      %vm353 = vmor %vm351, %vm352
      %v354 = vsel %vm353, %v345, %v350
      %v355 = vrsqrt.pop %v249
      %v356 = vmul.f32 %v355, %v249
      %v357 = vmul.f32 %v356, %v355
      %v358 = vmul.f32 0.5, %v357
      %v359 = vsub.f32 1.5, %v358
      %v360 = vmul.f32 %v355, %v359
      %vm361 = vweird.f32 %v249
      %vm362 = vweird.f32 %v355
      %vm363 = vmor %vm361, %vm362
      %v364 = vsel %vm363, %v355, %v360
      %v365 = vrsqrt.pop %v250
      %v366 = vmul.f32 %v365, %v250
      %v367 = vmul.f32 %v366, %v365
      %v368 = vmul.f32 0.5, %v367
      %v369 = vsub.f32 1.5, %v368
      %v370 = vmul.f32 %v365, %v369
      %vm371 = vweird.f32 %v250
      %vm372 = vweird.f32 %v365
      %vm373 = vmor %vm371, %vm372
      %v374 = vsel %vm373, %v365, %v370
      %v375 = vrsqrt.pop %v251
      %v376 = vmul.f32 %v375, %v251
      %v377 = vmul.f32 %v376, %v375
      %v378 = vmul.f32 0.5, %v377
      %v379 = vsub.f32 1.5, %v378
      %v380 = vmul.f32 %v375, %v379
      %vm381 = vweird.f32 %v251
      %vm382 = vweird.f32 %v375
      %vm383 = vmor %vm381, %vm382
      %v384 = vsel %vm383, %v375, %v380
      %v385 = vrsqrt.pop %v252
      %v386 = vmul.f32 %v385, %v252
      %v387 = vmul.f32 %v386, %v385
      %v388 = vmul.f32 0.5, %v387
      %v389 = vsub.f32 1.5, %v388
      %v390 = vmul.f32 %v385, %v389
      %vm391 = vweird.f32 %v252
      %vm392 = vweird.f32 %v385
      %vm393 = vmor %vm391, %vm392
      %v394 = vsel %vm393, %v385, %v390
      %v395 = vrsqrt.pop %v253
      %v396 = vmul.f32 %v395, %v253
      %v397 = vmul.f32 %v396, %v395
      %v398 = vmul.f32 0.5, %v397
      %v399 = vsub.f32 1.5, %v398
      %v400 = vmul.f32 %v395, %v399
      %vm401 = vweird.f32 %v253
      %vm402 = vweird.f32 %v395
      %vm403 = vmor %vm401, %vm402
      %v404 = vsel %vm403, %v395, %v400
      %v405 = vrsqrt.pop %v254
      %v406 = vmul.f32 %v405, %v254
      %v407 = vmul.f32 %v406, %v405
      %v408 = vmul.f32 0.5, %v407
      %v409 = vsub.f32 1.5, %v408
      %v410 = vmul.f32 %v405, %v409
      %vm411 = vweird.f32 %v254
      %vm412 = vweird.f32 %v405
      %vm413 = vmor %vm411, %vm412
      %v414 = vsel %vm413, %v405, %v410
      %v415 = vmul.f32 %v143, %v264
      %v416 = vmul.f32 %v144, %v274
      %v417 = vmul.f32 %v145, %v284
      %v418 = vmul.f32 %v146, %v294
      %v419 = vmul.f32 %v147, %v304
      %v420 = vmul.f32 %v148, %v314
      %v421 = vmul.f32 %v149, %v324
      %v422 = vmul.f32 %v150, %v334
      %v423 = vmul.f32 %v151, %v344
      %v424 = vmul.f32 %v152, %v354
      %v425 = vmul.f32 %v153, %v364
      %v426 = vmul.f32 %v154, %v374
      %v427 = vmul.f32 %v155, %v384
      %v428 = vmul.f32 %v156, %v394
      %v429 = vmul.f32 %v157, %v404
      %v430 = vmul.f32 %v158, %v414
      %v431 = vld [vmem:[%s3] sm:$0x1]
      %v433 = vperm.slane %v431, 0
      %v435 = vmul.f32 %v415, %v433
      %v436 = vmul.f32 %v416, %v433
      %v437 = vmul.f32 %v417, %v433
      %v438 = vmul.f32 %v418, %v433
      %v439 = vmul.f32 %v419, %v433
      %v440 = vmul.f32 %v420, %v433
      %v441 = vmul.f32 %v421, %v433
      %v442 = vmul.f32 %v422, %v433
      %v443 = vmul.f32 %v423, %v433
      %v444 = vmul.f32 %v424, %v433
      %v445 = vmul.f32 %v425, %v433
      %v446 = vmul.f32 %v426, %v433
      %v447 = vmul.f32 %v427, %v433
      %v448 = vmul.f32 %v428, %v433
      %v449 = vmul.f32 %v429, %v433
      %v450 = vmul.f32 %v430, %v433
      %v451 = vld [vmem:[%s4] sm:$0x1]
      %v453 = vperm.slane %v451, 0
      %v455 = vadd.f32 %v435, %v453
      %v456 = vadd.f32 %v436, %v453
      %v457 = vadd.f32 %v437, %v453
      %v458 = vadd.f32 %v438, %v453
      %v459 = vadd.f32 %v439, %v453
      %v460 = vadd.f32 %v440, %v453
      %v461 = vadd.f32 %v441, %v453
      %v462 = vadd.f32 %v442, %v453
      %v463 = vadd.f32 %v443, %v453
      %v464 = vadd.f32 %v444, %v453
      %v465 = vadd.f32 %v445, %v453
      %v466 = vadd.f32 %v446, %v453
      %v467 = vadd.f32 %v447, %v453
      %v468 = vadd.f32 %v448, %v453
      %v469 = vadd.f32 %v449, %v453
      %v470 = vadd.f32 %v450, %v453
      %v471 = vpack.c.bf16 %v455, %v455
      %v472 = vpack.c.bf16 %v456, %v456
      %v473 = vpack.c.bf16 %v457, %v457
      %v474 = vpack.c.bf16 %v458, %v458
      %v475 = vpack.c.bf16 %v459, %v459
      %v476 = vpack.c.bf16 %v460, %v460
      %v477 = vpack.c.bf16 %v461, %v461
      %v478 = vpack.c.bf16 %v462, %v462
      %v479 = vpack.c.bf16 %v463, %v463
      %v480 = vpack.c.bf16 %v464, %v464
      %v481 = vpack.c.bf16 %v465, %v465
      %v482 = vpack.c.bf16 %v466, %v466
      %v483 = vpack.c.bf16 %v467, %v467
      %v484 = vpack.c.bf16 %v468, %v468
      %v485 = vpack.c.bf16 %v469, %v469
      %v486 = vpack.c.bf16 %v470, %v470
      %vm487 = vcmask 257024
      %488 = vst.msk [vmem:[#allocation2] sm:$0xf] %vm487, %v471
      %489 = vst.msk [vmem:[#allocation2 + $0x4] sm:$0xf] %vm487, %v472
      %490 = vst.msk [vmem:[#allocation2 + $0x8] sm:$0xf] %vm487, %v473
      %491 = vst.msk [vmem:[#allocation2 + $0xc] sm:$0xf] %vm487, %v474
      %492 = vst.msk [vmem:[#allocation2 + $0x10] sm:$0xf] %vm487, %v475
      %493 = vst.msk [vmem:[#allocation2 + $0x14] sm:$0xf] %vm487, %v476
      %494 = vst.msk [vmem:[#allocation2 + $0x18] sm:$0xf] %vm487, %v477
      %495 = vst.msk [vmem:[#allocation2 + $0x1c] sm:$0xf] %vm487, %v478
      %496 = vst.msk [vmem:[#allocation2 + $0x20] sm:$0xf] %vm487, %v479
      %497 = vst.msk [vmem:[#allocation2 + $0x24] sm:$0xf] %vm487, %v480
      %498 = vst.msk [vmem:[#allocation2 + $0x28] sm:$0xf] %vm487, %v481
      %499 = vst.msk [vmem:[#allocation2 + $0x2c] sm:$0xf] %vm487, %v482
      %500 = vst.msk [vmem:[#allocation2 + $0x30] sm:$0xf] %vm487, %v483
      %501 = vst.msk [vmem:[#allocation2 + $0x34] sm:$0xf] %vm487, %v484
      %502 = vst.msk [vmem:[#allocation2 + $0x38] sm:$0xf] %vm487, %v485
      %503 = vst.msk [vmem:[#allocation2 + $0x3c] sm:$0xf] %vm487, %v486
    $region33: #{_lambda_.11} parent=1 // pred_fallthru
      _
    %v504 = vld [vmem:[#allocation2] sm:$0xf]
    %v505 = vld [vmem:[#allocation2 + $0x4] sm:$0xf]
    %v506 = vld [vmem:[#allocation2 + $0x8] sm:$0xf]
    %v507 = vld [vmem:[#allocation2 + $0xc] sm:$0xf]
    %v508 = vld [vmem:[#allocation2 + $0x10] sm:$0xf]
    %v509 = vld [vmem:[#allocation2 + $0x14] sm:$0xf]
    %v510 = vld [vmem:[#allocation2 + $0x18] sm:$0xf]
    %v511 = vld [vmem:[#allocation2 + $0x1c] sm:$0xf]
    %v512 = vld [vmem:[#allocation2 + $0x20] sm:$0xf]
    %v513 = vld [vmem:[#allocation2 + $0x24] sm:$0xf]
    %v514 = vld [vmem:[#allocation2 + $0x28] sm:$0xf]
    %v515 = vld [vmem:[#allocation2 + $0x2c] sm:$0xf]
    %v516 = vld [vmem:[#allocation2 + $0x30] sm:$0xf]
    %v517 = vld [vmem:[#allocation2 + $0x34] sm:$0xf]
    %v518 = vld [vmem:[#allocation2 + $0x38] sm:$0xf]
    %v519 = vld [vmem:[#allocation2 + $0x3c] sm:$0xf]
    %v520 = vld [vmem:[%s1] sm:$0xf]
    %v521 = vld [vmem:[%s1 + $0x4] sm:$0xf]
    %v522 = vld [vmem:[%s1 + $0x8] sm:$0xf]
    %v523 = vld [vmem:[%s1 + $0xc] sm:$0xf]
    %v524 = vld [vmem:[#allocation5] sm:$0x1]
    %v526 = vperm.slane %v524, 0
    %v544 = vunpack.c.l.b16 %v504
    %v545 = vunpack.c.l.b16 %v505
    %v546 = vunpack.c.l.b16 %v506
    %v547 = vunpack.c.l.b16 %v507
    %v548 = vunpack.c.l.b16 %v508
    %v549 = vunpack.c.l.b16 %v509
    %v550 = vunpack.c.l.b16 %v510
    %v551 = vunpack.c.l.b16 %v511
    %v552 = vunpack.c.l.b16 %v512
    %v553 = vunpack.c.l.b16 %v513
    %v554 = vunpack.c.l.b16 %v514
    %v555 = vunpack.c.l.b16 %v515
    %v556 = vunpack.c.l.b16 %v516
    %v557 = vunpack.c.l.b16 %v517
    %v558 = vunpack.c.l.b16 %v518
    %v559 = vunpack.c.l.b16 %v519
    %v560 = vpack.c.b16 %v545, %v544
    %v561 = vpack.c.b16 %v547, %v546
    %v562 = vpack.c.b16 %v549, %v548
    %v563 = vpack.c.b16 %v551, %v550
    %v564 = vpack.c.b16 %v553, %v552
    %v565 = vpack.c.b16 %v555, %v554
    %v566 = vpack.c.b16 %v557, %v556
    %v567 = vpack.c.b16 %v559, %v558
    %v572 = vunpack.c.l.b16 %v520
    %v573 = vunpack.c.l.b16 %v521
    %v574 = vunpack.c.l.b16 %v522
    %v575 = vunpack.c.l.b16 %v523
    %v576 = vpack.c.b16 %v573, %v572
    %v577 = vpack.c.b16 %v575, %v574
    %vm580 = vcmask 261120
    %v582 = vsel %vm580, %v560, 0
    %v585 = vsel %vm580, %v561, 0
    %v588 = vsel %vm580, %v562, 0
    %v591 = vsel %vm580, %v563, 0
    %v594 = vsel %vm580, %v564, 0
    %v597 = vsel %vm580, %v565, 0
    %v600 = vsel %vm580, %v566, 0
    %v603 = vsel %vm580, %v567, 0
    %605 = vmatpush.bf16.msra.mxu0 0
    %606 = vmatpush.bf16.msra.mxu0 0
    %607 = vmatpush.bf16.msra.mxu0 0
    %608 = vmatpush.bf16.msra.mxu0 0
    %609 = vmatpush.bf16.msra.mxu0 0
    %610 = vmatpush.bf16.msra.mxu0 0
    %611 = vmatpush.bf16.msra.mxu0 %v577
    %612 = vmatpush.bf16.msra.mxu0 %v576
    %613 = vmatmul.bf16.gmra.mxu0 %v582
    %v614 = vpop.f32.mrf.mxu0
    %v615 = vadd.f32 %v526, %v614
    %v616 = vpop.f32.mrf.mxu0
    %v617 = vadd.f32 %v526, %v616
    %618 = vmatmul.bf16.gmra.mxu0 %v585
    %v619 = vpop.f32.mrf.mxu0
    %v620 = vadd.f32 %v526, %v619
    %v621 = vpop.f32.mrf.mxu0
    %v622 = vadd.f32 %v526, %v621
    %623 = vmatmul.bf16.gmra.mxu0 %v588
    %v624 = vpop.f32.mrf.mxu0
    %v625 = vadd.f32 %v526, %v624
    %v626 = vpop.f32.mrf.mxu0
    %v627 = vadd.f32 %v526, %v626
    %628 = vmatmul.bf16.gmra.mxu0 %v591
    %v629 = vpop.f32.mrf.mxu0
    %v630 = vadd.f32 %v526, %v629
    %v631 = vpop.f32.mrf.mxu0
    %v632 = vadd.f32 %v526, %v631
    %633 = vmatmul.bf16.gmra.mxu0 %v594
    %v634 = vpop.f32.mrf.mxu0
    %v635 = vadd.f32 %v526, %v634
    %v636 = vpop.f32.mrf.mxu0
    %v637 = vadd.f32 %v526, %v636
    %638 = vmatmul.bf16.gmra.mxu0 %v597
    %v639 = vpop.f32.mrf.mxu0
    %v640 = vadd.f32 %v526, %v639
    %v641 = vpop.f32.mrf.mxu0
    %v642 = vadd.f32 %v526, %v641
    %643 = vmatmul.bf16.gmra.mxu0 %v600
    %v644 = vpop.f32.mrf.mxu0
    %v645 = vadd.f32 %v526, %v644
    %v646 = vpop.f32.mrf.mxu0
    %v647 = vadd.f32 %v526, %v646
    %648 = vmatmul.bf16.gmra.mxu0 %v603
    %v649 = vpop.f32.mrf.mxu0
    %v650 = vadd.f32 %v526, %v649
    %v651 = vpop.f32.mrf.mxu0
    %v652 = vadd.f32 %v526, %v651
    %653 = vdwg.mxu0
    %v654 = vpack.c.bf16 %v615, %v615
    %v655 = vpack.c.bf16 %v617, %v617
    %v656 = vpack.c.bf16 %v620, %v620
    %v657 = vpack.c.bf16 %v622, %v622
    %v658 = vpack.c.bf16 %v625, %v625
    %v659 = vpack.c.bf16 %v627, %v627
    %v660 = vpack.c.bf16 %v630, %v630
    %v661 = vpack.c.bf16 %v632, %v632
    %v662 = vpack.c.bf16 %v635, %v635
    %v663 = vpack.c.bf16 %v637, %v637
    %v664 = vpack.c.bf16 %v640, %v640
    %v665 = vpack.c.bf16 %v642, %v642
    %v666 = vpack.c.bf16 %v645, %v645
    %v667 = vpack.c.bf16 %v647, %v647
    %v668 = vpack.c.bf16 %v650, %v650
    %v669 = vpack.c.bf16 %v652, %v652
    %vm670 = vcmask 781312
    %671 = vst.msk [vmem:[%s5] sm:$0xf] %vm670, %v654
    %672 = vst.msk [vmem:[%s5 + $0x4] sm:$0xf] %vm670, %v655
    %673 = vst.msk [vmem:[%s5 + $0x8] sm:$0xf] %vm670, %v656
    %674 = vst.msk [vmem:[%s5 + $0xc] sm:$0xf] %vm670, %v657
    %675 = vst.msk [vmem:[%s5 + $0x10] sm:$0xf] %vm670, %v658
    %676 = vst.msk [vmem:[%s5 + $0x14] sm:$0xf] %vm670, %v659
    %677 = vst.msk [vmem:[%s5 + $0x18] sm:$0xf] %vm670, %v660
    %678 = vst.msk [vmem:[%s5 + $0x1c] sm:$0xf] %vm670, %v661
    %679 = vst.msk [vmem:[%s5 + $0x20] sm:$0xf] %vm670, %v662
    %680 = vst.msk [vmem:[%s5 + $0x24] sm:$0xf] %vm670, %v663
    %681 = vst.msk [vmem:[%s5 + $0x28] sm:$0xf] %vm670, %v664
    %682 = vst.msk [vmem:[%s5 + $0x2c] sm:$0xf] %vm670, %v665
    %683 = vst.msk [vmem:[%s5 + $0x30] sm:$0xf] %vm670, %v666
    %684 = vst.msk [vmem:[%s5 + $0x34] sm:$0xf] %vm670, %v667
    %685 = vst.msk [vmem:[%s5 + $0x38] sm:$0xf] %vm670, %v668
    %686 = vst.msk [vmem:[%s5 + $0x3c] sm:$0xf] %vm670, %v669
    // Predicated region
    $region34: #{_lambda_.11} parent=1 // pred_check
      _
    $region35: #{_lambda_.11} parent=1 // pred_check_branch
      %688 = sbr.rel (0) target = $region37
    $region36: #{_lambda_.11} parent=1 // pred_region
      _
    $region37: #{_lambda_.11} parent=1 // pred_fallthru
      _
    // Predicated region
    $region38: #{_lambda_.11} parent=1 // pred_check
      _
    $region39: #{_lambda_.11} parent=1 // pred_check_branch
      %690 = sbr.rel (0) target = $region41
    $region40: #{_lambda_.11} parent=1 // pred_region
      _
    $region41: #{_lambda_.11} parent=1 // pred_fallthru
      _
    %691 = vsyncpa [#allocation4], 1
    %692 = vsyncpa [#allocation6], 1

// kernel: _lambda_.12
$region0: #{_lambda_.12}
  #allocation0 [shape = 'u32[]', space=smem, size = 0x4, offset = 0x4, fixed_abs, tag = 'smem constant byte address 0x4 - core index']
  #allocation1 [shape = 'u32[72,128]{1,0:T(1,128)}', space=vmem, size = 0x9000, scoped, tag = 'internal scratch']
  %s0 = inlined_call_operand.vmem [shape: bf16[2,8,8,96], index: 0, kind: input, shape index: {}]
  %s1 = inlined_call_operand.hbm [shape: f32[9,64,2], index: 1, kind: input, shape index: {}]
  %s2 = inlined_call_operand.vmem [shape: bf16[2,8,8,32], index: 2, kind: output, shape index: {}]
  %s3 = sld [smem:[#allocation0]]
  $region45: #{_lambda_.12} parent=0
    _
  %s5 = ssub.s32 1, %s3
  %s6 = scalar_select 0, %s5, %s3
  $region1: #{_lambda_.12} parent=0
    #allocation2 [shape = 'u8[294912]{0}', space=vmem, size = 0x48000, scoped, tag = 'input window, operand 1, single buffered']
    #allocation3 [shape = 's32[2]{0}', space=sflag, size = 0x8, scoped, tag = 'scoped memory for _lambda_.12']
    %7 = vsyncpa [#allocation3], 0
    loop: start=0, step=1, limit=4
    $region2: #{_lambda_.12} parent=1 // loop_pre_header
      _
    $region3: #{_lambda_.12} parent=1 // loop_header
      %s9 = sphi 0, %s13
      %p10 = scmp.ge.s32.totalorder %s9, 4
      %s19 = sphi 0, %s21
      %s22 = sphi 0, %s19
      %s23 = sphi 0, %s22
      %s39 = sphi 0, %s23
      %s43 = sphi 0, %s43
      %s45 = sphi 0, %s43
      %s46 = sphi 0, %s45
      %s60 = sphi 0, %s46
      %s66 = sphi 0, %s68
      %s69 = sphi 0, %s66
      %s70 = sphi 0, %s69
      %s86 = sphi 0, %s70
    $region4: #{_lambda_.12} parent=1 // loop_header_branch
      %12 = sbr.rel (%p10) target = $region8
    $region5: #{_lambda_.12} parent=1 // loop_body
      %s14 = ssub.s32 %s9, 1
      %s15 = ssub.s32 %s9, 2
      %s16 = sadd.s32 %s9, 1
      %s17 = ssub.s32 %s9, %s16
      %p18 = scmp.eq.s32.totalorder %s17, 0
      %s20 = sadd.s32 %s19, 1
      %s21 = scalar_select %p18, %s19, %s20
      %p24 = pneg %p18
      %p25 = scmp.eq.s32.totalorder %s9, 1
      %p26 = por %p24, %p25
      %p27 = scmp.ne.s32.totalorder %s19, %s22
      %p28 = scmp.eq.s32.totalorder %s9, 0
      %p29 = por %p27, %p28
      %p30 = scmp.ne.s32.totalorder %s19, %s22
      %p31 = scmp.eq.s32.totalorder %s14, 1
      %p32 = por %p30, %p31
      %p33 = scmp.ne.s32.totalorder %s22, %s23
      %p34 = scmp.eq.s32.totalorder %s14, 0
      %p35 = por %p33, %p34
      %p36 = scmp.ne.s32.totalorder %s22, %s23
      %p37 = scmp.eq.s32.totalorder %s15, 1
      %p38 = por %p36, %p37
      %p40 = scmp.ne.s32.totalorder %s23, %s39
      %p41 = scmp.eq.s32.totalorder %s15, 0
      %p42 = por %p40, %p41
      %s44 = sadd.s32 %s43, 1
      %p47 = scmp.eq.s32.totalorder %s9, 1
      %p48 = scmp.ne.s32.totalorder %s43, %s45
      %p49 = scmp.eq.s32.totalorder %s9, 0
      %p50 = por %p48, %p49
      %p51 = scmp.ne.s32.totalorder %s43, %s45
      %p52 = scmp.eq.s32.totalorder %s14, 1
      %p53 = por %p51, %p52
      %p54 = scmp.ne.s32.totalorder %s45, %s46
      %p55 = scmp.eq.s32.totalorder %s14, 0
      %p56 = por %p54, %p55
      %p57 = scmp.ne.s32.totalorder %s45, %s46
      %p58 = scmp.eq.s32.totalorder %s15, 1
      %p59 = por %p57, %p58
      %p61 = scmp.ne.s32.totalorder %s46, %s60
      %p62 = scmp.eq.s32.totalorder %s15, 0
      %p63 = por %p61, %p62
      %s64 = ssub.s32 %s9, %s16
      %p65 = scmp.eq.s32.totalorder %s64, 0
      %s67 = sadd.s32 %s66, 1
      %s68 = scalar_select %p65, %s66, %s67
      %p71 = pneg %p65
      %p72 = scmp.eq.s32.totalorder %s9, 1
      %p73 = por %p71, %p72
      %p74 = scmp.ne.s32.totalorder %s66, %s69
      %p75 = scmp.eq.s32.totalorder %s9, 0
      %p76 = por %p74, %p75
      %p77 = scmp.ne.s32.totalorder %s66, %s69
      %p78 = scmp.eq.s32.totalorder %s14, 1
      %p79 = por %p77, %p78
      %p80 = scmp.ne.s32.totalorder %s69, %s70
      %p81 = scmp.eq.s32.totalorder %s14, 0
      %p82 = por %p80, %p81
      %p83 = scmp.ne.s32.totalorder %s69, %s70
      %p84 = scmp.eq.s32.totalorder %s15, 1
      %p85 = por %p83, %p84
      %p87 = scmp.ne.s32.totalorder %s70, %s86
      %p88 = scmp.eq.s32.totalorder %s15, 0
      %p89 = por %p87, %p88
      %p90 = scmp.le.s32.totalorder 1, %s9
      %p91 = scmp.lt.s32.totalorder %s9, 3
      %p92 = pnand %p90, %p91
      %p93 = pneg %p92
      // Predicated region
      $region9: #{_lambda_.12} parent=5 // pred_check
        _
      $region10: #{_lambda_.12} parent=5 // pred_check_branch
        %95 = sbr.rel (%p92) target = $region12
      $region11: #{_lambda_.12} parent=5 // pred_region
        %s96 = ssub.s32 %s9, 1
        // Predicated region
        $region13: #{_lambda_.12} parent=11 // pred_check
          %p97 = pneg %p56
        $region14: #{_lambda_.12} parent=11 // pred_check_branch
          %99 = sbr.rel (%p97) target = $region16
        $region15: #{_lambda_.12} parent=11 // pred_region
          %101 = vsyncadd [#allocation3], 0
          %s102 = sshll.u32 %s1, 4
          %s103 = int_to_ptr.hbm [resolvable:$true] %s102
          %s104 = sshll.u32 [#allocation2], 4
          %s105 = int_to_ptr.vmem [resolvable:$true] %s104
          %110 = dma.hbm_to_vmem [thread:$0]  %s103, 9216, %s105, [#allocation3], 128, 128, 8
        $region16: #{_lambda_.12} parent=11 // pred_fallthru
          _
      $region12: #{_lambda_.12} parent=5 // pred_fallthru
        _
      %p111 = scmp.lt.s32.totalorder %s9, 2
      // Predicated region
      $region17: #{_lambda_.12} parent=5 // pred_check
        %p112 = pneg %p111
      $region18: #{_lambda_.12} parent=5 // pred_check_branch
        %114 = sbr.rel (%p112) target = $region20
      $region19: #{_lambda_.12} parent=5 // pred_region
        // Predicated region
        $region21: #{_lambda_.12} parent=19 // pred_check
          %p115 = pneg %p29
        $region22: #{_lambda_.12} parent=19 // pred_check_branch
          %117 = sbr.rel (%p115) target = $region24
        $region23: #{_lambda_.12} parent=19 // pred_region
          %p118 = scmp.lt.s32.totalorder %s9, 1
          %s119 = scalar_select %p118, %s9, 1
          %s120 = smul.addr %s119, 8
          %s121 = smul.addr %s120, 4
          %s122 = scalar_lea.vmem %s0, %s121
        $region24: #{_lambda_.12} parent=19 // pred_fallthru
          _
      $region20: #{_lambda_.12} parent=5 // pred_fallthru
        _
      %p123 = scmp.le.s32.totalorder 1, %s9
      %p124 = scmp.lt.s32.totalorder %s9, 3
      %p125 = pnand %p123, %p124
      %p126 = pneg %p125
      // Predicated region
      $region25: #{_lambda_.12} parent=5 // pred_check
        _
      $region26: #{_lambda_.12} parent=5 // pred_check_branch
        %128 = sbr.rel (%p125) target = $region28
      $region27: #{_lambda_.12} parent=5 // pred_region
        %s129 = ssub.s32 %s9, 1
        // Predicated region
        $region29: #{_lambda_.12} parent=27 // pred_check
          %p130 = pneg %p56
        $region30: #{_lambda_.12} parent=27 // pred_check_branch
          %132 = sbr.rel (%p130) target = $region32
        $region31: #{_lambda_.12} parent=27 // pred_region
          %134 = dma.done [#allocation3], 9216
        $region32: #{_lambda_.12} parent=27 // pred_fallthru
          _
        %p135 = scmp.lt.s32.totalorder %s14, 1
        %s136 = scalar_select %p135, %s14, 1
        %s137 = smul.addr %s136, 8
        %s138 = smul.addr %s137, 4
        %s139 = scalar_lea.vmem %s0, %s138
        %p140 = pneg %p35
        %p141 = pneg %p32
        %p142 = pneg %p56
        %p143 = pneg %p53
        %p144 = pneg %p82
        %p145 = pneg %p79
        %p146 = scmp.lt.s32.totalorder %s14, 1
        %s147 = scalar_select %p146, %s14, 1
        %s148 = smul.addr %s147, 8
        %s149 = smul.addr %s148, 4
        %s150 = scalar_lea.vmem %s2, %s149
        %p151 = scmp.lt.s32.totalorder %s14, 1
        %s152 = scalar_select %p151, %s14, 1
        %s153 = smul.addr %s152, 8
        %s154 = smul.addr %s153, 4
        %s155 = scalar_lea.vmem %s0, %s154
        %p156 = scmp.lt.s32.totalorder %s14, 1
        %s157 = scalar_select %p156, %s14, 1
        %s158 = smul.addr %s157, 8
        %s159 = smul.addr %s158, 4
        %s160 = scalar_lea.vmem %s2, %s159
        %v161 = vlaneseq
        %v162 = vshrl.u32 %v161, 7
        %v163 = vadd.s32 %v162, 8
        %v164 = vadd.s32 %v162, 16
        %v165 = vadd.s32 %v162, 24
        %v166 = vlaneseq
        %v167 = vand.u32 %v166, 127
        %v168 = vmul.u32 %v167, 16
        %vm169 = vcmp.ge.s32.totalorder %v162, %v168
        %vm170 = vcmp.ge.s32.totalorder %v163, %v168
        %vm171 = vcmp.ge.s32.totalorder %v164, %v168
        %vm172 = vcmp.ge.s32.totalorder %v165, %v168
        %v173 = vadd.s32 %v167, 1
        %v174 = vmul.u32 %v173, 16
        %vm175 = vcmp.lt.s32.totalorder %v162, %v174
        %vm176 = vcmp.lt.s32.totalorder %v163, %v174
        %vm177 = vcmp.lt.s32.totalorder %v164, %v174
        %vm178 = vcmp.lt.s32.totalorder %v165, %v174
        %vm179 = vmand %vm169, %vm175
        %vm180 = vmand %vm170, %vm176
        %vm181 = vmand %vm171, %vm177
        %vm182 = vmand %vm172, %vm178
        %v183 = vsel %vm179, 1, 0
        %v184 = vsel %vm180, 1, 0
        %v185 = vsel %vm181, 1, 0
        %v186 = vsel %vm182, 1, 0
        %v187 = vcvt.s32.f32 %v183
        %v188 = vcvt.s32.f32 %v184
        %v189 = vcvt.s32.f32 %v185
        %v190 = vcvt.s32.f32 %v186
        %v191 = vmul.u32 %v162, 16
        %vm192 = vcmp.ge.s32.totalorder %v167, %v191
        %v193 = vadd.s32 %v162, 1
        %v194 = vmul.u32 %v193, 16
        %vm195 = vcmp.lt.s32.totalorder %v167, %v194
        %vm196 = vmand %vm192, %vm195
        %v197 = vsel %vm196, 1, 0
        %v198 = vcvt.s32.f32 %v197
        %v199 = vld [vmem:[%s155] sm:$0xf]
        %v200 = vld [vmem:[%s155 + $0x4] sm:$0xf]
        %v201 = vld [vmem:[%s155 + $0x8] sm:$0xf]
        %v202 = vld [vmem:[%s155 + $0xc] sm:$0xf]
        %v203 = vld [vmem:[%s155 + $0x10] sm:$0xf]
        %v204 = vld [vmem:[%s155 + $0x14] sm:$0xf]
        %v205 = vld [vmem:[%s155 + $0x18] sm:$0xf]
        %v206 = vld [vmem:[%s155 + $0x1c] sm:$0xf]
        %v207 = vunpack.c.l.bf16 %v199
        %v208 = vunpack.c.l.bf16 %v200
        %v209 = vunpack.c.l.bf16 %v201
        %v210 = vunpack.c.l.bf16 %v202
        %v211 = vunpack.c.l.bf16 %v203
        %v212 = vunpack.c.l.bf16 %v204
        %v213 = vunpack.c.l.bf16 %v205
        %v214 = vunpack.c.l.bf16 %v206
        %v215 = vmul.f32 %v207, 0.25
        %v216 = vmul.f32 %v208, 0.25
        %v217 = vmul.f32 %v209, 0.25
        %v218 = vmul.f32 %v210, 0.25
        %v219 = vmul.f32 %v211, 0.25
        %v220 = vmul.f32 %v212, 0.25
        %v221 = vmul.f32 %v213, 0.25
        %v222 = vmul.f32 %v214, 0.25
        %v229 = vrot.slane %v207, 7
        %v230 = vrot.slane %v208, 7
        %v231 = vrot.slane %v209, 7
        %v232 = vrot.slane %v210, 7
        %v233 = vrot.slane %v211, 7
        %v234 = vrot.slane %v212, 7
        %v241 = vrot.slane %v207, 6
        %v242 = vrot.slane %v208, 6
        %v243 = vrot.slane %v209, 6
        %v244 = vrot.slane %v210, 6
        %v245 = vrot.slane %v211, 6
        %v246 = vrot.slane %v212, 6
        %vm253 = vcmask 1040384
        %v254 = vsel %vm253, %v207, %v229
        %v255 = vsel %vm253, %v208, %v230
        %v256 = vsel %vm253, %v209, %v231
        %v257 = vsel %vm253, %v210, %v232
        %v258 = vsel %vm253, %v211, %v233
        %v259 = vsel %vm253, %v212, %v234
        %vm260 = vcmask 1046528
        %v261 = vsel %vm260, %v254, %v241
        %v262 = vsel %vm260, %v255, %v242
        %v263 = vsel %vm260, %v256, %v243
        %v264 = vsel %vm260, %v257, %v244
        %v265 = vsel %vm260, %v258, %v245
        %v266 = vsel %vm260, %v259, %v246
        %273 = vrot.lane.b32.xlu0 %v261, 96
        %v274 = vpop.permute.xlu0 %273
        %275 = vrot.lane.b32.xlu0 %v262, 96
        %v276 = vpop.permute.xlu0 %275
        %277 = vrot.lane.b32.xlu0 %v263, 96
        %v278 = vpop.permute.xlu0 %277
        %279 = vrot.lane.b32.xlu0 %v264, 96
        %v280 = vpop.permute.xlu0 %279
        %281 = vrot.lane.b32.xlu0 %v265, 96
        %v282 = vpop.permute.xlu0 %281
        %283 = vrot.lane.b32.xlu0 %v266, 96
        %v284 = vpop.permute.xlu0 %283
        %v291 = vmul.f32 %v215, %v274
        %v292 = vmul.f32 %v216, %v274
        %v293 = vmul.f32 %v217, %v276
        %v294 = vmul.f32 %v218, %v278
        %v295 = vmul.f32 %v219, %v280
        %v296 = vmul.f32 %v220, %v282
        %v297 = vmul.f32 %v221, %v284
        %v298 = vmul.f32 %v222, %v284
        %v299 = vld [vmem:[#allocation2] sm:$0xff]
        %v300 = vld [vmem:[#allocation2 + $0x8] sm:$0xff]
        %v301 = vld [vmem:[#allocation2 + $0x10] sm:$0xff]
        %v302 = vld [vmem:[#allocation2 + $0x18] sm:$0xff]
        %v303 = vld [vmem:[#allocation2 + $0x20] sm:$0xff]
        %v304 = vld [vmem:[#allocation2 + $0x28] sm:$0xff]
        %v305 = vld [vmem:[#allocation2 + $0x30] sm:$0xff]
        %v306 = vld [vmem:[#allocation2 + $0x38] sm:$0xff]
        %vm307 = vcmask 261120
        %v309 = vsel %vm307, %v291, 0
        %v312 = vsel %vm307, %v292, 0
        %v315 = vsel %vm307, %v293, 0
        %v318 = vsel %vm307, %v294, 0
        %v321 = vsel %vm307, %v295, 0
        %v324 = vsel %vm307, %v296, 0
        %v327 = vsel %vm307, %v297, 0
        %v330 = vsel %vm307, %v298, 0
        %332 = vmatpush.msra.mxu0 0.0
        %333 = vmatpush.msra.mxu0 0.0
        %334 = vmatpush.msra.mxu0 0.0
        %335 = vmatpush.msra.mxu0 0.0
        %336 = vmatpush.msra.mxu0 0.0
        %337 = vmatpush.msra.mxu0 0.0
        %338 = vmatpush.msra.mxu0 0.0
        %339 = vmatpush.msra.mxu0 0.0
        %340 = vmatpush.msra.mxu0 0.0
        %341 = vmatpush.msra.mxu0 0.0
        %342 = vmatpush.msra.mxu0 0.0
        %343 = vmatpush.msra.mxu0 0.0
        %344 = vmatpush.msra.mxu0 %v190
        %345 = vmatpush.msra.mxu0 %v189
        %346 = vmatpush.msra.mxu0 %v188
        %347 = vmatpush.msra.mxu0 %v187
        %348 = vmatmul.f32.gmra.mxu0 %v309
        %v349 = vpop.f32.mrf.mxu0
        %v350 = vadd.f32 %v299, %v349
        %351 = vmatmul.f32.gmra.mxu0 %v312
        %v352 = vpop.f32.mrf.mxu0
        %v353 = vadd.f32 %v300, %v352
        %354 = vmatmul.f32.gmra.mxu0 %v315
        %v355 = vpop.f32.mrf.mxu0
        %v356 = vadd.f32 %v301, %v355
        %357 = vmatmul.f32.gmra.mxu0 %v318
        %v358 = vpop.f32.mrf.mxu0
        %v359 = vadd.f32 %v302, %v358
        %360 = vmatmul.f32.gmra.mxu0 %v321
        %v361 = vpop.f32.mrf.mxu0
        %v362 = vadd.f32 %v303, %v361
        %363 = vmatmul.f32.gmra.mxu0 %v324
        %v364 = vpop.f32.mrf.mxu0
        %v365 = vadd.f32 %v304, %v364
        %366 = vmatmul.f32.gmra.mxu0 %v327
        %v367 = vpop.f32.mrf.mxu0
        %v368 = vadd.f32 %v305, %v367
        %369 = vmatmul.f32.gmra.mxu0 %v330
        %v370 = vpop.f32.mrf.mxu0
        %v371 = vadd.f32 %v306, %v370
        %372 = vdwg.mxu0
        %v373 = vrot.slane %v207, 1
        %v374 = vrot.slane %v208, 1
        %v375 = vrot.slane %v209, 1
        %v376 = vrot.slane %v210, 1
        %v377 = vrot.slane %v211, 1
        %v378 = vrot.slane %v212, 1
        %v385 = vsel %vm253, %v373, %v207
        %v386 = vsel %vm253, %v374, %v208
        %v387 = vsel %vm253, %v375, %v209
        %v388 = vsel %vm253, %v376, %v210
        %v389 = vsel %vm253, %v377, %v211
        %v390 = vsel %vm253, %v378, %v212
        %v391 = vsel %vm260, %v385, %v229
        %v392 = vsel %vm260, %v386, %v230
        %v393 = vsel %vm260, %v387, %v231
        %v394 = vsel %vm260, %v388, %v232
        %v395 = vsel %vm260, %v389, %v233
        %v396 = vsel %vm260, %v390, %v234
        %403 = vrot.lane.b32.xlu0 %v391, 96
        %v404 = vpop.permute.xlu0 %403
        %405 = vrot.lane.b32.xlu0 %v392, 96
        %v406 = vpop.permute.xlu0 %405
        %407 = vrot.lane.b32.xlu0 %v393, 96
        %v408 = vpop.permute.xlu0 %407
        %409 = vrot.lane.b32.xlu0 %v394, 96
        %v410 = vpop.permute.xlu0 %409
        %411 = vrot.lane.b32.xlu0 %v395, 96
        %v412 = vpop.permute.xlu0 %411
        %413 = vrot.lane.b32.xlu0 %v396, 96
        %v414 = vpop.permute.xlu0 %413
        %v421 = vmul.f32 %v215, %v404
        %v422 = vmul.f32 %v216, %v404
        %v423 = vmul.f32 %v217, %v406
        %v424 = vmul.f32 %v218, %v408
        %v425 = vmul.f32 %v219, %v410
        %v426 = vmul.f32 %v220, %v412
        %v427 = vmul.f32 %v221, %v414
        %v428 = vmul.f32 %v222, %v414
        %s429 = scalar_lea.vmem [#allocation2], 64
        %v430 = vld [vmem:[%s429] sm:$0xff]
        %v431 = vld [vmem:[%s429 + $0x8] sm:$0xff]
        %v432 = vld [vmem:[%s429 + $0x10] sm:$0xff]
        %v433 = vld [vmem:[%s429 + $0x18] sm:$0xff]
        %v434 = vld [vmem:[%s429 + $0x20] sm:$0xff]
        %v435 = vld [vmem:[%s429 + $0x28] sm:$0xff]
        %v436 = vld [vmem:[%s429 + $0x30] sm:$0xff]
        %v437 = vld [vmem:[%s429 + $0x38] sm:$0xff]
        %v439 = vsel %vm307, %v421, 0
        %v442 = vsel %vm307, %v422, 0
        %v445 = vsel %vm307, %v423, 0
        %v448 = vsel %vm307, %v424, 0
        %v451 = vsel %vm307, %v425, 0
        %v454 = vsel %vm307, %v426, 0
        %v457 = vsel %vm307, %v427, 0
        %v460 = vsel %vm307, %v428, 0
        %462 = vmatpush.msra.mxu0 0.0
        %463 = vmatpush.msra.mxu0 0.0
        %464 = vmatpush.msra.mxu0 0.0
        %465 = vmatpush.msra.mxu0 0.0
        %466 = vmatpush.msra.mxu0 0.0
        %467 = vmatpush.msra.mxu0 0.0
        %468 = vmatpush.msra.mxu0 0.0
        %469 = vmatpush.msra.mxu0 0.0
        %470 = vmatpush.msra.mxu0 0.0
        %471 = vmatpush.msra.mxu0 0.0
        %472 = vmatpush.msra.mxu0 0.0
        %473 = vmatpush.msra.mxu0 0.0
        %474 = vmatpush.msra.mxu0 %v190
        %475 = vmatpush.msra.mxu0 %v189
        %476 = vmatpush.msra.mxu0 %v188
        %477 = vmatpush.msra.mxu0 %v187
        %478 = vmatmul.f32.gmra.mxu0 %v439
        %v479 = vpop.f32.mrf.mxu0
        %v480 = vadd.f32 %v430, %v479
        %481 = vmatmul.f32.gmra.mxu0 %v442
        %v482 = vpop.f32.mrf.mxu0
        %v483 = vadd.f32 %v431, %v482
        %484 = vmatmul.f32.gmra.mxu0 %v445
        %v485 = vpop.f32.mrf.mxu0
        %v486 = vadd.f32 %v432, %v485
        %487 = vmatmul.f32.gmra.mxu0 %v448
        %v488 = vpop.f32.mrf.mxu0
        %v489 = vadd.f32 %v433, %v488
        %490 = vmatmul.f32.gmra.mxu0 %v451
        %v491 = vpop.f32.mrf.mxu0
        %v492 = vadd.f32 %v434, %v491
        %493 = vmatmul.f32.gmra.mxu0 %v454
        %v494 = vpop.f32.mrf.mxu0
        %v495 = vadd.f32 %v435, %v494
        %496 = vmatmul.f32.gmra.mxu0 %v457
        %v497 = vpop.f32.mrf.mxu0
        %v498 = vadd.f32 %v436, %v497
        %499 = vmatmul.f32.gmra.mxu0 %v460
        %v500 = vpop.f32.mrf.mxu0
        %v501 = vadd.f32 %v437, %v500
        %502 = vdwg.mxu0
        %v503 = vrot.slane %v207, 2
        %v504 = vrot.slane %v208, 2
        %v505 = vrot.slane %v209, 2
        %v506 = vrot.slane %v210, 2
        %v507 = vrot.slane %v211, 2
        %v508 = vrot.slane %v212, 2
        %v515 = vsel %vm253, %v503, %v373
        %v516 = vsel %vm253, %v504, %v374
        %v517 = vsel %vm253, %v505, %v375
        %v518 = vsel %vm253, %v506, %v376
        %v519 = vsel %vm253, %v507, %v377
        %v520 = vsel %vm253, %v508, %v378
        %v521 = vsel %vm260, %v515, %v207
        %v522 = vsel %vm260, %v516, %v208
        %v523 = vsel %vm260, %v517, %v209
        %v524 = vsel %vm260, %v518, %v210
        %v525 = vsel %vm260, %v519, %v211
        %v526 = vsel %vm260, %v520, %v212
        %533 = vrot.lane.b32.xlu0 %v521, 96
        %v534 = vpop.permute.xlu0 %533
        %535 = vrot.lane.b32.xlu0 %v522, 96
        %v536 = vpop.permute.xlu0 %535
        %537 = vrot.lane.b32.xlu0 %v523, 96
        %v538 = vpop.permute.xlu0 %537
        %539 = vrot.lane.b32.xlu0 %v524, 96
        %v540 = vpop.permute.xlu0 %539
        %541 = vrot.lane.b32.xlu0 %v525, 96
        %v542 = vpop.permute.xlu0 %541
        %543 = vrot.lane.b32.xlu0 %v526, 96
        %v544 = vpop.permute.xlu0 %543
        %v551 = vmul.f32 %v215, %v534
        %v552 = vmul.f32 %v216, %v534
        %v553 = vmul.f32 %v217, %v536
        %v554 = vmul.f32 %v218, %v538
        %v555 = vmul.f32 %v219, %v540
        %v556 = vmul.f32 %v220, %v542
        %v557 = vmul.f32 %v221, %v544
        %v558 = vmul.f32 %v222, %v544
        %s559 = scalar_lea.vmem [#allocation2], 128
        %v560 = vld [vmem:[%s559] sm:$0xff]
        %v561 = vld [vmem:[%s559 + $0x8] sm:$0xff]
        %v562 = vld [vmem:[%s559 + $0x10] sm:$0xff]
        %v563 = vld [vmem:[%s559 + $0x18] sm:$0xff]
        %v564 = vld [vmem:[%s559 + $0x20] sm:$0xff]
        %v565 = vld [vmem:[%s559 + $0x28] sm:$0xff]
        %v566 = vld [vmem:[%s559 + $0x30] sm:$0xff]
        %v567 = vld [vmem:[%s559 + $0x38] sm:$0xff]
        %v569 = vsel %vm307, %v551, 0
        %v572 = vsel %vm307, %v552, 0
        %v575 = vsel %vm307, %v553, 0
        %v578 = vsel %vm307, %v554, 0
        %v581 = vsel %vm307, %v555, 0
        %v584 = vsel %vm307, %v556, 0
        %v587 = vsel %vm307, %v557, 0
        %v590 = vsel %vm307, %v558, 0
        %592 = vmatpush.msra.mxu0 0.0
        %593 = vmatpush.msra.mxu0 0.0
        %594 = vmatpush.msra.mxu0 0.0
        %595 = vmatpush.msra.mxu0 0.0
        %596 = vmatpush.msra.mxu0 0.0
        %597 = vmatpush.msra.mxu0 0.0
        %598 = vmatpush.msra.mxu0 0.0
        %599 = vmatpush.msra.mxu0 0.0
        %600 = vmatpush.msra.mxu0 0.0
        %601 = vmatpush.msra.mxu0 0.0
        %602 = vmatpush.msra.mxu0 0.0
        %603 = vmatpush.msra.mxu0 0.0
        %604 = vmatpush.msra.mxu0 %v190
        %605 = vmatpush.msra.mxu0 %v189
        %606 = vmatpush.msra.mxu0 %v188
        %607 = vmatpush.msra.mxu0 %v187
        %608 = vmatmul.f32.gmra.mxu0 %v569
        %v609 = vpop.f32.mrf.mxu0
        %v610 = vadd.f32 %v560, %v609
        %611 = vmatmul.f32.gmra.mxu0 %v572
        %v612 = vpop.f32.mrf.mxu0
        %v613 = vadd.f32 %v561, %v612
        %614 = vmatmul.f32.gmra.mxu0 %v575
        %v615 = vpop.f32.mrf.mxu0
        %v616 = vadd.f32 %v562, %v615
        %617 = vmatmul.f32.gmra.mxu0 %v578
        %v618 = vpop.f32.mrf.mxu0
        %v619 = vadd.f32 %v563, %v618
        %620 = vmatmul.f32.gmra.mxu0 %v581
        %v621 = vpop.f32.mrf.mxu0
        %v622 = vadd.f32 %v564, %v621
        %623 = vmatmul.f32.gmra.mxu0 %v584
        %v624 = vpop.f32.mrf.mxu0
        %v625 = vadd.f32 %v565, %v624
        %626 = vmatmul.f32.gmra.mxu0 %v587
        %v627 = vpop.f32.mrf.mxu0
        %v628 = vadd.f32 %v566, %v627
        %629 = vmatmul.f32.gmra.mxu0 %v590
        %v630 = vpop.f32.mrf.mxu0
        %v631 = vadd.f32 %v567, %v630
        %632 = vdwg.mxu0
        %v634 = vrot.slane %v213, 7
        %v636 = vrot.slane %v213, 6
        %v638 = vsel %vm253, %v213, %v634
        %v639 = vsel %vm260, %v638, %v636
        %641 = vrot.lane.b32.xlu0 %v639, 96
        %v642 = vpop.permute.xlu0 %641
        %v644 = vmul.f32 %v215, %v276
        %v645 = vmul.f32 %v216, %v276
        %v646 = vmul.f32 %v217, %v278
        %v647 = vmul.f32 %v218, %v280
        %v648 = vmul.f32 %v219, %v282
        %v649 = vmul.f32 %v220, %v284
        %v650 = vmul.f32 %v221, %v642
        %v651 = vmul.f32 %v222, %v642
        %s652 = scalar_lea.vmem [#allocation2], 192
        %v653 = vld [vmem:[%s652] sm:$0xff]
        %v654 = vld [vmem:[%s652 + $0x8] sm:$0xff]
        %v655 = vld [vmem:[%s652 + $0x10] sm:$0xff]
        %v656 = vld [vmem:[%s652 + $0x18] sm:$0xff]
        %v657 = vld [vmem:[%s652 + $0x20] sm:$0xff]
        %v658 = vld [vmem:[%s652 + $0x28] sm:$0xff]
        %v659 = vld [vmem:[%s652 + $0x30] sm:$0xff]
        %v660 = vld [vmem:[%s652 + $0x38] sm:$0xff]
        %v662 = vsel %vm307, %v644, 0
        %v665 = vsel %vm307, %v645, 0
        %v668 = vsel %vm307, %v646, 0
        %v671 = vsel %vm307, %v647, 0
        %v674 = vsel %vm307, %v648, 0
        %v677 = vsel %vm307, %v649, 0
        %v680 = vsel %vm307, %v650, 0
        %v683 = vsel %vm307, %v651, 0
        %685 = vmatpush.msra.mxu0 0.0
        %686 = vmatpush.msra.mxu0 0.0
        %687 = vmatpush.msra.mxu0 0.0
        %688 = vmatpush.msra.mxu0 0.0
        %689 = vmatpush.msra.mxu0 0.0
        %690 = vmatpush.msra.mxu0 0.0
        %691 = vmatpush.msra.mxu0 0.0
        %692 = vmatpush.msra.mxu0 0.0
        %693 = vmatpush.msra.mxu0 0.0
        %694 = vmatpush.msra.mxu0 0.0
        %695 = vmatpush.msra.mxu0 0.0
        %696 = vmatpush.msra.mxu0 0.0
        %697 = vmatpush.msra.mxu0 %v190
        %698 = vmatpush.msra.mxu0 %v189
        %699 = vmatpush.msra.mxu0 %v188
        %700 = vmatpush.msra.mxu0 %v187
        %701 = vmatmul.f32.gmra.mxu0 %v662
        %v702 = vpop.f32.mrf.mxu0
        %v703 = vadd.f32 %v653, %v702
        %704 = vmatmul.f32.gmra.mxu0 %v665
        %v705 = vpop.f32.mrf.mxu0
        %v706 = vadd.f32 %v654, %v705
        %707 = vmatmul.f32.gmra.mxu0 %v668
        %v708 = vpop.f32.mrf.mxu0
        %v709 = vadd.f32 %v655, %v708
        %710 = vmatmul.f32.gmra.mxu0 %v671
        %v711 = vpop.f32.mrf.mxu0
        %v712 = vadd.f32 %v656, %v711
        %713 = vmatmul.f32.gmra.mxu0 %v674
        %v714 = vpop.f32.mrf.mxu0
        %v715 = vadd.f32 %v657, %v714
        %716 = vmatmul.f32.gmra.mxu0 %v677
        %v717 = vpop.f32.mrf.mxu0
        %v718 = vadd.f32 %v658, %v717
        %719 = vmatmul.f32.gmra.mxu0 %v680
        %v720 = vpop.f32.mrf.mxu0
        %v721 = vadd.f32 %v659, %v720
        %722 = vmatmul.f32.gmra.mxu0 %v683
        %v723 = vpop.f32.mrf.mxu0
        %v724 = vadd.f32 %v660, %v723
        %725 = vdwg.mxu0
        %v726 = vrot.slane %v213, 1
        %v728 = vsel %vm253, %v726, %v213
        %v729 = vsel %vm260, %v728, %v634
        %731 = vrot.lane.b32.xlu0 %v729, 96
        %v732 = vpop.permute.xlu0 %731
        %v734 = vmul.f32 %v215, %v406
        %v735 = vmul.f32 %v216, %v406
        %v736 = vmul.f32 %v217, %v408
        %v737 = vmul.f32 %v218, %v410
        %v738 = vmul.f32 %v219, %v412
        %v739 = vmul.f32 %v220, %v414
        %v740 = vmul.f32 %v221, %v732
        %v741 = vmul.f32 %v222, %v732
        %s742 = scalar_lea.vmem [#allocation2], 256
        %v743 = vld [vmem:[%s742] sm:$0xff]
        %v744 = vld [vmem:[%s742 + $0x8] sm:$0xff]
        %v745 = vld [vmem:[%s742 + $0x10] sm:$0xff]
        %v746 = vld [vmem:[%s742 + $0x18] sm:$0xff]
        %v747 = vld [vmem:[%s742 + $0x20] sm:$0xff]
        %v748 = vld [vmem:[%s742 + $0x28] sm:$0xff]
        %v749 = vld [vmem:[%s742 + $0x30] sm:$0xff]
        %v750 = vld [vmem:[%s742 + $0x38] sm:$0xff]
        %v752 = vsel %vm307, %v734, 0
        %v755 = vsel %vm307, %v735, 0
        %v758 = vsel %vm307, %v736, 0
        %v761 = vsel %vm307, %v737, 0
        %v764 = vsel %vm307, %v738, 0
        %v767 = vsel %vm307, %v739, 0
        %v770 = vsel %vm307, %v740, 0
        %v773 = vsel %vm307, %v741, 0
        %775 = vmatpush.msra.mxu0 0.0
        %776 = vmatpush.msra.mxu0 0.0
        %777 = vmatpush.msra.mxu0 0.0
        %778 = vmatpush.msra.mxu0 0.0
        %779 = vmatpush.msra.mxu0 0.0
        %780 = vmatpush.msra.mxu0 0.0
        %781 = vmatpush.msra.mxu0 0.0
        %782 = vmatpush.msra.mxu0 0.0
        %783 = vmatpush.msra.mxu0 0.0
        %784 = vmatpush.msra.mxu0 0.0
        %785 = vmatpush.msra.mxu0 0.0
        %786 = vmatpush.msra.mxu0 0.0
        %787 = vmatpush.msra.mxu0 %v190
        %788 = vmatpush.msra.mxu0 %v189
        %789 = vmatpush.msra.mxu0 %v188
        %790 = vmatpush.msra.mxu0 %v187
        %791 = vmatmul.f32.gmra.mxu0 %v752
        %v792 = vpop.f32.mrf.mxu0
        %v793 = vadd.f32 %v743, %v792
        %794 = vmatmul.f32.gmra.mxu0 %v755
        %v795 = vpop.f32.mrf.mxu0
        %v796 = vadd.f32 %v744, %v795
        %797 = vmatmul.f32.gmra.mxu0 %v758
        %v798 = vpop.f32.mrf.mxu0
        %v799 = vadd.f32 %v745, %v798
        %800 = vmatmul.f32.gmra.mxu0 %v761
        %v801 = vpop.f32.mrf.mxu0
        %v802 = vadd.f32 %v746, %v801
        %803 = vmatmul.f32.gmra.mxu0 %v764
        %v804 = vpop.f32.mrf.mxu0
        %v805 = vadd.f32 %v747, %v804
        %806 = vmatmul.f32.gmra.mxu0 %v767
        %v807 = vpop.f32.mrf.mxu0
        %v808 = vadd.f32 %v748, %v807
        %809 = vmatmul.f32.gmra.mxu0 %v770
        %v810 = vpop.f32.mrf.mxu0
        %v811 = vadd.f32 %v749, %v810
        %812 = vmatmul.f32.gmra.mxu0 %v773
        %v813 = vpop.f32.mrf.mxu0
        %v814 = vadd.f32 %v750, %v813
        %815 = vdwg.mxu0
        %v816 = vrot.slane %v213, 2
        %v818 = vsel %vm253, %v816, %v726
        %v819 = vsel %vm260, %v818, %v213
        %821 = vrot.lane.b32.xlu0 %v819, 96
        %v822 = vpop.permute.xlu0 %821
        %v824 = vmul.f32 %v215, %v536
        %v825 = vmul.f32 %v216, %v536
        %v826 = vmul.f32 %v217, %v538
        %v827 = vmul.f32 %v218, %v540
        %v828 = vmul.f32 %v219, %v542
        %v829 = vmul.f32 %v220, %v544
        %v830 = vmul.f32 %v221, %v822
        %v831 = vmul.f32 %v222, %v822
        %s832 = scalar_lea.vmem [#allocation2], 320
        %v833 = vld [vmem:[%s832] sm:$0xff]
        %v834 = vld [vmem:[%s832 + $0x8] sm:$0xff]
        %v835 = vld [vmem:[%s832 + $0x10] sm:$0xff]
        %v836 = vld [vmem:[%s832 + $0x18] sm:$0xff]
        %v837 = vld [vmem:[%s832 + $0x20] sm:$0xff]
        %v838 = vld [vmem:[%s832 + $0x28] sm:$0xff]
        %v839 = vld [vmem:[%s832 + $0x30] sm:$0xff]
        %v840 = vld [vmem:[%s832 + $0x38] sm:$0xff]
        %v842 = vsel %vm307, %v824, 0
        %v845 = vsel %vm307, %v825, 0
        %v848 = vsel %vm307, %v826, 0
        %v851 = vsel %vm307, %v827, 0
        %v854 = vsel %vm307, %v828, 0
        %v857 = vsel %vm307, %v829, 0
        %v860 = vsel %vm307, %v830, 0
        %v863 = vsel %vm307, %v831, 0
        %865 = vmatpush.msra.mxu0 0.0
        %866 = vmatpush.msra.mxu0 0.0
        %867 = vmatpush.msra.mxu0 0.0
        %868 = vmatpush.msra.mxu0 0.0
        %869 = vmatpush.msra.mxu0 0.0
        %870 = vmatpush.msra.mxu0 0.0
        %871 = vmatpush.msra.mxu0 0.0
        %872 = vmatpush.msra.mxu0 0.0
        %873 = vmatpush.msra.mxu0 0.0
        %874 = vmatpush.msra.mxu0 0.0
        %875 = vmatpush.msra.mxu0 0.0
        %876 = vmatpush.msra.mxu0 0.0
        %877 = vmatpush.msra.mxu0 %v190
        %878 = vmatpush.msra.mxu0 %v189
        %879 = vmatpush.msra.mxu0 %v188
        %880 = vmatpush.msra.mxu0 %v187
        %881 = vmatmul.f32.gmra.mxu0 %v842
        %v882 = vpop.f32.mrf.mxu0
        %v883 = vadd.f32 %v833, %v882
        %884 = vmatmul.f32.gmra.mxu0 %v845
        %v885 = vpop.f32.mrf.mxu0
        %v886 = vadd.f32 %v834, %v885
        %887 = vmatmul.f32.gmra.mxu0 %v848
        %v888 = vpop.f32.mrf.mxu0
        %v889 = vadd.f32 %v835, %v888
        %890 = vmatmul.f32.gmra.mxu0 %v851
        %v891 = vpop.f32.mrf.mxu0
        %v892 = vadd.f32 %v836, %v891
        %893 = vmatmul.f32.gmra.mxu0 %v854
        %v894 = vpop.f32.mrf.mxu0
        %v895 = vadd.f32 %v837, %v894
        %896 = vmatmul.f32.gmra.mxu0 %v857
        %v897 = vpop.f32.mrf.mxu0
        %v898 = vadd.f32 %v838, %v897
        %899 = vmatmul.f32.gmra.mxu0 %v860
        %v900 = vpop.f32.mrf.mxu0
        %v901 = vadd.f32 %v839, %v900
        %902 = vmatmul.f32.gmra.mxu0 %v863
        %v903 = vpop.f32.mrf.mxu0
        %v904 = vadd.f32 %v840, %v903
        %905 = vdwg.mxu0
        %v907 = vrot.slane %v214, 7
        %v909 = vrot.slane %v214, 6
        %v911 = vsel %vm253, %v214, %v907
        %v912 = vsel %vm260, %v911, %v909
        %914 = vrot.lane.b32.xlu0 %v912, 96
        %v915 = vpop.permute.xlu0 %914
        %v917 = vmul.f32 %v215, %v278
        %v918 = vmul.f32 %v216, %v278
        %v919 = vmul.f32 %v217, %v280
        %v920 = vmul.f32 %v218, %v282
        %v921 = vmul.f32 %v219, %v284
        %v922 = vmul.f32 %v220, %v642
        %v923 = vmul.f32 %v221, %v915
        %v924 = vmul.f32 %v222, %v915
        %s925 = scalar_lea.vmem [#allocation2], 384
        %v926 = vld [vmem:[%s925] sm:$0xff]
        %v927 = vld [vmem:[%s925 + $0x8] sm:$0xff]
        %v928 = vld [vmem:[%s925 + $0x10] sm:$0xff]
        %v929 = vld [vmem:[%s925 + $0x18] sm:$0xff]
        %v930 = vld [vmem:[%s925 + $0x20] sm:$0xff]
        %v931 = vld [vmem:[%s925 + $0x28] sm:$0xff]
        %v932 = vld [vmem:[%s925 + $0x30] sm:$0xff]
        %v933 = vld [vmem:[%s925 + $0x38] sm:$0xff]
        %v935 = vsel %vm307, %v917, 0
        %v938 = vsel %vm307, %v918, 0
        %v941 = vsel %vm307, %v919, 0
        %v944 = vsel %vm307, %v920, 0
        %v947 = vsel %vm307, %v921, 0
        %v950 = vsel %vm307, %v922, 0
        %v953 = vsel %vm307, %v923, 0
        %v956 = vsel %vm307, %v924, 0
        %958 = vmatpush.msra.mxu0 0.0
        %959 = vmatpush.msra.mxu0 0.0
        %960 = vmatpush.msra.mxu0 0.0
        %961 = vmatpush.msra.mxu0 0.0
        %962 = vmatpush.msra.mxu0 0.0
        %963 = vmatpush.msra.mxu0 0.0
        %964 = vmatpush.msra.mxu0 0.0
        %965 = vmatpush.msra.mxu0 0.0
        %966 = vmatpush.msra.mxu0 0.0
        %967 = vmatpush.msra.mxu0 0.0
        %968 = vmatpush.msra.mxu0 0.0
        %969 = vmatpush.msra.mxu0 0.0
        %970 = vmatpush.msra.mxu0 %v190
        %971 = vmatpush.msra.mxu0 %v189
        %972 = vmatpush.msra.mxu0 %v188
        %973 = vmatpush.msra.mxu0 %v187
        %974 = vmatmul.f32.gmra.mxu0 %v935
        %v975 = vpop.f32.mrf.mxu0
        %v976 = vadd.f32 %v926, %v975
        %977 = vmatmul.f32.gmra.mxu0 %v938
        %v978 = vpop.f32.mrf.mxu0
        %v979 = vadd.f32 %v927, %v978
        %980 = vmatmul.f32.gmra.mxu0 %v941
        %v981 = vpop.f32.mrf.mxu0
        %v982 = vadd.f32 %v928, %v981
        %983 = vmatmul.f32.gmra.mxu0 %v944
        %v984 = vpop.f32.mrf.mxu0
        %v985 = vadd.f32 %v929, %v984
        %986 = vmatmul.f32.gmra.mxu0 %v947
        %v987 = vpop.f32.mrf.mxu0
        %v988 = vadd.f32 %v930, %v987
        %989 = vmatmul.f32.gmra.mxu0 %v950
        %v990 = vpop.f32.mrf.mxu0
        %v991 = vadd.f32 %v931, %v990
        %992 = vmatmul.f32.gmra.mxu0 %v953
        %v993 = vpop.f32.mrf.mxu0
        %v994 = vadd.f32 %v932, %v993
        %995 = vmatmul.f32.gmra.mxu0 %v956
        %v996 = vpop.f32.mrf.mxu0
        %v997 = vadd.f32 %v933, %v996
        %998 = vdwg.mxu0
        %v999 = vrot.slane %v214, 1
        %v1001 = vsel %vm253, %v999, %v214
        %v1002 = vsel %vm260, %v1001, %v907
        %1004 = vrot.lane.b32.xlu0 %v1002, 96
        %v1005 = vpop.permute.xlu0 %1004
        %v1007 = vmul.f32 %v215, %v408
        %v1008 = vmul.f32 %v216, %v408
        %v1009 = vmul.f32 %v217, %v410
        %v1010 = vmul.f32 %v218, %v412
        %v1011 = vmul.f32 %v219, %v414
        %v1012 = vmul.f32 %v220, %v732
        %v1013 = vmul.f32 %v221, %v1005
        %v1014 = vmul.f32 %v222, %v1005
        %s1015 = scalar_lea.vmem [#allocation2], 448
        %v1016 = vld [vmem:[%s1015] sm:$0xff]
        %v1017 = vld [vmem:[%s1015 + $0x8] sm:$0xff]
        %v1018 = vld [vmem:[%s1015 + $0x10] sm:$0xff]
        %v1019 = vld [vmem:[%s1015 + $0x18] sm:$0xff]
        %v1020 = vld [vmem:[%s1015 + $0x20] sm:$0xff]
        %v1021 = vld [vmem:[%s1015 + $0x28] sm:$0xff]
        %v1022 = vld [vmem:[%s1015 + $0x30] sm:$0xff]
        %v1023 = vld [vmem:[%s1015 + $0x38] sm:$0xff]
        %v1025 = vsel %vm307, %v1007, 0
        %v1028 = vsel %vm307, %v1008, 0
        %v1031 = vsel %vm307, %v1009, 0
        %v1034 = vsel %vm307, %v1010, 0
        %v1037 = vsel %vm307, %v1011, 0
        %v1040 = vsel %vm307, %v1012, 0
        %v1043 = vsel %vm307, %v1013, 0
        %v1046 = vsel %vm307, %v1014, 0
        %1048 = vmatpush.msra.mxu0 0.0
        %1049 = vmatpush.msra.mxu0 0.0
        %1050 = vmatpush.msra.mxu0 0.0
        %1051 = vmatpush.msra.mxu0 0.0
        %1052 = vmatpush.msra.mxu0 0.0
        %1053 = vmatpush.msra.mxu0 0.0
        %1054 = vmatpush.msra.mxu0 0.0
        %1055 = vmatpush.msra.mxu0 0.0
        %1056 = vmatpush.msra.mxu0 0.0
        %1057 = vmatpush.msra.mxu0 0.0
        %1058 = vmatpush.msra.mxu0 0.0
        %1059 = vmatpush.msra.mxu0 0.0
        %1060 = vmatpush.msra.mxu0 %v190
        %1061 = vmatpush.msra.mxu0 %v189
        %1062 = vmatpush.msra.mxu0 %v188
        %1063 = vmatpush.msra.mxu0 %v187
        %1064 = vmatmul.f32.gmra.mxu0 %v1025
        %v1065 = vpop.f32.mrf.mxu0
        %v1066 = vadd.f32 %v1016, %v1065
        %1067 = vmatmul.f32.gmra.mxu0 %v1028
        %v1068 = vpop.f32.mrf.mxu0
        %v1069 = vadd.f32 %v1017, %v1068
        %1070 = vmatmul.f32.gmra.mxu0 %v1031
        %v1071 = vpop.f32.mrf.mxu0
        %v1072 = vadd.f32 %v1018, %v1071
        %1073 = vmatmul.f32.gmra.mxu0 %v1034
        %v1074 = vpop.f32.mrf.mxu0
        %v1075 = vadd.f32 %v1019, %v1074
        %1076 = vmatmul.f32.gmra.mxu0 %v1037
        %v1077 = vpop.f32.mrf.mxu0
        %v1078 = vadd.f32 %v1020, %v1077
        %1079 = vmatmul.f32.gmra.mxu0 %v1040
        %v1080 = vpop.f32.mrf.mxu0
        %v1081 = vadd.f32 %v1021, %v1080
        %1082 = vmatmul.f32.gmra.mxu0 %v1043
        %v1083 = vpop.f32.mrf.mxu0
        %v1084 = vadd.f32 %v1022, %v1083
        %1085 = vmatmul.f32.gmra.mxu0 %v1046
        %v1086 = vpop.f32.mrf.mxu0
        %v1087 = vadd.f32 %v1023, %v1086
        %1088 = vdwg.mxu0
        %v1089 = vrot.slane %v214, 2
        %v1091 = vsel %vm253, %v1089, %v999
        %v1092 = vsel %vm260, %v1091, %v214
        %1094 = vrot.lane.b32.xlu0 %v1092, 96
        %v1095 = vpop.permute.xlu0 %1094
        %v1097 = vmul.f32 %v215, %v538
        %v1098 = vmul.f32 %v216, %v538
        %v1099 = vmul.f32 %v217, %v540
        %v1100 = vmul.f32 %v218, %v542
        %v1101 = vmul.f32 %v219, %v544
        %v1102 = vmul.f32 %v220, %v822
        %v1103 = vmul.f32 %v221, %v1095
        %v1104 = vmul.f32 %v222, %v1095
        %s1105 = scalar_lea.vmem [#allocation2], 512
        %v1106 = vld [vmem:[%s1105] sm:$0xff]
        %v1107 = vld [vmem:[%s1105 + $0x8] sm:$0xff]
        %v1108 = vld [vmem:[%s1105 + $0x10] sm:$0xff]
        %v1109 = vld [vmem:[%s1105 + $0x18] sm:$0xff]
        %v1110 = vld [vmem:[%s1105 + $0x20] sm:$0xff]
        %v1111 = vld [vmem:[%s1105 + $0x28] sm:$0xff]
        %v1112 = vld [vmem:[%s1105 + $0x30] sm:$0xff]
        %v1113 = vld [vmem:[%s1105 + $0x38] sm:$0xff]
        %v1115 = vsel %vm307, %v1097, 0
        %v1118 = vsel %vm307, %v1098, 0
        %v1121 = vsel %vm307, %v1099, 0
        %v1124 = vsel %vm307, %v1100, 0
        %v1127 = vsel %vm307, %v1101, 0
        %v1130 = vsel %vm307, %v1102, 0
        %v1133 = vsel %vm307, %v1103, 0
        %v1136 = vsel %vm307, %v1104, 0
        %1138 = vmatpush.msra.mxu0 0.0
        %1139 = vmatpush.msra.mxu0 0.0
        %1140 = vmatpush.msra.mxu0 0.0
        %1141 = vmatpush.msra.mxu0 0.0
        %1142 = vmatpush.msra.mxu0 0.0
        %1143 = vmatpush.msra.mxu0 0.0
        %1144 = vmatpush.msra.mxu0 0.0
        %1145 = vmatpush.msra.mxu0 0.0
        %1146 = vmatpush.msra.mxu0 0.0
        %1147 = vmatpush.msra.mxu0 0.0
        %1148 = vmatpush.msra.mxu0 0.0
        %1149 = vmatpush.msra.mxu0 0.0
        %1150 = vmatpush.msra.mxu0 %v190
        %1151 = vmatpush.msra.mxu0 %v189
        %1152 = vmatpush.msra.mxu0 %v188
        %1153 = vmatpush.msra.mxu0 %v187
        %1154 = vmatmul.f32.gmra.mxu0 %v1115
        %v1155 = vpop.f32.mrf.mxu0
        %v1156 = vadd.f32 %v1106, %v1155
        %1157 = vmatmul.f32.gmra.mxu0 %v1118
        %v1158 = vpop.f32.mrf.mxu0
        %v1159 = vadd.f32 %v1107, %v1158
        %1160 = vmatmul.f32.gmra.mxu0 %v1121
        %v1161 = vpop.f32.mrf.mxu0
        %v1162 = vadd.f32 %v1108, %v1161
        %1163 = vmatmul.f32.gmra.mxu0 %v1124
        %v1164 = vpop.f32.mrf.mxu0
        %v1165 = vadd.f32 %v1109, %v1164
        %1166 = vmatmul.f32.gmra.mxu0 %v1127
        %v1167 = vpop.f32.mrf.mxu0
        %v1168 = vadd.f32 %v1110, %v1167
        %1169 = vmatmul.f32.gmra.mxu0 %v1130
        %v1170 = vpop.f32.mrf.mxu0
        %v1171 = vadd.f32 %v1111, %v1170
        %1172 = vmatmul.f32.gmra.mxu0 %v1133
        %v1173 = vpop.f32.mrf.mxu0
        %v1174 = vadd.f32 %v1112, %v1173
        %1175 = vmatmul.f32.gmra.mxu0 %v1136
        %v1176 = vpop.f32.mrf.mxu0
        %v1177 = vadd.f32 %v1113, %v1176
        %1178 = vdwg.mxu0
        %v1179 = vmax.f32 %v350, %v480
        %v1180 = vmax.f32 %v353, %v483
        %v1181 = vmax.f32 %v356, %v486
        %v1182 = vmax.f32 %v359, %v489
        %v1183 = vmax.f32 %v362, %v492
        %v1184 = vmax.f32 %v365, %v495
        %v1185 = vmax.f32 %v368, %v498
        %v1186 = vmax.f32 %v371, %v501
        %v1187 = vmax.f32 %v1179, %v610
        %v1188 = vmax.f32 %v1180, %v613
        %v1189 = vmax.f32 %v1181, %v616
        %v1190 = vmax.f32 %v1182, %v619
        %v1191 = vmax.f32 %v1183, %v622
        %v1192 = vmax.f32 %v1184, %v625
        %v1193 = vmax.f32 %v1185, %v628
        %v1194 = vmax.f32 %v1186, %v631
        %v1195 = vmax.f32 %v1187, %v703
        %v1196 = vmax.f32 %v1188, %v706
        %v1197 = vmax.f32 %v1189, %v709
        %v1198 = vmax.f32 %v1190, %v712
        %v1199 = vmax.f32 %v1191, %v715
        %v1200 = vmax.f32 %v1192, %v718
        %v1201 = vmax.f32 %v1193, %v721
        %v1202 = vmax.f32 %v1194, %v724
        %v1203 = vmax.f32 %v1195, %v793
        %v1204 = vmax.f32 %v1196, %v796
        %v1205 = vmax.f32 %v1197, %v799
        %v1206 = vmax.f32 %v1198, %v802
        %v1207 = vmax.f32 %v1199, %v805
        %v1208 = vmax.f32 %v1200, %v808
        %v1209 = vmax.f32 %v1201, %v811
        %v1210 = vmax.f32 %v1202, %v814
        %v1211 = vmax.f32 %v1203, %v883
        %v1212 = vmax.f32 %v1204, %v886
        %v1213 = vmax.f32 %v1205, %v889
        %v1214 = vmax.f32 %v1206, %v892
        %v1215 = vmax.f32 %v1207, %v895
        %v1216 = vmax.f32 %v1208, %v898
        %v1217 = vmax.f32 %v1209, %v901
        %v1218 = vmax.f32 %v1210, %v904
        %v1219 = vmax.f32 %v1211, %v976
        %v1220 = vmax.f32 %v1212, %v979
        %v1221 = vmax.f32 %v1213, %v982
        %v1222 = vmax.f32 %v1214, %v985
        %v1223 = vmax.f32 %v1215, %v988
        %v1224 = vmax.f32 %v1216, %v991
        %v1225 = vmax.f32 %v1217, %v994
        %v1226 = vmax.f32 %v1218, %v997
        %v1227 = vmax.f32 %v1219, %v1066
        %v1228 = vmax.f32 %v1220, %v1069
        %v1229 = vmax.f32 %v1221, %v1072
        %v1230 = vmax.f32 %v1222, %v1075
        %v1231 = vmax.f32 %v1223, %v1078
        %v1232 = vmax.f32 %v1224, %v1081
        %v1233 = vmax.f32 %v1225, %v1084
        %v1234 = vmax.f32 %v1226, %v1087
        %v1235 = vmax.f32 %v1227, %v1156
        %v1236 = vmax.f32 %v1228, %v1159
        %v1237 = vmax.f32 %v1229, %v1162
        %v1238 = vmax.f32 %v1230, %v1165
        %v1239 = vmax.f32 %v1231, %v1168
        %v1240 = vmax.f32 %v1232, %v1171
        %v1241 = vmax.f32 %v1233, %v1174
        %v1242 = vmax.f32 %v1234, %v1177
        %v1243 = vsub.f32 %v350, %v1235
        %v1244 = vsub.f32 %v353, %v1236
        %v1245 = vsub.f32 %v356, %v1237
        %v1246 = vsub.f32 %v359, %v1238
        %v1247 = vsub.f32 %v362, %v1239
        %v1248 = vsub.f32 %v365, %v1240
        %v1249 = vsub.f32 %v368, %v1241
        %v1250 = vsub.f32 %v371, %v1242
        %v1251 = vmul.f32 %v1243, 1.442695
        %v1252 = vpow.pop %v1251
        %v1253 = vmul.f32 %v1244, 1.442695
        %v1254 = vpow.pop %v1253
        %v1255 = vmul.f32 %v1245, 1.442695
        %v1256 = vpow.pop %v1255
        %v1257 = vmul.f32 %v1246, 1.442695
        %v1258 = vpow.pop %v1257
        %v1259 = vmul.f32 %v1247, 1.442695
        %v1260 = vpow.pop %v1259
        %v1261 = vmul.f32 %v1248, 1.442695
        %v1262 = vpow.pop %v1261
        %v1263 = vmul.f32 %v1249, 1.442695
        %v1264 = vpow.pop %v1263
        %v1265 = vmul.f32 %v1250, 1.442695
        %v1266 = vpow.pop %v1265
        %v1267 = vadd.f32 %v1252, 0.0
        %v1268 = vadd.f32 %v1254, 0.0
        %v1269 = vadd.f32 %v1256, 0.0
        %v1270 = vadd.f32 %v1258, 0.0
        %v1271 = vadd.f32 %v1260, 0.0
        %v1272 = vadd.f32 %v1262, 0.0
        %v1273 = vadd.f32 %v1264, 0.0
        %v1274 = vadd.f32 %v1266, 0.0
        %v1275 = vsub.f32 %v480, %v1235
        %v1276 = vsub.f32 %v483, %v1236
        %v1277 = vsub.f32 %v486, %v1237
        %v1278 = vsub.f32 %v489, %v1238
        %v1279 = vsub.f32 %v492, %v1239
        %v1280 = vsub.f32 %v495, %v1240
        %v1281 = vsub.f32 %v498, %v1241
        %v1282 = vsub.f32 %v501, %v1242
        %v1283 = vmul.f32 %v1275, 1.442695
        %v1284 = vpow.pop %v1283
        %v1285 = vmul.f32 %v1276, 1.442695
        %v1286 = vpow.pop %v1285
        %v1287 = vmul.f32 %v1277, 1.442695
        %v1288 = vpow.pop %v1287
        %v1289 = vmul.f32 %v1278, 1.442695
        %v1290 = vpow.pop %v1289
        %v1291 = vmul.f32 %v1279, 1.442695
        %v1292 = vpow.pop %v1291
        %v1293 = vmul.f32 %v1280, 1.442695
        %v1294 = vpow.pop %v1293
        %v1295 = vmul.f32 %v1281, 1.442695
        %v1296 = vpow.pop %v1295
        %v1297 = vmul.f32 %v1282, 1.442695
        %v1298 = vpow.pop %v1297
        %v1299 = vadd.f32 %v1267, %v1284
        %v1300 = vadd.f32 %v1268, %v1286
        %v1301 = vadd.f32 %v1269, %v1288
        %v1302 = vadd.f32 %v1270, %v1290
        %v1303 = vadd.f32 %v1271, %v1292
        %v1304 = vadd.f32 %v1272, %v1294
        %v1305 = vadd.f32 %v1273, %v1296
        %v1306 = vadd.f32 %v1274, %v1298
        %v1307 = vsub.f32 %v610, %v1235
        %v1308 = vsub.f32 %v613, %v1236
        %v1309 = vsub.f32 %v616, %v1237
        %v1310 = vsub.f32 %v619, %v1238
        %v1311 = vsub.f32 %v622, %v1239
        %v1312 = vsub.f32 %v625, %v1240
        %v1313 = vsub.f32 %v628, %v1241
        %v1314 = vsub.f32 %v631, %v1242
        %v1315 = vmul.f32 %v1307, 1.442695
        %v1316 = vpow.pop %v1315
        %v1317 = vmul.f32 %v1308, 1.442695
        %v1318 = vpow.pop %v1317
        %v1319 = vmul.f32 %v1309, 1.442695
        %v1320 = vpow.pop %v1319
        %v1321 = vmul.f32 %v1310, 1.442695
        %v1322 = vpow.pop %v1321
        %v1323 = vmul.f32 %v1311, 1.442695
        %v1324 = vpow.pop %v1323
        %v1325 = vmul.f32 %v1312, 1.442695
        %v1326 = vpow.pop %v1325
        %v1327 = vmul.f32 %v1313, 1.442695
        %v1328 = vpow.pop %v1327
        %v1329 = vmul.f32 %v1314, 1.442695
        %v1330 = vpow.pop %v1329
        %v1331 = vadd.f32 %v1299, %v1316
        %v1332 = vadd.f32 %v1300, %v1318
        %v1333 = vadd.f32 %v1301, %v1320
        %v1334 = vadd.f32 %v1302, %v1322
        %v1335 = vadd.f32 %v1303, %v1324
        %v1336 = vadd.f32 %v1304, %v1326
        %v1337 = vadd.f32 %v1305, %v1328
        %v1338 = vadd.f32 %v1306, %v1330
        %v1339 = vsub.f32 %v703, %v1235
        %v1340 = vsub.f32 %v706, %v1236
        %v1341 = vsub.f32 %v709, %v1237
        %v1342 = vsub.f32 %v712, %v1238
        %v1343 = vsub.f32 %v715, %v1239
        %v1344 = vsub.f32 %v718, %v1240
        %v1345 = vsub.f32 %v721, %v1241
        %v1346 = vsub.f32 %v724, %v1242
        %v1347 = vmul.f32 %v1339, 1.442695
        %v1348 = vpow.pop %v1347
        %v1349 = vmul.f32 %v1340, 1.442695
        %v1350 = vpow.pop %v1349
        %v1351 = vmul.f32 %v1341, 1.442695
        %v1352 = vpow.pop %v1351
        %v1353 = vmul.f32 %v1342, 1.442695
        %v1354 = vpow.pop %v1353
        %v1355 = vmul.f32 %v1343, 1.442695
        %v1356 = vpow.pop %v1355
        %v1357 = vmul.f32 %v1344, 1.442695
        %v1358 = vpow.pop %v1357
        %v1359 = vmul.f32 %v1345, 1.442695
        %v1360 = vpow.pop %v1359
        %v1361 = vmul.f32 %v1346, 1.442695
        %v1362 = vpow.pop %v1361
        %v1363 = vadd.f32 %v1331, %v1348
        %v1364 = vadd.f32 %v1332, %v1350
        %v1365 = vadd.f32 %v1333, %v1352
        %v1366 = vadd.f32 %v1334, %v1354
        %v1367 = vadd.f32 %v1335, %v1356
        %v1368 = vadd.f32 %v1336, %v1358
        %v1369 = vadd.f32 %v1337, %v1360
        %v1370 = vadd.f32 %v1338, %v1362
        %v1371 = vsub.f32 %v793, %v1235
        %v1372 = vsub.f32 %v796, %v1236
        %v1373 = vsub.f32 %v799, %v1237
        %v1374 = vsub.f32 %v802, %v1238
        %v1375 = vsub.f32 %v805, %v1239
        %v1376 = vsub.f32 %v808, %v1240
        %v1377 = vsub.f32 %v811, %v1241
        %v1378 = vsub.f32 %v814, %v1242
        %v1379 = vmul.f32 %v1371, 1.442695
        %v1380 = vpow.pop %v1379
        %v1381 = vmul.f32 %v1372, 1.442695
        %v1382 = vpow.pop %v1381
        %v1383 = vmul.f32 %v1373, 1.442695
        %v1384 = vpow.pop %v1383
        %v1385 = vmul.f32 %v1374, 1.442695
        %v1386 = vpow.pop %v1385
        %v1387 = vmul.f32 %v1375, 1.442695
        %v1388 = vpow.pop %v1387
        %v1389 = vmul.f32 %v1376, 1.442695
        %v1390 = vpow.pop %v1389
        %v1391 = vmul.f32 %v1377, 1.442695
        %v1392 = vpow.pop %v1391
        %v1393 = vmul.f32 %v1378, 1.442695
        %v1394 = vpow.pop %v1393
        %v1395 = vadd.f32 %v1363, %v1380
        %v1396 = vadd.f32 %v1364, %v1382
        %v1397 = vadd.f32 %v1365, %v1384
        %v1398 = vadd.f32 %v1366, %v1386
        %v1399 = vadd.f32 %v1367, %v1388
        %v1400 = vadd.f32 %v1368, %v1390
        %v1401 = vadd.f32 %v1369, %v1392
        %v1402 = vadd.f32 %v1370, %v1394
        %v1403 = vsub.f32 %v883, %v1235
        %v1404 = vsub.f32 %v886, %v1236
        %v1405 = vsub.f32 %v889, %v1237
        %v1406 = vsub.f32 %v892, %v1238
        %v1407 = vsub.f32 %v895, %v1239
        %v1408 = vsub.f32 %v898, %v1240
        %v1409 = vsub.f32 %v901, %v1241
        %v1410 = vsub.f32 %v904, %v1242
        %v1411 = vmul.f32 %v1403, 1.442695
        %v1412 = vpow.pop %v1411
        %v1413 = vmul.f32 %v1404, 1.442695
        %v1414 = vpow.pop %v1413
        %v1415 = vmul.f32 %v1405, 1.442695
        %v1416 = vpow.pop %v1415
        %v1417 = vmul.f32 %v1406, 1.442695
        %v1418 = vpow.pop %v1417
        %v1419 = vmul.f32 %v1407, 1.442695
        %v1420 = vpow.pop %v1419
        %v1421 = vmul.f32 %v1408, 1.442695
        %v1422 = vpow.pop %v1421
        %v1423 = vmul.f32 %v1409, 1.442695
        %v1424 = vpow.pop %v1423
        %v1425 = vmul.f32 %v1410, 1.442695
        %v1426 = vpow.pop %v1425
        %v1427 = vadd.f32 %v1395, %v1412
        %v1428 = vadd.f32 %v1396, %v1414
        %v1429 = vadd.f32 %v1397, %v1416
        %v1430 = vadd.f32 %v1398, %v1418
        %v1431 = vadd.f32 %v1399, %v1420
        %v1432 = vadd.f32 %v1400, %v1422
        %v1433 = vadd.f32 %v1401, %v1424
        %v1434 = vadd.f32 %v1402, %v1426
        %v1435 = vsub.f32 %v976, %v1235
        %v1436 = vsub.f32 %v979, %v1236
        %v1437 = vsub.f32 %v982, %v1237
        %v1438 = vsub.f32 %v985, %v1238
        %v1439 = vsub.f32 %v988, %v1239
        %v1440 = vsub.f32 %v991, %v1240
        %v1441 = vsub.f32 %v994, %v1241
        %v1442 = vsub.f32 %v997, %v1242
        %v1443 = vmul.f32 %v1435, 1.442695
        %v1444 = vpow.pop %v1443
        %v1445 = vmul.f32 %v1436, 1.442695
        %v1446 = vpow.pop %v1445
        %v1447 = vmul.f32 %v1437, 1.442695
        %v1448 = vpow.pop %v1447
        %v1449 = vmul.f32 %v1438, 1.442695
        %v1450 = vpow.pop %v1449
        %v1451 = vmul.f32 %v1439, 1.442695
        %v1452 = vpow.pop %v1451
        %v1453 = vmul.f32 %v1440, 1.442695
        %v1454 = vpow.pop %v1453
        %v1455 = vmul.f32 %v1441, 1.442695
        %v1456 = vpow.pop %v1455
        %v1457 = vmul.f32 %v1442, 1.442695
        %v1458 = vpow.pop %v1457
        %v1459 = vadd.f32 %v1427, %v1444
        %v1460 = vadd.f32 %v1428, %v1446
        %v1461 = vadd.f32 %v1429, %v1448
        %v1462 = vadd.f32 %v1430, %v1450
        %v1463 = vadd.f32 %v1431, %v1452
        %v1464 = vadd.f32 %v1432, %v1454
        %v1465 = vadd.f32 %v1433, %v1456
        %v1466 = vadd.f32 %v1434, %v1458
        %v1467 = vsub.f32 %v1066, %v1235
        %v1468 = vsub.f32 %v1069, %v1236
        %v1469 = vsub.f32 %v1072, %v1237
        %v1470 = vsub.f32 %v1075, %v1238
        %v1471 = vsub.f32 %v1078, %v1239
        %v1472 = vsub.f32 %v1081, %v1240
        %v1473 = vsub.f32 %v1084, %v1241
        %v1474 = vsub.f32 %v1087, %v1242
        %v1475 = vmul.f32 %v1467, 1.442695
        %v1476 = vpow.pop %v1475
        %v1477 = vmul.f32 %v1468, 1.442695
        %v1478 = vpow.pop %v1477
        %v1479 = vmul.f32 %v1469, 1.442695
        %v1480 = vpow.pop %v1479
        %v1481 = vmul.f32 %v1470, 1.442695
        %v1482 = vpow.pop %v1481
        %v1483 = vmul.f32 %v1471, 1.442695
        %v1484 = vpow.pop %v1483
        %v1485 = vmul.f32 %v1472, 1.442695
        %v1486 = vpow.pop %v1485
        %v1487 = vmul.f32 %v1473, 1.442695
        %v1488 = vpow.pop %v1487
        %v1489 = vmul.f32 %v1474, 1.442695
        %v1490 = vpow.pop %v1489
        %v1491 = vadd.f32 %v1459, %v1476
        %v1492 = vadd.f32 %v1460, %v1478
        %v1493 = vadd.f32 %v1461, %v1480
        %v1494 = vadd.f32 %v1462, %v1482
        %v1495 = vadd.f32 %v1463, %v1484
        %v1496 = vadd.f32 %v1464, %v1486
        %v1497 = vadd.f32 %v1465, %v1488
        %v1498 = vadd.f32 %v1466, %v1490
        %v1499 = vsub.f32 %v1156, %v1235
        %v1500 = vsub.f32 %v1159, %v1236
        %v1501 = vsub.f32 %v1162, %v1237
        %v1502 = vsub.f32 %v1165, %v1238
        %v1503 = vsub.f32 %v1168, %v1239
        %v1504 = vsub.f32 %v1171, %v1240
        %v1505 = vsub.f32 %v1174, %v1241
        %v1506 = vsub.f32 %v1177, %v1242
        %v1507 = vmul.f32 %v1499, 1.442695
        %v1508 = vpow.pop %v1507
        %v1509 = vmul.f32 %v1500, 1.442695
        %v1510 = vpow.pop %v1509
        %v1511 = vmul.f32 %v1501, 1.442695
        %v1512 = vpow.pop %v1511
        %v1513 = vmul.f32 %v1502, 1.442695
        %v1514 = vpow.pop %v1513
        %v1515 = vmul.f32 %v1503, 1.442695
        %v1516 = vpow.pop %v1515
        %v1517 = vmul.f32 %v1504, 1.442695
        %v1518 = vpow.pop %v1517
        %v1519 = vmul.f32 %v1505, 1.442695
        %v1520 = vpow.pop %v1519
        %v1521 = vmul.f32 %v1506, 1.442695
        %v1522 = vpow.pop %v1521
        %v1523 = vadd.f32 %v1491, %v1508
        %v1524 = vadd.f32 %v1492, %v1510
        %v1525 = vadd.f32 %v1493, %v1512
        %v1526 = vadd.f32 %v1494, %v1514
        %v1527 = vadd.f32 %v1495, %v1516
        %v1528 = vadd.f32 %v1496, %v1518
        %v1529 = vadd.f32 %v1497, %v1520
        %v1530 = vadd.f32 %v1498, %v1522
        %v1531 = vrcp.pop %v1523
        %v1532 = vmul.f32 %v1523, %v1531
        %v1533 = vsub.f32 1.0, %v1532
        %v1534 = vmul.f32 %v1531, %v1533
        %v1535 = vadd.f32 %v1531, %v1534
        %vm1536 = vweird.f32 %v1523
        %vm1537 = vweird.f32 %v1531
        %vm1538 = vmor %vm1536, %vm1537
        %v1539 = vsel %vm1538, %v1531, %v1535
        %v1540 = vand.u32 2147483647, %v1523
        %vm1541 = vcmp.eq.f32.partialorder %v1540, 8.507059e+37
        %v1542 = vand.u32 %v1523, 2147483648
        %v1543 = vor.u32 1.1754944e-38, %v1542
        %v1544 = vsel %vm1541, %v1543, %v1539
        %v1545 = vmul.f32 1.0, %v1544
        %v1546 = vrcp.pop %v1524
        %v1547 = vmul.f32 %v1524, %v1546
        %v1548 = vsub.f32 1.0, %v1547
        %v1549 = vmul.f32 %v1546, %v1548
        %v1550 = vadd.f32 %v1546, %v1549
        %vm1551 = vweird.f32 %v1524
        %vm1552 = vweird.f32 %v1546
        %vm1553 = vmor %vm1551, %vm1552
        %v1554 = vsel %vm1553, %v1546, %v1550
        %v1555 = vand.u32 2147483647, %v1524
        %vm1556 = vcmp.eq.f32.partialorder %v1555, 8.507059e+37
        %v1557 = vand.u32 %v1524, 2147483648
        %v1558 = vor.u32 1.1754944e-38, %v1557
        %v1559 = vsel %vm1556, %v1558, %v1554
        %v1560 = vmul.f32 1.0, %v1559
        %v1561 = vrcp.pop %v1525
        %v1562 = vmul.f32 %v1525, %v1561
        %v1563 = vsub.f32 1.0, %v1562
        %v1564 = vmul.f32 %v1561, %v1563
        %v1565 = vadd.f32 %v1561, %v1564
        %vm1566 = vweird.f32 %v1525
        %vm1567 = vweird.f32 %v1561
        %vm1568 = vmor %vm1566, %vm1567
        %v1569 = vsel %vm1568, %v1561, %v1565
        %v1570 = vand.u32 2147483647, %v1525
        %vm1571 = vcmp.eq.f32.partialorder %v1570, 8.507059e+37
        %v1572 = vand.u32 %v1525, 2147483648
        %v1573 = vor.u32 1.1754944e-38, %v1572
        %v1574 = vsel %vm1571, %v1573, %v1569
        %v1575 = vmul.f32 1.0, %v1574
        %v1576 = vrcp.pop %v1526
        %v1577 = vmul.f32 %v1526, %v1576
        %v1578 = vsub.f32 1.0, %v1577
        %v1579 = vmul.f32 %v1576, %v1578
        %v1580 = vadd.f32 %v1576, %v1579
        %vm1581 = vweird.f32 %v1526
        %vm1582 = vweird.f32 %v1576
        %vm1583 = vmor %vm1581, %vm1582
        %v1584 = vsel %vm1583, %v1576, %v1580
        %v1585 = vand.u32 2147483647, %v1526
        %vm1586 = vcmp.eq.f32.partialorder %v1585, 8.507059e+37
        %v1587 = vand.u32 %v1526, 2147483648
        %v1588 = vor.u32 1.1754944e-38, %v1587
        %v1589 = vsel %vm1586, %v1588, %v1584
        %v1590 = vmul.f32 1.0, %v1589
        %v1591 = vrcp.pop %v1527
        %v1592 = vmul.f32 %v1527, %v1591
        %v1593 = vsub.f32 1.0, %v1592
        %v1594 = vmul.f32 %v1591, %v1593
        %v1595 = vadd.f32 %v1591, %v1594
        %vm1596 = vweird.f32 %v1527
        %vm1597 = vweird.f32 %v1591
        %vm1598 = vmor %vm1596, %vm1597
        %v1599 = vsel %vm1598, %v1591, %v1595
        %v1600 = vand.u32 2147483647, %v1527
        %vm1601 = vcmp.eq.f32.partialorder %v1600, 8.507059e+37
        %v1602 = vand.u32 %v1527, 2147483648
        %v1603 = vor.u32 1.1754944e-38, %v1602
        %v1604 = vsel %vm1601, %v1603, %v1599
        %v1605 = vmul.f32 1.0, %v1604
        %v1606 = vrcp.pop %v1528
        %v1607 = vmul.f32 %v1528, %v1606
        %v1608 = vsub.f32 1.0, %v1607
        %v1609 = vmul.f32 %v1606, %v1608
        %v1610 = vadd.f32 %v1606, %v1609
        %vm1611 = vweird.f32 %v1528
        %vm1612 = vweird.f32 %v1606
        %vm1613 = vmor %vm1611, %vm1612
        %v1614 = vsel %vm1613, %v1606, %v1610
        %v1615 = vand.u32 2147483647, %v1528
        %vm1616 = vcmp.eq.f32.partialorder %v1615, 8.507059e+37
        %v1617 = vand.u32 %v1528, 2147483648
        %v1618 = vor.u32 1.1754944e-38, %v1617
        %v1619 = vsel %vm1616, %v1618, %v1614
        %v1620 = vmul.f32 1.0, %v1619
        %v1621 = vrcp.pop %v1529
        %v1622 = vmul.f32 %v1529, %v1621
        %v1623 = vsub.f32 1.0, %v1622
        %v1624 = vmul.f32 %v1621, %v1623
        %v1625 = vadd.f32 %v1621, %v1624
        %vm1626 = vweird.f32 %v1529
        %vm1627 = vweird.f32 %v1621
        %vm1628 = vmor %vm1626, %vm1627
        %v1629 = vsel %vm1628, %v1621, %v1625
        %v1630 = vand.u32 2147483647, %v1529
        %vm1631 = vcmp.eq.f32.partialorder %v1630, 8.507059e+37
        %v1632 = vand.u32 %v1529, 2147483648
        %v1633 = vor.u32 1.1754944e-38, %v1632
        %v1634 = vsel %vm1631, %v1633, %v1629
        %v1635 = vmul.f32 1.0, %v1634
        %v1636 = vrcp.pop %v1530
        %v1637 = vmul.f32 %v1530, %v1636
        %v1638 = vsub.f32 1.0, %v1637
        %v1639 = vmul.f32 %v1636, %v1638
        %v1640 = vadd.f32 %v1636, %v1639
        %vm1641 = vweird.f32 %v1530
        %vm1642 = vweird.f32 %v1636
        %vm1643 = vmor %vm1641, %vm1642
        %v1644 = vsel %vm1643, %v1636, %v1640
        %v1645 = vand.u32 2147483647, %v1530
        %vm1646 = vcmp.eq.f32.partialorder %v1645, 8.507059e+37
        %v1647 = vand.u32 %v1530, 2147483648
        %v1648 = vor.u32 1.1754944e-38, %v1647
        %v1649 = vsel %vm1646, %v1648, %v1644
        %v1650 = vmul.f32 1.0, %v1649
        %v1651 = vmul.f32 %v1252, %v1545
        %v1652 = vmul.f32 %v1254, %v1560
        %v1653 = vmul.f32 %v1256, %v1575
        %v1654 = vmul.f32 %v1258, %v1590
        %v1655 = vmul.f32 %v1260, %v1605
        %v1656 = vmul.f32 %v1262, %v1620
        %v1657 = vmul.f32 %v1264, %v1635
        %v1658 = vmul.f32 %v1266, %v1650
        %vm1659 = vcmask 15360
        %v1661 = vsel %vm1659, %v1651, 0
        %v1664 = vsel %vm1659, %v1652, 0
        %v1667 = vsel %vm1659, %v1653, 0
        %v1670 = vsel %vm1659, %v1654, 0
        %v1673 = vsel %vm1659, %v1655, 0
        %v1676 = vsel %vm1659, %v1656, 0
        %v1679 = vsel %vm1659, %v1657, 0
        %v1682 = vsel %vm1659, %v1658, 0
        %vm1684 = vcmask 1041408
        %v1686 = vsel %vm1684, %v198, 0
        %1688 = vmatpush.msra.mxu0 0.0
        %1689 = vmatpush.msra.mxu0 0.0
        %1690 = vmatpush.msra.mxu0 0.0
        %1691 = vmatpush.msra.mxu0 0.0
        %1692 = vmatpush.msra.mxu0 0.0
        %1693 = vmatpush.msra.mxu0 0.0
        %1694 = vmatpush.msra.mxu0 0.0
        %1695 = vmatpush.msra.mxu0 0.0
        %1696 = vmatpush.msra.mxu0 0.0
        %1697 = vmatpush.msra.mxu0 0.0
        %1698 = vmatpush.msra.mxu0 0.0
        %1699 = vmatpush.msra.mxu0 0.0
        %1700 = vmatpush.msra.mxu0 0.0
        %1701 = vmatpush.msra.mxu0 0.0
        %1702 = vmatpush.msra.mxu0 0.0
        %1703 = vmatpush.msra.mxu0 %v1686
        %1704 = vmatmul.f32.gmra.mxu0 %v1661
        %v1705 = vpop.f32.mrf.mxu0
        %v1706 = vadd.f32 0.0, %v1705
        %1707 = vmatmul.f32.gmra.mxu0 %v1664
        %v1708 = vpop.f32.mrf.mxu0
        %v1709 = vadd.f32 0.0, %v1708
        %1710 = vmatmul.f32.gmra.mxu0 %v1667
        %v1711 = vpop.f32.mrf.mxu0
        %v1712 = vadd.f32 0.0, %v1711
        %1713 = vmatmul.f32.gmra.mxu0 %v1670
        %v1714 = vpop.f32.mrf.mxu0
        %v1715 = vadd.f32 0.0, %v1714
        %1716 = vmatmul.f32.gmra.mxu0 %v1673
        %v1717 = vpop.f32.mrf.mxu0
        %v1718 = vadd.f32 0.0, %v1717
        %1719 = vmatmul.f32.gmra.mxu0 %v1676
        %v1720 = vpop.f32.mrf.mxu0
        %v1721 = vadd.f32 0.0, %v1720
        %1722 = vmatmul.f32.gmra.mxu0 %v1679
        %v1723 = vpop.f32.mrf.mxu0
        %v1724 = vadd.f32 0.0, %v1723
        %1725 = vmatmul.f32.gmra.mxu0 %v1682
        %v1726 = vpop.f32.mrf.mxu0
        %v1727 = vadd.f32 0.0, %v1726
        %1728 = vdwg.mxu0
        %1729 = vrot.lane.b32.xlu0 %v261, 64
        %v1730 = vpop.permute.xlu0 %1729
        %1731 = vrot.lane.b32.xlu0 %v262, 64
        %v1732 = vpop.permute.xlu0 %1731
        %1733 = vrot.lane.b32.xlu0 %v263, 64
        %v1734 = vpop.permute.xlu0 %1733
        %1735 = vrot.lane.b32.xlu0 %v264, 64
        %v1736 = vpop.permute.xlu0 %1735
        %1737 = vrot.lane.b32.xlu0 %v265, 64
        %v1738 = vpop.permute.xlu0 %1737
        %1739 = vrot.lane.b32.xlu0 %v266, 64
        %v1740 = vpop.permute.xlu0 %1739
        %v1747 = vmul.f32 %v1706, %v1730
        %v1748 = vmul.f32 %v1709, %v1730
        %v1749 = vmul.f32 %v1712, %v1732
        %v1750 = vmul.f32 %v1715, %v1734
        %v1751 = vmul.f32 %v1718, %v1736
        %v1752 = vmul.f32 %v1721, %v1738
        %v1753 = vmul.f32 %v1724, %v1740
        %v1754 = vmul.f32 %v1727, %v1740
        %v1755 = vadd.f32 %v1747, 0.0
        %v1756 = vadd.f32 %v1748, 0.0
        %v1757 = vadd.f32 %v1749, 0.0
        %v1758 = vadd.f32 %v1750, 0.0
        %v1759 = vadd.f32 %v1751, 0.0
        %v1760 = vadd.f32 %v1752, 0.0
        %v1761 = vadd.f32 %v1753, 0.0
        %v1762 = vadd.f32 %v1754, 0.0
        %v1763 = vmul.f32 %v1284, %v1545
        %v1764 = vmul.f32 %v1286, %v1560
        %v1765 = vmul.f32 %v1288, %v1575
        %v1766 = vmul.f32 %v1290, %v1590
        %v1767 = vmul.f32 %v1292, %v1605
        %v1768 = vmul.f32 %v1294, %v1620
        %v1769 = vmul.f32 %v1296, %v1635
        %v1770 = vmul.f32 %v1298, %v1650
        %v1772 = vsel %vm1659, %v1763, 0
        %v1775 = vsel %vm1659, %v1764, 0
        %v1778 = vsel %vm1659, %v1765, 0
        %v1781 = vsel %vm1659, %v1766, 0
        %v1784 = vsel %vm1659, %v1767, 0
        %v1787 = vsel %vm1659, %v1768, 0
        %v1790 = vsel %vm1659, %v1769, 0
        %v1793 = vsel %vm1659, %v1770, 0
        %1795 = vmatpush.msra.mxu0 0.0
        %1796 = vmatpush.msra.mxu0 0.0
        %1797 = vmatpush.msra.mxu0 0.0
        %1798 = vmatpush.msra.mxu0 0.0
        %1799 = vmatpush.msra.mxu0 0.0
        %1800 = vmatpush.msra.mxu0 0.0
        %1801 = vmatpush.msra.mxu0 0.0
        %1802 = vmatpush.msra.mxu0 0.0
        %1803 = vmatpush.msra.mxu0 0.0
        %1804 = vmatpush.msra.mxu0 0.0
        %1805 = vmatpush.msra.mxu0 0.0
        %1806 = vmatpush.msra.mxu0 0.0
        %1807 = vmatpush.msra.mxu0 0.0
        %1808 = vmatpush.msra.mxu0 0.0
        %1809 = vmatpush.msra.mxu0 0.0
        %1810 = vmatpush.msra.mxu0 %v1686
        %1811 = vmatmul.f32.gmra.mxu0 %v1772
        %v1812 = vpop.f32.mrf.mxu0
        %v1813 = vadd.f32 0.0, %v1812
        %1814 = vmatmul.f32.gmra.mxu0 %v1775
        %v1815 = vpop.f32.mrf.mxu0
        %v1816 = vadd.f32 0.0, %v1815
        %1817 = vmatmul.f32.gmra.mxu0 %v1778
        %v1818 = vpop.f32.mrf.mxu0
        %v1819 = vadd.f32 0.0, %v1818
        %1820 = vmatmul.f32.gmra.mxu0 %v1781
        %v1821 = vpop.f32.mrf.mxu0
        %v1822 = vadd.f32 0.0, %v1821
        %1823 = vmatmul.f32.gmra.mxu0 %v1784
        %v1824 = vpop.f32.mrf.mxu0
        %v1825 = vadd.f32 0.0, %v1824
        %1826 = vmatmul.f32.gmra.mxu0 %v1787
        %v1827 = vpop.f32.mrf.mxu0
        %v1828 = vadd.f32 0.0, %v1827
        %1829 = vmatmul.f32.gmra.mxu0 %v1790
        %v1830 = vpop.f32.mrf.mxu0
        %v1831 = vadd.f32 0.0, %v1830
        %1832 = vmatmul.f32.gmra.mxu0 %v1793
        %v1833 = vpop.f32.mrf.mxu0
        %v1834 = vadd.f32 0.0, %v1833
        %1835 = vdwg.mxu0
        %1836 = vrot.lane.b32.xlu0 %v391, 64
        %v1837 = vpop.permute.xlu0 %1836
        %1838 = vrot.lane.b32.xlu0 %v392, 64
        %v1839 = vpop.permute.xlu0 %1838
        %1840 = vrot.lane.b32.xlu0 %v393, 64
        %v1841 = vpop.permute.xlu0 %1840
        %1842 = vrot.lane.b32.xlu0 %v394, 64
        %v1843 = vpop.permute.xlu0 %1842
        %1844 = vrot.lane.b32.xlu0 %v395, 64
        %v1845 = vpop.permute.xlu0 %1844
        %1846 = vrot.lane.b32.xlu0 %v396, 64
        %v1847 = vpop.permute.xlu0 %1846
        %v1854 = vmul.f32 %v1813, %v1837
        %v1855 = vmul.f32 %v1816, %v1837
        %v1856 = vmul.f32 %v1819, %v1839
        %v1857 = vmul.f32 %v1822, %v1841
        %v1858 = vmul.f32 %v1825, %v1843
        %v1859 = vmul.f32 %v1828, %v1845
        %v1860 = vmul.f32 %v1831, %v1847
        %v1861 = vmul.f32 %v1834, %v1847
        %v1862 = vadd.f32 %v1755, %v1854
        %v1863 = vadd.f32 %v1756, %v1855
        %v1864 = vadd.f32 %v1757, %v1856
        %v1865 = vadd.f32 %v1758, %v1857
        %v1866 = vadd.f32 %v1759, %v1858
        %v1867 = vadd.f32 %v1760, %v1859
        %v1868 = vadd.f32 %v1761, %v1860
        %v1869 = vadd.f32 %v1762, %v1861
        %v1870 = vmul.f32 %v1316, %v1545
        %v1871 = vmul.f32 %v1318, %v1560
        %v1872 = vmul.f32 %v1320, %v1575
        %v1873 = vmul.f32 %v1322, %v1590
        %v1874 = vmul.f32 %v1324, %v1605
        %v1875 = vmul.f32 %v1326, %v1620
        %v1876 = vmul.f32 %v1328, %v1635
        %v1877 = vmul.f32 %v1330, %v1650
        %v1879 = vsel %vm1659, %v1870, 0
        %v1882 = vsel %vm1659, %v1871, 0
        %v1885 = vsel %vm1659, %v1872, 0
        %v1888 = vsel %vm1659, %v1873, 0
        %v1891 = vsel %vm1659, %v1874, 0
        %v1894 = vsel %vm1659, %v1875, 0
        %v1897 = vsel %vm1659, %v1876, 0
        %v1900 = vsel %vm1659, %v1877, 0
        %1902 = vmatpush.msra.mxu0 0.0
        %1903 = vmatpush.msra.mxu0 0.0
        %1904 = vmatpush.msra.mxu0 0.0
        %1905 = vmatpush.msra.mxu0 0.0
        %1906 = vmatpush.msra.mxu0 0.0
        %1907 = vmatpush.msra.mxu0 0.0
        %1908 = vmatpush.msra.mxu0 0.0
        %1909 = vmatpush.msra.mxu0 0.0
        %1910 = vmatpush.msra.mxu0 0.0
        %1911 = vmatpush.msra.mxu0 0.0
        %1912 = vmatpush.msra.mxu0 0.0
        %1913 = vmatpush.msra.mxu0 0.0
        %1914 = vmatpush.msra.mxu0 0.0
        %1915 = vmatpush.msra.mxu0 0.0
        %1916 = vmatpush.msra.mxu0 0.0
        %1917 = vmatpush.msra.mxu0 %v1686
        %1918 = vmatmul.f32.gmra.mxu0 %v1879
        %v1919 = vpop.f32.mrf.mxu0
        %v1920 = vadd.f32 0.0, %v1919
        %1921 = vmatmul.f32.gmra.mxu0 %v1882
        %v1922 = vpop.f32.mrf.mxu0
        %v1923 = vadd.f32 0.0, %v1922
        %1924 = vmatmul.f32.gmra.mxu0 %v1885
        %v1925 = vpop.f32.mrf.mxu0
        %v1926 = vadd.f32 0.0, %v1925
        %1927 = vmatmul.f32.gmra.mxu0 %v1888
        %v1928 = vpop.f32.mrf.mxu0
        %v1929 = vadd.f32 0.0, %v1928
        %1930 = vmatmul.f32.gmra.mxu0 %v1891
        %v1931 = vpop.f32.mrf.mxu0
        %v1932 = vadd.f32 0.0, %v1931
        %1933 = vmatmul.f32.gmra.mxu0 %v1894
        %v1934 = vpop.f32.mrf.mxu0
        %v1935 = vadd.f32 0.0, %v1934
        %1936 = vmatmul.f32.gmra.mxu0 %v1897
        %v1937 = vpop.f32.mrf.mxu0
        %v1938 = vadd.f32 0.0, %v1937
        %1939 = vmatmul.f32.gmra.mxu0 %v1900
        %v1940 = vpop.f32.mrf.mxu0
        %v1941 = vadd.f32 0.0, %v1940
        %1942 = vdwg.mxu0
        %1943 = vrot.lane.b32.xlu0 %v521, 64
        %v1944 = vpop.permute.xlu0 %1943
        %1945 = vrot.lane.b32.xlu0 %v522, 64
        %v1946 = vpop.permute.xlu0 %1945
        %1947 = vrot.lane.b32.xlu0 %v523, 64
        %v1948 = vpop.permute.xlu0 %1947
        %1949 = vrot.lane.b32.xlu0 %v524, 64
        %v1950 = vpop.permute.xlu0 %1949
        %1951 = vrot.lane.b32.xlu0 %v525, 64
        %v1952 = vpop.permute.xlu0 %1951
        %1953 = vrot.lane.b32.xlu0 %v526, 64
        %v1954 = vpop.permute.xlu0 %1953
        %v1961 = vmul.f32 %v1920, %v1944
        %v1962 = vmul.f32 %v1923, %v1944
        %v1963 = vmul.f32 %v1926, %v1946
        %v1964 = vmul.f32 %v1929, %v1948
        %v1965 = vmul.f32 %v1932, %v1950
        %v1966 = vmul.f32 %v1935, %v1952
        %v1967 = vmul.f32 %v1938, %v1954
        %v1968 = vmul.f32 %v1941, %v1954
        %v1969 = vadd.f32 %v1862, %v1961
        %v1970 = vadd.f32 %v1863, %v1962
        %v1971 = vadd.f32 %v1864, %v1963
        %v1972 = vadd.f32 %v1865, %v1964
        %v1973 = vadd.f32 %v1866, %v1965
        %v1974 = vadd.f32 %v1867, %v1966
        %v1975 = vadd.f32 %v1868, %v1967
        %v1976 = vadd.f32 %v1869, %v1968
        %v1977 = vmul.f32 %v1348, %v1545
        %v1978 = vmul.f32 %v1350, %v1560
        %v1979 = vmul.f32 %v1352, %v1575
        %v1980 = vmul.f32 %v1354, %v1590
        %v1981 = vmul.f32 %v1356, %v1605
        %v1982 = vmul.f32 %v1358, %v1620
        %v1983 = vmul.f32 %v1360, %v1635
        %v1984 = vmul.f32 %v1362, %v1650
        %v1986 = vsel %vm1659, %v1977, 0
        %v1989 = vsel %vm1659, %v1978, 0
        %v1992 = vsel %vm1659, %v1979, 0
        %v1995 = vsel %vm1659, %v1980, 0
        %v1998 = vsel %vm1659, %v1981, 0
        %v2001 = vsel %vm1659, %v1982, 0
        %v2004 = vsel %vm1659, %v1983, 0
        %v2007 = vsel %vm1659, %v1984, 0
        %2009 = vmatpush.msra.mxu0 0.0
        %2010 = vmatpush.msra.mxu0 0.0
        %2011 = vmatpush.msra.mxu0 0.0
        %2012 = vmatpush.msra.mxu0 0.0
        %2013 = vmatpush.msra.mxu0 0.0
        %2014 = vmatpush.msra.mxu0 0.0
        %2015 = vmatpush.msra.mxu0 0.0
        %2016 = vmatpush.msra.mxu0 0.0
        %2017 = vmatpush.msra.mxu0 0.0
        %2018 = vmatpush.msra.mxu0 0.0
        %2019 = vmatpush.msra.mxu0 0.0
        %2020 = vmatpush.msra.mxu0 0.0
        %2021 = vmatpush.msra.mxu0 0.0
        %2022 = vmatpush.msra.mxu0 0.0
        %2023 = vmatpush.msra.mxu0 0.0
        %2024 = vmatpush.msra.mxu0 %v1686
        %2025 = vmatmul.f32.gmra.mxu0 %v1986
        %v2026 = vpop.f32.mrf.mxu0
        %v2027 = vadd.f32 0.0, %v2026
        %2028 = vmatmul.f32.gmra.mxu0 %v1989
        %v2029 = vpop.f32.mrf.mxu0
        %v2030 = vadd.f32 0.0, %v2029
        %2031 = vmatmul.f32.gmra.mxu0 %v1992
        %v2032 = vpop.f32.mrf.mxu0
        %v2033 = vadd.f32 0.0, %v2032
        %2034 = vmatmul.f32.gmra.mxu0 %v1995
        %v2035 = vpop.f32.mrf.mxu0
        %v2036 = vadd.f32 0.0, %v2035
        %2037 = vmatmul.f32.gmra.mxu0 %v1998
        %v2038 = vpop.f32.mrf.mxu0
        %v2039 = vadd.f32 0.0, %v2038
        %2040 = vmatmul.f32.gmra.mxu0 %v2001
        %v2041 = vpop.f32.mrf.mxu0
        %v2042 = vadd.f32 0.0, %v2041
        %2043 = vmatmul.f32.gmra.mxu0 %v2004
        %v2044 = vpop.f32.mrf.mxu0
        %v2045 = vadd.f32 0.0, %v2044
        %2046 = vmatmul.f32.gmra.mxu0 %v2007
        %v2047 = vpop.f32.mrf.mxu0
        %v2048 = vadd.f32 0.0, %v2047
        %2049 = vdwg.mxu0
        %2050 = vrot.lane.b32.xlu0 %v639, 64
        %v2051 = vpop.permute.xlu0 %2050
        %v2053 = vmul.f32 %v2027, %v1732
        %v2054 = vmul.f32 %v2030, %v1732
        %v2055 = vmul.f32 %v2033, %v1734
        %v2056 = vmul.f32 %v2036, %v1736
        %v2057 = vmul.f32 %v2039, %v1738
        %v2058 = vmul.f32 %v2042, %v1740
        %v2059 = vmul.f32 %v2045, %v2051
        %v2060 = vmul.f32 %v2048, %v2051
        %v2061 = vadd.f32 %v1969, %v2053
        %v2062 = vadd.f32 %v1970, %v2054
        %v2063 = vadd.f32 %v1971, %v2055
        %v2064 = vadd.f32 %v1972, %v2056
        %v2065 = vadd.f32 %v1973, %v2057
        %v2066 = vadd.f32 %v1974, %v2058
        %v2067 = vadd.f32 %v1975, %v2059
        %v2068 = vadd.f32 %v1976, %v2060
        %v2069 = vmul.f32 %v1380, %v1545
        %v2070 = vmul.f32 %v1382, %v1560
        %v2071 = vmul.f32 %v1384, %v1575
        %v2072 = vmul.f32 %v1386, %v1590
        %v2073 = vmul.f32 %v1388, %v1605
        %v2074 = vmul.f32 %v1390, %v1620
        %v2075 = vmul.f32 %v1392, %v1635
        %v2076 = vmul.f32 %v1394, %v1650
        %v2078 = vsel %vm1659, %v2069, 0
        %v2081 = vsel %vm1659, %v2070, 0
        %v2084 = vsel %vm1659, %v2071, 0
        %v2087 = vsel %vm1659, %v2072, 0
        %v2090 = vsel %vm1659, %v2073, 0
        %v2093 = vsel %vm1659, %v2074, 0
        %v2096 = vsel %vm1659, %v2075, 0
        %v2099 = vsel %vm1659, %v2076, 0
        %2101 = vmatpush.msra.mxu0 0.0
        %2102 = vmatpush.msra.mxu0 0.0
        %2103 = vmatpush.msra.mxu0 0.0
        %2104 = vmatpush.msra.mxu0 0.0
        %2105 = vmatpush.msra.mxu0 0.0
        %2106 = vmatpush.msra.mxu0 0.0
        %2107 = vmatpush.msra.mxu0 0.0
        %2108 = vmatpush.msra.mxu0 0.0
        %2109 = vmatpush.msra.mxu0 0.0
        %2110 = vmatpush.msra.mxu0 0.0
        %2111 = vmatpush.msra.mxu0 0.0
        %2112 = vmatpush.msra.mxu0 0.0
        %2113 = vmatpush.msra.mxu0 0.0
        %2114 = vmatpush.msra.mxu0 0.0
        %2115 = vmatpush.msra.mxu0 0.0
        %2116 = vmatpush.msra.mxu0 %v1686
        %2117 = vmatmul.f32.gmra.mxu0 %v2078
        %v2118 = vpop.f32.mrf.mxu0
        %v2119 = vadd.f32 0.0, %v2118
        %2120 = vmatmul.f32.gmra.mxu0 %v2081
        %v2121 = vpop.f32.mrf.mxu0
        %v2122 = vadd.f32 0.0, %v2121
        %2123 = vmatmul.f32.gmra.mxu0 %v2084
        %v2124 = vpop.f32.mrf.mxu0
        %v2125 = vadd.f32 0.0, %v2124
        %2126 = vmatmul.f32.gmra.mxu0 %v2087
        %v2127 = vpop.f32.mrf.mxu0
        %v2128 = vadd.f32 0.0, %v2127
        %2129 = vmatmul.f32.gmra.mxu0 %v2090
        %v2130 = vpop.f32.mrf.mxu0
        %v2131 = vadd.f32 0.0, %v2130
        %2132 = vmatmul.f32.gmra.mxu0 %v2093
        %v2133 = vpop.f32.mrf.mxu0
        %v2134 = vadd.f32 0.0, %v2133
        %2135 = vmatmul.f32.gmra.mxu0 %v2096
        %v2136 = vpop.f32.mrf.mxu0
        %v2137 = vadd.f32 0.0, %v2136
        %2138 = vmatmul.f32.gmra.mxu0 %v2099
        %v2139 = vpop.f32.mrf.mxu0
        %v2140 = vadd.f32 0.0, %v2139
        %2141 = vdwg.mxu0
        %2142 = vrot.lane.b32.xlu0 %v729, 64
        %v2143 = vpop.permute.xlu0 %2142
        %v2145 = vmul.f32 %v2119, %v1839
        %v2146 = vmul.f32 %v2122, %v1839
        %v2147 = vmul.f32 %v2125, %v1841
        %v2148 = vmul.f32 %v2128, %v1843
        %v2149 = vmul.f32 %v2131, %v1845
        %v2150 = vmul.f32 %v2134, %v1847
        %v2151 = vmul.f32 %v2137, %v2143
        %v2152 = vmul.f32 %v2140, %v2143
        %v2153 = vadd.f32 %v2061, %v2145
        %v2154 = vadd.f32 %v2062, %v2146
        %v2155 = vadd.f32 %v2063, %v2147
        %v2156 = vadd.f32 %v2064, %v2148
        %v2157 = vadd.f32 %v2065, %v2149
        %v2158 = vadd.f32 %v2066, %v2150
        %v2159 = vadd.f32 %v2067, %v2151
        %v2160 = vadd.f32 %v2068, %v2152
        %v2161 = vmul.f32 %v1412, %v1545
        %v2162 = vmul.f32 %v1414, %v1560
        %v2163 = vmul.f32 %v1416, %v1575
        %v2164 = vmul.f32 %v1418, %v1590
        %v2165 = vmul.f32 %v1420, %v1605
        %v2166 = vmul.f32 %v1422, %v1620
        %v2167 = vmul.f32 %v1424, %v1635
        %v2168 = vmul.f32 %v1426, %v1650
        %v2170 = vsel %vm1659, %v2161, 0
        %v2173 = vsel %vm1659, %v2162, 0
        %v2176 = vsel %vm1659, %v2163, 0
        %v2179 = vsel %vm1659, %v2164, 0
        %v2182 = vsel %vm1659, %v2165, 0
        %v2185 = vsel %vm1659, %v2166, 0
        %v2188 = vsel %vm1659, %v2167, 0
        %v2191 = vsel %vm1659, %v2168, 0
        %2193 = vmatpush.msra.mxu0 0.0
        %2194 = vmatpush.msra.mxu0 0.0
        %2195 = vmatpush.msra.mxu0 0.0
        %2196 = vmatpush.msra.mxu0 0.0
        %2197 = vmatpush.msra.mxu0 0.0
        %2198 = vmatpush.msra.mxu0 0.0
        %2199 = vmatpush.msra.mxu0 0.0
        %2200 = vmatpush.msra.mxu0 0.0
        %2201 = vmatpush.msra.mxu0 0.0
        %2202 = vmatpush.msra.mxu0 0.0
        %2203 = vmatpush.msra.mxu0 0.0
        %2204 = vmatpush.msra.mxu0 0.0
        %2205 = vmatpush.msra.mxu0 0.0
        %2206 = vmatpush.msra.mxu0 0.0
        %2207 = vmatpush.msra.mxu0 0.0
        %2208 = vmatpush.msra.mxu0 %v1686
        %2209 = vmatmul.f32.gmra.mxu0 %v2170
        %v2210 = vpop.f32.mrf.mxu0
        %v2211 = vadd.f32 0.0, %v2210
        %2212 = vmatmul.f32.gmra.mxu0 %v2173
        %v2213 = vpop.f32.mrf.mxu0
        %v2214 = vadd.f32 0.0, %v2213
        %2215 = vmatmul.f32.gmra.mxu0 %v2176
        %v2216 = vpop.f32.mrf.mxu0
        %v2217 = vadd.f32 0.0, %v2216
        %2218 = vmatmul.f32.gmra.mxu0 %v2179
        %v2219 = vpop.f32.mrf.mxu0
        %v2220 = vadd.f32 0.0, %v2219
        %2221 = vmatmul.f32.gmra.mxu0 %v2182
        %v2222 = vpop.f32.mrf.mxu0
        %v2223 = vadd.f32 0.0, %v2222
        %2224 = vmatmul.f32.gmra.mxu0 %v2185
        %v2225 = vpop.f32.mrf.mxu0
        %v2226 = vadd.f32 0.0, %v2225
        %2227 = vmatmul.f32.gmra.mxu0 %v2188
        %v2228 = vpop.f32.mrf.mxu0
        %v2229 = vadd.f32 0.0, %v2228
        %2230 = vmatmul.f32.gmra.mxu0 %v2191
        %v2231 = vpop.f32.mrf.mxu0
        %v2232 = vadd.f32 0.0, %v2231
        %2233 = vdwg.mxu0
        %2234 = vrot.lane.b32.xlu0 %v819, 64
        %v2235 = vpop.permute.xlu0 %2234
        %v2237 = vmul.f32 %v2211, %v1946
        %v2238 = vmul.f32 %v2214, %v1946
        %v2239 = vmul.f32 %v2217, %v1948
        %v2240 = vmul.f32 %v2220, %v1950
        %v2241 = vmul.f32 %v2223, %v1952
        %v2242 = vmul.f32 %v2226, %v1954
        %v2243 = vmul.f32 %v2229, %v2235
        %v2244 = vmul.f32 %v2232, %v2235
        %v2245 = vadd.f32 %v2153, %v2237
        %v2246 = vadd.f32 %v2154, %v2238
        %v2247 = vadd.f32 %v2155, %v2239
        %v2248 = vadd.f32 %v2156, %v2240
        %v2249 = vadd.f32 %v2157, %v2241
        %v2250 = vadd.f32 %v2158, %v2242
        %v2251 = vadd.f32 %v2159, %v2243
        %v2252 = vadd.f32 %v2160, %v2244
        %v2253 = vmul.f32 %v1444, %v1545
        %v2254 = vmul.f32 %v1446, %v1560
        %v2255 = vmul.f32 %v1448, %v1575
        %v2256 = vmul.f32 %v1450, %v1590
        %v2257 = vmul.f32 %v1452, %v1605
        %v2258 = vmul.f32 %v1454, %v1620
        %v2259 = vmul.f32 %v1456, %v1635
        %v2260 = vmul.f32 %v1458, %v1650
        %v2262 = vsel %vm1659, %v2253, 0
        %v2265 = vsel %vm1659, %v2254, 0
        %v2268 = vsel %vm1659, %v2255, 0
        %v2271 = vsel %vm1659, %v2256, 0
        %v2274 = vsel %vm1659, %v2257, 0
        %v2277 = vsel %vm1659, %v2258, 0
        %v2280 = vsel %vm1659, %v2259, 0
        %v2283 = vsel %vm1659, %v2260, 0
        %2285 = vmatpush.msra.mxu0 0.0
        %2286 = vmatpush.msra.mxu0 0.0
        %2287 = vmatpush.msra.mxu0 0.0
        %2288 = vmatpush.msra.mxu0 0.0
        %2289 = vmatpush.msra.mxu0 0.0
        %2290 = vmatpush.msra.mxu0 0.0
        %2291 = vmatpush.msra.mxu0 0.0
        %2292 = vmatpush.msra.mxu0 0.0
        %2293 = vmatpush.msra.mxu0 0.0
        %2294 = vmatpush.msra.mxu0 0.0
        %2295 = vmatpush.msra.mxu0 0.0
        %2296 = vmatpush.msra.mxu0 0.0
        %2297 = vmatpush.msra.mxu0 0.0
        %2298 = vmatpush.msra.mxu0 0.0
        %2299 = vmatpush.msra.mxu0 0.0
        %2300 = vmatpush.msra.mxu0 %v1686
        %2301 = vmatmul.f32.gmra.mxu0 %v2262
        %v2302 = vpop.f32.mrf.mxu0
        %v2303 = vadd.f32 0.0, %v2302
        %2304 = vmatmul.f32.gmra.mxu0 %v2265
        %v2305 = vpop.f32.mrf.mxu0
        %v2306 = vadd.f32 0.0, %v2305
        %2307 = vmatmul.f32.gmra.mxu0 %v2268
        %v2308 = vpop.f32.mrf.mxu0
        %v2309 = vadd.f32 0.0, %v2308
        %2310 = vmatmul.f32.gmra.mxu0 %v2271
        %v2311 = vpop.f32.mrf.mxu0
        %v2312 = vadd.f32 0.0, %v2311
        %2313 = vmatmul.f32.gmra.mxu0 %v2274
        %v2314 = vpop.f32.mrf.mxu0
        %v2315 = vadd.f32 0.0, %v2314
        %2316 = vmatmul.f32.gmra.mxu0 %v2277
        %v2317 = vpop.f32.mrf.mxu0
        %v2318 = vadd.f32 0.0, %v2317
        %2319 = vmatmul.f32.gmra.mxu0 %v2280
        %v2320 = vpop.f32.mrf.mxu0
        %v2321 = vadd.f32 0.0, %v2320
        %2322 = vmatmul.f32.gmra.mxu0 %v2283
        %v2323 = vpop.f32.mrf.mxu0
        %v2324 = vadd.f32 0.0, %v2323
        %2325 = vdwg.mxu0
        %2326 = vrot.lane.b32.xlu0 %v912, 64
        %v2327 = vpop.permute.xlu0 %2326
        %v2329 = vmul.f32 %v2303, %v1734
        %v2330 = vmul.f32 %v2306, %v1734
        %v2331 = vmul.f32 %v2309, %v1736
        %v2332 = vmul.f32 %v2312, %v1738
        %v2333 = vmul.f32 %v2315, %v1740
        %v2334 = vmul.f32 %v2318, %v2051
        %v2335 = vmul.f32 %v2321, %v2327
        %v2336 = vmul.f32 %v2324, %v2327
        %v2337 = vadd.f32 %v2245, %v2329
        %v2338 = vadd.f32 %v2246, %v2330
        %v2339 = vadd.f32 %v2247, %v2331
        %v2340 = vadd.f32 %v2248, %v2332
        %v2341 = vadd.f32 %v2249, %v2333
        %v2342 = vadd.f32 %v2250, %v2334
        %v2343 = vadd.f32 %v2251, %v2335
        %v2344 = vadd.f32 %v2252, %v2336
        %v2345 = vmul.f32 %v1476, %v1545
        %v2346 = vmul.f32 %v1478, %v1560
        %v2347 = vmul.f32 %v1480, %v1575
        %v2348 = vmul.f32 %v1482, %v1590
        %v2349 = vmul.f32 %v1484, %v1605
        %v2350 = vmul.f32 %v1486, %v1620
        %v2351 = vmul.f32 %v1488, %v1635
        %v2352 = vmul.f32 %v1490, %v1650
        %v2354 = vsel %vm1659, %v2345, 0
        %v2357 = vsel %vm1659, %v2346, 0
        %v2360 = vsel %vm1659, %v2347, 0
        %v2363 = vsel %vm1659, %v2348, 0
        %v2366 = vsel %vm1659, %v2349, 0
        %v2369 = vsel %vm1659, %v2350, 0
        %v2372 = vsel %vm1659, %v2351, 0
        %v2375 = vsel %vm1659, %v2352, 0
        %2377 = vmatpush.msra.mxu0 0.0
        %2378 = vmatpush.msra.mxu0 0.0
        %2379 = vmatpush.msra.mxu0 0.0
        %2380 = vmatpush.msra.mxu0 0.0
        %2381 = vmatpush.msra.mxu0 0.0
        %2382 = vmatpush.msra.mxu0 0.0
        %2383 = vmatpush.msra.mxu0 0.0
        %2384 = vmatpush.msra.mxu0 0.0
        %2385 = vmatpush.msra.mxu0 0.0
        %2386 = vmatpush.msra.mxu0 0.0
        %2387 = vmatpush.msra.mxu0 0.0
        %2388 = vmatpush.msra.mxu0 0.0
        %2389 = vmatpush.msra.mxu0 0.0
        %2390 = vmatpush.msra.mxu0 0.0
        %2391 = vmatpush.msra.mxu0 0.0
        %2392 = vmatpush.msra.mxu0 %v1686
        %2393 = vmatmul.f32.gmra.mxu0 %v2354
        %v2394 = vpop.f32.mrf.mxu0
        %v2395 = vadd.f32 0.0, %v2394
        %2396 = vmatmul.f32.gmra.mxu0 %v2357
        %v2397 = vpop.f32.mrf.mxu0
        %v2398 = vadd.f32 0.0, %v2397
        %2399 = vmatmul.f32.gmra.mxu0 %v2360
        %v2400 = vpop.f32.mrf.mxu0
        %v2401 = vadd.f32 0.0, %v2400
        %2402 = vmatmul.f32.gmra.mxu0 %v2363
        %v2403 = vpop.f32.mrf.mxu0
        %v2404 = vadd.f32 0.0, %v2403
        %2405 = vmatmul.f32.gmra.mxu0 %v2366
        %v2406 = vpop.f32.mrf.mxu0
        %v2407 = vadd.f32 0.0, %v2406
        %2408 = vmatmul.f32.gmra.mxu0 %v2369
        %v2409 = vpop.f32.mrf.mxu0
        %v2410 = vadd.f32 0.0, %v2409
        %2411 = vmatmul.f32.gmra.mxu0 %v2372
        %v2412 = vpop.f32.mrf.mxu0
        %v2413 = vadd.f32 0.0, %v2412
        %2414 = vmatmul.f32.gmra.mxu0 %v2375
        %v2415 = vpop.f32.mrf.mxu0
        %v2416 = vadd.f32 0.0, %v2415
        %2417 = vdwg.mxu0
        %2418 = vrot.lane.b32.xlu0 %v1002, 64
        %v2419 = vpop.permute.xlu0 %2418
        %v2421 = vmul.f32 %v2395, %v1841
        %v2422 = vmul.f32 %v2398, %v1841
        %v2423 = vmul.f32 %v2401, %v1843
        %v2424 = vmul.f32 %v2404, %v1845
        %v2425 = vmul.f32 %v2407, %v1847
        %v2426 = vmul.f32 %v2410, %v2143
        %v2427 = vmul.f32 %v2413, %v2419
        %v2428 = vmul.f32 %v2416, %v2419
        %v2429 = vadd.f32 %v2337, %v2421
        %v2430 = vadd.f32 %v2338, %v2422
        %v2431 = vadd.f32 %v2339, %v2423
        %v2432 = vadd.f32 %v2340, %v2424
        %v2433 = vadd.f32 %v2341, %v2425
        %v2434 = vadd.f32 %v2342, %v2426
        %v2435 = vadd.f32 %v2343, %v2427
        %v2436 = vadd.f32 %v2344, %v2428
        %v2437 = vmul.f32 %v1508, %v1545
        %v2438 = vmul.f32 %v1510, %v1560
        %v2439 = vmul.f32 %v1512, %v1575
        %v2440 = vmul.f32 %v1514, %v1590
        %v2441 = vmul.f32 %v1516, %v1605
        %v2442 = vmul.f32 %v1518, %v1620
        %v2443 = vmul.f32 %v1520, %v1635
        %v2444 = vmul.f32 %v1522, %v1650
        %v2446 = vsel %vm1659, %v2437, 0
        %v2449 = vsel %vm1659, %v2438, 0
        %v2452 = vsel %vm1659, %v2439, 0
        %v2455 = vsel %vm1659, %v2440, 0
        %v2458 = vsel %vm1659, %v2441, 0
        %v2461 = vsel %vm1659, %v2442, 0
        %v2464 = vsel %vm1659, %v2443, 0
        %v2467 = vsel %vm1659, %v2444, 0
        %2469 = vmatpush.msra.mxu0 0.0
        %2470 = vmatpush.msra.mxu0 0.0
        %2471 = vmatpush.msra.mxu0 0.0
        %2472 = vmatpush.msra.mxu0 0.0
        %2473 = vmatpush.msra.mxu0 0.0
        %2474 = vmatpush.msra.mxu0 0.0
        %2475 = vmatpush.msra.mxu0 0.0
        %2476 = vmatpush.msra.mxu0 0.0
        %2477 = vmatpush.msra.mxu0 0.0
        %2478 = vmatpush.msra.mxu0 0.0
        %2479 = vmatpush.msra.mxu0 0.0
        %2480 = vmatpush.msra.mxu0 0.0
        %2481 = vmatpush.msra.mxu0 0.0
        %2482 = vmatpush.msra.mxu0 0.0
        %2483 = vmatpush.msra.mxu0 0.0
        %2484 = vmatpush.msra.mxu0 %v1686
        %2485 = vmatmul.f32.gmra.mxu0 %v2446
        %v2486 = vpop.f32.mrf.mxu0
        %v2487 = vadd.f32 0.0, %v2486
        %2488 = vmatmul.f32.gmra.mxu0 %v2449
        %v2489 = vpop.f32.mrf.mxu0
        %v2490 = vadd.f32 0.0, %v2489
        %2491 = vmatmul.f32.gmra.mxu0 %v2452
        %v2492 = vpop.f32.mrf.mxu0
        %v2493 = vadd.f32 0.0, %v2492
        %2494 = vmatmul.f32.gmra.mxu0 %v2455
        %v2495 = vpop.f32.mrf.mxu0
        %v2496 = vadd.f32 0.0, %v2495
        %2497 = vmatmul.f32.gmra.mxu0 %v2458
        %v2498 = vpop.f32.mrf.mxu0
        %v2499 = vadd.f32 0.0, %v2498
        %2500 = vmatmul.f32.gmra.mxu0 %v2461
        %v2501 = vpop.f32.mrf.mxu0
        %v2502 = vadd.f32 0.0, %v2501
        %2503 = vmatmul.f32.gmra.mxu0 %v2464
        %v2504 = vpop.f32.mrf.mxu0
        %v2505 = vadd.f32 0.0, %v2504
        %2506 = vmatmul.f32.gmra.mxu0 %v2467
        %v2507 = vpop.f32.mrf.mxu0
        %v2508 = vadd.f32 0.0, %v2507
        %2509 = vdwg.mxu0
        %2510 = vrot.lane.b32.xlu0 %v1092, 64
        %v2511 = vpop.permute.xlu0 %2510
        %v2513 = vmul.f32 %v2487, %v1948
        %v2514 = vmul.f32 %v2490, %v1948
        %v2515 = vmul.f32 %v2493, %v1950
        %v2516 = vmul.f32 %v2496, %v1952
        %v2517 = vmul.f32 %v2499, %v1954
        %v2518 = vmul.f32 %v2502, %v2235
        %v2519 = vmul.f32 %v2505, %v2511
        %v2520 = vmul.f32 %v2508, %v2511
        %v2521 = vadd.f32 %v2429, %v2513
        %v2522 = vadd.f32 %v2430, %v2514
        %v2523 = vadd.f32 %v2431, %v2515
        %v2524 = vadd.f32 %v2432, %v2516
        %v2525 = vadd.f32 %v2433, %v2517
        %v2526 = vadd.f32 %v2434, %v2518
        %v2527 = vadd.f32 %v2435, %v2519
        %v2528 = vadd.f32 %v2436, %v2520
        %v2529 = vpack.c.bf16 %v2521, %v2521
        %v2530 = vpack.c.bf16 %v2522, %v2522
        %v2531 = vpack.c.bf16 %v2523, %v2523
        %v2532 = vpack.c.bf16 %v2524, %v2524
        %v2533 = vpack.c.bf16 %v2525, %v2525
        %v2534 = vpack.c.bf16 %v2526, %v2526
        %v2535 = vpack.c.bf16 %v2527, %v2527
        %v2536 = vpack.c.bf16 %v2528, %v2528
        %vm2537 = vcmask 257024
        %2538 = vst.msk [vmem:[%s160] sm:$0xf] %vm2537, %v2529
        %2539 = vst.msk [vmem:[%s160 + $0x4] sm:$0xf] %vm2537, %v2530
        %2540 = vst.msk [vmem:[%s160 + $0x8] sm:$0xf] %vm2537, %v2531
        %2541 = vst.msk [vmem:[%s160 + $0xc] sm:$0xf] %vm2537, %v2532
        %2542 = vst.msk [vmem:[%s160 + $0x10] sm:$0xf] %vm2537, %v2533
        %2543 = vst.msk [vmem:[%s160 + $0x14] sm:$0xf] %vm2537, %v2534
        %2544 = vst.msk [vmem:[%s160 + $0x18] sm:$0xf] %vm2537, %v2535
        %2545 = vst.msk [vmem:[%s160 + $0x1c] sm:$0xf] %vm2537, %v2536
        %p2546 = scmp.lt.s32.totalorder %s14, 1
        %s2547 = scalar_select %p2546, %s14, 1
        %s2548 = smul.addr %s2547, 8
        %s2549 = smul.addr %s2548, 4
        %s2550 = scalar_lea.vmem %s2, %s2549
        // Predicated region
        $region33: #{_lambda_.12} parent=27 // pred_check
          %p2551 = pneg %p79
        $region34: #{_lambda_.12} parent=27 // pred_check_branch
          %2553 = sbr.rel (%p2551) target = $region36
        $region35: #{_lambda_.12} parent=27 // pred_region
          _
        $region36: #{_lambda_.12} parent=27 // pred_fallthru
          _
      $region28: #{_lambda_.12} parent=5 // pred_fallthru
        _
      %p2554 = scmp.le.s32.totalorder 2, %s9
      // Predicated region
      $region37: #{_lambda_.12} parent=5 // pred_check
        %p2555 = pneg %p2554
      $region38: #{_lambda_.12} parent=5 // pred_check_branch
        %2557 = sbr.rel (%p2555) target = $region40
      $region39: #{_lambda_.12} parent=5 // pred_region
        %s2558 = ssub.s32 %s9, 2
        // Predicated region
        $region41: #{_lambda_.12} parent=39 // pred_check
          %p2559 = pneg %p85
        $region42: #{_lambda_.12} parent=39 // pred_check_branch
          %2561 = sbr.rel (%p2559) target = $region44
        $region43: #{_lambda_.12} parent=39 // pred_region
          %p2562 = scmp.lt.s32.totalorder %s15, 1
          %s2563 = scalar_select %p2562, %s15, 1
          %s2564 = smul.addr %s2563, 8
          %s2565 = smul.addr %s2564, 4
          %s2566 = scalar_lea.vmem %s2, %s2565
        $region44: #{_lambda_.12} parent=39 // pred_fallthru
          _
      $region40: #{_lambda_.12} parent=5 // pred_fallthru
        _
    $region6: #{_lambda_.12} parent=1 // loop_footer
      %s13 = sadd.s32 1, %s9
    $region7: #{_lambda_.12} parent=1 // loop_footer_branch
      %8 = sbr.rel target = $region3
    $region8: #{_lambda_.12} parent=1 // loop_exit
      _
    %2567 = vsyncpa [#allocation3], 1
    %s2568 = scalar_lea.sflag [#allocation3], 1
    %2569 = vsyncpa %s2568, 1

// kernel: _lambda_.15
$region0: #{_lambda_.15}
  #allocation0 [shape = 'u32[]', space=smem, size = 0x4, offset = 0x4, fixed_abs, tag = 'smem constant byte address 0x4 - core index']
  #allocation1 [shape = 'u32[72,128]{1,0:T(1,128)}', space=vmem, size = 0x9000, scoped, tag = 'internal scratch']
  %s0 = inlined_call_operand.vmem [shape: bf16[128,128], index: 0, kind: input, shape index: {}]
  %s1 = inlined_call_operand.hbm [shape: bf16[128,32], index: 1, kind: input, shape index: {}]
  %s2 = inlined_call_operand.vmem [shape: f32[1,32], index: 2, kind: input, shape index: {}]
  %s3 = inlined_call_operand.vmem [shape: bf16[128,32], index: 3, kind: input, shape index: {}]
  %s4 = inlined_call_operand.vmem [shape: bf16[128,32], index: 4, kind: output, shape index: {}]
  %s5 = sld [smem:[#allocation0]]
  $region30: #{_lambda_.15} parent=0
    _
  %s7 = ssub.s32 1, %s5
  %s8 = scalar_select 0, %s7, %s5
  $region1: #{_lambda_.15} parent=0
    #allocation2 [shape = 'u8[32768]{0}', space=vmem, size = 0x8000, scoped, tag = 'input window, operand 1, single buffered']
    #allocation3 [shape = 's32[1]{0}', space=sflag, size = 0x4, scoped, tag = 'scoped memory for _lambda_.15']
    %9 = vsyncpa [#allocation3], 0
    // Predicated region
    $region2: #{_lambda_.15} parent=1 // pred_check
      _
    $region3: #{_lambda_.15} parent=1 // pred_check_branch
      %11 = sbr.rel (0) target = $region5
    $region4: #{_lambda_.15} parent=1 // pred_region
      _
    $region5: #{_lambda_.15} parent=1 // pred_fallthru
      _
    // Predicated region
    $region6: #{_lambda_.15} parent=1 // pred_check
      _
    $region7: #{_lambda_.15} parent=1 // pred_check_branch
      %13 = sbr.rel (0) target = $region9
    $region8: #{_lambda_.15} parent=1 // pred_region
      %15 = vsyncadd [#allocation3], 0
      %s16 = sshll.u32 %s1, 4
      %s17 = int_to_ptr.hbm [resolvable:$true] %s16
      %s18 = sshll.u32 [#allocation2], 4
      %s19 = int_to_ptr.vmem [resolvable:$true] %s18
      %24 = dma.hbm_to_vmem [thread:$0]  %s17, 1024, %s19, [#allocation3], 64, 64, 4
    $region9: #{_lambda_.15} parent=1 // pred_fallthru
      _
    // Predicated region
    $region10: #{_lambda_.15} parent=1 // pred_check
      _
    $region11: #{_lambda_.15} parent=1 // pred_check_branch
      %26 = sbr.rel (0) target = $region13
    $region12: #{_lambda_.15} parent=1 // pred_region
      _
    $region13: #{_lambda_.15} parent=1 // pred_fallthru
      _
    // Predicated region
    $region14: #{_lambda_.15} parent=1 // pred_check
      _
    $region15: #{_lambda_.15} parent=1 // pred_check_branch
      %28 = sbr.rel (0) target = $region17
    $region16: #{_lambda_.15} parent=1 // pred_region
      _
    $region17: #{_lambda_.15} parent=1 // pred_fallthru
      _
    // Predicated region
    $region18: #{_lambda_.15} parent=1 // pred_check
      _
    $region19: #{_lambda_.15} parent=1 // pred_check_branch
      %30 = sbr.rel (0) target = $region21
    $region20: #{_lambda_.15} parent=1 // pred_region
      %32 = dma.done [#allocation3], 1024
    $region21: #{_lambda_.15} parent=1 // pred_fallthru
      _
    %v33 = vld [vmem:[%s0] sm:$0xf]
    %v34 = vld [vmem:[%s0 + $0x4] sm:$0xf]
    %v35 = vld [vmem:[%s0 + $0x8] sm:$0xf]
    %v36 = vld [vmem:[%s0 + $0xc] sm:$0xf]
    %v37 = vld [vmem:[%s0 + $0x10] sm:$0xf]
    %v38 = vld [vmem:[%s0 + $0x14] sm:$0xf]
    %v39 = vld [vmem:[%s0 + $0x18] sm:$0xf]
    %v40 = vld [vmem:[%s0 + $0x1c] sm:$0xf]
    %v41 = vld [vmem:[%s0 + $0x20] sm:$0xf]
    %v42 = vld [vmem:[%s0 + $0x24] sm:$0xf]
    %v43 = vld [vmem:[%s0 + $0x28] sm:$0xf]
    %v44 = vld [vmem:[%s0 + $0x2c] sm:$0xf]
    %v45 = vld [vmem:[%s0 + $0x30] sm:$0xf]
    %v46 = vld [vmem:[%s0 + $0x34] sm:$0xf]
    %v47 = vld [vmem:[%s0 + $0x38] sm:$0xf]
    %v48 = vld [vmem:[%s0 + $0x3c] sm:$0xf]
    %v49 = vld [vmem:[#allocation2] sm:$0xf]
    %v50 = vld [vmem:[#allocation2 + $0x4] sm:$0xf]
    %v51 = vld [vmem:[#allocation2 + $0x8] sm:$0xf]
    %v52 = vld [vmem:[#allocation2 + $0xc] sm:$0xf]
    %v53 = vld [vmem:[#allocation2 + $0x10] sm:$0xf]
    %v54 = vld [vmem:[#allocation2 + $0x14] sm:$0xf]
    %v55 = vld [vmem:[#allocation2 + $0x18] sm:$0xf]
    %v56 = vld [vmem:[#allocation2 + $0x1c] sm:$0xf]
    %v57 = vld [vmem:[#allocation2 + $0x20] sm:$0xf]
    %v58 = vld [vmem:[#allocation2 + $0x24] sm:$0xf]
    %v59 = vld [vmem:[#allocation2 + $0x28] sm:$0xf]
    %v60 = vld [vmem:[#allocation2 + $0x2c] sm:$0xf]
    %v61 = vld [vmem:[#allocation2 + $0x30] sm:$0xf]
    %v62 = vld [vmem:[#allocation2 + $0x34] sm:$0xf]
    %v63 = vld [vmem:[#allocation2 + $0x38] sm:$0xf]
    %v64 = vld [vmem:[#allocation2 + $0x3c] sm:$0xf]
    %v65 = vld [vmem:[%s2] sm:$0x1]
    %v67 = vperm.slane %v65, 0
    %v85 = vunpack.c.l.b16 %v33
    %v86 = vunpack.c.l.b16 %v34
    %v87 = vunpack.c.l.b16 %v35
    %v88 = vunpack.c.l.b16 %v36
    %v89 = vunpack.c.l.b16 %v37
    %v90 = vunpack.c.l.b16 %v38
    %v91 = vunpack.c.l.b16 %v39
    %v92 = vunpack.c.l.b16 %v40
    %v93 = vunpack.c.l.b16 %v41
    %v94 = vunpack.c.l.b16 %v42
    %v95 = vunpack.c.l.b16 %v43
    %v96 = vunpack.c.l.b16 %v44
    %v97 = vunpack.c.l.b16 %v45
    %v98 = vunpack.c.l.b16 %v46
    %v99 = vunpack.c.l.b16 %v47
    %v100 = vunpack.c.l.b16 %v48
    %v101 = vpack.c.b16 %v86, %v85
    %v102 = vpack.c.b16 %v88, %v87
    %v103 = vpack.c.b16 %v90, %v89
    %v104 = vpack.c.b16 %v92, %v91
    %v105 = vpack.c.b16 %v94, %v93
    %v106 = vpack.c.b16 %v96, %v95
    %v107 = vpack.c.b16 %v98, %v97
    %v108 = vpack.c.b16 %v100, %v99
    %v133 = vunpack.c.l.b16 %v49
    %v134 = vunpack.c.l.b16 %v50
    %v135 = vunpack.c.l.b16 %v51
    %v136 = vunpack.c.l.b16 %v52
    %v137 = vunpack.c.l.b16 %v53
    %v138 = vunpack.c.l.b16 %v54
    %v139 = vunpack.c.l.b16 %v55
    %v140 = vunpack.c.l.b16 %v56
    %v141 = vunpack.c.l.b16 %v57
    %v142 = vunpack.c.l.b16 %v58
    %v143 = vunpack.c.l.b16 %v59
    %v144 = vunpack.c.l.b16 %v60
    %v145 = vunpack.c.l.b16 %v61
    %v146 = vunpack.c.l.b16 %v62
    %v147 = vunpack.c.l.b16 %v63
    %v148 = vunpack.c.l.b16 %v64
    %v149 = vpack.c.b16 %v134, %v133
    %v150 = vpack.c.b16 %v136, %v135
    %v151 = vpack.c.b16 %v138, %v137
    %v152 = vpack.c.b16 %v140, %v139
    %v153 = vpack.c.b16 %v142, %v141
    %v154 = vpack.c.b16 %v144, %v143
    %v155 = vpack.c.b16 %v146, %v145
    %v156 = vpack.c.b16 %v148, %v147
    %165 = vmatpush.bf16.msra.mxu0 %v156
    %166 = vmatpush.bf16.msra.mxu0 %v155
    %167 = vmatpush.bf16.msra.mxu0 %v154
    %168 = vmatpush.bf16.msra.mxu0 %v153
    %169 = vmatpush.bf16.msra.mxu0 %v152
    %170 = vmatpush.bf16.msra.mxu0 %v151
    %171 = vmatpush.bf16.msra.mxu0 %v150
    %172 = vmatpush.bf16.msra.mxu0 %v149
    %173 = vmatmul.bf16.gmra.mxu0 %v101
    %v174 = vpop.f32.mrf.mxu0
    %v175 = vadd.f32 %v67, %v174
    %v176 = vpop.f32.mrf.mxu0
    %v177 = vadd.f32 %v67, %v176
    %178 = vmatmul.bf16.gmra.mxu0 %v102
    %v179 = vpop.f32.mrf.mxu0
    %v180 = vadd.f32 %v67, %v179
    %v181 = vpop.f32.mrf.mxu0
    %v182 = vadd.f32 %v67, %v181
    %183 = vmatmul.bf16.gmra.mxu0 %v103
    %v184 = vpop.f32.mrf.mxu0
    %v185 = vadd.f32 %v67, %v184
    %v186 = vpop.f32.mrf.mxu0
    %v187 = vadd.f32 %v67, %v186
    %188 = vmatmul.bf16.gmra.mxu0 %v104
    %v189 = vpop.f32.mrf.mxu0
    %v190 = vadd.f32 %v67, %v189
    %v191 = vpop.f32.mrf.mxu0
    %v192 = vadd.f32 %v67, %v191
    %193 = vmatmul.bf16.gmra.mxu0 %v105
    %v194 = vpop.f32.mrf.mxu0
    %v195 = vadd.f32 %v67, %v194
    %v196 = vpop.f32.mrf.mxu0
    %v197 = vadd.f32 %v67, %v196
    %198 = vmatmul.bf16.gmra.mxu0 %v106
    %v199 = vpop.f32.mrf.mxu0
    %v200 = vadd.f32 %v67, %v199
    %v201 = vpop.f32.mrf.mxu0
    %v202 = vadd.f32 %v67, %v201
    %203 = vmatmul.bf16.gmra.mxu0 %v107
    %v204 = vpop.f32.mrf.mxu0
    %v205 = vadd.f32 %v67, %v204
    %v206 = vpop.f32.mrf.mxu0
    %v207 = vadd.f32 %v67, %v206
    %208 = vmatmul.bf16.gmra.mxu0 %v108
    %v209 = vpop.f32.mrf.mxu0
    %v210 = vadd.f32 %v67, %v209
    %v211 = vpop.f32.mrf.mxu0
    %v212 = vadd.f32 %v67, %v211
    %213 = vdwg.mxu0
    %v214 = vld [vmem:[%s3] sm:$0xf]
    %v215 = vld [vmem:[%s3 + $0x4] sm:$0xf]
    %v216 = vld [vmem:[%s3 + $0x8] sm:$0xf]
    %v217 = vld [vmem:[%s3 + $0xc] sm:$0xf]
    %v218 = vld [vmem:[%s3 + $0x10] sm:$0xf]
    %v219 = vld [vmem:[%s3 + $0x14] sm:$0xf]
    %v220 = vld [vmem:[%s3 + $0x18] sm:$0xf]
    %v221 = vld [vmem:[%s3 + $0x1c] sm:$0xf]
    %v222 = vld [vmem:[%s3 + $0x20] sm:$0xf]
    %v223 = vld [vmem:[%s3 + $0x24] sm:$0xf]
    %v224 = vld [vmem:[%s3 + $0x28] sm:$0xf]
    %v225 = vld [vmem:[%s3 + $0x2c] sm:$0xf]
    %v226 = vld [vmem:[%s3 + $0x30] sm:$0xf]
    %v227 = vld [vmem:[%s3 + $0x34] sm:$0xf]
    %v228 = vld [vmem:[%s3 + $0x38] sm:$0xf]
    %v229 = vld [vmem:[%s3 + $0x3c] sm:$0xf]
    %v230 = vunpack.c.l.bf16 %v214
    %v231 = vunpack.c.l.bf16 %v215
    %v232 = vunpack.c.l.bf16 %v216
    %v233 = vunpack.c.l.bf16 %v217
    %v234 = vunpack.c.l.bf16 %v218
    %v235 = vunpack.c.l.bf16 %v219
    %v236 = vunpack.c.l.bf16 %v220
    %v237 = vunpack.c.l.bf16 %v221
    %v238 = vunpack.c.l.bf16 %v222
    %v239 = vunpack.c.l.bf16 %v223
    %v240 = vunpack.c.l.bf16 %v224
    %v241 = vunpack.c.l.bf16 %v225
    %v242 = vunpack.c.l.bf16 %v226
    %v243 = vunpack.c.l.bf16 %v227
    %v244 = vunpack.c.l.bf16 %v228
    %v245 = vunpack.c.l.bf16 %v229
    %v246 = vadd.f32 %v175, %v230
    %v247 = vadd.f32 %v177, %v231
    %v248 = vadd.f32 %v180, %v232
    %v249 = vadd.f32 %v182, %v233
    %v250 = vadd.f32 %v185, %v234
    %v251 = vadd.f32 %v187, %v235
    %v252 = vadd.f32 %v190, %v236
    %v253 = vadd.f32 %v192, %v237
    %v254 = vadd.f32 %v195, %v238
    %v255 = vadd.f32 %v197, %v239
    %v256 = vadd.f32 %v200, %v240
    %v257 = vadd.f32 %v202, %v241
    %v258 = vadd.f32 %v205, %v242
    %v259 = vadd.f32 %v207, %v243
    %v260 = vadd.f32 %v210, %v244
    %v261 = vadd.f32 %v212, %v245
    %v262 = vpack.c.bf16 %v246, %v246
    %v263 = vpack.c.bf16 %v247, %v247
    %v264 = vpack.c.bf16 %v248, %v248
    %v265 = vpack.c.bf16 %v249, %v249
    %v266 = vpack.c.bf16 %v250, %v250
    %v267 = vpack.c.bf16 %v251, %v251
    %v268 = vpack.c.bf16 %v252, %v252
    %v269 = vpack.c.bf16 %v253, %v253
    %v270 = vpack.c.bf16 %v254, %v254
    %v271 = vpack.c.bf16 %v255, %v255
    %v272 = vpack.c.bf16 %v256, %v256
    %v273 = vpack.c.bf16 %v257, %v257
    %v274 = vpack.c.bf16 %v258, %v258
    %v275 = vpack.c.bf16 %v259, %v259
    %v276 = vpack.c.bf16 %v260, %v260
    %v277 = vpack.c.bf16 %v261, %v261
    %vm278 = vcmask 257024
    %279 = vst.msk [vmem:[%s4] sm:$0xf] %vm278, %v262
    %280 = vst.msk [vmem:[%s4 + $0x4] sm:$0xf] %vm278, %v263
    %281 = vst.msk [vmem:[%s4 + $0x8] sm:$0xf] %vm278, %v264
    %282 = vst.msk [vmem:[%s4 + $0xc] sm:$0xf] %vm278, %v265
    %283 = vst.msk [vmem:[%s4 + $0x10] sm:$0xf] %vm278, %v266
    %284 = vst.msk [vmem:[%s4 + $0x14] sm:$0xf] %vm278, %v267
    %285 = vst.msk [vmem:[%s4 + $0x18] sm:$0xf] %vm278, %v268
    %286 = vst.msk [vmem:[%s4 + $0x1c] sm:$0xf] %vm278, %v269
    %287 = vst.msk [vmem:[%s4 + $0x20] sm:$0xf] %vm278, %v270
    %288 = vst.msk [vmem:[%s4 + $0x24] sm:$0xf] %vm278, %v271
    %289 = vst.msk [vmem:[%s4 + $0x28] sm:$0xf] %vm278, %v272
    %290 = vst.msk [vmem:[%s4 + $0x2c] sm:$0xf] %vm278, %v273
    %291 = vst.msk [vmem:[%s4 + $0x30] sm:$0xf] %vm278, %v274
    %292 = vst.msk [vmem:[%s4 + $0x34] sm:$0xf] %vm278, %v275
    %293 = vst.msk [vmem:[%s4 + $0x38] sm:$0xf] %vm278, %v276
    %294 = vst.msk [vmem:[%s4 + $0x3c] sm:$0xf] %vm278, %v277
    // Predicated region
    $region22: #{_lambda_.15} parent=1 // pred_check
      _
    $region23: #{_lambda_.15} parent=1 // pred_check_branch
      %296 = sbr.rel (0) target = $region25
    $region24: #{_lambda_.15} parent=1 // pred_region
      _
    $region25: #{_lambda_.15} parent=1 // pred_fallthru
      _
    // Predicated region
    $region26: #{_lambda_.15} parent=1 // pred_check
      _
    $region27: #{_lambda_.15} parent=1 // pred_check_branch
      %298 = sbr.rel (0) target = $region29
    $region28: #{_lambda_.15} parent=1 // pred_region
      _
    $region29: #{_lambda_.15} parent=1 // pred_fallthru
      _
    %299 = vsyncpa [#allocation3], 1

// kernel: _lambda_.14
$region0: #{_lambda_.14}
  #allocation0 [shape = 'u32[]', space=smem, size = 0x4, offset = 0x4, fixed_abs, tag = 'smem constant byte address 0x4 - core index']
  #allocation1 [shape = 'u32[72,128]{1,0:T(1,128)}', space=vmem, size = 0x9000, scoped, tag = 'internal scratch']
  #allocation2 [shape = 'bf16[128,32]{1,0:T(8,128)(2,1)}', space=vmem, size = 0x8000, scoped, tag = 'scratch operand']
  %s0 = inlined_call_operand.vmem [shape: bf16[128,32], index: 0, kind: input, shape index: {}]
  %s1 = inlined_call_operand.hbm [shape: bf16[32,128], index: 1, kind: input, shape index: {}]
  %s2 = inlined_call_operand.vmem [shape: f32[1,128], index: 2, kind: input, shape index: {}]
  %s3 = inlined_call_operand.vmem [shape: f32[1,32], index: 3, kind: input, shape index: {}]
  %s4 = inlined_call_operand.vmem [shape: f32[1,32], index: 4, kind: input, shape index: {}]
  %s5 = inlined_call_operand.vmem [shape: bf16[128,128], index: 5, kind: output, shape index: {}]
  %s6 = sld [smem:[#allocation0]]
  $region38: #{_lambda_.14} parent=0
    _
  %s8 = ssub.s32 1, %s6
  %s9 = scalar_select 0, %s8, %s6
  $region1: #{_lambda_.14} parent=0
    #allocation3 [shape = 'u8[8192]{0}', space=vmem, size = 0x2000, scoped, tag = 'input window, operand 1, single buffered']
    #allocation4 [shape = 's32[1]{0}', space=sflag, size = 0x4, scoped, tag = 'scoped memory for _lambda_.14']
    %10 = vsyncpa [#allocation4], 0
    // Predicated region
    $region2: #{_lambda_.14} parent=1 // pred_check
      _
    $region3: #{_lambda_.14} parent=1 // pred_check_branch
      %12 = sbr.rel (0) target = $region5
    $region4: #{_lambda_.14} parent=1 // pred_region
      _
    $region5: #{_lambda_.14} parent=1 // pred_fallthru
      _
    // Predicated region
    $region6: #{_lambda_.14} parent=1 // pred_check
      _
    $region7: #{_lambda_.14} parent=1 // pred_check_branch
      %14 = sbr.rel (0) target = $region9
    $region8: #{_lambda_.14} parent=1 // pred_region
      %16 = vsyncadd [#allocation4], 0
      %s17 = sshll.u32 %s1, 4
      %s18 = int_to_ptr.hbm [resolvable:$true] %s17
      %s19 = sshll.u32 [#allocation3], 4
      %s20 = int_to_ptr.vmem [resolvable:$true] %s19
      %25 = dma.hbm_to_vmem [thread:$0]  %s18, 256, %s20, [#allocation4], 64, 64, 4
    $region9: #{_lambda_.14} parent=1 // pred_fallthru
      _
    // Predicated region
    $region10: #{_lambda_.14} parent=1 // pred_check
      _
    $region11: #{_lambda_.14} parent=1 // pred_check_branch
      %27 = sbr.rel (0) target = $region13
    $region12: #{_lambda_.14} parent=1 // pred_region
      _
    $region13: #{_lambda_.14} parent=1 // pred_fallthru
      _
    // Predicated region
    $region14: #{_lambda_.14} parent=1 // pred_check
      _
    $region15: #{_lambda_.14} parent=1 // pred_check_branch
      %29 = sbr.rel (0) target = $region17
    $region16: #{_lambda_.14} parent=1 // pred_region
      _
    $region17: #{_lambda_.14} parent=1 // pred_fallthru
      _
    // Predicated region
    $region18: #{_lambda_.14} parent=1 // pred_check
      _
    $region19: #{_lambda_.14} parent=1 // pred_check_branch
      %31 = sbr.rel (0) target = $region21
    $region20: #{_lambda_.14} parent=1 // pred_region
      _
    $region21: #{_lambda_.14} parent=1 // pred_fallthru
      _
    // Predicated region
    $region22: #{_lambda_.14} parent=1 // pred_check
      _
    $region23: #{_lambda_.14} parent=1 // pred_check_branch
      %33 = sbr.rel (0) target = $region25
    $region24: #{_lambda_.14} parent=1 // pred_region
      %35 = dma.done [#allocation4], 256
    $region25: #{_lambda_.14} parent=1 // pred_fallthru
      _
    %p37 = scmp.eq.s32.totalorder 0, 0
    // Predicated region
    $region26: #{_lambda_.14} parent=1 // pred_check
      %p38 = pneg %p37
    $region27: #{_lambda_.14} parent=1 // pred_check_branch
      %40 = sbr.rel (%p38) target = $region29
    $region28: #{_lambda_.14} parent=1 // pred_region
      %v41 = vld [vmem:[%s0] sm:$0xf]
      %v42 = vld [vmem:[%s0 + $0x4] sm:$0xf]
      %v43 = vld [vmem:[%s0 + $0x8] sm:$0xf]
      %v44 = vld [vmem:[%s0 + $0xc] sm:$0xf]
      %v45 = vld [vmem:[%s0 + $0x10] sm:$0xf]
      %v46 = vld [vmem:[%s0 + $0x14] sm:$0xf]
      %v47 = vld [vmem:[%s0 + $0x18] sm:$0xf]
      %v48 = vld [vmem:[%s0 + $0x1c] sm:$0xf]
      %v49 = vld [vmem:[%s0 + $0x20] sm:$0xf]
      %v50 = vld [vmem:[%s0 + $0x24] sm:$0xf]
      %v51 = vld [vmem:[%s0 + $0x28] sm:$0xf]
      %v52 = vld [vmem:[%s0 + $0x2c] sm:$0xf]
      %v53 = vld [vmem:[%s0 + $0x30] sm:$0xf]
      %v54 = vld [vmem:[%s0 + $0x34] sm:$0xf]
      %v55 = vld [vmem:[%s0 + $0x38] sm:$0xf]
      %v56 = vld [vmem:[%s0 + $0x3c] sm:$0xf]
      %v57 = vunpack.c.l.bf16 %v41
      %v58 = vunpack.c.l.bf16 %v42
      %v59 = vunpack.c.l.bf16 %v43
      %v60 = vunpack.c.l.bf16 %v44
      %v61 = vunpack.c.l.bf16 %v45
      %v62 = vunpack.c.l.bf16 %v46
      %v63 = vunpack.c.l.bf16 %v47
      %v64 = vunpack.c.l.bf16 %v48
      %v65 = vunpack.c.l.bf16 %v49
      %v66 = vunpack.c.l.bf16 %v50
      %v67 = vunpack.c.l.bf16 %v51
      %v68 = vunpack.c.l.bf16 %v52
      %v69 = vunpack.c.l.bf16 %v53
      %v70 = vunpack.c.l.bf16 %v54
      %v71 = vunpack.c.l.bf16 %v55
      %v72 = vunpack.c.l.bf16 %v56
      %vm73 = vcmask 261120
      %v74 = vsel %vm73, %v57, 0.0
      %75 = vadd.xlane.f32.xlu0 %v74
      %v76 = vpop.xlane.xlu0 %75
      %v77 = vsel %vm73, %v58, 0.0
      %78 = vadd.xlane.f32.xlu0 %v77
      %v79 = vpop.xlane.xlu0 %78
      %v80 = vsel %vm73, %v59, 0.0
      %81 = vadd.xlane.f32.xlu0 %v80
      %v82 = vpop.xlane.xlu0 %81
      %v83 = vsel %vm73, %v60, 0.0
      %84 = vadd.xlane.f32.xlu0 %v83
      %v85 = vpop.xlane.xlu0 %84
      %v86 = vsel %vm73, %v61, 0.0
      %87 = vadd.xlane.f32.xlu0 %v86
      %v88 = vpop.xlane.xlu0 %87
      %v89 = vsel %vm73, %v62, 0.0
      %90 = vadd.xlane.f32.xlu0 %v89
      %v91 = vpop.xlane.xlu0 %90
      %v92 = vsel %vm73, %v63, 0.0
      %93 = vadd.xlane.f32.xlu0 %v92
      %v94 = vpop.xlane.xlu0 %93
      %v95 = vsel %vm73, %v64, 0.0
      %96 = vadd.xlane.f32.xlu0 %v95
      %v97 = vpop.xlane.xlu0 %96
      %v98 = vsel %vm73, %v65, 0.0
      %99 = vadd.xlane.f32.xlu0 %v98
      %v100 = vpop.xlane.xlu0 %99
      %v101 = vsel %vm73, %v66, 0.0
      %102 = vadd.xlane.f32.xlu0 %v101
      %v103 = vpop.xlane.xlu0 %102
      %v104 = vsel %vm73, %v67, 0.0
      %105 = vadd.xlane.f32.xlu0 %v104
      %v106 = vpop.xlane.xlu0 %105
      %v107 = vsel %vm73, %v68, 0.0
      %108 = vadd.xlane.f32.xlu0 %v107
      %v109 = vpop.xlane.xlu0 %108
      %v110 = vsel %vm73, %v69, 0.0
      %111 = vadd.xlane.f32.xlu0 %v110
      %v112 = vpop.xlane.xlu0 %111
      %v113 = vsel %vm73, %v70, 0.0
      %114 = vadd.xlane.f32.xlu0 %v113
      %v115 = vpop.xlane.xlu0 %114
      %v116 = vsel %vm73, %v71, 0.0
      %117 = vadd.xlane.f32.xlu0 %v116
      %v118 = vpop.xlane.xlu0 %117
      %v119 = vsel %vm73, %v72, 0.0
      %120 = vadd.xlane.f32.xlu0 %v119
      %v121 = vpop.xlane.xlu0 %120
      %v122 = vrcp.pop 32.0
      %v123 = vmul.f32 32.0, %v122
      %v124 = vsub.f32 1.0, %v123
      %v125 = vmul.f32 %v122, %v124
      %v126 = vadd.f32 %v122, %v125
      %vm127 = vweird.f32 %v122
      %v128 = vsel %vm127, %v122, %v126
      %v129 = vmul.f32 %v76, %v128
      %v130 = vmul.f32 %v79, %v128
      %v131 = vmul.f32 %v82, %v128
      %v132 = vmul.f32 %v85, %v128
      %v133 = vmul.f32 %v88, %v128
      %v134 = vmul.f32 %v91, %v128
      %v135 = vmul.f32 %v94, %v128
      %v136 = vmul.f32 %v97, %v128
      %v137 = vmul.f32 %v100, %v128
      %v138 = vmul.f32 %v103, %v128
      %v139 = vmul.f32 %v106, %v128
      %v140 = vmul.f32 %v109, %v128
      %v141 = vmul.f32 %v112, %v128
      %v142 = vmul.f32 %v115, %v128
      %v143 = vmul.f32 %v118, %v128
      %v144 = vmul.f32 %v121, %v128
      %v145 = vsub.f32 %v57, %v129
      %v146 = vsub.f32 %v58, %v130
      %v147 = vsub.f32 %v59, %v131
      %v148 = vsub.f32 %v60, %v132
      %v149 = vsub.f32 %v61, %v133
      %v150 = vsub.f32 %v62, %v134
      %v151 = vsub.f32 %v63, %v135
      %v152 = vsub.f32 %v64, %v136
      %v153 = vsub.f32 %v65, %v137
      %v154 = vsub.f32 %v66, %v138
      %v155 = vsub.f32 %v67, %v139
      %v156 = vsub.f32 %v68, %v140
      %v157 = vsub.f32 %v69, %v141
      %v158 = vsub.f32 %v70, %v142
      %v159 = vsub.f32 %v71, %v143
      %v160 = vsub.f32 %v72, %v144
      %v161 = vmul.f32 %v145, %v145
      %v162 = vmul.f32 %v146, %v146
      %v163 = vmul.f32 %v147, %v147
      %v164 = vmul.f32 %v148, %v148
      %v165 = vmul.f32 %v149, %v149
      %v166 = vmul.f32 %v150, %v150
      %v167 = vmul.f32 %v151, %v151
      %v168 = vmul.f32 %v152, %v152
      %v169 = vmul.f32 %v153, %v153
      %v170 = vmul.f32 %v154, %v154
      %v171 = vmul.f32 %v155, %v155
      %v172 = vmul.f32 %v156, %v156
      %v173 = vmul.f32 %v157, %v157
      %v174 = vmul.f32 %v158, %v158
      %v175 = vmul.f32 %v159, %v159
      %v176 = vmul.f32 %v160, %v160
      %v177 = vsel %vm73, %v161, 0.0
      %178 = vadd.xlane.f32.xlu0 %v177
      %v179 = vpop.xlane.xlu0 %178
      %v180 = vsel %vm73, %v162, 0.0
      %181 = vadd.xlane.f32.xlu0 %v180
      %v182 = vpop.xlane.xlu0 %181
      %v183 = vsel %vm73, %v163, 0.0
      %184 = vadd.xlane.f32.xlu0 %v183
      %v185 = vpop.xlane.xlu0 %184
      %v186 = vsel %vm73, %v164, 0.0
      %187 = vadd.xlane.f32.xlu0 %v186
      %v188 = vpop.xlane.xlu0 %187
      %v189 = vsel %vm73, %v165, 0.0
      %190 = vadd.xlane.f32.xlu0 %v189
      %v191 = vpop.xlane.xlu0 %190
      %v192 = vsel %vm73, %v166, 0.0
      %193 = vadd.xlane.f32.xlu0 %v192
      %v194 = vpop.xlane.xlu0 %193
      %v195 = vsel %vm73, %v167, 0.0
      %196 = vadd.xlane.f32.xlu0 %v195
      %v197 = vpop.xlane.xlu0 %196
      %v198 = vsel %vm73, %v168, 0.0
      %199 = vadd.xlane.f32.xlu0 %v198
      %v200 = vpop.xlane.xlu0 %199
      %v201 = vsel %vm73, %v169, 0.0
      %202 = vadd.xlane.f32.xlu0 %v201
      %v203 = vpop.xlane.xlu0 %202
      %v204 = vsel %vm73, %v170, 0.0
      %205 = vadd.xlane.f32.xlu0 %v204
      %v206 = vpop.xlane.xlu0 %205
      %v207 = vsel %vm73, %v171, 0.0
      %208 = vadd.xlane.f32.xlu0 %v207
      %v209 = vpop.xlane.xlu0 %208
      %v210 = vsel %vm73, %v172, 0.0
      %211 = vadd.xlane.f32.xlu0 %v210
      %v212 = vpop.xlane.xlu0 %211
      %v213 = vsel %vm73, %v173, 0.0
      %214 = vadd.xlane.f32.xlu0 %v213
      %v215 = vpop.xlane.xlu0 %214
      %v216 = vsel %vm73, %v174, 0.0
      %217 = vadd.xlane.f32.xlu0 %v216
      %v218 = vpop.xlane.xlu0 %217
      %v219 = vsel %vm73, %v175, 0.0
      %220 = vadd.xlane.f32.xlu0 %v219
      %v221 = vpop.xlane.xlu0 %220
      %v222 = vsel %vm73, %v176, 0.0
      %223 = vadd.xlane.f32.xlu0 %v222
      %v224 = vpop.xlane.xlu0 %223
      %v225 = vmul.f32 %v179, %v128
      %v226 = vmul.f32 %v182, %v128
      %v227 = vmul.f32 %v185, %v128
      %v228 = vmul.f32 %v188, %v128
      %v229 = vmul.f32 %v191, %v128
      %v230 = vmul.f32 %v194, %v128
      %v231 = vmul.f32 %v197, %v128
      %v232 = vmul.f32 %v200, %v128
      %v233 = vmul.f32 %v203, %v128
      %v234 = vmul.f32 %v206, %v128
      %v235 = vmul.f32 %v209, %v128
      %v236 = vmul.f32 %v212, %v128
      %v237 = vmul.f32 %v215, %v128
      %v238 = vmul.f32 %v218, %v128
      %v239 = vmul.f32 %v221, %v128
      %v240 = vmul.f32 %v224, %v128
      %v241 = vadd.f32 %v225, 1e-05
      %v242 = vadd.f32 %v226, 1e-05
      %v243 = vadd.f32 %v227, 1e-05
      %v244 = vadd.f32 %v228, 1e-05
      %v245 = vadd.f32 %v229, 1e-05
      %v246 = vadd.f32 %v230, 1e-05
      %v247 = vadd.f32 %v231, 1e-05
      %v248 = vadd.f32 %v232, 1e-05
      %v249 = vadd.f32 %v233, 1e-05
      %v250 = vadd.f32 %v234, 1e-05
      %v251 = vadd.f32 %v235, 1e-05
      %v252 = vadd.f32 %v236, 1e-05
      %v253 = vadd.f32 %v237, 1e-05
      %v254 = vadd.f32 %v238, 1e-05
      %v255 = vadd.f32 %v239, 1e-05
      %v256 = vadd.f32 %v240, 1e-05
      %v257 = vrsqrt.pop %v241
      %v258 = vmul.f32 %v257, %v241
      %v259 = vmul.f32 %v258, %v257
      %v260 = vmul.f32 0.5, %v259
      %v261 = vsub.f32 1.5, %v260
      %v262 = vmul.f32 %v257, %v261
      %vm263 = vweird.f32 %v241
      %vm264 = vweird.f32 %v257
      %vm265 = vmor %vm263, %vm264
      %v266 = vsel %vm265, %v257, %v262
      %v267 = vrsqrt.pop %v242
      %v268 = vmul.f32 %v267, %v242
      %v269 = vmul.f32 %v268, %v267
      %v270 = vmul.f32 0.5, %v269
      %v271 = vsub.f32 1.5, %v270
      %v272 = vmul.f32 %v267, %v271
      %vm273 = vweird.f32 %v242
      %vm274 = vweird.f32 %v267
      %vm275 = vmor %vm273, %vm274
      %v276 = vsel %vm275, %v267, %v272
      %v277 = vrsqrt.pop %v243
      %v278 = vmul.f32 %v277, %v243
      %v279 = vmul.f32 %v278, %v277
      %v280 = vmul.f32 0.5, %v279
      %v281 = vsub.f32 1.5, %v280
      %v282 = vmul.f32 %v277, %v281
      %vm283 = vweird.f32 %v243
      %vm284 = vweird.f32 %v277
      %vm285 = vmor %vm283, %vm284
      %v286 = vsel %vm285, %v277, %v282
      %v287 = vrsqrt.pop %v244
      %v288 = vmul.f32 %v287, %v244
      %v289 = vmul.f32 %v288, %v287
      %v290 = vmul.f32 0.5, %v289
      %v291 = vsub.f32 1.5, %v290
      %v292 = vmul.f32 %v287, %v291
      %vm293 = vweird.f32 %v244
      %vm294 = vweird.f32 %v287
      %vm295 = vmor %vm293, %vm294
      %v296 = vsel %vm295, %v287, %v292
      %v297 = vrsqrt.pop %v245
      %v298 = vmul.f32 %v297, %v245
      %v299 = vmul.f32 %v298, %v297
      %v300 = vmul.f32 0.5, %v299
      %v301 = vsub.f32 1.5, %v300
      %v302 = vmul.f32 %v297, %v301
      %vm303 = vweird.f32 %v245
      %vm304 = vweird.f32 %v297
      %vm305 = vmor %vm303, %vm304
      %v306 = vsel %vm305, %v297, %v302
      %v307 = vrsqrt.pop %v246
      %v308 = vmul.f32 %v307, %v246
      %v309 = vmul.f32 %v308, %v307
      %v310 = vmul.f32 0.5, %v309
      %v311 = vsub.f32 1.5, %v310
      %v312 = vmul.f32 %v307, %v311
      %vm313 = vweird.f32 %v246
      %vm314 = vweird.f32 %v307
      %vm315 = vmor %vm313, %vm314
      %v316 = vsel %vm315, %v307, %v312
      %v317 = vrsqrt.pop %v247
      %v318 = vmul.f32 %v317, %v247
      %v319 = vmul.f32 %v318, %v317
      %v320 = vmul.f32 0.5, %v319
      %v321 = vsub.f32 1.5, %v320
      %v322 = vmul.f32 %v317, %v321
      %vm323 = vweird.f32 %v247
      %vm324 = vweird.f32 %v317
      %vm325 = vmor %vm323, %vm324
      %v326 = vsel %vm325, %v317, %v322
      %v327 = vrsqrt.pop %v248
      %v328 = vmul.f32 %v327, %v248
      %v329 = vmul.f32 %v328, %v327
      %v330 = vmul.f32 0.5, %v329
      %v331 = vsub.f32 1.5, %v330
      %v332 = vmul.f32 %v327, %v331
      %vm333 = vweird.f32 %v248
      %vm334 = vweird.f32 %v327
      %vm335 = vmor %vm333, %vm334
      %v336 = vsel %vm335, %v327, %v332
      %v337 = vrsqrt.pop %v249
      %v338 = vmul.f32 %v337, %v249
      %v339 = vmul.f32 %v338, %v337
      %v340 = vmul.f32 0.5, %v339
      %v341 = vsub.f32 1.5, %v340
      %v342 = vmul.f32 %v337, %v341
      %vm343 = vweird.f32 %v249
      %vm344 = vweird.f32 %v337
      %vm345 = vmor %vm343, %vm344
      %v346 = vsel %vm345, %v337, %v342
      %v347 = vrsqrt.pop %v250
      %v348 = vmul.f32 %v347, %v250
      %v349 = vmul.f32 %v348, %v347
      %v350 = vmul.f32 0.5, %v349
      %v351 = vsub.f32 1.5, %v350
      %v352 = vmul.f32 %v347, %v351
      %vm353 = vweird.f32 %v250
      %vm354 = vweird.f32 %v347
      %vm355 = vmor %vm353, %vm354
      %v356 = vsel %vm355, %v347, %v352
      %v357 = vrsqrt.pop %v251
      %v358 = vmul.f32 %v357, %v251
      %v359 = vmul.f32 %v358, %v357
      %v360 = vmul.f32 0.5, %v359
      %v361 = vsub.f32 1.5, %v360
      %v362 = vmul.f32 %v357, %v361
      %vm363 = vweird.f32 %v251
      %vm364 = vweird.f32 %v357
      %vm365 = vmor %vm363, %vm364
      %v366 = vsel %vm365, %v357, %v362
      %v367 = vrsqrt.pop %v252
      %v368 = vmul.f32 %v367, %v252
      %v369 = vmul.f32 %v368, %v367
      %v370 = vmul.f32 0.5, %v369
      %v371 = vsub.f32 1.5, %v370
      %v372 = vmul.f32 %v367, %v371
      %vm373 = vweird.f32 %v252
      %vm374 = vweird.f32 %v367
      %vm375 = vmor %vm373, %vm374
      %v376 = vsel %vm375, %v367, %v372
      %v377 = vrsqrt.pop %v253
      %v378 = vmul.f32 %v377, %v253
      %v379 = vmul.f32 %v378, %v377
      %v380 = vmul.f32 0.5, %v379
      %v381 = vsub.f32 1.5, %v380
      %v382 = vmul.f32 %v377, %v381
      %vm383 = vweird.f32 %v253
      %vm384 = vweird.f32 %v377
      %vm385 = vmor %vm383, %vm384
      %v386 = vsel %vm385, %v377, %v382
      %v387 = vrsqrt.pop %v254
      %v388 = vmul.f32 %v387, %v254
      %v389 = vmul.f32 %v388, %v387
      %v390 = vmul.f32 0.5, %v389
      %v391 = vsub.f32 1.5, %v390
      %v392 = vmul.f32 %v387, %v391
      %vm393 = vweird.f32 %v254
      %vm394 = vweird.f32 %v387
      %vm395 = vmor %vm393, %vm394
      %v396 = vsel %vm395, %v387, %v392
      %v397 = vrsqrt.pop %v255
      %v398 = vmul.f32 %v397, %v255
      %v399 = vmul.f32 %v398, %v397
      %v400 = vmul.f32 0.5, %v399
      %v401 = vsub.f32 1.5, %v400
      %v402 = vmul.f32 %v397, %v401
      %vm403 = vweird.f32 %v255
      %vm404 = vweird.f32 %v397
      %vm405 = vmor %vm403, %vm404
      %v406 = vsel %vm405, %v397, %v402
      %v407 = vrsqrt.pop %v256
      %v408 = vmul.f32 %v407, %v256
      %v409 = vmul.f32 %v408, %v407
      %v410 = vmul.f32 0.5, %v409
      %v411 = vsub.f32 1.5, %v410
      %v412 = vmul.f32 %v407, %v411
      %vm413 = vweird.f32 %v256
      %vm414 = vweird.f32 %v407
      %vm415 = vmor %vm413, %vm414
      %v416 = vsel %vm415, %v407, %v412
      %v417 = vmul.f32 %v145, %v266
      %v418 = vmul.f32 %v146, %v276
      %v419 = vmul.f32 %v147, %v286
      %v420 = vmul.f32 %v148, %v296
      %v421 = vmul.f32 %v149, %v306
      %v422 = vmul.f32 %v150, %v316
      %v423 = vmul.f32 %v151, %v326
      %v424 = vmul.f32 %v152, %v336
      %v425 = vmul.f32 %v153, %v346
      %v426 = vmul.f32 %v154, %v356
      %v427 = vmul.f32 %v155, %v366
      %v428 = vmul.f32 %v156, %v376
      %v429 = vmul.f32 %v157, %v386
      %v430 = vmul.f32 %v158, %v396
      %v431 = vmul.f32 %v159, %v406
      %v432 = vmul.f32 %v160, %v416
      %v433 = vld [vmem:[%s3] sm:$0x1]
      %v435 = vperm.slane %v433, 0
      %v437 = vmul.f32 %v417, %v435
      %v438 = vmul.f32 %v418, %v435
      %v439 = vmul.f32 %v419, %v435
      %v440 = vmul.f32 %v420, %v435
      %v441 = vmul.f32 %v421, %v435
      %v442 = vmul.f32 %v422, %v435
      %v443 = vmul.f32 %v423, %v435
      %v444 = vmul.f32 %v424, %v435
      %v445 = vmul.f32 %v425, %v435
      %v446 = vmul.f32 %v426, %v435
      %v447 = vmul.f32 %v427, %v435
      %v448 = vmul.f32 %v428, %v435
      %v449 = vmul.f32 %v429, %v435
      %v450 = vmul.f32 %v430, %v435
      %v451 = vmul.f32 %v431, %v435
      %v452 = vmul.f32 %v432, %v435
      %v453 = vld [vmem:[%s4] sm:$0x1]
      %v455 = vperm.slane %v453, 0
      %v457 = vadd.f32 %v437, %v455
      %v458 = vadd.f32 %v438, %v455
      %v459 = vadd.f32 %v439, %v455
      %v460 = vadd.f32 %v440, %v455
      %v461 = vadd.f32 %v441, %v455
      %v462 = vadd.f32 %v442, %v455
      %v463 = vadd.f32 %v443, %v455
      %v464 = vadd.f32 %v444, %v455
      %v465 = vadd.f32 %v445, %v455
      %v466 = vadd.f32 %v446, %v455
      %v467 = vadd.f32 %v447, %v455
      %v468 = vadd.f32 %v448, %v455
      %v469 = vadd.f32 %v449, %v455
      %v470 = vadd.f32 %v450, %v455
      %v471 = vadd.f32 %v451, %v455
      %v472 = vadd.f32 %v452, %v455
      %v473 = vpack.c.bf16 %v457, %v457
      %v474 = vpack.c.bf16 %v458, %v458
      %v475 = vpack.c.bf16 %v459, %v459
      %v476 = vpack.c.bf16 %v460, %v460
      %v477 = vpack.c.bf16 %v461, %v461
      %v478 = vpack.c.bf16 %v462, %v462
      %v479 = vpack.c.bf16 %v463, %v463
      %v480 = vpack.c.bf16 %v464, %v464
      %v481 = vpack.c.bf16 %v465, %v465
      %v482 = vpack.c.bf16 %v466, %v466
      %v483 = vpack.c.bf16 %v467, %v467
      %v484 = vpack.c.bf16 %v468, %v468
      %v485 = vpack.c.bf16 %v469, %v469
      %v486 = vpack.c.bf16 %v470, %v470
      %v487 = vpack.c.bf16 %v471, %v471
      %v488 = vpack.c.bf16 %v472, %v472
      %vm489 = vcmask 257024
      %490 = vst.msk [vmem:[#allocation2] sm:$0xf] %vm489, %v473
      %491 = vst.msk [vmem:[#allocation2 + $0x4] sm:$0xf] %vm489, %v474
      %492 = vst.msk [vmem:[#allocation2 + $0x8] sm:$0xf] %vm489, %v475
      %493 = vst.msk [vmem:[#allocation2 + $0xc] sm:$0xf] %vm489, %v476
      %494 = vst.msk [vmem:[#allocation2 + $0x10] sm:$0xf] %vm489, %v477
      %495 = vst.msk [vmem:[#allocation2 + $0x14] sm:$0xf] %vm489, %v478
      %496 = vst.msk [vmem:[#allocation2 + $0x18] sm:$0xf] %vm489, %v479
      %497 = vst.msk [vmem:[#allocation2 + $0x1c] sm:$0xf] %vm489, %v480
      %498 = vst.msk [vmem:[#allocation2 + $0x20] sm:$0xf] %vm489, %v481
      %499 = vst.msk [vmem:[#allocation2 + $0x24] sm:$0xf] %vm489, %v482
      %500 = vst.msk [vmem:[#allocation2 + $0x28] sm:$0xf] %vm489, %v483
      %501 = vst.msk [vmem:[#allocation2 + $0x2c] sm:$0xf] %vm489, %v484
      %502 = vst.msk [vmem:[#allocation2 + $0x30] sm:$0xf] %vm489, %v485
      %503 = vst.msk [vmem:[#allocation2 + $0x34] sm:$0xf] %vm489, %v486
      %504 = vst.msk [vmem:[#allocation2 + $0x38] sm:$0xf] %vm489, %v487
      %505 = vst.msk [vmem:[#allocation2 + $0x3c] sm:$0xf] %vm489, %v488
    $region29: #{_lambda_.14} parent=1 // pred_fallthru
      _
    %v506 = vld [vmem:[#allocation2] sm:$0xf]
    %v507 = vld [vmem:[#allocation2 + $0x4] sm:$0xf]
    %v508 = vld [vmem:[#allocation2 + $0x8] sm:$0xf]
    %v509 = vld [vmem:[#allocation2 + $0xc] sm:$0xf]
    %v510 = vld [vmem:[#allocation2 + $0x10] sm:$0xf]
    %v511 = vld [vmem:[#allocation2 + $0x14] sm:$0xf]
    %v512 = vld [vmem:[#allocation2 + $0x18] sm:$0xf]
    %v513 = vld [vmem:[#allocation2 + $0x1c] sm:$0xf]
    %v514 = vld [vmem:[#allocation2 + $0x20] sm:$0xf]
    %v515 = vld [vmem:[#allocation2 + $0x24] sm:$0xf]
    %v516 = vld [vmem:[#allocation2 + $0x28] sm:$0xf]
    %v517 = vld [vmem:[#allocation2 + $0x2c] sm:$0xf]
    %v518 = vld [vmem:[#allocation2 + $0x30] sm:$0xf]
    %v519 = vld [vmem:[#allocation2 + $0x34] sm:$0xf]
    %v520 = vld [vmem:[#allocation2 + $0x38] sm:$0xf]
    %v521 = vld [vmem:[#allocation2 + $0x3c] sm:$0xf]
    %v522 = vld [vmem:[#allocation3] sm:$0xf]
    %v523 = vld [vmem:[#allocation3 + $0x4] sm:$0xf]
    %v524 = vld [vmem:[#allocation3 + $0x8] sm:$0xf]
    %v525 = vld [vmem:[#allocation3 + $0xc] sm:$0xf]
    %v526 = vld [vmem:[%s2] sm:$0x1]
    %v528 = vperm.slane %v526, 0
    %v546 = vunpack.c.l.b16 %v506
    %v547 = vunpack.c.l.b16 %v507
    %v548 = vunpack.c.l.b16 %v508
    %v549 = vunpack.c.l.b16 %v509
    %v550 = vunpack.c.l.b16 %v510
    %v551 = vunpack.c.l.b16 %v511
    %v552 = vunpack.c.l.b16 %v512
    %v553 = vunpack.c.l.b16 %v513
    %v554 = vunpack.c.l.b16 %v514
    %v555 = vunpack.c.l.b16 %v515
    %v556 = vunpack.c.l.b16 %v516
    %v557 = vunpack.c.l.b16 %v517
    %v558 = vunpack.c.l.b16 %v518
    %v559 = vunpack.c.l.b16 %v519
    %v560 = vunpack.c.l.b16 %v520
    %v561 = vunpack.c.l.b16 %v521
    %v562 = vpack.c.b16 %v547, %v546
    %v563 = vpack.c.b16 %v549, %v548
    %v564 = vpack.c.b16 %v551, %v550
    %v565 = vpack.c.b16 %v553, %v552
    %v566 = vpack.c.b16 %v555, %v554
    %v567 = vpack.c.b16 %v557, %v556
    %v568 = vpack.c.b16 %v559, %v558
    %v569 = vpack.c.b16 %v561, %v560
    %v574 = vunpack.c.l.b16 %v522
    %v575 = vunpack.c.l.b16 %v523
    %v576 = vunpack.c.l.b16 %v524
    %v577 = vunpack.c.l.b16 %v525
    %v578 = vpack.c.b16 %v575, %v574
    %v579 = vpack.c.b16 %v577, %v576
    %vm582 = vcmask 261120
    %v584 = vsel %vm582, %v562, 0
    %v587 = vsel %vm582, %v563, 0
    %v590 = vsel %vm582, %v564, 0
    %v593 = vsel %vm582, %v565, 0
    %v596 = vsel %vm582, %v566, 0
    %v599 = vsel %vm582, %v567, 0
    %v602 = vsel %vm582, %v568, 0
    %v605 = vsel %vm582, %v569, 0
    %607 = vmatpush.bf16.msra.mxu0 0
    %608 = vmatpush.bf16.msra.mxu0 0
    %609 = vmatpush.bf16.msra.mxu0 0
    %610 = vmatpush.bf16.msra.mxu0 0
    %611 = vmatpush.bf16.msra.mxu0 0
    %612 = vmatpush.bf16.msra.mxu0 0
    %613 = vmatpush.bf16.msra.mxu0 %v579
    %614 = vmatpush.bf16.msra.mxu0 %v578
    %615 = vmatmul.bf16.gmra.mxu0 %v584
    %v616 = vpop.f32.mrf.mxu0
    %v617 = vadd.f32 %v528, %v616
    %v618 = vpop.f32.mrf.mxu0
    %v619 = vadd.f32 %v528, %v618
    %620 = vmatmul.bf16.gmra.mxu0 %v587
    %v621 = vpop.f32.mrf.mxu0
    %v622 = vadd.f32 %v528, %v621
    %v623 = vpop.f32.mrf.mxu0
    %v624 = vadd.f32 %v528, %v623
    %625 = vmatmul.bf16.gmra.mxu0 %v590
    %v626 = vpop.f32.mrf.mxu0
    %v627 = vadd.f32 %v528, %v626
    %v628 = vpop.f32.mrf.mxu0
    %v629 = vadd.f32 %v528, %v628
    %630 = vmatmul.bf16.gmra.mxu0 %v593
    %v631 = vpop.f32.mrf.mxu0
    %v632 = vadd.f32 %v528, %v631
    %v633 = vpop.f32.mrf.mxu0
    %v634 = vadd.f32 %v528, %v633
    %635 = vmatmul.bf16.gmra.mxu0 %v596
    %v636 = vpop.f32.mrf.mxu0
    %v637 = vadd.f32 %v528, %v636
    %v638 = vpop.f32.mrf.mxu0
    %v639 = vadd.f32 %v528, %v638
    %640 = vmatmul.bf16.gmra.mxu0 %v599
    %v641 = vpop.f32.mrf.mxu0
    %v642 = vadd.f32 %v528, %v641
    %v643 = vpop.f32.mrf.mxu0
    %v644 = vadd.f32 %v528, %v643
    %645 = vmatmul.bf16.gmra.mxu0 %v602
    %v646 = vpop.f32.mrf.mxu0
    %v647 = vadd.f32 %v528, %v646
    %v648 = vpop.f32.mrf.mxu0
    %v649 = vadd.f32 %v528, %v648
    %650 = vmatmul.bf16.gmra.mxu0 %v605
    %v651 = vpop.f32.mrf.mxu0
    %v652 = vadd.f32 %v528, %v651
    %v653 = vpop.f32.mrf.mxu0
    %v654 = vadd.f32 %v528, %v653
    %655 = vdwg.mxu0
    %v656 = vmul.f32 %v617, 0.5
    %v657 = vmul.f32 %v619, 0.5
    %v658 = vmul.f32 %v622, 0.5
    %v659 = vmul.f32 %v624, 0.5
    %v660 = vmul.f32 %v627, 0.5
    %v661 = vmul.f32 %v629, 0.5
    %v662 = vmul.f32 %v632, 0.5
    %v663 = vmul.f32 %v634, 0.5
    %v664 = vmul.f32 %v637, 0.5
    %v665 = vmul.f32 %v639, 0.5
    %v666 = vmul.f32 %v642, 0.5
    %v667 = vmul.f32 %v644, 0.5
    %v668 = vmul.f32 %v647, 0.5
    %v669 = vmul.f32 %v649, 0.5
    %v670 = vmul.f32 %v652, 0.5
    %v671 = vmul.f32 %v654, 0.5
    %v672 = vmul.f32 %v617, 0.70710677
    %v673 = vmul.f32 %v619, 0.70710677
    %v674 = vmul.f32 %v622, 0.70710677
    %v675 = vmul.f32 %v624, 0.70710677
    %v676 = vmul.f32 %v627, 0.70710677
    %v677 = vmul.f32 %v629, 0.70710677
    %v678 = vmul.f32 %v632, 0.70710677
    %v679 = vmul.f32 %v634, 0.70710677
    %v680 = vmul.f32 %v637, 0.70710677
    %v681 = vmul.f32 %v639, 0.70710677
    %v682 = vmul.f32 %v642, 0.70710677
    %v683 = vmul.f32 %v644, 0.70710677
    %v684 = vmul.f32 %v647, 0.70710677
    %v685 = vmul.f32 %v649, 0.70710677
    %v686 = vmul.f32 %v652, 0.70710677
    %v687 = vmul.f32 %v654, 0.70710677
    %vm688 = vcmp.ge.f32.partialorder %v672, 0.0
    %vm689 = vcmp.ge.f32.partialorder %v673, 0.0
    %vm690 = vcmp.ge.f32.partialorder %v674, 0.0
    %vm691 = vcmp.ge.f32.partialorder %v675, 0.0
    %vm692 = vcmp.ge.f32.partialorder %v676, 0.0
    %vm693 = vcmp.ge.f32.partialorder %v677, 0.0
    %vm694 = vcmp.ge.f32.partialorder %v678, 0.0
    %vm695 = vcmp.ge.f32.partialorder %v679, 0.0
    %vm696 = vcmp.ge.f32.partialorder %v680, 0.0
    %vm697 = vcmp.ge.f32.partialorder %v681, 0.0
    %vm698 = vcmp.ge.f32.partialorder %v682, 0.0
    %vm699 = vcmp.ge.f32.partialorder %v683, 0.0
    %vm700 = vcmp.ge.f32.partialorder %v684, 0.0
    %vm701 = vcmp.ge.f32.partialorder %v685, 0.0
    %vm702 = vcmp.ge.f32.partialorder %v686, 0.0
    %vm703 = vcmp.ge.f32.partialorder %v687, 0.0
    %v704 = vsel %vm688, 1.0, -1.0
    %v705 = vsel %vm689, 1.0, -1.0
    %v706 = vsel %vm690, 1.0, -1.0
    %v707 = vsel %vm691, 1.0, -1.0
    %v708 = vsel %vm692, 1.0, -1.0
    %v709 = vsel %vm693, 1.0, -1.0
    %v710 = vsel %vm694, 1.0, -1.0
    %v711 = vsel %vm695, 1.0, -1.0
    %v712 = vsel %vm696, 1.0, -1.0
    %v713 = vsel %vm697, 1.0, -1.0
    %v714 = vsel %vm698, 1.0, -1.0
    %v715 = vsel %vm699, 1.0, -1.0
    %v716 = vsel %vm700, 1.0, -1.0
    %v717 = vsel %vm701, 1.0, -1.0
    %v718 = vsel %vm702, 1.0, -1.0
    %v719 = vsel %vm703, 1.0, -1.0
    %v720 = vand.u32 2147483647, %v672
    %v721 = vand.u32 2147483647, %v673
    %v722 = vand.u32 2147483647, %v674
    %v723 = vand.u32 2147483647, %v675
    %v724 = vand.u32 2147483647, %v676
    %v725 = vand.u32 2147483647, %v677
    %v726 = vand.u32 2147483647, %v678
    %v727 = vand.u32 2147483647, %v679
    %v728 = vand.u32 2147483647, %v680
    %v729 = vand.u32 2147483647, %v681
    %v730 = vand.u32 2147483647, %v682
    %v731 = vand.u32 2147483647, %v683
    %v732 = vand.u32 2147483647, %v684
    %v733 = vand.u32 2147483647, %v685
    %v734 = vand.u32 2147483647, %v686
    %v735 = vand.u32 2147483647, %v687
    %v736 = vmul.f32 %v720, 0.3275911
    %v737 = vmul.f32 %v721, 0.3275911
    %v738 = vmul.f32 %v722, 0.3275911
    %v739 = vmul.f32 %v723, 0.3275911
    %v740 = vmul.f32 %v724, 0.3275911
    %v741 = vmul.f32 %v725, 0.3275911
    %v742 = vmul.f32 %v726, 0.3275911
    %v743 = vmul.f32 %v727, 0.3275911
    %v744 = vmul.f32 %v728, 0.3275911
    %v745 = vmul.f32 %v729, 0.3275911
    %v746 = vmul.f32 %v730, 0.3275911
    %v747 = vmul.f32 %v731, 0.3275911
    %v748 = vmul.f32 %v732, 0.3275911
    %v749 = vmul.f32 %v733, 0.3275911
    %v750 = vmul.f32 %v734, 0.3275911
    %v751 = vmul.f32 %v735, 0.3275911
    %v752 = vadd.f32 %v736, 1.0
    %v753 = vadd.f32 %v737, 1.0
    %v754 = vadd.f32 %v738, 1.0
    %v755 = vadd.f32 %v739, 1.0
    %v756 = vadd.f32 %v740, 1.0
    %v757 = vadd.f32 %v741, 1.0
    %v758 = vadd.f32 %v742, 1.0
    %v759 = vadd.f32 %v743, 1.0
    %v760 = vadd.f32 %v744, 1.0
    %v761 = vadd.f32 %v745, 1.0
    %v762 = vadd.f32 %v746, 1.0
    %v763 = vadd.f32 %v747, 1.0
    %v764 = vadd.f32 %v748, 1.0
    %v765 = vadd.f32 %v749, 1.0
    %v766 = vadd.f32 %v750, 1.0
    %v767 = vadd.f32 %v751, 1.0
    %v768 = vrcp.pop %v752
    %v769 = vrcp.pop %v753
    %v770 = vrcp.pop %v754
    %v771 = vrcp.pop %v755
    %v772 = vrcp.pop %v756
    %v773 = vrcp.pop %v757
    %v774 = vrcp.pop %v758
    %v775 = vrcp.pop %v759
    %v776 = vrcp.pop %v760
    %v777 = vrcp.pop %v761
    %v778 = vrcp.pop %v762
    %v779 = vrcp.pop %v763
    %v780 = vrcp.pop %v764
    %v781 = vrcp.pop %v765
    %v782 = vrcp.pop %v766
    %v783 = vrcp.pop %v767
    %v784 = vmul.f32 %v768, 1.0614054
    %v785 = vmul.f32 %v769, 1.0614054
    %v786 = vmul.f32 %v770, 1.0614054
    %v787 = vmul.f32 %v771, 1.0614054
    %v788 = vmul.f32 %v772, 1.0614054
    %v789 = vmul.f32 %v773, 1.0614054
    %v790 = vmul.f32 %v774, 1.0614054
    %v791 = vmul.f32 %v775, 1.0614054
    %v792 = vmul.f32 %v776, 1.0614054
    %v793 = vmul.f32 %v777, 1.0614054
    %v794 = vmul.f32 %v778, 1.0614054
    %v795 = vmul.f32 %v779, 1.0614054
    %v796 = vmul.f32 %v780, 1.0614054
    %v797 = vmul.f32 %v781, 1.0614054
    %v798 = vmul.f32 %v782, 1.0614054
    %v799 = vmul.f32 %v783, 1.0614054
    %v800 = vadd.f32 %v784, -1.4531521
    %v801 = vadd.f32 %v785, -1.4531521
    %v802 = vadd.f32 %v786, -1.4531521
    %v803 = vadd.f32 %v787, -1.4531521
    %v804 = vadd.f32 %v788, -1.4531521
    %v805 = vadd.f32 %v789, -1.4531521
    %v806 = vadd.f32 %v790, -1.4531521
    %v807 = vadd.f32 %v791, -1.4531521
    %v808 = vadd.f32 %v792, -1.4531521
    %v809 = vadd.f32 %v793, -1.4531521
    %v810 = vadd.f32 %v794, -1.4531521
    %v811 = vadd.f32 %v795, -1.4531521
    %v812 = vadd.f32 %v796, -1.4531521
    %v813 = vadd.f32 %v797, -1.4531521
    %v814 = vadd.f32 %v798, -1.4531521
    %v815 = vadd.f32 %v799, -1.4531521
    %v816 = vmul.f32 %v800, %v768
    %v817 = vmul.f32 %v801, %v769
    %v818 = vmul.f32 %v802, %v770
    %v819 = vmul.f32 %v803, %v771
    %v820 = vmul.f32 %v804, %v772
    %v821 = vmul.f32 %v805, %v773
    %v822 = vmul.f32 %v806, %v774
    %v823 = vmul.f32 %v807, %v775
    %v824 = vmul.f32 %v808, %v776
    %v825 = vmul.f32 %v809, %v777
    %v826 = vmul.f32 %v810, %v778
    %v827 = vmul.f32 %v811, %v779
    %v828 = vmul.f32 %v812, %v780
    %v829 = vmul.f32 %v813, %v781
    %v830 = vmul.f32 %v814, %v782
    %v831 = vmul.f32 %v815, %v783
    %v832 = vadd.f32 %v816, 1.4214138
    %v833 = vadd.f32 %v817, 1.4214138
    %v834 = vadd.f32 %v818, 1.4214138
    %v835 = vadd.f32 %v819, 1.4214138
    %v836 = vadd.f32 %v820, 1.4214138
    %v837 = vadd.f32 %v821, 1.4214138
    %v838 = vadd.f32 %v822, 1.4214138
    %v839 = vadd.f32 %v823, 1.4214138
    %v840 = vadd.f32 %v824, 1.4214138
    %v841 = vadd.f32 %v825, 1.4214138
    %v842 = vadd.f32 %v826, 1.4214138
    %v843 = vadd.f32 %v827, 1.4214138
    %v844 = vadd.f32 %v828, 1.4214138
    %v845 = vadd.f32 %v829, 1.4214138
    %v846 = vadd.f32 %v830, 1.4214138
    %v847 = vadd.f32 %v831, 1.4214138
    %v848 = vmul.f32 %v832, %v768
    %v849 = vmul.f32 %v833, %v769
    %v850 = vmul.f32 %v834, %v770
    %v851 = vmul.f32 %v835, %v771
    %v852 = vmul.f32 %v836, %v772
    %v853 = vmul.f32 %v837, %v773
    %v854 = vmul.f32 %v838, %v774
    %v855 = vmul.f32 %v839, %v775
    %v856 = vmul.f32 %v840, %v776
    %v857 = vmul.f32 %v841, %v777
    %v858 = vmul.f32 %v842, %v778
    %v859 = vmul.f32 %v843, %v779
    %v860 = vmul.f32 %v844, %v780
    %v861 = vmul.f32 %v845, %v781
    %v862 = vmul.f32 %v846, %v782
    %v863 = vmul.f32 %v847, %v783
    %v864 = vadd.f32 %v848, -0.28449672
    %v865 = vadd.f32 %v849, -0.28449672
    %v866 = vadd.f32 %v850, -0.28449672
    %v867 = vadd.f32 %v851, -0.28449672
    %v868 = vadd.f32 %v852, -0.28449672
    %v869 = vadd.f32 %v853, -0.28449672
    %v870 = vadd.f32 %v854, -0.28449672
    %v871 = vadd.f32 %v855, -0.28449672
    %v872 = vadd.f32 %v856, -0.28449672
    %v873 = vadd.f32 %v857, -0.28449672
    %v874 = vadd.f32 %v858, -0.28449672
    %v875 = vadd.f32 %v859, -0.28449672
    %v876 = vadd.f32 %v860, -0.28449672
    %v877 = vadd.f32 %v861, -0.28449672
    %v878 = vadd.f32 %v862, -0.28449672
    %v879 = vadd.f32 %v863, -0.28449672
    %v880 = vmul.f32 %v864, %v768
    %v881 = vmul.f32 %v865, %v769
    %v882 = vmul.f32 %v866, %v770
    %v883 = vmul.f32 %v867, %v771
    %v884 = vmul.f32 %v868, %v772
    %v885 = vmul.f32 %v869, %v773
    %v886 = vmul.f32 %v870, %v774
    %v887 = vmul.f32 %v871, %v775
    %v888 = vmul.f32 %v872, %v776
    %v889 = vmul.f32 %v873, %v777
    %v890 = vmul.f32 %v874, %v778
    %v891 = vmul.f32 %v875, %v779
    %v892 = vmul.f32 %v876, %v780
    %v893 = vmul.f32 %v877, %v781
    %v894 = vmul.f32 %v878, %v782
    %v895 = vmul.f32 %v879, %v783
    %v896 = vadd.f32 %v880, 0.2548296
    %v897 = vadd.f32 %v881, 0.2548296
    %v898 = vadd.f32 %v882, 0.2548296
    %v899 = vadd.f32 %v883, 0.2548296
    %v900 = vadd.f32 %v884, 0.2548296
    %v901 = vadd.f32 %v885, 0.2548296
    %v902 = vadd.f32 %v886, 0.2548296
    %v903 = vadd.f32 %v887, 0.2548296
    %v904 = vadd.f32 %v888, 0.2548296
    %v905 = vadd.f32 %v889, 0.2548296
    %v906 = vadd.f32 %v890, 0.2548296
    %v907 = vadd.f32 %v891, 0.2548296
    %v908 = vadd.f32 %v892, 0.2548296
    %v909 = vadd.f32 %v893, 0.2548296
    %v910 = vadd.f32 %v894, 0.2548296
    %v911 = vadd.f32 %v895, 0.2548296
    %v912 = vmul.f32 %v896, %v768
    %v913 = vmul.f32 %v897, %v769
    %v914 = vmul.f32 %v898, %v770
    %v915 = vmul.f32 %v899, %v771
    %v916 = vmul.f32 %v900, %v772
    %v917 = vmul.f32 %v901, %v773
    %v918 = vmul.f32 %v902, %v774
    %v919 = vmul.f32 %v903, %v775
    %v920 = vmul.f32 %v904, %v776
    %v921 = vmul.f32 %v905, %v777
    %v922 = vmul.f32 %v906, %v778
    %v923 = vmul.f32 %v907, %v779
    %v924 = vmul.f32 %v908, %v780
    %v925 = vmul.f32 %v909, %v781
    %v926 = vmul.f32 %v910, %v782
    %v927 = vmul.f32 %v911, %v783
    %v928 = vsub.f32 0.0, %v720
    %v929 = vsub.f32 0.0, %v721
    %v930 = vsub.f32 0.0, %v722
    %v931 = vsub.f32 0.0, %v723
    %v932 = vsub.f32 0.0, %v724
    %v933 = vsub.f32 0.0, %v725
    %v934 = vsub.f32 0.0, %v726
    %v935 = vsub.f32 0.0, %v727
    %v936 = vsub.f32 0.0, %v728
    %v937 = vsub.f32 0.0, %v729
    %v938 = vsub.f32 0.0, %v730
    %v939 = vsub.f32 0.0, %v731
    %v940 = vsub.f32 0.0, %v732
    %v941 = vsub.f32 0.0, %v733
    %v942 = vsub.f32 0.0, %v734
    %v943 = vsub.f32 0.0, %v735
    %v944 = vmul.f32 %v928, %v720
    %v945 = vmul.f32 %v929, %v721
    %v946 = vmul.f32 %v930, %v722
    %v947 = vmul.f32 %v931, %v723
    %v948 = vmul.f32 %v932, %v724
    %v949 = vmul.f32 %v933, %v725
    %v950 = vmul.f32 %v934, %v726
    %v951 = vmul.f32 %v935, %v727
    %v952 = vmul.f32 %v936, %v728
    %v953 = vmul.f32 %v937, %v729
    %v954 = vmul.f32 %v938, %v730
    %v955 = vmul.f32 %v939, %v731
    %v956 = vmul.f32 %v940, %v732
    %v957 = vmul.f32 %v941, %v733
    %v958 = vmul.f32 %v942, %v734
    %v959 = vmul.f32 %v943, %v735
    %v960 = vmul.f32 %v944, 1.442695
    %v961 = vpow.pop %v960
    %v962 = vmul.f32 %v945, 1.442695
    %v963 = vpow.pop %v962
    %v964 = vmul.f32 %v946, 1.442695
    %v965 = vpow.pop %v964
    %v966 = vmul.f32 %v947, 1.442695
    %v967 = vpow.pop %v966
    %v968 = vmul.f32 %v948, 1.442695
    %v969 = vpow.pop %v968
    %v970 = vmul.f32 %v949, 1.442695
    %v971 = vpow.pop %v970
    %v972 = vmul.f32 %v950, 1.442695
    %v973 = vpow.pop %v972
    %v974 = vmul.f32 %v951, 1.442695
    %v975 = vpow.pop %v974
    %v976 = vmul.f32 %v952, 1.442695
    %v977 = vpow.pop %v976
    %v978 = vmul.f32 %v953, 1.442695
    %v979 = vpow.pop %v978
    %v980 = vmul.f32 %v954, 1.442695
    %v981 = vpow.pop %v980
    %v982 = vmul.f32 %v955, 1.442695
    %v983 = vpow.pop %v982
    %v984 = vmul.f32 %v956, 1.442695
    %v985 = vpow.pop %v984
    %v986 = vmul.f32 %v957, 1.442695
    %v987 = vpow.pop %v986
    %v988 = vmul.f32 %v958, 1.442695
    %v989 = vpow.pop %v988
    %v990 = vmul.f32 %v959, 1.442695
    %v991 = vpow.pop %v990
    %v992 = vmul.f32 %v912, %v961
    %v993 = vmul.f32 %v913, %v963
    %v994 = vmul.f32 %v914, %v965
    %v995 = vmul.f32 %v915, %v967
    %v996 = vmul.f32 %v916, %v969
    %v997 = vmul.f32 %v917, %v971
    %v998 = vmul.f32 %v918, %v973
    %v999 = vmul.f32 %v919, %v975
    %v1000 = vmul.f32 %v920, %v977
    %v1001 = vmul.f32 %v921, %v979
    %v1002 = vmul.f32 %v922, %v981
    %v1003 = vmul.f32 %v923, %v983
    %v1004 = vmul.f32 %v924, %v985
    %v1005 = vmul.f32 %v925, %v987
    %v1006 = vmul.f32 %v926, %v989
    %v1007 = vmul.f32 %v927, %v991
    %v1008 = vsub.f32 1.0, %v992
    %v1009 = vsub.f32 1.0, %v993
    %v1010 = vsub.f32 1.0, %v994
    %v1011 = vsub.f32 1.0, %v995
    %v1012 = vsub.f32 1.0, %v996
    %v1013 = vsub.f32 1.0, %v997
    %v1014 = vsub.f32 1.0, %v998
    %v1015 = vsub.f32 1.0, %v999
    %v1016 = vsub.f32 1.0, %v1000
    %v1017 = vsub.f32 1.0, %v1001
    %v1018 = vsub.f32 1.0, %v1002
    %v1019 = vsub.f32 1.0, %v1003
    %v1020 = vsub.f32 1.0, %v1004
    %v1021 = vsub.f32 1.0, %v1005
    %v1022 = vsub.f32 1.0, %v1006
    %v1023 = vsub.f32 1.0, %v1007
    %v1024 = vmul.f32 %v704, %v1008
    %v1025 = vmul.f32 %v705, %v1009
    %v1026 = vmul.f32 %v706, %v1010
    %v1027 = vmul.f32 %v707, %v1011
    %v1028 = vmul.f32 %v708, %v1012
    %v1029 = vmul.f32 %v709, %v1013
    %v1030 = vmul.f32 %v710, %v1014
    %v1031 = vmul.f32 %v711, %v1015
    %v1032 = vmul.f32 %v712, %v1016
    %v1033 = vmul.f32 %v713, %v1017
    %v1034 = vmul.f32 %v714, %v1018
    %v1035 = vmul.f32 %v715, %v1019
    %v1036 = vmul.f32 %v716, %v1020
    %v1037 = vmul.f32 %v717, %v1021
    %v1038 = vmul.f32 %v718, %v1022
    %v1039 = vmul.f32 %v719, %v1023
    %v1040 = vadd.f32 %v1024, 1.0
    %v1041 = vadd.f32 %v1025, 1.0
    %v1042 = vadd.f32 %v1026, 1.0
    %v1043 = vadd.f32 %v1027, 1.0
    %v1044 = vadd.f32 %v1028, 1.0
    %v1045 = vadd.f32 %v1029, 1.0
    %v1046 = vadd.f32 %v1030, 1.0
    %v1047 = vadd.f32 %v1031, 1.0
    %v1048 = vadd.f32 %v1032, 1.0
    %v1049 = vadd.f32 %v1033, 1.0
    %v1050 = vadd.f32 %v1034, 1.0
    %v1051 = vadd.f32 %v1035, 1.0
    %v1052 = vadd.f32 %v1036, 1.0
    %v1053 = vadd.f32 %v1037, 1.0
    %v1054 = vadd.f32 %v1038, 1.0
    %v1055 = vadd.f32 %v1039, 1.0
    %v1056 = vmul.f32 %v656, %v1040
    %v1057 = vmul.f32 %v657, %v1041
    %v1058 = vmul.f32 %v658, %v1042
    %v1059 = vmul.f32 %v659, %v1043
    %v1060 = vmul.f32 %v660, %v1044
    %v1061 = vmul.f32 %v661, %v1045
    %v1062 = vmul.f32 %v662, %v1046
    %v1063 = vmul.f32 %v663, %v1047
    %v1064 = vmul.f32 %v664, %v1048
    %v1065 = vmul.f32 %v665, %v1049
    %v1066 = vmul.f32 %v666, %v1050
    %v1067 = vmul.f32 %v667, %v1051
    %v1068 = vmul.f32 %v668, %v1052
    %v1069 = vmul.f32 %v669, %v1053
    %v1070 = vmul.f32 %v670, %v1054
    %v1071 = vmul.f32 %v671, %v1055
    %v1072 = vpack.c.bf16 %v1056, %v1056
    %v1073 = vpack.c.bf16 %v1057, %v1057
    %v1074 = vpack.c.bf16 %v1058, %v1058
    %v1075 = vpack.c.bf16 %v1059, %v1059
    %v1076 = vpack.c.bf16 %v1060, %v1060
    %v1077 = vpack.c.bf16 %v1061, %v1061
    %v1078 = vpack.c.bf16 %v1062, %v1062
    %v1079 = vpack.c.bf16 %v1063, %v1063
    %v1080 = vpack.c.bf16 %v1064, %v1064
    %v1081 = vpack.c.bf16 %v1065, %v1065
    %v1082 = vpack.c.bf16 %v1066, %v1066
    %v1083 = vpack.c.bf16 %v1067, %v1067
    %v1084 = vpack.c.bf16 %v1068, %v1068
    %v1085 = vpack.c.bf16 %v1069, %v1069
    %v1086 = vpack.c.bf16 %v1070, %v1070
    %v1087 = vpack.c.bf16 %v1071, %v1071
    %1088 = vst [vmem:[%s5] sm:$0xf] %v1072
    %1089 = vst [vmem:[%s5 + $0x4] sm:$0xf] %v1073
    %1090 = vst [vmem:[%s5 + $0x8] sm:$0xf] %v1074
    %1091 = vst [vmem:[%s5 + $0xc] sm:$0xf] %v1075
    %1092 = vst [vmem:[%s5 + $0x10] sm:$0xf] %v1076
    %1093 = vst [vmem:[%s5 + $0x14] sm:$0xf] %v1077
    %1094 = vst [vmem:[%s5 + $0x18] sm:$0xf] %v1078
    %1095 = vst [vmem:[%s5 + $0x1c] sm:$0xf] %v1079
    %1096 = vst [vmem:[%s5 + $0x20] sm:$0xf] %v1080
    %1097 = vst [vmem:[%s5 + $0x24] sm:$0xf] %v1081
    %1098 = vst [vmem:[%s5 + $0x28] sm:$0xf] %v1082
    %1099 = vst [vmem:[%s5 + $0x2c] sm:$0xf] %v1083
    %1100 = vst [vmem:[%s5 + $0x30] sm:$0xf] %v1084
    %1101 = vst [vmem:[%s5 + $0x34] sm:$0xf] %v1085
    %1102 = vst [vmem:[%s5 + $0x38] sm:$0xf] %v1086
    %1103 = vst [vmem:[%s5 + $0x3c] sm:$0xf] %v1087
    // Predicated region
    $region30: #{_lambda_.14} parent=1 // pred_check
      _
    $region31: #{_lambda_.14} parent=1 // pred_check_branch
      %1105 = sbr.rel (0) target = $region33
    $region32: #{_lambda_.14} parent=1 // pred_region
      _
    $region33: #{_lambda_.14} parent=1 // pred_fallthru
      _
    // Predicated region
    $region34: #{_lambda_.14} parent=1 // pred_check
      _
    $region35: #{_lambda_.14} parent=1 // pred_check_branch
      %1107 = sbr.rel (0) target = $region37
    $region36: #{_lambda_.14} parent=1 // pred_region
      _
    $region37: #{_lambda_.14} parent=1 // pred_fallthru
      _
    %1108 = vsyncpa [#allocation4], 1

// kernel: _lambda_.16
$region0: #{_lambda_.16}
  #allocation0 [shape = 'u32[]', space=smem, size = 0x4, offset = 0x4, fixed_abs, tag = 'smem constant byte address 0x4 - core index']
  #allocation1 [shape = 'u32[72,128]{1,0:T(1,128)}', space=vmem, size = 0x9000, scoped, tag = 'internal scratch']
  #allocation2 [shape = 'bf16[128,32]{1,0:T(8,128)(2,1)}', space=vmem, size = 0x8000, scoped, tag = 'scratch operand']
  %s0 = inlined_call_operand.vmem [shape: bf16[128,32], index: 0, kind: input, shape index: {}]
  %s1 = inlined_call_operand.hbm [shape: bf16[32,96], index: 1, kind: input, shape index: {}]
  %s2 = inlined_call_operand.vmem [shape: f32[1,96], index: 2, kind: input, shape index: {}]
  %s3 = inlined_call_operand.vmem [shape: f32[1,32], index: 3, kind: input, shape index: {}]
  %s4 = inlined_call_operand.vmem [shape: f32[1,32], index: 4, kind: input, shape index: {}]
  %s5 = inlined_call_operand.vmem [shape: bf16[128,96], index: 5, kind: output, shape index: {}]
  %s6 = sld [smem:[#allocation0]]
  $region38: #{_lambda_.16} parent=0
    _
  %s8 = ssub.s32 1, %s6
  %s9 = scalar_select 0, %s8, %s6
  $region1: #{_lambda_.16} parent=0
    #allocation3 [shape = 'u8[8192]{0}', space=vmem, size = 0x2000, scoped, tag = 'input window, operand 1, single buffered']
    #allocation4 [shape = 's32[1]{0}', space=sflag, size = 0x4, scoped, tag = 'scoped memory for _lambda_.16']
    %10 = vsyncpa [#allocation4], 0
    // Predicated region
    $region2: #{_lambda_.16} parent=1 // pred_check
      _
    $region3: #{_lambda_.16} parent=1 // pred_check_branch
      %12 = sbr.rel (0) target = $region5
    $region4: #{_lambda_.16} parent=1 // pred_region
      _
    $region5: #{_lambda_.16} parent=1 // pred_fallthru
      _
    // Predicated region
    $region6: #{_lambda_.16} parent=1 // pred_check
      _
    $region7: #{_lambda_.16} parent=1 // pred_check_branch
      %14 = sbr.rel (0) target = $region9
    $region8: #{_lambda_.16} parent=1 // pred_region
      %16 = vsyncadd [#allocation4], 0
      %s17 = sshll.u32 %s1, 4
      %s18 = int_to_ptr.hbm [resolvable:$true] %s17
      %s19 = sshll.u32 [#allocation3], 4
      %s20 = int_to_ptr.vmem [resolvable:$true] %s19
      %25 = dma.hbm_to_vmem [thread:$0]  %s18, 256, %s20, [#allocation4], 64, 64, 4
    $region9: #{_lambda_.16} parent=1 // pred_fallthru
      _
    // Predicated region
    $region10: #{_lambda_.16} parent=1 // pred_check
      _
    $region11: #{_lambda_.16} parent=1 // pred_check_branch
      %27 = sbr.rel (0) target = $region13
    $region12: #{_lambda_.16} parent=1 // pred_region
      _
    $region13: #{_lambda_.16} parent=1 // pred_fallthru
      _
    // Predicated region
    $region14: #{_lambda_.16} parent=1 // pred_check
      _
    $region15: #{_lambda_.16} parent=1 // pred_check_branch
      %29 = sbr.rel (0) target = $region17
    $region16: #{_lambda_.16} parent=1 // pred_region
      _
    $region17: #{_lambda_.16} parent=1 // pred_fallthru
      _
    // Predicated region
    $region18: #{_lambda_.16} parent=1 // pred_check
      _
    $region19: #{_lambda_.16} parent=1 // pred_check_branch
      %31 = sbr.rel (0) target = $region21
    $region20: #{_lambda_.16} parent=1 // pred_region
      _
    $region21: #{_lambda_.16} parent=1 // pred_fallthru
      _
    // Predicated region
    $region22: #{_lambda_.16} parent=1 // pred_check
      _
    $region23: #{_lambda_.16} parent=1 // pred_check_branch
      %33 = sbr.rel (0) target = $region25
    $region24: #{_lambda_.16} parent=1 // pred_region
      %35 = dma.done [#allocation4], 256
    $region25: #{_lambda_.16} parent=1 // pred_fallthru
      _
    %p37 = scmp.eq.s32.totalorder 0, 0
    // Predicated region
    $region26: #{_lambda_.16} parent=1 // pred_check
      %p38 = pneg %p37
    $region27: #{_lambda_.16} parent=1 // pred_check_branch
      %40 = sbr.rel (%p38) target = $region29
    $region28: #{_lambda_.16} parent=1 // pred_region
      %v41 = vld [vmem:[%s0] sm:$0xf]
      %v42 = vld [vmem:[%s0 + $0x4] sm:$0xf]
      %v43 = vld [vmem:[%s0 + $0x8] sm:$0xf]
      %v44 = vld [vmem:[%s0 + $0xc] sm:$0xf]
      %v45 = vld [vmem:[%s0 + $0x10] sm:$0xf]
      %v46 = vld [vmem:[%s0 + $0x14] sm:$0xf]
      %v47 = vld [vmem:[%s0 + $0x18] sm:$0xf]
      %v48 = vld [vmem:[%s0 + $0x1c] sm:$0xf]
      %v49 = vld [vmem:[%s0 + $0x20] sm:$0xf]
      %v50 = vld [vmem:[%s0 + $0x24] sm:$0xf]
      %v51 = vld [vmem:[%s0 + $0x28] sm:$0xf]
      %v52 = vld [vmem:[%s0 + $0x2c] sm:$0xf]
      %v53 = vld [vmem:[%s0 + $0x30] sm:$0xf]
      %v54 = vld [vmem:[%s0 + $0x34] sm:$0xf]
      %v55 = vld [vmem:[%s0 + $0x38] sm:$0xf]
      %v56 = vld [vmem:[%s0 + $0x3c] sm:$0xf]
      %v57 = vunpack.c.l.bf16 %v41
      %v58 = vunpack.c.l.bf16 %v42
      %v59 = vunpack.c.l.bf16 %v43
      %v60 = vunpack.c.l.bf16 %v44
      %v61 = vunpack.c.l.bf16 %v45
      %v62 = vunpack.c.l.bf16 %v46
      %v63 = vunpack.c.l.bf16 %v47
      %v64 = vunpack.c.l.bf16 %v48
      %v65 = vunpack.c.l.bf16 %v49
      %v66 = vunpack.c.l.bf16 %v50
      %v67 = vunpack.c.l.bf16 %v51
      %v68 = vunpack.c.l.bf16 %v52
      %v69 = vunpack.c.l.bf16 %v53
      %v70 = vunpack.c.l.bf16 %v54
      %v71 = vunpack.c.l.bf16 %v55
      %v72 = vunpack.c.l.bf16 %v56
      %vm73 = vcmask 261120
      %v74 = vsel %vm73, %v57, 0.0
      %75 = vadd.xlane.f32.xlu0 %v74
      %v76 = vpop.xlane.xlu0 %75
      %v77 = vsel %vm73, %v58, 0.0
      %78 = vadd.xlane.f32.xlu0 %v77
      %v79 = vpop.xlane.xlu0 %78
      %v80 = vsel %vm73, %v59, 0.0
      %81 = vadd.xlane.f32.xlu0 %v80
      %v82 = vpop.xlane.xlu0 %81
      %v83 = vsel %vm73, %v60, 0.0
      %84 = vadd.xlane.f32.xlu0 %v83
      %v85 = vpop.xlane.xlu0 %84
      %v86 = vsel %vm73, %v61, 0.0
      %87 = vadd.xlane.f32.xlu0 %v86
      %v88 = vpop.xlane.xlu0 %87
      %v89 = vsel %vm73, %v62, 0.0
      %90 = vadd.xlane.f32.xlu0 %v89
      %v91 = vpop.xlane.xlu0 %90
      %v92 = vsel %vm73, %v63, 0.0
      %93 = vadd.xlane.f32.xlu0 %v92
      %v94 = vpop.xlane.xlu0 %93
      %v95 = vsel %vm73, %v64, 0.0
      %96 = vadd.xlane.f32.xlu0 %v95
      %v97 = vpop.xlane.xlu0 %96
      %v98 = vsel %vm73, %v65, 0.0
      %99 = vadd.xlane.f32.xlu0 %v98
      %v100 = vpop.xlane.xlu0 %99
      %v101 = vsel %vm73, %v66, 0.0
      %102 = vadd.xlane.f32.xlu0 %v101
      %v103 = vpop.xlane.xlu0 %102
      %v104 = vsel %vm73, %v67, 0.0
      %105 = vadd.xlane.f32.xlu0 %v104
      %v106 = vpop.xlane.xlu0 %105
      %v107 = vsel %vm73, %v68, 0.0
      %108 = vadd.xlane.f32.xlu0 %v107
      %v109 = vpop.xlane.xlu0 %108
      %v110 = vsel %vm73, %v69, 0.0
      %111 = vadd.xlane.f32.xlu0 %v110
      %v112 = vpop.xlane.xlu0 %111
      %v113 = vsel %vm73, %v70, 0.0
      %114 = vadd.xlane.f32.xlu0 %v113
      %v115 = vpop.xlane.xlu0 %114
      %v116 = vsel %vm73, %v71, 0.0
      %117 = vadd.xlane.f32.xlu0 %v116
      %v118 = vpop.xlane.xlu0 %117
      %v119 = vsel %vm73, %v72, 0.0
      %120 = vadd.xlane.f32.xlu0 %v119
      %v121 = vpop.xlane.xlu0 %120
      %v122 = vrcp.pop 32.0
      %v123 = vmul.f32 32.0, %v122
      %v124 = vsub.f32 1.0, %v123
      %v125 = vmul.f32 %v122, %v124
      %v126 = vadd.f32 %v122, %v125
      %vm127 = vweird.f32 %v122
      %v128 = vsel %vm127, %v122, %v126
      %v129 = vmul.f32 %v76, %v128
      %v130 = vmul.f32 %v79, %v128
      %v131 = vmul.f32 %v82, %v128
      %v132 = vmul.f32 %v85, %v128
      %v133 = vmul.f32 %v88, %v128
      %v134 = vmul.f32 %v91, %v128
      %v135 = vmul.f32 %v94, %v128
      %v136 = vmul.f32 %v97, %v128
      %v137 = vmul.f32 %v100, %v128
      %v138 = vmul.f32 %v103, %v128
      %v139 = vmul.f32 %v106, %v128
      %v140 = vmul.f32 %v109, %v128
      %v141 = vmul.f32 %v112, %v128
      %v142 = vmul.f32 %v115, %v128
      %v143 = vmul.f32 %v118, %v128
      %v144 = vmul.f32 %v121, %v128
      %v145 = vsub.f32 %v57, %v129
      %v146 = vsub.f32 %v58, %v130
      %v147 = vsub.f32 %v59, %v131
      %v148 = vsub.f32 %v60, %v132
      %v149 = vsub.f32 %v61, %v133
      %v150 = vsub.f32 %v62, %v134
      %v151 = vsub.f32 %v63, %v135
      %v152 = vsub.f32 %v64, %v136
      %v153 = vsub.f32 %v65, %v137
      %v154 = vsub.f32 %v66, %v138
      %v155 = vsub.f32 %v67, %v139
      %v156 = vsub.f32 %v68, %v140
      %v157 = vsub.f32 %v69, %v141
      %v158 = vsub.f32 %v70, %v142
      %v159 = vsub.f32 %v71, %v143
      %v160 = vsub.f32 %v72, %v144
      %v161 = vmul.f32 %v145, %v145
      %v162 = vmul.f32 %v146, %v146
      %v163 = vmul.f32 %v147, %v147
      %v164 = vmul.f32 %v148, %v148
      %v165 = vmul.f32 %v149, %v149
      %v166 = vmul.f32 %v150, %v150
      %v167 = vmul.f32 %v151, %v151
      %v168 = vmul.f32 %v152, %v152
      %v169 = vmul.f32 %v153, %v153
      %v170 = vmul.f32 %v154, %v154
      %v171 = vmul.f32 %v155, %v155
      %v172 = vmul.f32 %v156, %v156
      %v173 = vmul.f32 %v157, %v157
      %v174 = vmul.f32 %v158, %v158
      %v175 = vmul.f32 %v159, %v159
      %v176 = vmul.f32 %v160, %v160
      %v177 = vsel %vm73, %v161, 0.0
      %178 = vadd.xlane.f32.xlu0 %v177
      %v179 = vpop.xlane.xlu0 %178
      %v180 = vsel %vm73, %v162, 0.0
      %181 = vadd.xlane.f32.xlu0 %v180
      %v182 = vpop.xlane.xlu0 %181
      %v183 = vsel %vm73, %v163, 0.0
      %184 = vadd.xlane.f32.xlu0 %v183
      %v185 = vpop.xlane.xlu0 %184
      %v186 = vsel %vm73, %v164, 0.0
      %187 = vadd.xlane.f32.xlu0 %v186
      %v188 = vpop.xlane.xlu0 %187
      %v189 = vsel %vm73, %v165, 0.0
      %190 = vadd.xlane.f32.xlu0 %v189
      %v191 = vpop.xlane.xlu0 %190
      %v192 = vsel %vm73, %v166, 0.0
      %193 = vadd.xlane.f32.xlu0 %v192
      %v194 = vpop.xlane.xlu0 %193
      %v195 = vsel %vm73, %v167, 0.0
      %196 = vadd.xlane.f32.xlu0 %v195
      %v197 = vpop.xlane.xlu0 %196
      %v198 = vsel %vm73, %v168, 0.0
      %199 = vadd.xlane.f32.xlu0 %v198
      %v200 = vpop.xlane.xlu0 %199
      %v201 = vsel %vm73, %v169, 0.0
      %202 = vadd.xlane.f32.xlu0 %v201
      %v203 = vpop.xlane.xlu0 %202
      %v204 = vsel %vm73, %v170, 0.0
      %205 = vadd.xlane.f32.xlu0 %v204
      %v206 = vpop.xlane.xlu0 %205
      %v207 = vsel %vm73, %v171, 0.0
      %208 = vadd.xlane.f32.xlu0 %v207
      %v209 = vpop.xlane.xlu0 %208
      %v210 = vsel %vm73, %v172, 0.0
      %211 = vadd.xlane.f32.xlu0 %v210
      %v212 = vpop.xlane.xlu0 %211
      %v213 = vsel %vm73, %v173, 0.0
      %214 = vadd.xlane.f32.xlu0 %v213
      %v215 = vpop.xlane.xlu0 %214
      %v216 = vsel %vm73, %v174, 0.0
      %217 = vadd.xlane.f32.xlu0 %v216
      %v218 = vpop.xlane.xlu0 %217
      %v219 = vsel %vm73, %v175, 0.0
      %220 = vadd.xlane.f32.xlu0 %v219
      %v221 = vpop.xlane.xlu0 %220
      %v222 = vsel %vm73, %v176, 0.0
      %223 = vadd.xlane.f32.xlu0 %v222
      %v224 = vpop.xlane.xlu0 %223
      %v225 = vmul.f32 %v179, %v128
      %v226 = vmul.f32 %v182, %v128
      %v227 = vmul.f32 %v185, %v128
      %v228 = vmul.f32 %v188, %v128
      %v229 = vmul.f32 %v191, %v128
      %v230 = vmul.f32 %v194, %v128
      %v231 = vmul.f32 %v197, %v128
      %v232 = vmul.f32 %v200, %v128
      %v233 = vmul.f32 %v203, %v128
      %v234 = vmul.f32 %v206, %v128
      %v235 = vmul.f32 %v209, %v128
      %v236 = vmul.f32 %v212, %v128
      %v237 = vmul.f32 %v215, %v128
      %v238 = vmul.f32 %v218, %v128
      %v239 = vmul.f32 %v221, %v128
      %v240 = vmul.f32 %v224, %v128
      %v241 = vadd.f32 %v225, 1e-05
      %v242 = vadd.f32 %v226, 1e-05
      %v243 = vadd.f32 %v227, 1e-05
      %v244 = vadd.f32 %v228, 1e-05
      %v245 = vadd.f32 %v229, 1e-05
      %v246 = vadd.f32 %v230, 1e-05
      %v247 = vadd.f32 %v231, 1e-05
      %v248 = vadd.f32 %v232, 1e-05
      %v249 = vadd.f32 %v233, 1e-05
      %v250 = vadd.f32 %v234, 1e-05
      %v251 = vadd.f32 %v235, 1e-05
      %v252 = vadd.f32 %v236, 1e-05
      %v253 = vadd.f32 %v237, 1e-05
      %v254 = vadd.f32 %v238, 1e-05
      %v255 = vadd.f32 %v239, 1e-05
      %v256 = vadd.f32 %v240, 1e-05
      %v257 = vrsqrt.pop %v241
      %v258 = vmul.f32 %v257, %v241
      %v259 = vmul.f32 %v258, %v257
      %v260 = vmul.f32 0.5, %v259
      %v261 = vsub.f32 1.5, %v260
      %v262 = vmul.f32 %v257, %v261
      %vm263 = vweird.f32 %v241
      %vm264 = vweird.f32 %v257
      %vm265 = vmor %vm263, %vm264
      %v266 = vsel %vm265, %v257, %v262
      %v267 = vrsqrt.pop %v242
      %v268 = vmul.f32 %v267, %v242
      %v269 = vmul.f32 %v268, %v267
      %v270 = vmul.f32 0.5, %v269
      %v271 = vsub.f32 1.5, %v270
      %v272 = vmul.f32 %v267, %v271
      %vm273 = vweird.f32 %v242
      %vm274 = vweird.f32 %v267
      %vm275 = vmor %vm273, %vm274
      %v276 = vsel %vm275, %v267, %v272
      %v277 = vrsqrt.pop %v243
      %v278 = vmul.f32 %v277, %v243
      %v279 = vmul.f32 %v278, %v277
      %v280 = vmul.f32 0.5, %v279
      %v281 = vsub.f32 1.5, %v280
      %v282 = vmul.f32 %v277, %v281
      %vm283 = vweird.f32 %v243
      %vm284 = vweird.f32 %v277
      %vm285 = vmor %vm283, %vm284
      %v286 = vsel %vm285, %v277, %v282
      %v287 = vrsqrt.pop %v244
      %v288 = vmul.f32 %v287, %v244
      %v289 = vmul.f32 %v288, %v287
      %v290 = vmul.f32 0.5, %v289
      %v291 = vsub.f32 1.5, %v290
      %v292 = vmul.f32 %v287, %v291
      %vm293 = vweird.f32 %v244
      %vm294 = vweird.f32 %v287
      %vm295 = vmor %vm293, %vm294
      %v296 = vsel %vm295, %v287, %v292
      %v297 = vrsqrt.pop %v245
      %v298 = vmul.f32 %v297, %v245
      %v299 = vmul.f32 %v298, %v297
      %v300 = vmul.f32 0.5, %v299
      %v301 = vsub.f32 1.5, %v300
      %v302 = vmul.f32 %v297, %v301
      %vm303 = vweird.f32 %v245
      %vm304 = vweird.f32 %v297
      %vm305 = vmor %vm303, %vm304
      %v306 = vsel %vm305, %v297, %v302
      %v307 = vrsqrt.pop %v246
      %v308 = vmul.f32 %v307, %v246
      %v309 = vmul.f32 %v308, %v307
      %v310 = vmul.f32 0.5, %v309
      %v311 = vsub.f32 1.5, %v310
      %v312 = vmul.f32 %v307, %v311
      %vm313 = vweird.f32 %v246
      %vm314 = vweird.f32 %v307
      %vm315 = vmor %vm313, %vm314
      %v316 = vsel %vm315, %v307, %v312
      %v317 = vrsqrt.pop %v247
      %v318 = vmul.f32 %v317, %v247
      %v319 = vmul.f32 %v318, %v317
      %v320 = vmul.f32 0.5, %v319
      %v321 = vsub.f32 1.5, %v320
      %v322 = vmul.f32 %v317, %v321
      %vm323 = vweird.f32 %v247
      %vm324 = vweird.f32 %v317
      %vm325 = vmor %vm323, %vm324
      %v326 = vsel %vm325, %v317, %v322
      %v327 = vrsqrt.pop %v248
      %v328 = vmul.f32 %v327, %v248
      %v329 = vmul.f32 %v328, %v327
      %v330 = vmul.f32 0.5, %v329
      %v331 = vsub.f32 1.5, %v330
      %v332 = vmul.f32 %v327, %v331
      %vm333 = vweird.f32 %v248
      %vm334 = vweird.f32 %v327
      %vm335 = vmor %vm333, %vm334
      %v336 = vsel %vm335, %v327, %v332
      %v337 = vrsqrt.pop %v249
      %v338 = vmul.f32 %v337, %v249
      %v339 = vmul.f32 %v338, %v337
      %v340 = vmul.f32 0.5, %v339
      %v341 = vsub.f32 1.5, %v340
      %v342 = vmul.f32 %v337, %v341
      %vm343 = vweird.f32 %v249
      %vm344 = vweird.f32 %v337
      %vm345 = vmor %vm343, %vm344
      %v346 = vsel %vm345, %v337, %v342
      %v347 = vrsqrt.pop %v250
      %v348 = vmul.f32 %v347, %v250
      %v349 = vmul.f32 %v348, %v347
      %v350 = vmul.f32 0.5, %v349
      %v351 = vsub.f32 1.5, %v350
      %v352 = vmul.f32 %v347, %v351
      %vm353 = vweird.f32 %v250
      %vm354 = vweird.f32 %v347
      %vm355 = vmor %vm353, %vm354
      %v356 = vsel %vm355, %v347, %v352
      %v357 = vrsqrt.pop %v251
      %v358 = vmul.f32 %v357, %v251
      %v359 = vmul.f32 %v358, %v357
      %v360 = vmul.f32 0.5, %v359
      %v361 = vsub.f32 1.5, %v360
      %v362 = vmul.f32 %v357, %v361
      %vm363 = vweird.f32 %v251
      %vm364 = vweird.f32 %v357
      %vm365 = vmor %vm363, %vm364
      %v366 = vsel %vm365, %v357, %v362
      %v367 = vrsqrt.pop %v252
      %v368 = vmul.f32 %v367, %v252
      %v369 = vmul.f32 %v368, %v367
      %v370 = vmul.f32 0.5, %v369
      %v371 = vsub.f32 1.5, %v370
      %v372 = vmul.f32 %v367, %v371
      %vm373 = vweird.f32 %v252
      %vm374 = vweird.f32 %v367
      %vm375 = vmor %vm373, %vm374
      %v376 = vsel %vm375, %v367, %v372
      %v377 = vrsqrt.pop %v253
      %v378 = vmul.f32 %v377, %v253
      %v379 = vmul.f32 %v378, %v377
      %v380 = vmul.f32 0.5, %v379
      %v381 = vsub.f32 1.5, %v380
      %v382 = vmul.f32 %v377, %v381
      %vm383 = vweird.f32 %v253
      %vm384 = vweird.f32 %v377
      %vm385 = vmor %vm383, %vm384
      %v386 = vsel %vm385, %v377, %v382
      %v387 = vrsqrt.pop %v254
      %v388 = vmul.f32 %v387, %v254
      %v389 = vmul.f32 %v388, %v387
      %v390 = vmul.f32 0.5, %v389
      %v391 = vsub.f32 1.5, %v390
      %v392 = vmul.f32 %v387, %v391
      %vm393 = vweird.f32 %v254
      %vm394 = vweird.f32 %v387
      %vm395 = vmor %vm393, %vm394
      %v396 = vsel %vm395, %v387, %v392
      %v397 = vrsqrt.pop %v255
      %v398 = vmul.f32 %v397, %v255
      %v399 = vmul.f32 %v398, %v397
      %v400 = vmul.f32 0.5, %v399
      %v401 = vsub.f32 1.5, %v400
      %v402 = vmul.f32 %v397, %v401
      %vm403 = vweird.f32 %v255
      %vm404 = vweird.f32 %v397
      %vm405 = vmor %vm403, %vm404
      %v406 = vsel %vm405, %v397, %v402
      %v407 = vrsqrt.pop %v256
      %v408 = vmul.f32 %v407, %v256
      %v409 = vmul.f32 %v408, %v407
      %v410 = vmul.f32 0.5, %v409
      %v411 = vsub.f32 1.5, %v410
      %v412 = vmul.f32 %v407, %v411
      %vm413 = vweird.f32 %v256
      %vm414 = vweird.f32 %v407
      %vm415 = vmor %vm413, %vm414
      %v416 = vsel %vm415, %v407, %v412
      %v417 = vmul.f32 %v145, %v266
      %v418 = vmul.f32 %v146, %v276
      %v419 = vmul.f32 %v147, %v286
      %v420 = vmul.f32 %v148, %v296
      %v421 = vmul.f32 %v149, %v306
      %v422 = vmul.f32 %v150, %v316
      %v423 = vmul.f32 %v151, %v326
      %v424 = vmul.f32 %v152, %v336
      %v425 = vmul.f32 %v153, %v346
      %v426 = vmul.f32 %v154, %v356
      %v427 = vmul.f32 %v155, %v366
      %v428 = vmul.f32 %v156, %v376
      %v429 = vmul.f32 %v157, %v386
      %v430 = vmul.f32 %v158, %v396
      %v431 = vmul.f32 %v159, %v406
      %v432 = vmul.f32 %v160, %v416
      %v433 = vld [vmem:[%s3] sm:$0x1]
      %v435 = vperm.slane %v433, 0
      %v437 = vmul.f32 %v417, %v435
      %v438 = vmul.f32 %v418, %v435
      %v439 = vmul.f32 %v419, %v435
      %v440 = vmul.f32 %v420, %v435
      %v441 = vmul.f32 %v421, %v435
      %v442 = vmul.f32 %v422, %v435
      %v443 = vmul.f32 %v423, %v435
      %v444 = vmul.f32 %v424, %v435
      %v445 = vmul.f32 %v425, %v435
      %v446 = vmul.f32 %v426, %v435
      %v447 = vmul.f32 %v427, %v435
      %v448 = vmul.f32 %v428, %v435
      %v449 = vmul.f32 %v429, %v435
      %v450 = vmul.f32 %v430, %v435
      %v451 = vmul.f32 %v431, %v435
      %v452 = vmul.f32 %v432, %v435
      %v453 = vld [vmem:[%s4] sm:$0x1]
      %v455 = vperm.slane %v453, 0
      %v457 = vadd.f32 %v437, %v455
      %v458 = vadd.f32 %v438, %v455
      %v459 = vadd.f32 %v439, %v455
      %v460 = vadd.f32 %v440, %v455
      %v461 = vadd.f32 %v441, %v455
      %v462 = vadd.f32 %v442, %v455
      %v463 = vadd.f32 %v443, %v455
      %v464 = vadd.f32 %v444, %v455
      %v465 = vadd.f32 %v445, %v455
      %v466 = vadd.f32 %v446, %v455
      %v467 = vadd.f32 %v447, %v455
      %v468 = vadd.f32 %v448, %v455
      %v469 = vadd.f32 %v449, %v455
      %v470 = vadd.f32 %v450, %v455
      %v471 = vadd.f32 %v451, %v455
      %v472 = vadd.f32 %v452, %v455
      %v473 = vpack.c.bf16 %v457, %v457
      %v474 = vpack.c.bf16 %v458, %v458
      %v475 = vpack.c.bf16 %v459, %v459
      %v476 = vpack.c.bf16 %v460, %v460
      %v477 = vpack.c.bf16 %v461, %v461
      %v478 = vpack.c.bf16 %v462, %v462
      %v479 = vpack.c.bf16 %v463, %v463
      %v480 = vpack.c.bf16 %v464, %v464
      %v481 = vpack.c.bf16 %v465, %v465
      %v482 = vpack.c.bf16 %v466, %v466
      %v483 = vpack.c.bf16 %v467, %v467
      %v484 = vpack.c.bf16 %v468, %v468
      %v485 = vpack.c.bf16 %v469, %v469
      %v486 = vpack.c.bf16 %v470, %v470
      %v487 = vpack.c.bf16 %v471, %v471
      %v488 = vpack.c.bf16 %v472, %v472
      %vm489 = vcmask 257024
      %490 = vst.msk [vmem:[#allocation2] sm:$0xf] %vm489, %v473
      %491 = vst.msk [vmem:[#allocation2 + $0x4] sm:$0xf] %vm489, %v474
      %492 = vst.msk [vmem:[#allocation2 + $0x8] sm:$0xf] %vm489, %v475
      %493 = vst.msk [vmem:[#allocation2 + $0xc] sm:$0xf] %vm489, %v476
      %494 = vst.msk [vmem:[#allocation2 + $0x10] sm:$0xf] %vm489, %v477
      %495 = vst.msk [vmem:[#allocation2 + $0x14] sm:$0xf] %vm489, %v478
      %496 = vst.msk [vmem:[#allocation2 + $0x18] sm:$0xf] %vm489, %v479
      %497 = vst.msk [vmem:[#allocation2 + $0x1c] sm:$0xf] %vm489, %v480
      %498 = vst.msk [vmem:[#allocation2 + $0x20] sm:$0xf] %vm489, %v481
      %499 = vst.msk [vmem:[#allocation2 + $0x24] sm:$0xf] %vm489, %v482
      %500 = vst.msk [vmem:[#allocation2 + $0x28] sm:$0xf] %vm489, %v483
      %501 = vst.msk [vmem:[#allocation2 + $0x2c] sm:$0xf] %vm489, %v484
      %502 = vst.msk [vmem:[#allocation2 + $0x30] sm:$0xf] %vm489, %v485
      %503 = vst.msk [vmem:[#allocation2 + $0x34] sm:$0xf] %vm489, %v486
      %504 = vst.msk [vmem:[#allocation2 + $0x38] sm:$0xf] %vm489, %v487
      %505 = vst.msk [vmem:[#allocation2 + $0x3c] sm:$0xf] %vm489, %v488
    $region29: #{_lambda_.16} parent=1 // pred_fallthru
      _
    %v506 = vld [vmem:[#allocation2] sm:$0xf]
    %v507 = vld [vmem:[#allocation2 + $0x4] sm:$0xf]
    %v508 = vld [vmem:[#allocation2 + $0x8] sm:$0xf]
    %v509 = vld [vmem:[#allocation2 + $0xc] sm:$0xf]
    %v510 = vld [vmem:[#allocation2 + $0x10] sm:$0xf]
    %v511 = vld [vmem:[#allocation2 + $0x14] sm:$0xf]
    %v512 = vld [vmem:[#allocation2 + $0x18] sm:$0xf]
    %v513 = vld [vmem:[#allocation2 + $0x1c] sm:$0xf]
    %v514 = vld [vmem:[#allocation2 + $0x20] sm:$0xf]
    %v515 = vld [vmem:[#allocation2 + $0x24] sm:$0xf]
    %v516 = vld [vmem:[#allocation2 + $0x28] sm:$0xf]
    %v517 = vld [vmem:[#allocation2 + $0x2c] sm:$0xf]
    %v518 = vld [vmem:[#allocation2 + $0x30] sm:$0xf]
    %v519 = vld [vmem:[#allocation2 + $0x34] sm:$0xf]
    %v520 = vld [vmem:[#allocation2 + $0x38] sm:$0xf]
    %v521 = vld [vmem:[#allocation2 + $0x3c] sm:$0xf]
    %v522 = vld [vmem:[#allocation3] sm:$0xf]
    %v523 = vld [vmem:[#allocation3 + $0x4] sm:$0xf]
    %v524 = vld [vmem:[#allocation3 + $0x8] sm:$0xf]
    %v525 = vld [vmem:[#allocation3 + $0xc] sm:$0xf]
    %v526 = vld [vmem:[%s2] sm:$0x1]
    %v528 = vperm.slane %v526, 0
    %v546 = vunpack.c.l.b16 %v506
    %v547 = vunpack.c.l.b16 %v507
    %v548 = vunpack.c.l.b16 %v508
    %v549 = vunpack.c.l.b16 %v509
    %v550 = vunpack.c.l.b16 %v510
    %v551 = vunpack.c.l.b16 %v511
    %v552 = vunpack.c.l.b16 %v512
    %v553 = vunpack.c.l.b16 %v513
    %v554 = vunpack.c.l.b16 %v514
    %v555 = vunpack.c.l.b16 %v515
    %v556 = vunpack.c.l.b16 %v516
    %v557 = vunpack.c.l.b16 %v517
    %v558 = vunpack.c.l.b16 %v518
    %v559 = vunpack.c.l.b16 %v519
    %v560 = vunpack.c.l.b16 %v520
    %v561 = vunpack.c.l.b16 %v521
    %v562 = vpack.c.b16 %v547, %v546
    %v563 = vpack.c.b16 %v549, %v548
    %v564 = vpack.c.b16 %v551, %v550
    %v565 = vpack.c.b16 %v553, %v552
    %v566 = vpack.c.b16 %v555, %v554
    %v567 = vpack.c.b16 %v557, %v556
    %v568 = vpack.c.b16 %v559, %v558
    %v569 = vpack.c.b16 %v561, %v560
    %v574 = vunpack.c.l.b16 %v522
    %v575 = vunpack.c.l.b16 %v523
    %v576 = vunpack.c.l.b16 %v524
    %v577 = vunpack.c.l.b16 %v525
    %v578 = vpack.c.b16 %v575, %v574
    %v579 = vpack.c.b16 %v577, %v576
    %vm582 = vcmask 261120
    %v584 = vsel %vm582, %v562, 0
    %v587 = vsel %vm582, %v563, 0
    %v590 = vsel %vm582, %v564, 0
    %v593 = vsel %vm582, %v565, 0
    %v596 = vsel %vm582, %v566, 0
    %v599 = vsel %vm582, %v567, 0
    %v602 = vsel %vm582, %v568, 0
    %v605 = vsel %vm582, %v569, 0
    %607 = vmatpush.bf16.msra.mxu0 0
    %608 = vmatpush.bf16.msra.mxu0 0
    %609 = vmatpush.bf16.msra.mxu0 0
    %610 = vmatpush.bf16.msra.mxu0 0
    %611 = vmatpush.bf16.msra.mxu0 0
    %612 = vmatpush.bf16.msra.mxu0 0
    %613 = vmatpush.bf16.msra.mxu0 %v579
    %614 = vmatpush.bf16.msra.mxu0 %v578
    %615 = vmatmul.bf16.gmra.mxu0 %v584
    %v616 = vpop.f32.mrf.mxu0
    %v617 = vadd.f32 %v528, %v616
    %v618 = vpop.f32.mrf.mxu0
    %v619 = vadd.f32 %v528, %v618
    %620 = vmatmul.bf16.gmra.mxu0 %v587
    %v621 = vpop.f32.mrf.mxu0
    %v622 = vadd.f32 %v528, %v621
    %v623 = vpop.f32.mrf.mxu0
    %v624 = vadd.f32 %v528, %v623
    %625 = vmatmul.bf16.gmra.mxu0 %v590
    %v626 = vpop.f32.mrf.mxu0
    %v627 = vadd.f32 %v528, %v626
    %v628 = vpop.f32.mrf.mxu0
    %v629 = vadd.f32 %v528, %v628
    %630 = vmatmul.bf16.gmra.mxu0 %v593
    %v631 = vpop.f32.mrf.mxu0
    %v632 = vadd.f32 %v528, %v631
    %v633 = vpop.f32.mrf.mxu0
    %v634 = vadd.f32 %v528, %v633
    %635 = vmatmul.bf16.gmra.mxu0 %v596
    %v636 = vpop.f32.mrf.mxu0
    %v637 = vadd.f32 %v528, %v636
    %v638 = vpop.f32.mrf.mxu0
    %v639 = vadd.f32 %v528, %v638
    %640 = vmatmul.bf16.gmra.mxu0 %v599
    %v641 = vpop.f32.mrf.mxu0
    %v642 = vadd.f32 %v528, %v641
    %v643 = vpop.f32.mrf.mxu0
    %v644 = vadd.f32 %v528, %v643
    %645 = vmatmul.bf16.gmra.mxu0 %v602
    %v646 = vpop.f32.mrf.mxu0
    %v647 = vadd.f32 %v528, %v646
    %v648 = vpop.f32.mrf.mxu0
    %v649 = vadd.f32 %v528, %v648
    %650 = vmatmul.bf16.gmra.mxu0 %v605
    %v651 = vpop.f32.mrf.mxu0
    %v652 = vadd.f32 %v528, %v651
    %v653 = vpop.f32.mrf.mxu0
    %v654 = vadd.f32 %v528, %v653
    %655 = vdwg.mxu0
    %v656 = vpack.c.bf16 %v617, %v617
    %v657 = vpack.c.bf16 %v619, %v619
    %v658 = vpack.c.bf16 %v622, %v622
    %v659 = vpack.c.bf16 %v624, %v624
    %v660 = vpack.c.bf16 %v627, %v627
    %v661 = vpack.c.bf16 %v629, %v629
    %v662 = vpack.c.bf16 %v632, %v632
    %v663 = vpack.c.bf16 %v634, %v634
    %v664 = vpack.c.bf16 %v637, %v637
    %v665 = vpack.c.bf16 %v639, %v639
    %v666 = vpack.c.bf16 %v642, %v642
    %v667 = vpack.c.bf16 %v644, %v644
    %v668 = vpack.c.bf16 %v647, %v647
    %v669 = vpack.c.bf16 %v649, %v649
    %v670 = vpack.c.bf16 %v652, %v652
    %v671 = vpack.c.bf16 %v654, %v654
    %vm672 = vcmask 781312
    %673 = vst.msk [vmem:[%s5] sm:$0xf] %vm672, %v656
    %674 = vst.msk [vmem:[%s5 + $0x4] sm:$0xf] %vm672, %v657
    %675 = vst.msk [vmem:[%s5 + $0x8] sm:$0xf] %vm672, %v658
    %676 = vst.msk [vmem:[%s5 + $0xc] sm:$0xf] %vm672, %v659
    %677 = vst.msk [vmem:[%s5 + $0x10] sm:$0xf] %vm672, %v660
    %678 = vst.msk [vmem:[%s5 + $0x14] sm:$0xf] %vm672, %v661
    %679 = vst.msk [vmem:[%s5 + $0x18] sm:$0xf] %vm672, %v662
    %680 = vst.msk [vmem:[%s5 + $0x1c] sm:$0xf] %vm672, %v663
    %681 = vst.msk [vmem:[%s5 + $0x20] sm:$0xf] %vm672, %v664
    %682 = vst.msk [vmem:[%s5 + $0x24] sm:$0xf] %vm672, %v665
    %683 = vst.msk [vmem:[%s5 + $0x28] sm:$0xf] %vm672, %v666
    %684 = vst.msk [vmem:[%s5 + $0x2c] sm:$0xf] %vm672, %v667
    %685 = vst.msk [vmem:[%s5 + $0x30] sm:$0xf] %vm672, %v668
    %686 = vst.msk [vmem:[%s5 + $0x34] sm:$0xf] %vm672, %v669
    %687 = vst.msk [vmem:[%s5 + $0x38] sm:$0xf] %vm672, %v670
    %688 = vst.msk [vmem:[%s5 + $0x3c] sm:$0xf] %vm672, %v671
    // Predicated region
    $region30: #{_lambda_.16} parent=1 // pred_check
      _
    $region31: #{_lambda_.16} parent=1 // pred_check_branch
      %690 = sbr.rel (0) target = $region33
    $region32: #{_lambda_.16} parent=1 // pred_region
      _
    $region33: #{_lambda_.16} parent=1 // pred_fallthru
      _
    // Predicated region
    $region34: #{_lambda_.16} parent=1 // pred_check
      _
    $region35: #{_lambda_.16} parent=1 // pred_check_branch
      %692 = sbr.rel (0) target = $region37
    $region36: #{_lambda_.16} parent=1 // pred_region
      _
    $region37: #{_lambda_.16} parent=1 // pred_fallthru
      _
    %693 = vsyncpa [#allocation4], 1

// kernel: _lambda_.18
$region0: #{_lambda_.18}
  #allocation0 [shape = 'u32[]', space=smem, size = 0x4, offset = 0x4, fixed_abs, tag = 'smem constant byte address 0x4 - core index']
  #allocation1 [shape = 'u32[72,128]{1,0:T(1,128)}', space=vmem, size = 0x9000, scoped, tag = 'internal scratch']
  %s0 = inlined_call_operand.vmem [shape: bf16[128,32], index: 0, kind: input, shape index: {}]
  %s1 = inlined_call_operand.hbm [shape: bf16[32,32], index: 1, kind: input, shape index: {}]
  %s2 = inlined_call_operand.vmem [shape: f32[1,32], index: 2, kind: input, shape index: {}]
  %s3 = inlined_call_operand.vmem [shape: bf16[128,32], index: 3, kind: input, shape index: {}]
  %s4 = inlined_call_operand.vmem [shape: bf16[128,32], index: 4, kind: output, shape index: {}]
  %s5 = sld [smem:[#allocation0]]
  $region30: #{_lambda_.18} parent=0
    _
  %s7 = ssub.s32 1, %s5
  %s8 = scalar_select 0, %s7, %s5
  $region1: #{_lambda_.18} parent=0
    #allocation2 [shape = 'u8[8192]{0}', space=vmem, size = 0x2000, scoped, tag = 'input window, operand 1, single buffered']
    #allocation3 [shape = 's32[1]{0}', space=sflag, size = 0x4, scoped, tag = 'scoped memory for _lambda_.18']
    %9 = vsyncpa [#allocation3], 0
    // Predicated region
    $region2: #{_lambda_.18} parent=1 // pred_check
      _
    $region3: #{_lambda_.18} parent=1 // pred_check_branch
      %11 = sbr.rel (0) target = $region5
    $region4: #{_lambda_.18} parent=1 // pred_region
      _
    $region5: #{_lambda_.18} parent=1 // pred_fallthru
      _
    // Predicated region
    $region6: #{_lambda_.18} parent=1 // pred_check
      _
    $region7: #{_lambda_.18} parent=1 // pred_check_branch
      %13 = sbr.rel (0) target = $region9
    $region8: #{_lambda_.18} parent=1 // pred_region
      %15 = vsyncadd [#allocation3], 0
      %s16 = sshll.u32 %s1, 4
      %s17 = int_to_ptr.hbm [resolvable:$true] %s16
      %s18 = sshll.u32 [#allocation2], 4
      %s19 = int_to_ptr.vmem [resolvable:$true] %s18
      %24 = dma.hbm_to_vmem [thread:$0]  %s17, 256, %s19, [#allocation3], 64, 64, 4
    $region9: #{_lambda_.18} parent=1 // pred_fallthru
      _
    // Predicated region
    $region10: #{_lambda_.18} parent=1 // pred_check
      _
    $region11: #{_lambda_.18} parent=1 // pred_check_branch
      %26 = sbr.rel (0) target = $region13
    $region12: #{_lambda_.18} parent=1 // pred_region
      _
    $region13: #{_lambda_.18} parent=1 // pred_fallthru
      _
    // Predicated region
    $region14: #{_lambda_.18} parent=1 // pred_check
      _
    $region15: #{_lambda_.18} parent=1 // pred_check_branch
      %28 = sbr.rel (0) target = $region17
    $region16: #{_lambda_.18} parent=1 // pred_region
      _
    $region17: #{_lambda_.18} parent=1 // pred_fallthru
      _
    // Predicated region
    $region18: #{_lambda_.18} parent=1 // pred_check
      _
    $region19: #{_lambda_.18} parent=1 // pred_check_branch
      %30 = sbr.rel (0) target = $region21
    $region20: #{_lambda_.18} parent=1 // pred_region
      %32 = dma.done [#allocation3], 256
    $region21: #{_lambda_.18} parent=1 // pred_fallthru
      _
    %v34 = vld [vmem:[%s0] sm:$0xf]
    %v35 = vld [vmem:[%s0 + $0x4] sm:$0xf]
    %v36 = vld [vmem:[%s0 + $0x8] sm:$0xf]
    %v37 = vld [vmem:[%s0 + $0xc] sm:$0xf]
    %v38 = vld [vmem:[%s0 + $0x10] sm:$0xf]
    %v39 = vld [vmem:[%s0 + $0x14] sm:$0xf]
    %v40 = vld [vmem:[%s0 + $0x18] sm:$0xf]
    %v41 = vld [vmem:[%s0 + $0x1c] sm:$0xf]
    %v42 = vld [vmem:[%s0 + $0x20] sm:$0xf]
    %v43 = vld [vmem:[%s0 + $0x24] sm:$0xf]
    %v44 = vld [vmem:[%s0 + $0x28] sm:$0xf]
    %v45 = vld [vmem:[%s0 + $0x2c] sm:$0xf]
    %v46 = vld [vmem:[%s0 + $0x30] sm:$0xf]
    %v47 = vld [vmem:[%s0 + $0x34] sm:$0xf]
    %v48 = vld [vmem:[%s0 + $0x38] sm:$0xf]
    %v49 = vld [vmem:[%s0 + $0x3c] sm:$0xf]
    %v50 = vld [vmem:[#allocation2] sm:$0xf]
    %v51 = vld [vmem:[#allocation2 + $0x4] sm:$0xf]
    %v52 = vld [vmem:[#allocation2 + $0x8] sm:$0xf]
    %v53 = vld [vmem:[#allocation2 + $0xc] sm:$0xf]
    %v54 = vld [vmem:[%s2] sm:$0x1]
    %v56 = vperm.slane %v54, 0
    %v74 = vunpack.c.l.b16 %v34
    %v75 = vunpack.c.l.b16 %v35
    %v76 = vunpack.c.l.b16 %v36
    %v77 = vunpack.c.l.b16 %v37
    %v78 = vunpack.c.l.b16 %v38
    %v79 = vunpack.c.l.b16 %v39
    %v80 = vunpack.c.l.b16 %v40
    %v81 = vunpack.c.l.b16 %v41
    %v82 = vunpack.c.l.b16 %v42
    %v83 = vunpack.c.l.b16 %v43
    %v84 = vunpack.c.l.b16 %v44
    %v85 = vunpack.c.l.b16 %v45
    %v86 = vunpack.c.l.b16 %v46
    %v87 = vunpack.c.l.b16 %v47
    %v88 = vunpack.c.l.b16 %v48
    %v89 = vunpack.c.l.b16 %v49
    %v90 = vpack.c.b16 %v75, %v74
    %v91 = vpack.c.b16 %v77, %v76
    %v92 = vpack.c.b16 %v79, %v78
    %v93 = vpack.c.b16 %v81, %v80
    %v94 = vpack.c.b16 %v83, %v82
    %v95 = vpack.c.b16 %v85, %v84
    %v96 = vpack.c.b16 %v87, %v86
    %v97 = vpack.c.b16 %v89, %v88
    %v102 = vunpack.c.l.b16 %v50
    %v103 = vunpack.c.l.b16 %v51
    %v104 = vunpack.c.l.b16 %v52
    %v105 = vunpack.c.l.b16 %v53
    %v106 = vpack.c.b16 %v103, %v102
    %v107 = vpack.c.b16 %v105, %v104
    %vm110 = vcmask 261120
    %v112 = vsel %vm110, %v90, 0
    %v115 = vsel %vm110, %v91, 0
    %v118 = vsel %vm110, %v92, 0
    %v121 = vsel %vm110, %v93, 0
    %v124 = vsel %vm110, %v94, 0
    %v127 = vsel %vm110, %v95, 0
    %v130 = vsel %vm110, %v96, 0
    %v133 = vsel %vm110, %v97, 0
    %135 = vmatpush.bf16.msra.mxu0 0
    %136 = vmatpush.bf16.msra.mxu0 0
    %137 = vmatpush.bf16.msra.mxu0 0
    %138 = vmatpush.bf16.msra.mxu0 0
    %139 = vmatpush.bf16.msra.mxu0 0
    %140 = vmatpush.bf16.msra.mxu0 0
    %141 = vmatpush.bf16.msra.mxu0 %v107
    %142 = vmatpush.bf16.msra.mxu0 %v106
    %143 = vmatmul.bf16.gmra.mxu0 %v112
    %v144 = vpop.f32.mrf.mxu0
    %v145 = vadd.f32 %v56, %v144
    %v146 = vpop.f32.mrf.mxu0
    %v147 = vadd.f32 %v56, %v146
    %148 = vmatmul.bf16.gmra.mxu0 %v115
    %v149 = vpop.f32.mrf.mxu0
    %v150 = vadd.f32 %v56, %v149
    %v151 = vpop.f32.mrf.mxu0
    %v152 = vadd.f32 %v56, %v151
    %153 = vmatmul.bf16.gmra.mxu0 %v118
    %v154 = vpop.f32.mrf.mxu0
    %v155 = vadd.f32 %v56, %v154
    %v156 = vpop.f32.mrf.mxu0
    %v157 = vadd.f32 %v56, %v156
    %158 = vmatmul.bf16.gmra.mxu0 %v121
    %v159 = vpop.f32.mrf.mxu0
    %v160 = vadd.f32 %v56, %v159
    %v161 = vpop.f32.mrf.mxu0
    %v162 = vadd.f32 %v56, %v161
    %163 = vmatmul.bf16.gmra.mxu0 %v124
    %v164 = vpop.f32.mrf.mxu0
    %v165 = vadd.f32 %v56, %v164
    %v166 = vpop.f32.mrf.mxu0
    %v167 = vadd.f32 %v56, %v166
    %168 = vmatmul.bf16.gmra.mxu0 %v127
    %v169 = vpop.f32.mrf.mxu0
    %v170 = vadd.f32 %v56, %v169
    %v171 = vpop.f32.mrf.mxu0
    %v172 = vadd.f32 %v56, %v171
    %173 = vmatmul.bf16.gmra.mxu0 %v130
    %v174 = vpop.f32.mrf.mxu0
    %v175 = vadd.f32 %v56, %v174
    %v176 = vpop.f32.mrf.mxu0
    %v177 = vadd.f32 %v56, %v176
    %178 = vmatmul.bf16.gmra.mxu0 %v133
    %v179 = vpop.f32.mrf.mxu0
    %v180 = vadd.f32 %v56, %v179
    %v181 = vpop.f32.mrf.mxu0
    %v182 = vadd.f32 %v56, %v181
    %183 = vdwg.mxu0
    %v184 = vld [vmem:[%s3] sm:$0xf]
    %v185 = vld [vmem:[%s3 + $0x4] sm:$0xf]
    %v186 = vld [vmem:[%s3 + $0x8] sm:$0xf]
    %v187 = vld [vmem:[%s3 + $0xc] sm:$0xf]
    %v188 = vld [vmem:[%s3 + $0x10] sm:$0xf]
    %v189 = vld [vmem:[%s3 + $0x14] sm:$0xf]
    %v190 = vld [vmem:[%s3 + $0x18] sm:$0xf]
    %v191 = vld [vmem:[%s3 + $0x1c] sm:$0xf]
    %v192 = vld [vmem:[%s3 + $0x20] sm:$0xf]
    %v193 = vld [vmem:[%s3 + $0x24] sm:$0xf]
    %v194 = vld [vmem:[%s3 + $0x28] sm:$0xf]
    %v195 = vld [vmem:[%s3 + $0x2c] sm:$0xf]
    %v196 = vld [vmem:[%s3 + $0x30] sm:$0xf]
    %v197 = vld [vmem:[%s3 + $0x34] sm:$0xf]
    %v198 = vld [vmem:[%s3 + $0x38] sm:$0xf]
    %v199 = vld [vmem:[%s3 + $0x3c] sm:$0xf]
    %v200 = vunpack.c.l.bf16 %v184
    %v201 = vunpack.c.l.bf16 %v185
    %v202 = vunpack.c.l.bf16 %v186
    %v203 = vunpack.c.l.bf16 %v187
    %v204 = vunpack.c.l.bf16 %v188
    %v205 = vunpack.c.l.bf16 %v189
    %v206 = vunpack.c.l.bf16 %v190
    %v207 = vunpack.c.l.bf16 %v191
    %v208 = vunpack.c.l.bf16 %v192
    %v209 = vunpack.c.l.bf16 %v193
    %v210 = vunpack.c.l.bf16 %v194
    %v211 = vunpack.c.l.bf16 %v195
    %v212 = vunpack.c.l.bf16 %v196
    %v213 = vunpack.c.l.bf16 %v197
    %v214 = vunpack.c.l.bf16 %v198
    %v215 = vunpack.c.l.bf16 %v199
    %v216 = vadd.f32 %v145, %v200
    %v217 = vadd.f32 %v147, %v201
    %v218 = vadd.f32 %v150, %v202
    %v219 = vadd.f32 %v152, %v203
    %v220 = vadd.f32 %v155, %v204
    %v221 = vadd.f32 %v157, %v205
    %v222 = vadd.f32 %v160, %v206
    %v223 = vadd.f32 %v162, %v207
    %v224 = vadd.f32 %v165, %v208
    %v225 = vadd.f32 %v167, %v209
    %v226 = vadd.f32 %v170, %v210
    %v227 = vadd.f32 %v172, %v211
    %v228 = vadd.f32 %v175, %v212
    %v229 = vadd.f32 %v177, %v213
    %v230 = vadd.f32 %v180, %v214
    %v231 = vadd.f32 %v182, %v215
    %v232 = vpack.c.bf16 %v216, %v216
    %v233 = vpack.c.bf16 %v217, %v217
    %v234 = vpack.c.bf16 %v218, %v218
    %v235 = vpack.c.bf16 %v219, %v219
    %v236 = vpack.c.bf16 %v220, %v220
    %v237 = vpack.c.bf16 %v221, %v221
    %v238 = vpack.c.bf16 %v222, %v222
    %v239 = vpack.c.bf16 %v223, %v223
    %v240 = vpack.c.bf16 %v224, %v224
    %v241 = vpack.c.bf16 %v225, %v225
    %v242 = vpack.c.bf16 %v226, %v226
    %v243 = vpack.c.bf16 %v227, %v227
    %v244 = vpack.c.bf16 %v228, %v228
    %v245 = vpack.c.bf16 %v229, %v229
    %v246 = vpack.c.bf16 %v230, %v230
    %v247 = vpack.c.bf16 %v231, %v231
    %vm248 = vcmask 257024
    %249 = vst.msk [vmem:[%s4] sm:$0xf] %vm248, %v232
    %250 = vst.msk [vmem:[%s4 + $0x4] sm:$0xf] %vm248, %v233
    %251 = vst.msk [vmem:[%s4 + $0x8] sm:$0xf] %vm248, %v234
    %252 = vst.msk [vmem:[%s4 + $0xc] sm:$0xf] %vm248, %v235
    %253 = vst.msk [vmem:[%s4 + $0x10] sm:$0xf] %vm248, %v236
    %254 = vst.msk [vmem:[%s4 + $0x14] sm:$0xf] %vm248, %v237
    %255 = vst.msk [vmem:[%s4 + $0x18] sm:$0xf] %vm248, %v238
    %256 = vst.msk [vmem:[%s4 + $0x1c] sm:$0xf] %vm248, %v239
    %257 = vst.msk [vmem:[%s4 + $0x20] sm:$0xf] %vm248, %v240
    %258 = vst.msk [vmem:[%s4 + $0x24] sm:$0xf] %vm248, %v241
    %259 = vst.msk [vmem:[%s4 + $0x28] sm:$0xf] %vm248, %v242
    %260 = vst.msk [vmem:[%s4 + $0x2c] sm:$0xf] %vm248, %v243
    %261 = vst.msk [vmem:[%s4 + $0x30] sm:$0xf] %vm248, %v244
    %262 = vst.msk [vmem:[%s4 + $0x34] sm:$0xf] %vm248, %v245
    %263 = vst.msk [vmem:[%s4 + $0x38] sm:$0xf] %vm248, %v246
    %264 = vst.msk [vmem:[%s4 + $0x3c] sm:$0xf] %vm248, %v247
    // Predicated region
    $region22: #{_lambda_.18} parent=1 // pred_check
      _
    $region23: #{_lambda_.18} parent=1 // pred_check_branch
      %266 = sbr.rel (0) target = $region25
    $region24: #{_lambda_.18} parent=1 // pred_region
      _
    $region25: #{_lambda_.18} parent=1 // pred_fallthru
      _
    // Predicated region
    $region26: #{_lambda_.18} parent=1 // pred_check
      _
    $region27: #{_lambda_.18} parent=1 // pred_check_branch
      %268 = sbr.rel (0) target = $region29
    $region28: #{_lambda_.18} parent=1 // pred_region
      _
    $region29: #{_lambda_.18} parent=1 // pred_fallthru
      _
    %269 = vsyncpa [#allocation3], 1

// kernel: _lambda_.19
$region0: #{_lambda_.19}
  #allocation0 [shape = 'u32[]', space=smem, size = 0x4, offset = 0x4, fixed_abs, tag = 'smem constant byte address 0x4 - core index']
  #allocation1 [shape = 'u32[72,128]{1,0:T(1,128)}', space=vmem, size = 0x9000, scoped, tag = 'internal scratch']
  #allocation2 [shape = 'bf16[128,32]{1,0:T(8,128)(2,1)}', space=vmem, size = 0x8000, scoped, tag = 'scratch operand']
  %s0 = inlined_call_operand.vmem [shape: bf16[128,32], index: 0, kind: input, shape index: {}]
  %s1 = inlined_call_operand.vmem [shape: bf16[32,128], index: 1, kind: input, shape index: {}]
  %s2 = inlined_call_operand.vmem [shape: f32[1,128], index: 2, kind: input, shape index: {}]
  %s3 = inlined_call_operand.vmem [shape: f32[1,32], index: 3, kind: input, shape index: {}]
  %s4 = inlined_call_operand.vmem [shape: f32[1,32], index: 4, kind: input, shape index: {}]
  %s5 = inlined_call_operand.vmem [shape: bf16[128,128], index: 5, kind: output, shape index: {}]
  %s6 = sld [smem:[#allocation0]]
  $region34: #{_lambda_.19} parent=0
    _
  %s8 = ssub.s32 1, %s6
  %s9 = scalar_select 0, %s8, %s6
  // Predicated region
  $region2: #{_lambda_.19} parent=0 // pred_check
    _
  $region3: #{_lambda_.19} parent=0 // pred_check_branch
    %11 = sbr.rel (0) target = $region5
  $region4: #{_lambda_.19} parent=0 // pred_region
    _
  $region5: #{_lambda_.19} parent=0 // pred_fallthru
    _
  // Predicated region
  $region6: #{_lambda_.19} parent=0 // pred_check
    _
  $region7: #{_lambda_.19} parent=0 // pred_check_branch
    %13 = sbr.rel (0) target = $region9
  $region8: #{_lambda_.19} parent=0 // pred_region
    _
  $region9: #{_lambda_.19} parent=0 // pred_fallthru
    _
  // Predicated region
  $region10: #{_lambda_.19} parent=0 // pred_check
    _
  $region11: #{_lambda_.19} parent=0 // pred_check_branch
    %15 = sbr.rel (0) target = $region13
  $region12: #{_lambda_.19} parent=0 // pred_region
    _
  $region13: #{_lambda_.19} parent=0 // pred_fallthru
    _
  // Predicated region
  $region14: #{_lambda_.19} parent=0 // pred_check
    _
  $region15: #{_lambda_.19} parent=0 // pred_check_branch
    %17 = sbr.rel (0) target = $region17
  $region16: #{_lambda_.19} parent=0 // pred_region
    _
  $region17: #{_lambda_.19} parent=0 // pred_fallthru
    _
  // Predicated region
  $region18: #{_lambda_.19} parent=0 // pred_check
    _
  $region19: #{_lambda_.19} parent=0 // pred_check_branch
    %19 = sbr.rel (0) target = $region21
  $region20: #{_lambda_.19} parent=0 // pred_region
    _
  $region21: #{_lambda_.19} parent=0 // pred_fallthru
    _
  %p21 = scmp.eq.s32.totalorder 0, 0
  // Predicated region
  $region22: #{_lambda_.19} parent=0 // pred_check
    %p22 = pneg %p21
  $region23: #{_lambda_.19} parent=0 // pred_check_branch
    %24 = sbr.rel (%p22) target = $region25
  $region24: #{_lambda_.19} parent=0 // pred_region
    %v25 = vld [vmem:[%s0] sm:$0xf]
    %v26 = vld [vmem:[%s0 + $0x4] sm:$0xf]
    %v27 = vld [vmem:[%s0 + $0x8] sm:$0xf]
    %v28 = vld [vmem:[%s0 + $0xc] sm:$0xf]
    %v29 = vld [vmem:[%s0 + $0x10] sm:$0xf]
    %v30 = vld [vmem:[%s0 + $0x14] sm:$0xf]
    %v31 = vld [vmem:[%s0 + $0x18] sm:$0xf]
    %v32 = vld [vmem:[%s0 + $0x1c] sm:$0xf]
    %v33 = vld [vmem:[%s0 + $0x20] sm:$0xf]
    %v34 = vld [vmem:[%s0 + $0x24] sm:$0xf]
    %v35 = vld [vmem:[%s0 + $0x28] sm:$0xf]
    %v36 = vld [vmem:[%s0 + $0x2c] sm:$0xf]
    %v37 = vld [vmem:[%s0 + $0x30] sm:$0xf]
    %v38 = vld [vmem:[%s0 + $0x34] sm:$0xf]
    %v39 = vld [vmem:[%s0 + $0x38] sm:$0xf]
    %v40 = vld [vmem:[%s0 + $0x3c] sm:$0xf]
    %v41 = vunpack.c.l.bf16 %v25
    %v42 = vunpack.c.l.bf16 %v26
    %v43 = vunpack.c.l.bf16 %v27
    %v44 = vunpack.c.l.bf16 %v28
    %v45 = vunpack.c.l.bf16 %v29
    %v46 = vunpack.c.l.bf16 %v30
    %v47 = vunpack.c.l.bf16 %v31
    %v48 = vunpack.c.l.bf16 %v32
    %v49 = vunpack.c.l.bf16 %v33
    %v50 = vunpack.c.l.bf16 %v34
    %v51 = vunpack.c.l.bf16 %v35
    %v52 = vunpack.c.l.bf16 %v36
    %v53 = vunpack.c.l.bf16 %v37
    %v54 = vunpack.c.l.bf16 %v38
    %v55 = vunpack.c.l.bf16 %v39
    %v56 = vunpack.c.l.bf16 %v40
    %vm57 = vcmask 261120
    %v58 = vsel %vm57, %v41, 0.0
    %59 = vadd.xlane.f32.xlu0 %v58
    %v60 = vpop.xlane.xlu0 %59
    %v61 = vsel %vm57, %v42, 0.0
    %62 = vadd.xlane.f32.xlu0 %v61
    %v63 = vpop.xlane.xlu0 %62
    %v64 = vsel %vm57, %v43, 0.0
    %65 = vadd.xlane.f32.xlu0 %v64
    %v66 = vpop.xlane.xlu0 %65
    %v67 = vsel %vm57, %v44, 0.0
    %68 = vadd.xlane.f32.xlu0 %v67
    %v69 = vpop.xlane.xlu0 %68
    %v70 = vsel %vm57, %v45, 0.0
    %71 = vadd.xlane.f32.xlu0 %v70
    %v72 = vpop.xlane.xlu0 %71
    %v73 = vsel %vm57, %v46, 0.0
    %74 = vadd.xlane.f32.xlu0 %v73
    %v75 = vpop.xlane.xlu0 %74
    %v76 = vsel %vm57, %v47, 0.0
    %77 = vadd.xlane.f32.xlu0 %v76
    %v78 = vpop.xlane.xlu0 %77
    %v79 = vsel %vm57, %v48, 0.0
    %80 = vadd.xlane.f32.xlu0 %v79
    %v81 = vpop.xlane.xlu0 %80
    %v82 = vsel %vm57, %v49, 0.0
    %83 = vadd.xlane.f32.xlu0 %v82
    %v84 = vpop.xlane.xlu0 %83
    %v85 = vsel %vm57, %v50, 0.0
    %86 = vadd.xlane.f32.xlu0 %v85
    %v87 = vpop.xlane.xlu0 %86
    %v88 = vsel %vm57, %v51, 0.0
    %89 = vadd.xlane.f32.xlu0 %v88
    %v90 = vpop.xlane.xlu0 %89
    %v91 = vsel %vm57, %v52, 0.0
    %92 = vadd.xlane.f32.xlu0 %v91
    %v93 = vpop.xlane.xlu0 %92
    %v94 = vsel %vm57, %v53, 0.0
    %95 = vadd.xlane.f32.xlu0 %v94
    %v96 = vpop.xlane.xlu0 %95
    %v97 = vsel %vm57, %v54, 0.0
    %98 = vadd.xlane.f32.xlu0 %v97
    %v99 = vpop.xlane.xlu0 %98
    %v100 = vsel %vm57, %v55, 0.0
    %101 = vadd.xlane.f32.xlu0 %v100
    %v102 = vpop.xlane.xlu0 %101
    %v103 = vsel %vm57, %v56, 0.0
    %104 = vadd.xlane.f32.xlu0 %v103
    %v105 = vpop.xlane.xlu0 %104
    %v106 = vrcp.pop 32.0
    %v107 = vmul.f32 32.0, %v106
    %v108 = vsub.f32 1.0, %v107
    %v109 = vmul.f32 %v106, %v108
    %v110 = vadd.f32 %v106, %v109
    %vm111 = vweird.f32 %v106
    %v112 = vsel %vm111, %v106, %v110
    %v113 = vmul.f32 %v60, %v112
    %v114 = vmul.f32 %v63, %v112
    %v115 = vmul.f32 %v66, %v112
    %v116 = vmul.f32 %v69, %v112
    %v117 = vmul.f32 %v72, %v112
    %v118 = vmul.f32 %v75, %v112
    %v119 = vmul.f32 %v78, %v112
    %v120 = vmul.f32 %v81, %v112
    %v121 = vmul.f32 %v84, %v112
    %v122 = vmul.f32 %v87, %v112
    %v123 = vmul.f32 %v90, %v112
    %v124 = vmul.f32 %v93, %v112
    %v125 = vmul.f32 %v96, %v112
    %v126 = vmul.f32 %v99, %v112
    %v127 = vmul.f32 %v102, %v112
    %v128 = vmul.f32 %v105, %v112
    %v129 = vsub.f32 %v41, %v113
    %v130 = vsub.f32 %v42, %v114
    %v131 = vsub.f32 %v43, %v115
    %v132 = vsub.f32 %v44, %v116
    %v133 = vsub.f32 %v45, %v117
    %v134 = vsub.f32 %v46, %v118
    %v135 = vsub.f32 %v47, %v119
    %v136 = vsub.f32 %v48, %v120
    %v137 = vsub.f32 %v49, %v121
    %v138 = vsub.f32 %v50, %v122
    %v139 = vsub.f32 %v51, %v123
    %v140 = vsub.f32 %v52, %v124
    %v141 = vsub.f32 %v53, %v125
    %v142 = vsub.f32 %v54, %v126
    %v143 = vsub.f32 %v55, %v127
    %v144 = vsub.f32 %v56, %v128
    %v145 = vmul.f32 %v129, %v129
    %v146 = vmul.f32 %v130, %v130
    %v147 = vmul.f32 %v131, %v131
    %v148 = vmul.f32 %v132, %v132
    %v149 = vmul.f32 %v133, %v133
    %v150 = vmul.f32 %v134, %v134
    %v151 = vmul.f32 %v135, %v135
    %v152 = vmul.f32 %v136, %v136
    %v153 = vmul.f32 %v137, %v137
    %v154 = vmul.f32 %v138, %v138
    %v155 = vmul.f32 %v139, %v139
    %v156 = vmul.f32 %v140, %v140
    %v157 = vmul.f32 %v141, %v141
    %v158 = vmul.f32 %v142, %v142
    %v159 = vmul.f32 %v143, %v143
    %v160 = vmul.f32 %v144, %v144
    %v161 = vsel %vm57, %v145, 0.0
    %162 = vadd.xlane.f32.xlu0 %v161
    %v163 = vpop.xlane.xlu0 %162
    %v164 = vsel %vm57, %v146, 0.0
    %165 = vadd.xlane.f32.xlu0 %v164
    %v166 = vpop.xlane.xlu0 %165
    %v167 = vsel %vm57, %v147, 0.0
    %168 = vadd.xlane.f32.xlu0 %v167
    %v169 = vpop.xlane.xlu0 %168
    %v170 = vsel %vm57, %v148, 0.0
    %171 = vadd.xlane.f32.xlu0 %v170
    %v172 = vpop.xlane.xlu0 %171
    %v173 = vsel %vm57, %v149, 0.0
    %174 = vadd.xlane.f32.xlu0 %v173
    %v175 = vpop.xlane.xlu0 %174
    %v176 = vsel %vm57, %v150, 0.0
    %177 = vadd.xlane.f32.xlu0 %v176
    %v178 = vpop.xlane.xlu0 %177
    %v179 = vsel %vm57, %v151, 0.0
    %180 = vadd.xlane.f32.xlu0 %v179
    %v181 = vpop.xlane.xlu0 %180
    %v182 = vsel %vm57, %v152, 0.0
    %183 = vadd.xlane.f32.xlu0 %v182
    %v184 = vpop.xlane.xlu0 %183
    %v185 = vsel %vm57, %v153, 0.0
    %186 = vadd.xlane.f32.xlu0 %v185
    %v187 = vpop.xlane.xlu0 %186
    %v188 = vsel %vm57, %v154, 0.0
    %189 = vadd.xlane.f32.xlu0 %v188
    %v190 = vpop.xlane.xlu0 %189
    %v191 = vsel %vm57, %v155, 0.0
    %192 = vadd.xlane.f32.xlu0 %v191
    %v193 = vpop.xlane.xlu0 %192
    %v194 = vsel %vm57, %v156, 0.0
    %195 = vadd.xlane.f32.xlu0 %v194
    %v196 = vpop.xlane.xlu0 %195
    %v197 = vsel %vm57, %v157, 0.0
    %198 = vadd.xlane.f32.xlu0 %v197
    %v199 = vpop.xlane.xlu0 %198
    %v200 = vsel %vm57, %v158, 0.0
    %201 = vadd.xlane.f32.xlu0 %v200
    %v202 = vpop.xlane.xlu0 %201
    %v203 = vsel %vm57, %v159, 0.0
    %204 = vadd.xlane.f32.xlu0 %v203
    %v205 = vpop.xlane.xlu0 %204
    %v206 = vsel %vm57, %v160, 0.0
    %207 = vadd.xlane.f32.xlu0 %v206
    %v208 = vpop.xlane.xlu0 %207
    %v209 = vmul.f32 %v163, %v112
    %v210 = vmul.f32 %v166, %v112
    %v211 = vmul.f32 %v169, %v112
    %v212 = vmul.f32 %v172, %v112
    %v213 = vmul.f32 %v175, %v112
    %v214 = vmul.f32 %v178, %v112
    %v215 = vmul.f32 %v181, %v112
    %v216 = vmul.f32 %v184, %v112
    %v217 = vmul.f32 %v187, %v112
    %v218 = vmul.f32 %v190, %v112
    %v219 = vmul.f32 %v193, %v112
    %v220 = vmul.f32 %v196, %v112
    %v221 = vmul.f32 %v199, %v112
    %v222 = vmul.f32 %v202, %v112
    %v223 = vmul.f32 %v205, %v112
    %v224 = vmul.f32 %v208, %v112
    %v225 = vadd.f32 %v209, 1e-05
    %v226 = vadd.f32 %v210, 1e-05
    %v227 = vadd.f32 %v211, 1e-05
    %v228 = vadd.f32 %v212, 1e-05
    %v229 = vadd.f32 %v213, 1e-05
    %v230 = vadd.f32 %v214, 1e-05
    %v231 = vadd.f32 %v215, 1e-05
    %v232 = vadd.f32 %v216, 1e-05
    %v233 = vadd.f32 %v217, 1e-05
    %v234 = vadd.f32 %v218, 1e-05
    %v235 = vadd.f32 %v219, 1e-05
    %v236 = vadd.f32 %v220, 1e-05
    %v237 = vadd.f32 %v221, 1e-05
    %v238 = vadd.f32 %v222, 1e-05
    %v239 = vadd.f32 %v223, 1e-05
    %v240 = vadd.f32 %v224, 1e-05
    %v241 = vrsqrt.pop %v225
    %v242 = vmul.f32 %v241, %v225
    %v243 = vmul.f32 %v242, %v241
    %v244 = vmul.f32 0.5, %v243
    %v245 = vsub.f32 1.5, %v244
    %v246 = vmul.f32 %v241, %v245
    %vm247 = vweird.f32 %v225
    %vm248 = vweird.f32 %v241
    %vm249 = vmor %vm247, %vm248
    %v250 = vsel %vm249, %v241, %v246
    %v251 = vrsqrt.pop %v226
    %v252 = vmul.f32 %v251, %v226
    %v253 = vmul.f32 %v252, %v251
    %v254 = vmul.f32 0.5, %v253
    %v255 = vsub.f32 1.5, %v254
    %v256 = vmul.f32 %v251, %v255
    %vm257 = vweird.f32 %v226
    %vm258 = vweird.f32 %v251
    %vm259 = vmor %vm257, %vm258
    %v260 = vsel %vm259, %v251, %v256
    %v261 = vrsqrt.pop %v227
    %v262 = vmul.f32 %v261, %v227
    %v263 = vmul.f32 %v262, %v261
    %v264 = vmul.f32 0.5, %v263
    %v265 = vsub.f32 1.5, %v264
    %v266 = vmul.f32 %v261, %v265
    %vm267 = vweird.f32 %v227
    %vm268 = vweird.f32 %v261
    %vm269 = vmor %vm267, %vm268
    %v270 = vsel %vm269, %v261, %v266
    %v271 = vrsqrt.pop %v228
    %v272 = vmul.f32 %v271, %v228
    %v273 = vmul.f32 %v272, %v271
    %v274 = vmul.f32 0.5, %v273
    %v275 = vsub.f32 1.5, %v274
    %v276 = vmul.f32 %v271, %v275
    %vm277 = vweird.f32 %v228
    %vm278 = vweird.f32 %v271
    %vm279 = vmor %vm277, %vm278
    %v280 = vsel %vm279, %v271, %v276
    %v281 = vrsqrt.pop %v229
    %v282 = vmul.f32 %v281, %v229
    %v283 = vmul.f32 %v282, %v281
    %v284 = vmul.f32 0.5, %v283
    %v285 = vsub.f32 1.5, %v284
    %v286 = vmul.f32 %v281, %v285
    %vm287 = vweird.f32 %v229
    %vm288 = vweird.f32 %v281
    %vm289 = vmor %vm287, %vm288
    %v290 = vsel %vm289, %v281, %v286
    %v291 = vrsqrt.pop %v230
    %v292 = vmul.f32 %v291, %v230
    %v293 = vmul.f32 %v292, %v291
    %v294 = vmul.f32 0.5, %v293
    %v295 = vsub.f32 1.5, %v294
    %v296 = vmul.f32 %v291, %v295
    %vm297 = vweird.f32 %v230
    %vm298 = vweird.f32 %v291
    %vm299 = vmor %vm297, %vm298
    %v300 = vsel %vm299, %v291, %v296
    %v301 = vrsqrt.pop %v231
    %v302 = vmul.f32 %v301, %v231
    %v303 = vmul.f32 %v302, %v301
    %v304 = vmul.f32 0.5, %v303
    %v305 = vsub.f32 1.5, %v304
    %v306 = vmul.f32 %v301, %v305
    %vm307 = vweird.f32 %v231
    %vm308 = vweird.f32 %v301
    %vm309 = vmor %vm307, %vm308
    %v310 = vsel %vm309, %v301, %v306
    %v311 = vrsqrt.pop %v232
    %v312 = vmul.f32 %v311, %v232
    %v313 = vmul.f32 %v312, %v311
    %v314 = vmul.f32 0.5, %v313
    %v315 = vsub.f32 1.5, %v314
    %v316 = vmul.f32 %v311, %v315
    %vm317 = vweird.f32 %v232
    %vm318 = vweird.f32 %v311
    %vm319 = vmor %vm317, %vm318
    %v320 = vsel %vm319, %v311, %v316
    %v321 = vrsqrt.pop %v233
    %v322 = vmul.f32 %v321, %v233
    %v323 = vmul.f32 %v322, %v321
    %v324 = vmul.f32 0.5, %v323
    %v325 = vsub.f32 1.5, %v324
    %v326 = vmul.f32 %v321, %v325
    %vm327 = vweird.f32 %v233
    %vm328 = vweird.f32 %v321
    %vm329 = vmor %vm327, %vm328
    %v330 = vsel %vm329, %v321, %v326
    %v331 = vrsqrt.pop %v234
    %v332 = vmul.f32 %v331, %v234
    %v333 = vmul.f32 %v332, %v331
    %v334 = vmul.f32 0.5, %v333
    %v335 = vsub.f32 1.5, %v334
    %v336 = vmul.f32 %v331, %v335
    %vm337 = vweird.f32 %v234
    %vm338 = vweird.f32 %v331
    %vm339 = vmor %vm337, %vm338
    %v340 = vsel %vm339, %v331, %v336
    %v341 = vrsqrt.pop %v235
    %v342 = vmul.f32 %v341, %v235
    %v343 = vmul.f32 %v342, %v341
    %v344 = vmul.f32 0.5, %v343
    %v345 = vsub.f32 1.5, %v344
    %v346 = vmul.f32 %v341, %v345
    %vm347 = vweird.f32 %v235
    %vm348 = vweird.f32 %v341
    %vm349 = vmor %vm347, %vm348
    %v350 = vsel %vm349, %v341, %v346
    %v351 = vrsqrt.pop %v236
    %v352 = vmul.f32 %v351, %v236
    %v353 = vmul.f32 %v352, %v351
    %v354 = vmul.f32 0.5, %v353
    %v355 = vsub.f32 1.5, %v354
    %v356 = vmul.f32 %v351, %v355
    %vm357 = vweird.f32 %v236
    %vm358 = vweird.f32 %v351
    %vm359 = vmor %vm357, %vm358
    %v360 = vsel %vm359, %v351, %v356
    %v361 = vrsqrt.pop %v237
    %v362 = vmul.f32 %v361, %v237
    %v363 = vmul.f32 %v362, %v361
    %v364 = vmul.f32 0.5, %v363
    %v365 = vsub.f32 1.5, %v364
    %v366 = vmul.f32 %v361, %v365
    %vm367 = vweird.f32 %v237
    %vm368 = vweird.f32 %v361
    %vm369 = vmor %vm367, %vm368
    %v370 = vsel %vm369, %v361, %v366
    %v371 = vrsqrt.pop %v238
    %v372 = vmul.f32 %v371, %v238
    %v373 = vmul.f32 %v372, %v371
    %v374 = vmul.f32 0.5, %v373
    %v375 = vsub.f32 1.5, %v374
    %v376 = vmul.f32 %v371, %v375
    %vm377 = vweird.f32 %v238
    %vm378 = vweird.f32 %v371
    %vm379 = vmor %vm377, %vm378
    %v380 = vsel %vm379, %v371, %v376
    %v381 = vrsqrt.pop %v239
    %v382 = vmul.f32 %v381, %v239
    %v383 = vmul.f32 %v382, %v381
    %v384 = vmul.f32 0.5, %v383
    %v385 = vsub.f32 1.5, %v384
    %v386 = vmul.f32 %v381, %v385
    %vm387 = vweird.f32 %v239
    %vm388 = vweird.f32 %v381
    %vm389 = vmor %vm387, %vm388
    %v390 = vsel %vm389, %v381, %v386
    %v391 = vrsqrt.pop %v240
    %v392 = vmul.f32 %v391, %v240
    %v393 = vmul.f32 %v392, %v391
    %v394 = vmul.f32 0.5, %v393
    %v395 = vsub.f32 1.5, %v394
    %v396 = vmul.f32 %v391, %v395
    %vm397 = vweird.f32 %v240
    %vm398 = vweird.f32 %v391
    %vm399 = vmor %vm397, %vm398
    %v400 = vsel %vm399, %v391, %v396
    %v401 = vmul.f32 %v129, %v250
    %v402 = vmul.f32 %v130, %v260
    %v403 = vmul.f32 %v131, %v270
    %v404 = vmul.f32 %v132, %v280
    %v405 = vmul.f32 %v133, %v290
    %v406 = vmul.f32 %v134, %v300
    %v407 = vmul.f32 %v135, %v310
    %v408 = vmul.f32 %v136, %v320
    %v409 = vmul.f32 %v137, %v330
    %v410 = vmul.f32 %v138, %v340
    %v411 = vmul.f32 %v139, %v350
    %v412 = vmul.f32 %v140, %v360
    %v413 = vmul.f32 %v141, %v370
    %v414 = vmul.f32 %v142, %v380
    %v415 = vmul.f32 %v143, %v390
    %v416 = vmul.f32 %v144, %v400
    %v417 = vld [vmem:[%s3] sm:$0x1]
    %v419 = vperm.slane %v417, 0
    %v421 = vmul.f32 %v401, %v419
    %v422 = vmul.f32 %v402, %v419
    %v423 = vmul.f32 %v403, %v419
    %v424 = vmul.f32 %v404, %v419
    %v425 = vmul.f32 %v405, %v419
    %v426 = vmul.f32 %v406, %v419
    %v427 = vmul.f32 %v407, %v419
    %v428 = vmul.f32 %v408, %v419
    %v429 = vmul.f32 %v409, %v419
    %v430 = vmul.f32 %v410, %v419
    %v431 = vmul.f32 %v411, %v419
    %v432 = vmul.f32 %v412, %v419
    %v433 = vmul.f32 %v413, %v419
    %v434 = vmul.f32 %v414, %v419
    %v435 = vmul.f32 %v415, %v419
    %v436 = vmul.f32 %v416, %v419
    %v437 = vld [vmem:[%s4] sm:$0x1]
    %v439 = vperm.slane %v437, 0
    %v441 = vadd.f32 %v421, %v439
    %v442 = vadd.f32 %v422, %v439
    %v443 = vadd.f32 %v423, %v439
    %v444 = vadd.f32 %v424, %v439
    %v445 = vadd.f32 %v425, %v439
    %v446 = vadd.f32 %v426, %v439
    %v447 = vadd.f32 %v427, %v439
    %v448 = vadd.f32 %v428, %v439
    %v449 = vadd.f32 %v429, %v439
    %v450 = vadd.f32 %v430, %v439
    %v451 = vadd.f32 %v431, %v439
    %v452 = vadd.f32 %v432, %v439
    %v453 = vadd.f32 %v433, %v439
    %v454 = vadd.f32 %v434, %v439
    %v455 = vadd.f32 %v435, %v439
    %v456 = vadd.f32 %v436, %v439
    %v457 = vpack.c.bf16 %v441, %v441
    %v458 = vpack.c.bf16 %v442, %v442
    %v459 = vpack.c.bf16 %v443, %v443
    %v460 = vpack.c.bf16 %v444, %v444
    %v461 = vpack.c.bf16 %v445, %v445
    %v462 = vpack.c.bf16 %v446, %v446
    %v463 = vpack.c.bf16 %v447, %v447
    %v464 = vpack.c.bf16 %v448, %v448
    %v465 = vpack.c.bf16 %v449, %v449
    %v466 = vpack.c.bf16 %v450, %v450
    %v467 = vpack.c.bf16 %v451, %v451
    %v468 = vpack.c.bf16 %v452, %v452
    %v469 = vpack.c.bf16 %v453, %v453
    %v470 = vpack.c.bf16 %v454, %v454
    %v471 = vpack.c.bf16 %v455, %v455
    %v472 = vpack.c.bf16 %v456, %v456
    %vm473 = vcmask 257024
    %474 = vst.msk [vmem:[#allocation2] sm:$0xf] %vm473, %v457
    %475 = vst.msk [vmem:[#allocation2 + $0x4] sm:$0xf] %vm473, %v458
    %476 = vst.msk [vmem:[#allocation2 + $0x8] sm:$0xf] %vm473, %v459
    %477 = vst.msk [vmem:[#allocation2 + $0xc] sm:$0xf] %vm473, %v460
    %478 = vst.msk [vmem:[#allocation2 + $0x10] sm:$0xf] %vm473, %v461
    %479 = vst.msk [vmem:[#allocation2 + $0x14] sm:$0xf] %vm473, %v462
    %480 = vst.msk [vmem:[#allocation2 + $0x18] sm:$0xf] %vm473, %v463
    %481 = vst.msk [vmem:[#allocation2 + $0x1c] sm:$0xf] %vm473, %v464
    %482 = vst.msk [vmem:[#allocation2 + $0x20] sm:$0xf] %vm473, %v465
    %483 = vst.msk [vmem:[#allocation2 + $0x24] sm:$0xf] %vm473, %v466
    %484 = vst.msk [vmem:[#allocation2 + $0x28] sm:$0xf] %vm473, %v467
    %485 = vst.msk [vmem:[#allocation2 + $0x2c] sm:$0xf] %vm473, %v468
    %486 = vst.msk [vmem:[#allocation2 + $0x30] sm:$0xf] %vm473, %v469
    %487 = vst.msk [vmem:[#allocation2 + $0x34] sm:$0xf] %vm473, %v470
    %488 = vst.msk [vmem:[#allocation2 + $0x38] sm:$0xf] %vm473, %v471
    %489 = vst.msk [vmem:[#allocation2 + $0x3c] sm:$0xf] %vm473, %v472
  $region25: #{_lambda_.19} parent=0 // pred_fallthru
    _
  %v490 = vld [vmem:[#allocation2] sm:$0xf]
  %v491 = vld [vmem:[#allocation2 + $0x4] sm:$0xf]
  %v492 = vld [vmem:[#allocation2 + $0x8] sm:$0xf]
  %v493 = vld [vmem:[#allocation2 + $0xc] sm:$0xf]
  %v494 = vld [vmem:[#allocation2 + $0x10] sm:$0xf]
  %v495 = vld [vmem:[#allocation2 + $0x14] sm:$0xf]
  %v496 = vld [vmem:[#allocation2 + $0x18] sm:$0xf]
  %v497 = vld [vmem:[#allocation2 + $0x1c] sm:$0xf]
  %v498 = vld [vmem:[#allocation2 + $0x20] sm:$0xf]
  %v499 = vld [vmem:[#allocation2 + $0x24] sm:$0xf]
  %v500 = vld [vmem:[#allocation2 + $0x28] sm:$0xf]
  %v501 = vld [vmem:[#allocation2 + $0x2c] sm:$0xf]
  %v502 = vld [vmem:[#allocation2 + $0x30] sm:$0xf]
  %v503 = vld [vmem:[#allocation2 + $0x34] sm:$0xf]
  %v504 = vld [vmem:[#allocation2 + $0x38] sm:$0xf]
  %v505 = vld [vmem:[#allocation2 + $0x3c] sm:$0xf]
  %v506 = vld [vmem:[%s1] sm:$0xf]
  %v507 = vld [vmem:[%s1 + $0x4] sm:$0xf]
  %v508 = vld [vmem:[%s1 + $0x8] sm:$0xf]
  %v509 = vld [vmem:[%s1 + $0xc] sm:$0xf]
  %v510 = vld [vmem:[%s2] sm:$0x1]
  %v512 = vperm.slane %v510, 0
  %v530 = vunpack.c.l.b16 %v490
  %v531 = vunpack.c.l.b16 %v491
  %v532 = vunpack.c.l.b16 %v492
  %v533 = vunpack.c.l.b16 %v493
  %v534 = vunpack.c.l.b16 %v494
  %v535 = vunpack.c.l.b16 %v495
  %v536 = vunpack.c.l.b16 %v496
  %v537 = vunpack.c.l.b16 %v497
  %v538 = vunpack.c.l.b16 %v498
  %v539 = vunpack.c.l.b16 %v499
  %v540 = vunpack.c.l.b16 %v500
  %v541 = vunpack.c.l.b16 %v501
  %v542 = vunpack.c.l.b16 %v502
  %v543 = vunpack.c.l.b16 %v503
  %v544 = vunpack.c.l.b16 %v504
  %v545 = vunpack.c.l.b16 %v505
  %v546 = vpack.c.b16 %v531, %v530
  %v547 = vpack.c.b16 %v533, %v532
  %v548 = vpack.c.b16 %v535, %v534
  %v549 = vpack.c.b16 %v537, %v536
  %v550 = vpack.c.b16 %v539, %v538
  %v551 = vpack.c.b16 %v541, %v540
  %v552 = vpack.c.b16 %v543, %v542
  %v553 = vpack.c.b16 %v545, %v544
  %v558 = vunpack.c.l.b16 %v506
  %v559 = vunpack.c.l.b16 %v507
  %v560 = vunpack.c.l.b16 %v508
  %v561 = vunpack.c.l.b16 %v509
  %v562 = vpack.c.b16 %v559, %v558
  %v563 = vpack.c.b16 %v561, %v560
  %vm566 = vcmask 261120
  %v568 = vsel %vm566, %v546, 0
  %v571 = vsel %vm566, %v547, 0
  %v574 = vsel %vm566, %v548, 0
  %v577 = vsel %vm566, %v549, 0
  %v580 = vsel %vm566, %v550, 0
  %v583 = vsel %vm566, %v551, 0
  %v586 = vsel %vm566, %v552, 0
  %v589 = vsel %vm566, %v553, 0
  %591 = vmatpush.bf16.msra.mxu0 0
  %592 = vmatpush.bf16.msra.mxu0 0
  %593 = vmatpush.bf16.msra.mxu0 0
  %594 = vmatpush.bf16.msra.mxu0 0
  %595 = vmatpush.bf16.msra.mxu0 0
  %596 = vmatpush.bf16.msra.mxu0 0
  %597 = vmatpush.bf16.msra.mxu0 %v563
  %598 = vmatpush.bf16.msra.mxu0 %v562
  %599 = vmatmul.bf16.gmra.mxu0 %v568
  %v600 = vpop.f32.mrf.mxu0
  %v601 = vadd.f32 %v512, %v600
  %v602 = vpop.f32.mrf.mxu0
  %v603 = vadd.f32 %v512, %v602
  %604 = vmatmul.bf16.gmra.mxu0 %v571
  %v605 = vpop.f32.mrf.mxu0
  %v606 = vadd.f32 %v512, %v605
  %v607 = vpop.f32.mrf.mxu0
  %v608 = vadd.f32 %v512, %v607
  %609 = vmatmul.bf16.gmra.mxu0 %v574
  %v610 = vpop.f32.mrf.mxu0
  %v611 = vadd.f32 %v512, %v610
  %v612 = vpop.f32.mrf.mxu0
  %v613 = vadd.f32 %v512, %v612
  %614 = vmatmul.bf16.gmra.mxu0 %v577
  %v615 = vpop.f32.mrf.mxu0
  %v616 = vadd.f32 %v512, %v615
  %v617 = vpop.f32.mrf.mxu0
  %v618 = vadd.f32 %v512, %v617
  %619 = vmatmul.bf16.gmra.mxu0 %v580
  %v620 = vpop.f32.mrf.mxu0
  %v621 = vadd.f32 %v512, %v620
  %v622 = vpop.f32.mrf.mxu0
  %v623 = vadd.f32 %v512, %v622
  %624 = vmatmul.bf16.gmra.mxu0 %v583
  %v625 = vpop.f32.mrf.mxu0
  %v626 = vadd.f32 %v512, %v625
  %v627 = vpop.f32.mrf.mxu0
  %v628 = vadd.f32 %v512, %v627
  %629 = vmatmul.bf16.gmra.mxu0 %v586
  %v630 = vpop.f32.mrf.mxu0
  %v631 = vadd.f32 %v512, %v630
  %v632 = vpop.f32.mrf.mxu0
  %v633 = vadd.f32 %v512, %v632
  %634 = vmatmul.bf16.gmra.mxu0 %v589
  %v635 = vpop.f32.mrf.mxu0
  %v636 = vadd.f32 %v512, %v635
  %v637 = vpop.f32.mrf.mxu0
  %v638 = vadd.f32 %v512, %v637
  %639 = vdwg.mxu0
  %v640 = vmul.f32 %v601, 0.5
  %v641 = vmul.f32 %v603, 0.5
  %v642 = vmul.f32 %v606, 0.5
  %v643 = vmul.f32 %v608, 0.5
  %v644 = vmul.f32 %v611, 0.5
  %v645 = vmul.f32 %v613, 0.5
  %v646 = vmul.f32 %v616, 0.5
  %v647 = vmul.f32 %v618, 0.5
  %v648 = vmul.f32 %v621, 0.5
  %v649 = vmul.f32 %v623, 0.5
  %v650 = vmul.f32 %v626, 0.5
  %v651 = vmul.f32 %v628, 0.5
  %v652 = vmul.f32 %v631, 0.5
  %v653 = vmul.f32 %v633, 0.5
  %v654 = vmul.f32 %v636, 0.5
  %v655 = vmul.f32 %v638, 0.5
  %v656 = vmul.f32 %v601, 0.70710677
  %v657 = vmul.f32 %v603, 0.70710677
  %v658 = vmul.f32 %v606, 0.70710677
  %v659 = vmul.f32 %v608, 0.70710677
  %v660 = vmul.f32 %v611, 0.70710677
  %v661 = vmul.f32 %v613, 0.70710677
  %v662 = vmul.f32 %v616, 0.70710677
  %v663 = vmul.f32 %v618, 0.70710677
  %v664 = vmul.f32 %v621, 0.70710677
  %v665 = vmul.f32 %v623, 0.70710677
  %v666 = vmul.f32 %v626, 0.70710677
  %v667 = vmul.f32 %v628, 0.70710677
  %v668 = vmul.f32 %v631, 0.70710677
  %v669 = vmul.f32 %v633, 0.70710677
  %v670 = vmul.f32 %v636, 0.70710677
  %v671 = vmul.f32 %v638, 0.70710677
  %vm672 = vcmp.ge.f32.partialorder %v656, 0.0
  %vm673 = vcmp.ge.f32.partialorder %v657, 0.0
  %vm674 = vcmp.ge.f32.partialorder %v658, 0.0
  %vm675 = vcmp.ge.f32.partialorder %v659, 0.0
  %vm676 = vcmp.ge.f32.partialorder %v660, 0.0
  %vm677 = vcmp.ge.f32.partialorder %v661, 0.0
  %vm678 = vcmp.ge.f32.partialorder %v662, 0.0
  %vm679 = vcmp.ge.f32.partialorder %v663, 0.0
  %vm680 = vcmp.ge.f32.partialorder %v664, 0.0
  %vm681 = vcmp.ge.f32.partialorder %v665, 0.0
  %vm682 = vcmp.ge.f32.partialorder %v666, 0.0
  %vm683 = vcmp.ge.f32.partialorder %v667, 0.0
  %vm684 = vcmp.ge.f32.partialorder %v668, 0.0
  %vm685 = vcmp.ge.f32.partialorder %v669, 0.0
  %vm686 = vcmp.ge.f32.partialorder %v670, 0.0
  %vm687 = vcmp.ge.f32.partialorder %v671, 0.0
  %v688 = vsel %vm672, 1.0, -1.0
  %v689 = vsel %vm673, 1.0, -1.0
  %v690 = vsel %vm674, 1.0, -1.0
  %v691 = vsel %vm675, 1.0, -1.0
  %v692 = vsel %vm676, 1.0, -1.0
  %v693 = vsel %vm677, 1.0, -1.0
  %v694 = vsel %vm678, 1.0, -1.0
  %v695 = vsel %vm679, 1.0, -1.0
  %v696 = vsel %vm680, 1.0, -1.0
  %v697 = vsel %vm681, 1.0, -1.0
  %v698 = vsel %vm682, 1.0, -1.0
  %v699 = vsel %vm683, 1.0, -1.0
  %v700 = vsel %vm684, 1.0, -1.0
  %v701 = vsel %vm685, 1.0, -1.0
  %v702 = vsel %vm686, 1.0, -1.0
  %v703 = vsel %vm687, 1.0, -1.0
  %v704 = vand.u32 2147483647, %v656
  %v705 = vand.u32 2147483647, %v657
  %v706 = vand.u32 2147483647, %v658
  %v707 = vand.u32 2147483647, %v659
  %v708 = vand.u32 2147483647, %v660
  %v709 = vand.u32 2147483647, %v661
  %v710 = vand.u32 2147483647, %v662
  %v711 = vand.u32 2147483647, %v663
  %v712 = vand.u32 2147483647, %v664
  %v713 = vand.u32 2147483647, %v665
  %v714 = vand.u32 2147483647, %v666
  %v715 = vand.u32 2147483647, %v667
  %v716 = vand.u32 2147483647, %v668
  %v717 = vand.u32 2147483647, %v669
  %v718 = vand.u32 2147483647, %v670
  %v719 = vand.u32 2147483647, %v671
  %v720 = vmul.f32 %v704, 0.3275911
  %v721 = vmul.f32 %v705, 0.3275911
  %v722 = vmul.f32 %v706, 0.3275911
  %v723 = vmul.f32 %v707, 0.3275911
  %v724 = vmul.f32 %v708, 0.3275911
  %v725 = vmul.f32 %v709, 0.3275911
  %v726 = vmul.f32 %v710, 0.3275911
  %v727 = vmul.f32 %v711, 0.3275911
  %v728 = vmul.f32 %v712, 0.3275911
  %v729 = vmul.f32 %v713, 0.3275911
  %v730 = vmul.f32 %v714, 0.3275911
  %v731 = vmul.f32 %v715, 0.3275911
  %v732 = vmul.f32 %v716, 0.3275911
  %v733 = vmul.f32 %v717, 0.3275911
  %v734 = vmul.f32 %v718, 0.3275911
  %v735 = vmul.f32 %v719, 0.3275911
  %v736 = vadd.f32 %v720, 1.0
  %v737 = vadd.f32 %v721, 1.0
  %v738 = vadd.f32 %v722, 1.0
  %v739 = vadd.f32 %v723, 1.0
  %v740 = vadd.f32 %v724, 1.0
  %v741 = vadd.f32 %v725, 1.0
  %v742 = vadd.f32 %v726, 1.0
  %v743 = vadd.f32 %v727, 1.0
  %v744 = vadd.f32 %v728, 1.0
  %v745 = vadd.f32 %v729, 1.0
  %v746 = vadd.f32 %v730, 1.0
  %v747 = vadd.f32 %v731, 1.0
  %v748 = vadd.f32 %v732, 1.0
  %v749 = vadd.f32 %v733, 1.0
  %v750 = vadd.f32 %v734, 1.0
  %v751 = vadd.f32 %v735, 1.0
  %v752 = vrcp.pop %v736
  %v753 = vrcp.pop %v737
  %v754 = vrcp.pop %v738
  %v755 = vrcp.pop %v739
  %v756 = vrcp.pop %v740
  %v757 = vrcp.pop %v741
  %v758 = vrcp.pop %v742
  %v759 = vrcp.pop %v743
  %v760 = vrcp.pop %v744
  %v761 = vrcp.pop %v745
  %v762 = vrcp.pop %v746
  %v763 = vrcp.pop %v747
  %v764 = vrcp.pop %v748
  %v765 = vrcp.pop %v749
  %v766 = vrcp.pop %v750
  %v767 = vrcp.pop %v751
  %v768 = vmul.f32 %v752, 1.0614054
  %v769 = vmul.f32 %v753, 1.0614054
  %v770 = vmul.f32 %v754, 1.0614054
  %v771 = vmul.f32 %v755, 1.0614054
  %v772 = vmul.f32 %v756, 1.0614054
  %v773 = vmul.f32 %v757, 1.0614054
  %v774 = vmul.f32 %v758, 1.0614054
  %v775 = vmul.f32 %v759, 1.0614054
  %v776 = vmul.f32 %v760, 1.0614054
  %v777 = vmul.f32 %v761, 1.0614054
  %v778 = vmul.f32 %v762, 1.0614054
  %v779 = vmul.f32 %v763, 1.0614054
  %v780 = vmul.f32 %v764, 1.0614054
  %v781 = vmul.f32 %v765, 1.0614054
  %v782 = vmul.f32 %v766, 1.0614054
  %v783 = vmul.f32 %v767, 1.0614054
  %v784 = vadd.f32 %v768, -1.4531521
  %v785 = vadd.f32 %v769, -1.4531521
  %v786 = vadd.f32 %v770, -1.4531521
  %v787 = vadd.f32 %v771, -1.4531521
  %v788 = vadd.f32 %v772, -1.4531521
  %v789 = vadd.f32 %v773, -1.4531521
  %v790 = vadd.f32 %v774, -1.4531521
  %v791 = vadd.f32 %v775, -1.4531521
  %v792 = vadd.f32 %v776, -1.4531521
  %v793 = vadd.f32 %v777, -1.4531521
  %v794 = vadd.f32 %v778, -1.4531521
  %v795 = vadd.f32 %v779, -1.4531521
  %v796 = vadd.f32 %v780, -1.4531521
  %v797 = vadd.f32 %v781, -1.4531521
  %v798 = vadd.f32 %v782, -1.4531521
  %v799 = vadd.f32 %v783, -1.4531521
  %v800 = vmul.f32 %v784, %v752
  %v801 = vmul.f32 %v785, %v753
  %v802 = vmul.f32 %v786, %v754
  %v803 = vmul.f32 %v787, %v755
  %v804 = vmul.f32 %v788, %v756
  %v805 = vmul.f32 %v789, %v757
  %v806 = vmul.f32 %v790, %v758
  %v807 = vmul.f32 %v791, %v759
  %v808 = vmul.f32 %v792, %v760
  %v809 = vmul.f32 %v793, %v761
  %v810 = vmul.f32 %v794, %v762
  %v811 = vmul.f32 %v795, %v763
  %v812 = vmul.f32 %v796, %v764
  %v813 = vmul.f32 %v797, %v765
  %v814 = vmul.f32 %v798, %v766
  %v815 = vmul.f32 %v799, %v767
  %v816 = vadd.f32 %v800, 1.4214138
  %v817 = vadd.f32 %v801, 1.4214138
  %v818 = vadd.f32 %v802, 1.4214138
  %v819 = vadd.f32 %v803, 1.4214138
  %v820 = vadd.f32 %v804, 1.4214138
  %v821 = vadd.f32 %v805, 1.4214138
  %v822 = vadd.f32 %v806, 1.4214138
  %v823 = vadd.f32 %v807, 1.4214138
  %v824 = vadd.f32 %v808, 1.4214138
  %v825 = vadd.f32 %v809, 1.4214138
  %v826 = vadd.f32 %v810, 1.4214138
  %v827 = vadd.f32 %v811, 1.4214138
  %v828 = vadd.f32 %v812, 1.4214138
  %v829 = vadd.f32 %v813, 1.4214138
  %v830 = vadd.f32 %v814, 1.4214138
  %v831 = vadd.f32 %v815, 1.4214138
  %v832 = vmul.f32 %v816, %v752
  %v833 = vmul.f32 %v817, %v753
  %v834 = vmul.f32 %v818, %v754
  %v835 = vmul.f32 %v819, %v755
  %v836 = vmul.f32 %v820, %v756
  %v837 = vmul.f32 %v821, %v757
  %v838 = vmul.f32 %v822, %v758
  %v839 = vmul.f32 %v823, %v759
  %v840 = vmul.f32 %v824, %v760
  %v841 = vmul.f32 %v825, %v761
  %v842 = vmul.f32 %v826, %v762
  %v843 = vmul.f32 %v827, %v763
  %v844 = vmul.f32 %v828, %v764
  %v845 = vmul.f32 %v829, %v765
  %v846 = vmul.f32 %v830, %v766
  %v847 = vmul.f32 %v831, %v767
  %v848 = vadd.f32 %v832, -0.28449672
  %v849 = vadd.f32 %v833, -0.28449672
  %v850 = vadd.f32 %v834, -0.28449672
  %v851 = vadd.f32 %v835, -0.28449672
  %v852 = vadd.f32 %v836, -0.28449672
  %v853 = vadd.f32 %v837, -0.28449672
  %v854 = vadd.f32 %v838, -0.28449672
  %v855 = vadd.f32 %v839, -0.28449672
  %v856 = vadd.f32 %v840, -0.28449672
  %v857 = vadd.f32 %v841, -0.28449672
  %v858 = vadd.f32 %v842, -0.28449672
  %v859 = vadd.f32 %v843, -0.28449672
  %v860 = vadd.f32 %v844, -0.28449672
  %v861 = vadd.f32 %v845, -0.28449672
  %v862 = vadd.f32 %v846, -0.28449672
  %v863 = vadd.f32 %v847, -0.28449672
  %v864 = vmul.f32 %v848, %v752
  %v865 = vmul.f32 %v849, %v753
  %v866 = vmul.f32 %v850, %v754
  %v867 = vmul.f32 %v851, %v755
  %v868 = vmul.f32 %v852, %v756
  %v869 = vmul.f32 %v853, %v757
  %v870 = vmul.f32 %v854, %v758
  %v871 = vmul.f32 %v855, %v759
  %v872 = vmul.f32 %v856, %v760
  %v873 = vmul.f32 %v857, %v761
  %v874 = vmul.f32 %v858, %v762
  %v875 = vmul.f32 %v859, %v763
  %v876 = vmul.f32 %v860, %v764
  %v877 = vmul.f32 %v861, %v765
  %v878 = vmul.f32 %v862, %v766
  %v879 = vmul.f32 %v863, %v767
  %v880 = vadd.f32 %v864, 0.2548296
  %v881 = vadd.f32 %v865, 0.2548296
  %v882 = vadd.f32 %v866, 0.2548296
  %v883 = vadd.f32 %v867, 0.2548296
  %v884 = vadd.f32 %v868, 0.2548296
  %v885 = vadd.f32 %v869, 0.2548296
  %v886 = vadd.f32 %v870, 0.2548296
  %v887 = vadd.f32 %v871, 0.2548296
  %v888 = vadd.f32 %v872, 0.2548296
  %v889 = vadd.f32 %v873, 0.2548296
  %v890 = vadd.f32 %v874, 0.2548296
  %v891 = vadd.f32 %v875, 0.2548296
  %v892 = vadd.f32 %v876, 0.2548296
  %v893 = vadd.f32 %v877, 0.2548296
  %v894 = vadd.f32 %v878, 0.2548296
  %v895 = vadd.f32 %v879, 0.2548296
  %v896 = vmul.f32 %v880, %v752
  %v897 = vmul.f32 %v881, %v753
  %v898 = vmul.f32 %v882, %v754
  %v899 = vmul.f32 %v883, %v755
  %v900 = vmul.f32 %v884, %v756
  %v901 = vmul.f32 %v885, %v757
  %v902 = vmul.f32 %v886, %v758
  %v903 = vmul.f32 %v887, %v759
  %v904 = vmul.f32 %v888, %v760
  %v905 = vmul.f32 %v889, %v761
  %v906 = vmul.f32 %v890, %v762
  %v907 = vmul.f32 %v891, %v763
  %v908 = vmul.f32 %v892, %v764
  %v909 = vmul.f32 %v893, %v765
  %v910 = vmul.f32 %v894, %v766
  %v911 = vmul.f32 %v895, %v767
  %v912 = vsub.f32 0.0, %v704
  %v913 = vsub.f32 0.0, %v705
  %v914 = vsub.f32 0.0, %v706
  %v915 = vsub.f32 0.0, %v707
  %v916 = vsub.f32 0.0, %v708
  %v917 = vsub.f32 0.0, %v709
  %v918 = vsub.f32 0.0, %v710
  %v919 = vsub.f32 0.0, %v711
  %v920 = vsub.f32 0.0, %v712
  %v921 = vsub.f32 0.0, %v713
  %v922 = vsub.f32 0.0, %v714
  %v923 = vsub.f32 0.0, %v715
  %v924 = vsub.f32 0.0, %v716
  %v925 = vsub.f32 0.0, %v717
  %v926 = vsub.f32 0.0, %v718
  %v927 = vsub.f32 0.0, %v719
  %v928 = vmul.f32 %v912, %v704
  %v929 = vmul.f32 %v913, %v705
  %v930 = vmul.f32 %v914, %v706
  %v931 = vmul.f32 %v915, %v707
  %v932 = vmul.f32 %v916, %v708
  %v933 = vmul.f32 %v917, %v709
  %v934 = vmul.f32 %v918, %v710
  %v935 = vmul.f32 %v919, %v711
  %v936 = vmul.f32 %v920, %v712
  %v937 = vmul.f32 %v921, %v713
  %v938 = vmul.f32 %v922, %v714
  %v939 = vmul.f32 %v923, %v715
  %v940 = vmul.f32 %v924, %v716
  %v941 = vmul.f32 %v925, %v717
  %v942 = vmul.f32 %v926, %v718
  %v943 = vmul.f32 %v927, %v719
  %v944 = vmul.f32 %v928, 1.442695
  %v945 = vpow.pop %v944
  %v946 = vmul.f32 %v929, 1.442695
  %v947 = vpow.pop %v946
  %v948 = vmul.f32 %v930, 1.442695
  %v949 = vpow.pop %v948
  %v950 = vmul.f32 %v931, 1.442695
  %v951 = vpow.pop %v950
  %v952 = vmul.f32 %v932, 1.442695
  %v953 = vpow.pop %v952
  %v954 = vmul.f32 %v933, 1.442695
  %v955 = vpow.pop %v954
  %v956 = vmul.f32 %v934, 1.442695
  %v957 = vpow.pop %v956
  %v958 = vmul.f32 %v935, 1.442695
  %v959 = vpow.pop %v958
  %v960 = vmul.f32 %v936, 1.442695
  %v961 = vpow.pop %v960
  %v962 = vmul.f32 %v937, 1.442695
  %v963 = vpow.pop %v962
  %v964 = vmul.f32 %v938, 1.442695
  %v965 = vpow.pop %v964
  %v966 = vmul.f32 %v939, 1.442695
  %v967 = vpow.pop %v966
  %v968 = vmul.f32 %v940, 1.442695
  %v969 = vpow.pop %v968
  %v970 = vmul.f32 %v941, 1.442695
  %v971 = vpow.pop %v970
  %v972 = vmul.f32 %v942, 1.442695
  %v973 = vpow.pop %v972
  %v974 = vmul.f32 %v943, 1.442695
  %v975 = vpow.pop %v974
  %v976 = vmul.f32 %v896, %v945
  %v977 = vmul.f32 %v897, %v947
  %v978 = vmul.f32 %v898, %v949
  %v979 = vmul.f32 %v899, %v951
  %v980 = vmul.f32 %v900, %v953
  %v981 = vmul.f32 %v901, %v955
  %v982 = vmul.f32 %v902, %v957
  %v983 = vmul.f32 %v903, %v959
  %v984 = vmul.f32 %v904, %v961
  %v985 = vmul.f32 %v905, %v963
  %v986 = vmul.f32 %v906, %v965
  %v987 = vmul.f32 %v907, %v967
  %v988 = vmul.f32 %v908, %v969
  %v989 = vmul.f32 %v909, %v971
  %v990 = vmul.f32 %v910, %v973
  %v991 = vmul.f32 %v911, %v975
  %v992 = vsub.f32 1.0, %v976
  %v993 = vsub.f32 1.0, %v977
  %v994 = vsub.f32 1.0, %v978
  %v995 = vsub.f32 1.0, %v979
  %v996 = vsub.f32 1.0, %v980
  %v997 = vsub.f32 1.0, %v981
  %v998 = vsub.f32 1.0, %v982
  %v999 = vsub.f32 1.0, %v983
  %v1000 = vsub.f32 1.0, %v984
  %v1001 = vsub.f32 1.0, %v985
  %v1002 = vsub.f32 1.0, %v986
  %v1003 = vsub.f32 1.0, %v987
  %v1004 = vsub.f32 1.0, %v988
  %v1005 = vsub.f32 1.0, %v989
  %v1006 = vsub.f32 1.0, %v990
  %v1007 = vsub.f32 1.0, %v991
  %v1008 = vmul.f32 %v688, %v992
  %v1009 = vmul.f32 %v689, %v993
  %v1010 = vmul.f32 %v690, %v994
  %v1011 = vmul.f32 %v691, %v995
  %v1012 = vmul.f32 %v692, %v996
  %v1013 = vmul.f32 %v693, %v997
  %v1014 = vmul.f32 %v694, %v998
  %v1015 = vmul.f32 %v695, %v999
  %v1016 = vmul.f32 %v696, %v1000
  %v1017 = vmul.f32 %v697, %v1001
  %v1018 = vmul.f32 %v698, %v1002
  %v1019 = vmul.f32 %v699, %v1003
  %v1020 = vmul.f32 %v700, %v1004
  %v1021 = vmul.f32 %v701, %v1005
  %v1022 = vmul.f32 %v702, %v1006
  %v1023 = vmul.f32 %v703, %v1007
  %v1024 = vadd.f32 %v1008, 1.0
  %v1025 = vadd.f32 %v1009, 1.0
  %v1026 = vadd.f32 %v1010, 1.0
  %v1027 = vadd.f32 %v1011, 1.0
  %v1028 = vadd.f32 %v1012, 1.0
  %v1029 = vadd.f32 %v1013, 1.0
  %v1030 = vadd.f32 %v1014, 1.0
  %v1031 = vadd.f32 %v1015, 1.0
  %v1032 = vadd.f32 %v1016, 1.0
  %v1033 = vadd.f32 %v1017, 1.0
  %v1034 = vadd.f32 %v1018, 1.0
  %v1035 = vadd.f32 %v1019, 1.0
  %v1036 = vadd.f32 %v1020, 1.0
  %v1037 = vadd.f32 %v1021, 1.0
  %v1038 = vadd.f32 %v1022, 1.0
  %v1039 = vadd.f32 %v1023, 1.0
  %v1040 = vmul.f32 %v640, %v1024
  %v1041 = vmul.f32 %v641, %v1025
  %v1042 = vmul.f32 %v642, %v1026
  %v1043 = vmul.f32 %v643, %v1027
  %v1044 = vmul.f32 %v644, %v1028
  %v1045 = vmul.f32 %v645, %v1029
  %v1046 = vmul.f32 %v646, %v1030
  %v1047 = vmul.f32 %v647, %v1031
  %v1048 = vmul.f32 %v648, %v1032
  %v1049 = vmul.f32 %v649, %v1033
  %v1050 = vmul.f32 %v650, %v1034
  %v1051 = vmul.f32 %v651, %v1035
  %v1052 = vmul.f32 %v652, %v1036
  %v1053 = vmul.f32 %v653, %v1037
  %v1054 = vmul.f32 %v654, %v1038
  %v1055 = vmul.f32 %v655, %v1039
  %v1056 = vpack.c.bf16 %v1040, %v1040
  %v1057 = vpack.c.bf16 %v1041, %v1041
  %v1058 = vpack.c.bf16 %v1042, %v1042
  %v1059 = vpack.c.bf16 %v1043, %v1043
  %v1060 = vpack.c.bf16 %v1044, %v1044
  %v1061 = vpack.c.bf16 %v1045, %v1045
  %v1062 = vpack.c.bf16 %v1046, %v1046
  %v1063 = vpack.c.bf16 %v1047, %v1047
  %v1064 = vpack.c.bf16 %v1048, %v1048
  %v1065 = vpack.c.bf16 %v1049, %v1049
  %v1066 = vpack.c.bf16 %v1050, %v1050
  %v1067 = vpack.c.bf16 %v1051, %v1051
  %v1068 = vpack.c.bf16 %v1052, %v1052
  %v1069 = vpack.c.bf16 %v1053, %v1053
  %v1070 = vpack.c.bf16 %v1054, %v1054
  %v1071 = vpack.c.bf16 %v1055, %v1055
  %1072 = vst [vmem:[%s5] sm:$0xf] %v1056
  %1073 = vst [vmem:[%s5 + $0x4] sm:$0xf] %v1057
  %1074 = vst [vmem:[%s5 + $0x8] sm:$0xf] %v1058
  %1075 = vst [vmem:[%s5 + $0xc] sm:$0xf] %v1059
  %1076 = vst [vmem:[%s5 + $0x10] sm:$0xf] %v1060
  %1077 = vst [vmem:[%s5 + $0x14] sm:$0xf] %v1061
  %1078 = vst [vmem:[%s5 + $0x18] sm:$0xf] %v1062
  %1079 = vst [vmem:[%s5 + $0x1c] sm:$0xf] %v1063
  %1080 = vst [vmem:[%s5 + $0x20] sm:$0xf] %v1064
  %1081 = vst [vmem:[%s5 + $0x24] sm:$0xf] %v1065
  %1082 = vst [vmem:[%s5 + $0x28] sm:$0xf] %v1066
  %1083 = vst [vmem:[%s5 + $0x2c] sm:$0xf] %v1067
  %1084 = vst [vmem:[%s5 + $0x30] sm:$0xf] %v1068
  %1085 = vst [vmem:[%s5 + $0x34] sm:$0xf] %v1069
  %1086 = vst [vmem:[%s5 + $0x38] sm:$0xf] %v1070
  %1087 = vst [vmem:[%s5 + $0x3c] sm:$0xf] %v1071
  // Predicated region
  $region26: #{_lambda_.19} parent=0 // pred_check
    _
  $region27: #{_lambda_.19} parent=0 // pred_check_branch
    %1089 = sbr.rel (0) target = $region29
  $region28: #{_lambda_.19} parent=0 // pred_region
    _
  $region29: #{_lambda_.19} parent=0 // pred_fallthru
    _
  // Predicated region
  $region30: #{_lambda_.19} parent=0 // pred_check
    _
  $region31: #{_lambda_.19} parent=0 // pred_check_branch
    %1091 = sbr.rel (0) target = $region33
  $region32: #{_lambda_.19} parent=0 // pred_region
    _
  $region33: #{_lambda_.19} parent=0 // pred_fallthru
    _

// kernel: _lambda_.21
$region0: #{_lambda_.21}
  #allocation0 [shape = 'u32[]', space=smem, size = 0x4, offset = 0x4, fixed_abs, tag = 'smem constant byte address 0x4 - core index']
  #allocation1 [shape = 'u32[72,128]{1,0:T(1,128)}', space=vmem, size = 0x9000, scoped, tag = 'internal scratch']
  %s0 = inlined_call_operand.vmem [shape: bf16[32,288], index: 0, kind: input, shape index: {}]
  %s1 = inlined_call_operand.vmem [shape: bf16[288,64], index: 1, kind: input, shape index: {}]
  %s2 = inlined_call_operand.vmem [shape: f32[1,64], index: 2, kind: input, shape index: {}, may-alias: {2,4}]
  %s3 = inlined_call_operand.vmem [shape: f32[1,64], index: 3, kind: input, shape index: {}]
  %s4 = inlined_call_operand.vmem [shape: f32[1,64], index: 4, kind: input, shape index: {}, may-alias: {2,4}]
  %s5 = inlined_call_operand.hbm [shape: f32[32,64], index: 5, kind: output, shape index: {}]
  %s6 = sld [smem:[#allocation0]]
  $region30: #{_lambda_.21} parent=0
    _
  %s8 = ssub.s32 1, %s6
  %s9 = scalar_select 0, %s8, %s6
  $region1: #{_lambda_.21} parent=0
    #allocation2 [shape = 'u8[16384]{0}', space=vmem, size = 0x4000, scoped, tag = 'output window, operand 0, single buffered']
    #allocation3 [shape = 's32[1]{0}', space=sflag, size = 0x4, scoped, tag = 'scoped memory for _lambda_.21']
    %10 = vsyncpa [#allocation3], 0
    // Predicated region
    $region2: #{_lambda_.21} parent=1 // pred_check
      _
    $region3: #{_lambda_.21} parent=1 // pred_check_branch
      %12 = sbr.rel (0) target = $region5
    $region4: #{_lambda_.21} parent=1 // pred_region
      _
    $region5: #{_lambda_.21} parent=1 // pred_fallthru
      _
    // Predicated region
    $region6: #{_lambda_.21} parent=1 // pred_check
      _
    $region7: #{_lambda_.21} parent=1 // pred_check_branch
      %14 = sbr.rel (0) target = $region9
    $region8: #{_lambda_.21} parent=1 // pred_region
      _
    $region9: #{_lambda_.21} parent=1 // pred_fallthru
      _
    // Predicated region
    $region10: #{_lambda_.21} parent=1 // pred_check
      _
    $region11: #{_lambda_.21} parent=1 // pred_check_branch
      %16 = sbr.rel (0) target = $region13
    $region12: #{_lambda_.21} parent=1 // pred_region
      _
    $region13: #{_lambda_.21} parent=1 // pred_fallthru
      _
    // Predicated region
    $region14: #{_lambda_.21} parent=1 // pred_check
      _
    $region15: #{_lambda_.21} parent=1 // pred_check_branch
      %18 = sbr.rel (0) target = $region17
    $region16: #{_lambda_.21} parent=1 // pred_region
      _
    $region17: #{_lambda_.21} parent=1 // pred_fallthru
      _
    // Predicated region
    $region18: #{_lambda_.21} parent=1 // pred_check
      _
    $region19: #{_lambda_.21} parent=1 // pred_check_branch
      %20 = sbr.rel (0) target = $region21
    $region20: #{_lambda_.21} parent=1 // pred_region
      _
    $region21: #{_lambda_.21} parent=1 // pred_fallthru
      _
    %v22 = vld [vmem:[%s0] sm:$0xff]
    %v23 = vld [vmem:[%s0 + $0x8] sm:$0xf]
    %v24 = vld [vmem:[%s0 + $0xc] sm:$0xff]
    %v25 = vld [vmem:[%s0 + $0x14] sm:$0xf]
    %v26 = vld [vmem:[%s0 + $0x18] sm:$0xff]
    %v27 = vld [vmem:[%s0 + $0x20] sm:$0xf]
    %v28 = vld [vmem:[%s0 + $0x24] sm:$0xff]
    %v29 = vld [vmem:[%s0 + $0x2c] sm:$0xf]
    %v30 = vld [vmem:[%s1] sm:$0xf]
    %v31 = vld [vmem:[%s1 + $0x4] sm:$0xf]
    %v32 = vld [vmem:[%s1 + $0x8] sm:$0xf]
    %v33 = vld [vmem:[%s1 + $0xc] sm:$0xf]
    %v34 = vld [vmem:[%s1 + $0x10] sm:$0xf]
    %v35 = vld [vmem:[%s1 + $0x14] sm:$0xf]
    %v36 = vld [vmem:[%s1 + $0x18] sm:$0xf]
    %v37 = vld [vmem:[%s1 + $0x1c] sm:$0xf]
    %v38 = vld [vmem:[%s1 + $0x20] sm:$0xf]
    %v39 = vld [vmem:[%s1 + $0x24] sm:$0xf]
    %v40 = vld [vmem:[%s1 + $0x28] sm:$0xf]
    %v41 = vld [vmem:[%s1 + $0x2c] sm:$0xf]
    %v42 = vld [vmem:[%s1 + $0x30] sm:$0xf]
    %v43 = vld [vmem:[%s1 + $0x34] sm:$0xf]
    %v44 = vld [vmem:[%s1 + $0x38] sm:$0xf]
    %v45 = vld [vmem:[%s1 + $0x3c] sm:$0xf]
    %v46 = vld [vmem:[%s1 + $0x40] sm:$0xf]
    %v47 = vld [vmem:[%s1 + $0x44] sm:$0xf]
    %v48 = vld [vmem:[%s1 + $0x48] sm:$0xf]
    %v49 = vld [vmem:[%s1 + $0x4c] sm:$0xf]
    %v50 = vld [vmem:[%s1 + $0x50] sm:$0xf]
    %v51 = vld [vmem:[%s1 + $0x54] sm:$0xf]
    %v52 = vld [vmem:[%s1 + $0x58] sm:$0xf]
    %v53 = vld [vmem:[%s1 + $0x5c] sm:$0xf]
    %v54 = vld [vmem:[%s1 + $0x60] sm:$0xf]
    %v55 = vld [vmem:[%s1 + $0x64] sm:$0xf]
    %v56 = vld [vmem:[%s1 + $0x68] sm:$0xf]
    %v57 = vld [vmem:[%s1 + $0x6c] sm:$0xf]
    %v58 = vld [vmem:[%s1 + $0x70] sm:$0xf]
    %v59 = vld [vmem:[%s1 + $0x74] sm:$0xf]
    %v60 = vld [vmem:[%s1 + $0x78] sm:$0xf]
    %v61 = vld [vmem:[%s1 + $0x7c] sm:$0xf]
    %v62 = vld [vmem:[%s1 + $0x80] sm:$0xf]
    %v63 = vld [vmem:[%s1 + $0x84] sm:$0xf]
    %v64 = vld [vmem:[%s1 + $0x88] sm:$0xf]
    %v65 = vld [vmem:[%s1 + $0x8c] sm:$0xf]
    %v66 = vld [vmem:[%s2] sm:$0x1]
    %v68 = vperm.slane %v66, 0
    %v78 = vunpack.c.l.b16 %v22
    %v79 = vunpack.c.h.b16 %v22
    %v80 = vunpack.c.l.b16 %v23
    %v81 = vunpack.c.l.b16 %v24
    %v82 = vunpack.c.h.b16 %v24
    %v83 = vunpack.c.l.b16 %v25
    %v84 = vunpack.c.l.b16 %v26
    %v85 = vunpack.c.h.b16 %v26
    %v86 = vunpack.c.l.b16 %v27
    %v87 = vunpack.c.l.b16 %v28
    %v88 = vunpack.c.h.b16 %v28
    %v89 = vunpack.c.l.b16 %v29
    %v90 = vpack.c.b16 %v81, %v78
    %v91 = vpack.c.b16 %v82, %v79
    %v92 = vpack.c.b16 %v83, %v80
    %v93 = vpack.c.b16 %v87, %v84
    %v94 = vpack.c.b16 %v88, %v85
    %v95 = vpack.c.b16 %v89, %v86
    %v136 = vunpack.c.l.b16 %v30
    %v137 = vunpack.c.l.b16 %v31
    %v138 = vunpack.c.l.b16 %v32
    %v139 = vunpack.c.l.b16 %v33
    %v140 = vunpack.c.l.b16 %v34
    %v141 = vunpack.c.l.b16 %v35
    %v142 = vunpack.c.l.b16 %v36
    %v143 = vunpack.c.l.b16 %v37
    %v144 = vunpack.c.l.b16 %v38
    %v145 = vunpack.c.l.b16 %v39
    %v146 = vunpack.c.l.b16 %v40
    %v147 = vunpack.c.l.b16 %v41
    %v148 = vunpack.c.l.b16 %v42
    %v149 = vunpack.c.l.b16 %v43
    %v150 = vunpack.c.l.b16 %v44
    %v151 = vunpack.c.l.b16 %v45
    %v152 = vunpack.c.l.b16 %v46
    %v153 = vunpack.c.l.b16 %v47
    %v154 = vunpack.c.l.b16 %v48
    %v155 = vunpack.c.l.b16 %v49
    %v156 = vunpack.c.l.b16 %v50
    %v157 = vunpack.c.l.b16 %v51
    %v158 = vunpack.c.l.b16 %v52
    %v159 = vunpack.c.l.b16 %v53
    %v160 = vunpack.c.l.b16 %v54
    %v161 = vunpack.c.l.b16 %v55
    %v162 = vunpack.c.l.b16 %v56
    %v163 = vunpack.c.l.b16 %v57
    %v164 = vunpack.c.l.b16 %v58
    %v165 = vunpack.c.l.b16 %v59
    %v166 = vunpack.c.l.b16 %v60
    %v167 = vunpack.c.l.b16 %v61
    %v168 = vunpack.c.l.b16 %v62
    %v169 = vunpack.c.l.b16 %v63
    %v170 = vunpack.c.l.b16 %v64
    %v171 = vunpack.c.l.b16 %v65
    %v172 = vpack.c.b16 %v137, %v136
    %v173 = vpack.c.b16 %v139, %v138
    %v174 = vpack.c.b16 %v141, %v140
    %v175 = vpack.c.b16 %v143, %v142
    %v176 = vpack.c.b16 %v145, %v144
    %v177 = vpack.c.b16 %v147, %v146
    %v178 = vpack.c.b16 %v149, %v148
    %v179 = vpack.c.b16 %v151, %v150
    %v180 = vpack.c.b16 %v153, %v152
    %v181 = vpack.c.b16 %v155, %v154
    %v182 = vpack.c.b16 %v157, %v156
    %v183 = vpack.c.b16 %v159, %v158
    %v184 = vpack.c.b16 %v161, %v160
    %v185 = vpack.c.b16 %v163, %v162
    %v186 = vpack.c.b16 %v165, %v164
    %v187 = vpack.c.b16 %v167, %v166
    %v188 = vpack.c.b16 %v169, %v168
    %v189 = vpack.c.b16 %v171, %v170
    %vm208 = vcmask 261120
    %v210 = vsel %vm208, %v92, 0
    %v213 = vsel %vm208, %v95, 0
    %215 = vmatpush.bf16.msra.mxu0 %v179
    %216 = vmatpush.bf16.msra.mxu0 %v178
    %217 = vmatpush.bf16.msra.mxu0 %v177
    %218 = vmatpush.bf16.msra.mxu0 %v176
    %219 = vmatpush.bf16.msra.mxu0 %v175
    %220 = vmatpush.bf16.msra.mxu0 %v174
    %221 = vmatpush.bf16.msra.mxu0 %v173
    %222 = vmatpush.bf16.msra.mxu0 %v172
    %223 = vmatmul.bf16.gmra.mxu0 %v90
    %v224 = vpop.f32.mrf.mxu0
    %v225 = vadd.f32 %v68, %v224
    %v226 = vpop.f32.mrf.mxu0
    %v227 = vadd.f32 %v68, %v226
    %228 = vmatmul.bf16.gmra.mxu0 %v93
    %v229 = vpop.f32.mrf.mxu0
    %v230 = vadd.f32 %v68, %v229
    %v231 = vpop.f32.mrf.mxu0
    %v232 = vadd.f32 %v68, %v231
    %233 = vdwg.mxu0
    %234 = vmatpush.bf16.msra.mxu0 %v187
    %235 = vmatpush.bf16.msra.mxu0 %v186
    %236 = vmatpush.bf16.msra.mxu0 %v185
    %237 = vmatpush.bf16.msra.mxu0 %v184
    %238 = vmatpush.bf16.msra.mxu0 %v183
    %239 = vmatpush.bf16.msra.mxu0 %v182
    %240 = vmatpush.bf16.msra.mxu0 %v181
    %241 = vmatpush.bf16.msra.mxu0 %v180
    %242 = vmatmul.bf16.gmra.mxu0 %v91
    %v243 = vpop.f32.mrf.mxu0
    %v244 = vadd.f32 %v225, %v243
    %v245 = vpop.f32.mrf.mxu0
    %v246 = vadd.f32 %v227, %v245
    %247 = vmatmul.bf16.gmra.mxu0 %v94
    %v248 = vpop.f32.mrf.mxu0
    %v249 = vadd.f32 %v230, %v248
    %v250 = vpop.f32.mrf.mxu0
    %v251 = vadd.f32 %v232, %v250
    %252 = vdwg.mxu0
    %253 = vmatpush.bf16.msra.mxu0 0
    %254 = vmatpush.bf16.msra.mxu0 0
    %255 = vmatpush.bf16.msra.mxu0 0
    %256 = vmatpush.bf16.msra.mxu0 0
    %257 = vmatpush.bf16.msra.mxu0 0
    %258 = vmatpush.bf16.msra.mxu0 0
    %259 = vmatpush.bf16.msra.mxu0 %v189
    %260 = vmatpush.bf16.msra.mxu0 %v188
    %261 = vmatmul.bf16.gmra.mxu0 %v210
    %v262 = vpop.f32.mrf.mxu0
    %v263 = vadd.f32 %v244, %v262
    %v264 = vpop.f32.mrf.mxu0
    %v265 = vadd.f32 %v246, %v264
    %266 = vmatmul.bf16.gmra.mxu0 %v213
    %v267 = vpop.f32.mrf.mxu0
    %v268 = vadd.f32 %v249, %v267
    %v269 = vpop.f32.mrf.mxu0
    %v270 = vadd.f32 %v251, %v269
    %271 = vdwg.mxu0
    %vm272 = vcmask 523264
    %v273 = vsel %vm272, %v263, 0.0
    %274 = vadd.xlane.f32.xlu0 %v273
    %v275 = vpop.xlane.xlu0 %274
    %v276 = vsel %vm272, %v265, 0.0
    %277 = vadd.xlane.f32.xlu0 %v276
    %v278 = vpop.xlane.xlu0 %277
    %v279 = vsel %vm272, %v268, 0.0
    %280 = vadd.xlane.f32.xlu0 %v279
    %v281 = vpop.xlane.xlu0 %280
    %v282 = vsel %vm272, %v270, 0.0
    %283 = vadd.xlane.f32.xlu0 %v282
    %v284 = vpop.xlane.xlu0 %283
    %v285 = vrcp.pop 64.0
    %v286 = vmul.f32 64.0, %v285
    %v287 = vsub.f32 1.0, %v286
    %v288 = vmul.f32 %v285, %v287
    %v289 = vadd.f32 %v285, %v288
    %vm290 = vweird.f32 %v285
    %v291 = vsel %vm290, %v285, %v289
    %v292 = vmul.f32 %v275, %v291
    %v293 = vmul.f32 %v278, %v291
    %v294 = vmul.f32 %v281, %v291
    %v295 = vmul.f32 %v284, %v291
    %v296 = vsub.f32 %v263, %v292
    %v297 = vsub.f32 %v265, %v293
    %v298 = vsub.f32 %v268, %v294
    %v299 = vsub.f32 %v270, %v295
    %v300 = vmul.f32 %v296, %v296
    %v301 = vmul.f32 %v297, %v297
    %v302 = vmul.f32 %v298, %v298
    %v303 = vmul.f32 %v299, %v299
    %v304 = vsel %vm272, %v300, 0.0
    %305 = vadd.xlane.f32.xlu0 %v304
    %v306 = vpop.xlane.xlu0 %305
    %v307 = vsel %vm272, %v301, 0.0
    %308 = vadd.xlane.f32.xlu0 %v307
    %v309 = vpop.xlane.xlu0 %308
    %v310 = vsel %vm272, %v302, 0.0
    %311 = vadd.xlane.f32.xlu0 %v310
    %v312 = vpop.xlane.xlu0 %311
    %v313 = vsel %vm272, %v303, 0.0
    %314 = vadd.xlane.f32.xlu0 %v313
    %v315 = vpop.xlane.xlu0 %314
    %v316 = vmul.f32 %v306, %v291
    %v317 = vmul.f32 %v309, %v291
    %v318 = vmul.f32 %v312, %v291
    %v319 = vmul.f32 %v315, %v291
    %v320 = vadd.f32 %v316, 1e-05
    %v321 = vadd.f32 %v317, 1e-05
    %v322 = vadd.f32 %v318, 1e-05
    %v323 = vadd.f32 %v319, 1e-05
    %v324 = vrsqrt.pop %v320
    %v325 = vmul.f32 %v324, %v320
    %v326 = vmul.f32 %v325, %v324
    %v327 = vmul.f32 0.5, %v326
    %v328 = vsub.f32 1.5, %v327
    %v329 = vmul.f32 %v324, %v328
    %vm330 = vweird.f32 %v320
    %vm331 = vweird.f32 %v324
    %vm332 = vmor %vm330, %vm331
    %v333 = vsel %vm332, %v324, %v329
    %v334 = vrsqrt.pop %v321
    %v335 = vmul.f32 %v334, %v321
    %v336 = vmul.f32 %v335, %v334
    %v337 = vmul.f32 0.5, %v336
    %v338 = vsub.f32 1.5, %v337
    %v339 = vmul.f32 %v334, %v338
    %vm340 = vweird.f32 %v321
    %vm341 = vweird.f32 %v334
    %vm342 = vmor %vm340, %vm341
    %v343 = vsel %vm342, %v334, %v339
    %v344 = vrsqrt.pop %v322
    %v345 = vmul.f32 %v344, %v322
    %v346 = vmul.f32 %v345, %v344
    %v347 = vmul.f32 0.5, %v346
    %v348 = vsub.f32 1.5, %v347
    %v349 = vmul.f32 %v344, %v348
    %vm350 = vweird.f32 %v322
    %vm351 = vweird.f32 %v344
    %vm352 = vmor %vm350, %vm351
    %v353 = vsel %vm352, %v344, %v349
    %v354 = vrsqrt.pop %v323
    %v355 = vmul.f32 %v354, %v323
    %v356 = vmul.f32 %v355, %v354
    %v357 = vmul.f32 0.5, %v356
    %v358 = vsub.f32 1.5, %v357
    %v359 = vmul.f32 %v354, %v358
    %vm360 = vweird.f32 %v323
    %vm361 = vweird.f32 %v354
    %vm362 = vmor %vm360, %vm361
    %v363 = vsel %vm362, %v354, %v359
    %v364 = vmul.f32 %v296, %v333
    %v365 = vmul.f32 %v297, %v343
    %v366 = vmul.f32 %v298, %v353
    %v367 = vmul.f32 %v299, %v363
    %v368 = vld [vmem:[%s3] sm:$0x1]
    %v370 = vperm.slane %v368, 0
    %v372 = vmul.f32 %v364, %v370
    %v373 = vmul.f32 %v365, %v370
    %v374 = vmul.f32 %v366, %v370
    %v375 = vmul.f32 %v367, %v370
    %v376 = vld [vmem:[%s4] sm:$0x1]
    %v378 = vperm.slane %v376, 0
    %v380 = vadd.f32 %v372, %v378
    %v381 = vadd.f32 %v373, %v378
    %v382 = vadd.f32 %v374, %v378
    %v383 = vadd.f32 %v375, %v378
    %384 = vst.msk [vmem:[#allocation2] sm:$0xff] %vm272, %v380
    %385 = vst.msk [vmem:[#allocation2 + $0x8] sm:$0xff] %vm272, %v381
    %386 = vst.msk [vmem:[#allocation2 + $0x10] sm:$0xff] %vm272, %v382
    %387 = vst.msk [vmem:[#allocation2 + $0x18] sm:$0xff] %vm272, %v383
    // Predicated region
    $region22: #{_lambda_.21} parent=1 // pred_check
      _
    $region23: #{_lambda_.21} parent=1 // pred_check_branch
      %389 = sbr.rel (0) target = $region25
    $region24: #{_lambda_.21} parent=1 // pred_region
      %391 = vsyncadd [#allocation3], 0
      %s392 = sshll.u32 [#allocation2], 4
      %s393 = int_to_ptr.vmem [resolvable:$true] %s392
      %s394 = sshll.u32 %s5, 4
      %s395 = int_to_ptr.hbm [resolvable:$true] %s394
      %400 = dma.vmem_to_hbm [thread:$0]  %s393, 512, %s395, [#allocation3], 128, 128, 8
    $region25: #{_lambda_.21} parent=1 // pred_fallthru
      _
    // Predicated region
    $region26: #{_lambda_.21} parent=1 // pred_check
      _
    $region27: #{_lambda_.21} parent=1 // pred_check_branch
      %402 = sbr.rel (0) target = $region29
    $region28: #{_lambda_.21} parent=1 // pred_region
      %404 = dma.done [#allocation3], 512
    $region29: #{_lambda_.21} parent=1 // pred_fallthru
      _
    %405 = vsyncpa [#allocation3], 1

</llo_original>
